<compile_context>
chip_gen: v5e
topology: v5e:2x2
jax: 0.10.0
libtpu: 0.0.40
codegen_flags: <defaults>
</compile_context>

<pallas_src>
import numpy as np

import jax
import jax.numpy as jnp
from jax.experimental import pallas as pl
from jax.experimental.pallas import tpu as pltpu


# ---------------------------------------------------------------------------
# Constant 0/1 selection matrices (built once on host, live in VMEM)
# ---------------------------------------------------------------------------
def _shift_matrices(h, w):
    """P[t] (t = kh*3+kw), shape (h*w, h*w): (P[t] @ x)[i*w+j] = x[(i+kh-1)*w + (j+kw-1)]
    when in bounds, else 0 (i.e. 'same' zero padding)."""
    n = h * w
    P = np.zeros((9, n, n), np.float32)
    for kh in range(3):
        for kw in range(3):
            t = kh * 3 + kw
            for i in range(h):
                si = i + kh - 1
                if not (0 <= si < h):
                    continue
                for j in range(w):
                    sj = j + kw - 1
                    if not (0 <= sj < w):
                        continue
                    P[t, i * w + j, si * w + sj] = 1.0
    return P


def _pool_matrices(h, w):
    """S[k], k over the 4 corners of a 2x2 window, shape (h//2*w//2, h*w):
    pooled = max_k (S[k] @ y) implements MaxPool2d(2, 2)."""
    ho, wo = h // 2, w // 2
    S = np.zeros((4, ho * wo, h * w), np.float32)
    for k, (di, dj) in enumerate([(0, 0), (0, 1), (1, 0), (1, 1)]):
        for i in range(ho):
            for j in range(wo):
                S[k, i * wo + j, (2 * i + di) * w + (2 * j + dj)] = 1.0
    return S


def build_selection_constants():
    return {
        "P1": jnp.asarray(_shift_matrices(14, 14)),  # (9, 196, 196) f32
        "SP": jnp.asarray(_pool_matrices(14, 14)),   # (4,  49, 196) f32
        "P2": jnp.asarray(_shift_matrices(7, 7)),    # (9,  49,  49) f32
    }


def _round_up(x, m):
    return ((x + m - 1) // m) * m


# ---------------------------------------------------------------------------
# Kernel 1: conv1 + ReLU + maxpool + conv2 + ReLU + conv3 + ReLU  (per image)
# ---------------------------------------------------------------------------
def _conv_stack_kernel(x_ref, p1_ref, sp_ref, p2_ref,
                       w1_ref, b1_ref, w2_ref, b2_ref, w3_ref, b3_ref,
                       o_ref):
    f32, bf16 = jnp.float32, jnp.bfloat16
    x = x_ref[0]                                      # (196, 1) f32, flattened 14x14, Cin=1

    # conv1 (1->32) + ReLU:  sum_t P1[t] @ (x * w1[t])
    acc = jnp.zeros((196, 32), f32)
    for t in range(9):
        xt = x * w1_ref[t:t + 1, :]                   # (196,1)*(1,32) -> (196,32)  (f32 VPU)
        acc = acc + jnp.dot(p1_ref[t], xt, preferred_element_type=f32)
    y1 = jnp.maximum(acc + b1_ref[...], 0.0)          # (196, 32)

    # 2x2 stride-2 max pool: exact row-selection matmuls, max of the 4 corners
    pooled = jnp.dot(sp_ref[0], y1, preferred_element_type=f32)       # (49, 32)
    for k in range(1, 4):
        pooled = jnp.maximum(pooled,
                             jnp.dot(sp_ref[k], y1, preferred_element_type=f32))

    # conv2 (32->64) + ReLU:  sum_t P2[t] @ (pooled @ w2[t])   (bf16 MXU, f32 acc)
    pooled_bf = pooled.astype(bf16)
    acc = jnp.zeros((49, 64), f32)
    for t in range(9):
        z = jnp.dot(pooled_bf, w2_ref[t], preferred_element_type=f32)  # (49, 64)
        acc = acc + jnp.dot(p2_ref[t], z, preferred_element_type=f32)
    y2 = jnp.maximum(acc + b2_ref[...], 0.0)

    # conv3 (64->128) + ReLU
    y2_bf = y2.astype(bf16)
    acc = jnp.zeros((49, 128), f32)
    for t in range(9):
        z = jnp.dot(y2_bf, w3_ref[t], preferred_element_type=f32)      # (49, 128)
        acc = acc + jnp.dot(p2_ref[t], z, preferred_element_type=f32)
    y3 = jnp.maximum(acc + b3_ref[...], 0.0)

    o_ref[0] = y3.astype(o_ref.dtype)                  # (49, 128) bf16, lane-dense store


# ---------------------------------------------------------------------------
# Kernel 2: fc1 -> fc2 -> fc3 -> fc4 (fc4 padded to 128 lanes)
# ---------------------------------------------------------------------------
def _fc_stack_kernel(x_ref, w1_ref, b1_ref, w2_ref, b2_ref,
                     w3_ref, b3_ref, w4_ref, b4_ref, o_ref):
    f32, bf16 = jnp.float32, jnp.bfloat16
    h = jnp.dot(x_ref[...], w1_ref[...], preferred_element_type=f32) + b1_ref[...]
    h = jnp.maximum(h, 0.0)
    h = jnp.dot(h.astype(bf16), w2_ref[...], preferred_element_type=f32) + b2_ref[...]
    h = jnp.maximum(h, 0.0)
    h = jnp.dot(h.astype(bf16), w3_ref[...], preferred_element_type=f32) + b3_ref[...]
    h = jnp.maximum(h, 0.0)
    h = jnp.dot(h.astype(bf16), w4_ref[...], preferred_element_type=f32) + b4_ref[...]
    o_ref[...] = h                                      # (TBF, 128) f32, lane-dense


# ---------------------------------------------------------------------------
# Parameter init (synthetic; torch layouts generated then permuted ONCE)
# ---------------------------------------------------------------------------
def init_params(key):
    ks = jax.random.split(key, 14)
    f32, bf16 = jnp.float32, jnp.bfloat16

    def conv_torch(k, cout, cin):                       # torch Conv2d weight (Cout,Cin,3,3)
        return 0.05 * jax.random.normal(k, (cout, cin, 3, 3), f32)

    def fc_torch(k, fout, fin):                         # torch Linear weight (out,in)
        return 0.05 * jax.random.normal(k, (fout, fin), f32)

    def conv_to_kernel(w):                              # (Cout,Cin,3,3) -> (9, Cin, Cout)
        return jnp.transpose(w, (2, 3, 1, 0)).reshape(9, w.shape[1], w.shape[0])

    c1 = conv_torch(ks[0], 32, 1)
    c2 = conv_torch(ks[2], 64, 32)
    c3 = conv_torch(ks[4], 128, 64)
    f1 = fc_torch(ks[6], 128, 128 * 7 * 7)
    f2 = fc_torch(ks[8], 64, 128)
    f3 = fc_torch(ks[10], 32, 64)
    f4 = fc_torch(ks[12], 10, 32)

    # fc1: torch flattens conv features in (c, h, w) order; the conv kernel emits
    # (h, w, c).  Permute fc1's input rows once here -> no runtime transpose.
    f1w = jnp.transpose(f1.reshape(128, 128, 7, 7), (2, 3, 1, 0)).reshape(7 * 7 * 128, 128)

    # fc4: pad 10 output columns to 128 so the final store is lane-dense.
    f4w = jnp.zeros((32, 128), f32).at[:, :10].set(f4.T)
    f4b = jnp.zeros((1, 128), f32).at[:, :10].set(0.01 * jax.random.normal(ks[13], (10,), f32))

    return {
        "c1w": conv_to_kernel(c1).reshape(9, 32),                       # f32 (VPU path)
        "c1b": 0.01 * jax.random.normal(ks[1], (1, 32), f32),
        "c2w": conv_to_kernel(c2).astype(bf16),                         # (9, 32, 64)
        "c2b": 0.01 * jax.random.normal(ks[3], (1, 64), f32),
        "c3w": conv_to_kernel(c3).astype(bf16),                         # (9, 64, 128)
        "c3b": 0.01 * jax.random.normal(ks[5], (1, 128), f32),
        "f1w": f1w.astype(bf16),                                        # (6272, 128)
        "f1b": 0.01 * jax.random.normal(ks[7], (1, 128), f32),
        "f2w": f2.T.astype(bf16),                                       # (128, 64)
        "f2b": 0.01 * jax.random.normal(ks[9], (1, 64), f32),
        "f3w": f3.T.astype(bf16),                                       # (64, 32)
        "f3b": 0.01 * jax.random.normal(ks[11], (1, 32), f32),
        "f4w": f4w.astype(bf16),                                        # (32, 128)
        "f4b": f4b,                                                     # (1, 128) f32
    }


# ---------------------------------------------------------------------------
# Forward pass (mirrors CNNClassifier.forward)
# ---------------------------------------------------------------------------
def cnn_classifier_forward(x_nchw, p, consts):
    B = x_nchw.shape[0]
    x = x_nchw.reshape(B, 14 * 14, 1)                   # Cin=1: free reshape, row-major (h, w)

    # ---- fused conv stack: one grid step per image, "parallel" over batch ----
    y3 = pl.pallas_call(
        _conv_stack_kernel,
        out_shape=jax.ShapeDtypeStruct((B, 49, 128), jnp.bfloat16),
        grid=(B,),
        in_specs=[
            pl.BlockSpec((1, 196, 1), lambda b: (b, 0, 0)),      # image
            pl.BlockSpec((9, 196, 196), lambda b: (0, 0, 0)),    # conv1 shift matrices
            pl.BlockSpec((4, 49, 196), lambda b: (0, 0, 0)),     # pool selection matrices
            pl.BlockSpec((9, 49, 49), lambda b: (0, 0, 0)),      # conv2/3 shift matrices
            pl.BlockSpec((9, 32), lambda b: (0, 0)),             # conv1 weight
            pl.BlockSpec((1, 32), lambda b: (0, 0)),
            pl.BlockSpec((9, 32, 64), lambda b: (0, 0, 0)),      # conv2 weight (bf16)
            pl.BlockSpec((1, 64), lambda b: (0, 0)),
            pl.BlockSpec((9, 64, 128), lambda b: (0, 0, 0)),     # conv3 weight (bf16)
            pl.BlockSpec((1, 128), lambda b: (0, 0)),
        ],
        out_specs=pl.BlockSpec((1, 49, 128), lambda b: (b, 0, 0)),
        compiler_params=pltpu.CompilerParams(dimension_semantics=("parallel",)),
    )(x, consts["P1"], consts["SP"], consts["P2"],
      p["c1w"], p["c1b"], p["c2w"], p["c2b"], p["c3w"], p["c3b"])

    # (B, 49, 128) -> (B, 6272): contiguous (h, w, c) flatten, matches permuted f1w rows.
    feats = y3.reshape(B, 49 * 128)

    # ---- fused fc stack: tile rows over (padded) batch, weights resident in VMEM ----
    b8 = _round_up(B, 8)
    tbf = min(256, b8)
    b_pad = _round_up(b8, tbf)
    if b_pad != B:
        feats = jnp.pad(feats, ((0, b_pad - B), (0, 0)))

    out = pl.pallas_call(
        _fc_stack_kernel,
        out_shape=jax.ShapeDtypeStruct((b_pad, 128), jnp.float32),
        grid=(b_pad // tbf,),
        in_specs=[
            pl.BlockSpec((tbf, 6272), lambda i: (i, 0)),
            pl.BlockSpec((6272, 128), lambda i: (0, 0)),
            pl.BlockSpec((1, 128), lambda i: (0, 0)),
            pl.BlockSpec((128, 64), lambda i: (0, 0)),
            pl.BlockSpec((1, 64), lambda i: (0, 0)),
            pl.BlockSpec((64, 32), lambda i: (0, 0)),
            pl.BlockSpec((1, 32), lambda i: (0, 0)),
            pl.BlockSpec((32, 128), lambda i: (0, 0)),
            pl.BlockSpec((1, 128), lambda i: (0, 0)),
        ],
        out_specs=pl.BlockSpec((tbf, 128), lambda i: (i, 0)),
        compiler_params=pltpu.CompilerParams(dimension_semantics=("parallel",)),
    )(feats, p["f1w"], p["f1b"], p["f2w"], p["f2b"],
      p["f3w"], p["f3b"], p["f4w"], p["f4b"])

    return out[:B, :10]                                  # logits, f32


# ---------------------------------------------------------------------------
# Pure-JAX (XLA) reference for a tolerance check — identical math to the module
# ---------------------------------------------------------------------------
def _conv_same_ref(x_nhwc, w9, b):
    w = w9.astype(jnp.float32).reshape(3, 3, w9.shape[-2], w9.shape[-1])
    y = jax.lax.conv_general_dilated(x_nhwc, w, window_strides=(1, 1), padding="SAME",
                                     dimension_numbers=("NHWC", "HWIO", "NHWC"))
    return jnp.maximum(y + b.astype(jnp.float32).reshape(1, 1, 1, -1), 0.0)


def reference_forward(x_nchw, p):
    x = jnp.transpose(x_nchw, (0, 2, 3, 1))                              # NHWC
    x = _conv_same_ref(x, p["c1w"].reshape(9, 1, 32), p["c1b"])
    x = jnp.maximum(jnp.maximum(x[:, 0::2, 0::2, :], x[:, 0::2, 1::2, :]),
                    jnp.maximum(x[:, 1::2, 0::2, :], x[:, 1::2, 1::2, :]))
    x = _conv_same_ref(x, p["c2w"], p["c2b"])
    x = _conv_same_ref(x, p["c3w"], p["c3b"])
    x = x.reshape(x.shape[0], -1)                                        # (h, w, c) flatten

    def fc(h, w, b, relu):
        y = h @ w.astype(jnp.float32) + b.astype(jnp.float32)
        return jnp.maximum(y, 0.0) if relu else y

    x = fc(x, p["f1w"], p["f1b"], True)
    x = fc(x, p["f2w"], p["f2b"], True)
    x = fc(x, p["f3w"], p["f3b"], True)
    x = fc(x, p["f4w"], p["f4b"], False)
    return x[:, :10]


if __name__ == "__main__":
    key = jax.random.PRNGKey(0)
    kp, kx = jax.random.split(key)
    params = init_params(kp)
    consts = build_selection_constants()
    # Input consistent with fc1 = Linear(128*7*7, 128) and a single 2x2 pool.
    x = jax.random.normal(kx, (2, 1, 14, 14), jnp.float32)

    fwd = jax.jit(cnn_classifier_forward)
    out = fwd(x, params, consts)
    jax.block_until_ready(out)

    assert out.shape == (2, 10), out.shape
    assert out.dtype == jnp.float32

    # Numerical sanity check vs. an f32 XLA reference (kernel uses bf16 MXU operands).
    ref = jax.jit(reference_forward)(x, params)
    np.testing.assert_allclose(np.asarray(out), np.asarray(ref), atol=2e-2, rtol=2e-2)

    print("KERNEL_OK")
</pallas_src>

<mosaic_0001>
module attributes {stable_mosaic.version = 11 : i64} {
  func.func @_fc_stack_kernel(%arg0: i32, %arg1: memref<8x6272xbf16, #tpu.memory_space<vmem>>, %arg2: memref<6272x128xbf16, #tpu.memory_space<vmem>>, %arg3: memref<1x128xf32, #tpu.memory_space<vmem>>, %arg4: memref<128x64xbf16, #tpu.memory_space<vmem>>, %arg5: memref<1x64xf32, #tpu.memory_space<vmem>>, %arg6: memref<64x32xbf16, #tpu.memory_space<vmem>>, %arg7: memref<1x32xf32, #tpu.memory_space<vmem>>, %arg8: memref<32x128xbf16, #tpu.memory_space<vmem>>, %arg9: memref<1x128xf32, #tpu.memory_space<vmem>>, %arg10: memref<8x128xf32, #tpu.memory_space<vmem>>) attributes {dimension_semantics = [#tpu.dimension_semantics<parallel>], iteration_bounds = array<i64: 1>, scalar_prefetch = 0 : i64, scratch_operands = 0 : i64, tpu.core_type = #tpu.core_type<tc>, window_params = [{transform_indices = @transform_0, window_bounds = array<i64: 8, 6272>}, {pipeline_mode = #tpu.pipeline_mode<synchronous>, transform_indices = @transform_1, window_bounds = array<i64: 6272, 128>}, {pipeline_mode = #tpu.pipeline_mode<synchronous>, transform_indices = @transform_2, window_bounds = array<i64: 1, 128>}, {pipeline_mode = #tpu.pipeline_mode<synchronous>, transform_indices = @transform_3, window_bounds = array<i64: 128, 64>}, {pipeline_mode = #tpu.pipeline_mode<synchronous>, transform_indices = @transform_4, window_bounds = array<i64: 1, 64>}, {pipeline_mode = #tpu.pipeline_mode<synchronous>, transform_indices = @transform_5, window_bounds = array<i64: 64, 32>}, {pipeline_mode = #tpu.pipeline_mode<synchronous>, transform_indices = @transform_6, window_bounds = array<i64: 1, 32>}, {pipeline_mode = #tpu.pipeline_mode<synchronous>, transform_indices = @transform_7, window_bounds = array<i64: 32, 128>}, {pipeline_mode = #tpu.pipeline_mode<synchronous>, transform_indices = @transform_8, window_bounds = array<i64: 1, 128>}, {transform_indices = @transform_9, window_bounds = array<i64: 8, 128>}]} {
    %c0 = arith.constant 0 : index
    %c0_0 = arith.constant 0 : index
    %0 = vector.load %arg1[%c0, %c0_0] : memref<8x6272xbf16, #tpu.memory_space<vmem>>, vector<8x6272xbf16>
    %c0_1 = arith.constant 0 : index
    %c0_2 = arith.constant 0 : index
    %1 = vector.load %arg2[%c0_1, %c0_2] : memref<6272x128xbf16, #tpu.memory_space<vmem>>, vector<6272x128xbf16>
    %cst = arith.constant dense<0.000000e+00> : vector<8x128xf32>
    %2 = tpu.matmul %0, %1, %cst {dimension_numbers = #tpu.dot_dimension_numbers<[1], [0], [0], [1], [0, 0, 1, 1], [], []>} : vector<8x6272xbf16>, vector<6272x128xbf16>, vector<8x128xf32> -> vector<8x128xf32>
    %c0_3 = arith.constant 0 : index
    %c0_4 = arith.constant 0 : index
    %3 = vector.load %arg3[%c0_3, %c0_4] : memref<1x128xf32, #tpu.memory_space<vmem>>, vector<1x128xf32>
    %4 = vector.broadcast %3 : vector<1x128xf32> to vector<8x128xf32>
    %5 = arith.addf %2, %4 : vector<8x128xf32>
    %cst_5 = arith.constant 0.000000e+00 : f32
    %6 = vector.broadcast %cst_5 : f32 to vector<8x128xf32>
    %7 = arith.maximumf %5, %6 : vector<8x128xf32>
    %8 = arith.truncf %7 : vector<8x128xf32> to vector<8x128xbf16>
    %c0_6 = arith.constant 0 : index
    %c0_7 = arith.constant 0 : index
    %9 = vector.load %arg4[%c0_6, %c0_7] : memref<128x64xbf16, #tpu.memory_space<vmem>>, vector<128x64xbf16>
    %cst_8 = arith.constant dense<0.000000e+00> : vector<8x64xf32>
    %10 = tpu.matmul %8, %9, %cst_8 {dimension_numbers = #tpu.dot_dimension_numbers<[1], [0], [0], [1], [0, 0, 1, 1], [], []>} : vector<8x128xbf16>, vector<128x64xbf16>, vector<8x64xf32> -> vector<8x64xf32>
    %c0_9 = arith.constant 0 : index
    %c0_10 = arith.constant 0 : index
    %11 = vector.load %arg5[%c0_9, %c0_10] : memref<1x64xf32, #tpu.memory_space<vmem>>, vector<1x64xf32>
    %12 = vector.broadcast %11 : vector<1x64xf32> to vector<8x64xf32>
    %13 = arith.addf %10, %12 : vector<8x64xf32>
    %cst_11 = arith.constant 0.000000e+00 : f32
    %14 = vector.broadcast %cst_11 : f32 to vector<8x64xf32>
    %15 = arith.maximumf %13, %14 : vector<8x64xf32>
    %16 = arith.truncf %15 : vector<8x64xf32> to vector<8x64xbf16>
    %c0_12 = arith.constant 0 : index
    %c0_13 = arith.constant 0 : index
    %17 = vector.load %arg6[%c0_12, %c0_13] : memref<64x32xbf16, #tpu.memory_space<vmem>>, vector<64x32xbf16>
    %cst_14 = arith.constant dense<0.000000e+00> : vector<8x32xf32>
    %18 = tpu.matmul %16, %17, %cst_14 {dimension_numbers = #tpu.dot_dimension_numbers<[1], [0], [0], [1], [0, 0, 1, 1], [], []>} : vector<8x64xbf16>, vector<64x32xbf16>, vector<8x32xf32> -> vector<8x32xf32>
    %c0_15 = arith.constant 0 : index
    %c0_16 = arith.constant 0 : index
    %19 = vector.load %arg7[%c0_15, %c0_16] : memref<1x32xf32, #tpu.memory_space<vmem>>, vector<1x32xf32>
    %20 = vector.broadcast %19 : vector<1x32xf32> to vector<8x32xf32>
    %21 = arith.addf %18, %20 : vector<8x32xf32>
    %cst_17 = arith.constant 0.000000e+00 : f32
    %22 = vector.broadcast %cst_17 : f32 to vector<8x32xf32>
    %23 = arith.maximumf %21, %22 : vector<8x32xf32>
    %24 = arith.truncf %23 : vector<8x32xf32> to vector<8x32xbf16>
    %c0_18 = arith.constant 0 : index
    %c0_19 = arith.constant 0 : index
    %25 = vector.load %arg8[%c0_18, %c0_19] : memref<32x128xbf16, #tpu.memory_space<vmem>>, vector<32x128xbf16>
    %cst_20 = arith.constant dense<0.000000e+00> : vector<8x128xf32>
    %26 = tpu.matmul %24, %25, %cst_20 {dimension_numbers = #tpu.dot_dimension_numbers<[1], [0], [0], [1], [0, 0, 1, 1], [], []>} : vector<8x32xbf16>, vector<32x128xbf16>, vector<8x128xf32> -> vector<8x128xf32>
    %c0_21 = arith.constant 0 : index
    %c0_22 = arith.constant 0 : index
    %27 = vector.load %arg9[%c0_21, %c0_22] : memref<1x128xf32, #tpu.memory_space<vmem>>, vector<1x128xf32>
    %28 = vector.broadcast %27 : vector<1x128xf32> to vector<8x128xf32>
    %29 = arith.addf %26, %28 : vector<8x128xf32>
    %c0_23 = arith.constant 0 : index
    %c0_24 = arith.constant 0 : index
    %30 = vector.load %arg10[%c0_23, %c0_24] : memref<8x128xf32, #tpu.memory_space<vmem>>, vector<8x128xf32>
    tpu.vector_store %arg10[%c0_23, %c0_24], %29 {strides = array<i32>} : memref<8x128xf32, #tpu.memory_space<vmem>>, vector<8x128xf32>,
    return
  }
  func.func @transform_0(%arg0: i32) -> (i32, i32) {
    %c0_i32 = arith.constant 0 : i32
    %c0_i32_0 = arith.constant 0 : i32
    return %arg0, %c0_i32 : i32, i32
  }
  func.func @transform_1(%arg0: i32) -> (i32, i32) {
    %c0_i32 = arith.constant 0 : i32
    %c0_i32_0 = arith.constant 0 : i32
    %c0_i32_1 = arith.constant 0 : i32
    return %c0_i32, %c0_i32_0 : i32, i32
  }
  func.func @transform_2(%arg0: i32) -> (i32, i32) {
    %c0_i32 = arith.constant 0 : i32
    %c0_i32_0 = arith.constant 0 : i32
    %c0_i32_1 = arith.constant 0 : i32
    return %c0_i32, %c0_i32_0 : i32, i32
  }
  func.func @transform_3(%arg0: i32) -> (i32, i32) {
    %c0_i32 = arith.constant 0 : i32
    %c0_i32_0 = arith.constant 0 : i32
    %c0_i32_1 = arith.constant 0 : i32
    return %c0_i32, %c0_i32_0 : i32, i32
  }
  func.func @transform_4(%arg0: i32) -> (i32, i32) {
    %c0_i32 = arith.constant 0 : i32
    %c0_i32_0 = arith.constant 0 : i32
    %c0_i32_1 = arith.constant 0 : i32
    return %c0_i32, %c0_i32_0 : i32, i32
  }
  func.func @transform_5(%arg0: i32) -> (i32, i32) {
    %c0_i32 = arith.constant 0 : i32
    %c0_i32_0 = arith.constant 0 : i32
    %c0_i32_1 = arith.constant 0 : i32
    return %c0_i32, %c0_i32_0 : i32, i32
  }
  func.func @transform_6(%arg0: i32) -> (i32, i32) {
    %c0_i32 = arith.constant 0 : i32
    %c0_i32_0 = arith.constant 0 : i32
    %c0_i32_1 = arith.constant 0 : i32
    return %c0_i32, %c0_i32_0 : i32, i32
  }
  func.func @transform_7(%arg0: i32) -> (i32, i32) {
    %c0_i32 = arith.constant 0 : i32
    %c0_i32_0 = arith.constant 0 : i32
    %c0_i32_1 = arith.constant 0 : i32
    return %c0_i32, %c0_i32_0 : i32, i32
  }
  func.func @transform_8(%arg0: i32) -> (i32, i32) {
    %c0_i32 = arith.constant 0 : i32
    %c0_i32_0 = arith.constant 0 : i32
    %c0_i32_1 = arith.constant 0 : i32
    return %c0_i32, %c0_i32_0 : i32, i32
  }
  func.func @transform_9(%arg0: i32) -> (i32, i32) {
    %c0_i32 = arith.constant 0 : i32
    %c0_i32_0 = arith.constant 0 : i32
    return %arg0, %c0_i32 : i32, i32
  }
}

module attributes {stable_mosaic.version = 11 : i64} {
  func.func @_conv_stack_kernel(%arg0: i32, %arg1: memref<1x196x1xf32, #tpu.memory_space<vmem>>, %arg2: memref<9x196x196xf32, #tpu.memory_space<vmem>>, %arg3: memref<4x49x196xf32, #tpu.memory_space<vmem>>, %arg4: memref<9x49x49xf32, #tpu.memory_space<vmem>>, %arg5: memref<9x32xf32, #tpu.memory_space<vmem>>, %arg6: memref<1x32xf32, #tpu.memory_space<vmem>>, %arg7: memref<9x32x64xbf16, #tpu.memory_space<vmem>>, %arg8: memref<1x64xf32, #tpu.memory_space<vmem>>, %arg9: memref<9x64x128xbf16, #tpu.memory_space<vmem>>, %arg10: memref<1x128xf32, #tpu.memory_space<vmem>>, %arg11: memref<1x49x128xbf16, #tpu.memory_space<vmem>>) attributes {dimension_semantics = [#tpu.dimension_semantics<parallel>], iteration_bounds = array<i64: 2>, scalar_prefetch = 0 : i64, scratch_operands = 0 : i64, tpu.core_type = #tpu.core_type<tc>, window_params = [{transform_indices = @transform_0, window_bounds = array<i64: 1, 196, 1>}, {pipeline_mode = #tpu.pipeline_mode<synchronous>, transform_indices = @transform_1, window_bounds = array<i64: 9, 196, 196>}, {pipeline_mode = #tpu.pipeline_mode<synchronous>, transform_indices = @transform_2, window_bounds = array<i64: 4, 49, 196>}, {pipeline_mode = #tpu.pipeline_mode<synchronous>, transform_indices = @transform_3, window_bounds = array<i64: 9, 49, 49>}, {pipeline_mode = #tpu.pipeline_mode<synchronous>, transform_indices = @transform_4, window_bounds = array<i64: 9, 32>}, {pipeline_mode = #tpu.pipeline_mode<synchronous>, transform_indices = @transform_5, window_bounds = array<i64: 1, 32>}, {pipeline_mode = #tpu.pipeline_mode<synchronous>, transform_indices = @transform_6, window_bounds = array<i64: 9, 32, 64>}, {pipeline_mode = #tpu.pipeline_mode<synchronous>, transform_indices = @transform_7, window_bounds = array<i64: 1, 64>}, {pipeline_mode = #tpu.pipeline_mode<synchronous>, transform_indices = @transform_8, window_bounds = array<i64: 9, 64, 128>}, {pipeline_mode = #tpu.pipeline_mode<synchronous>, transform_indices = @transform_9, window_bounds = array<i64: 1, 128>}, {transform_indices = @transform_10, window_bounds = array<i64: 1, 49, 128>}]} {
    %c0 = arith.constant 0 : index
    %c0_0 = arith.constant 0 : index
    %c0_1 = arith.constant 0 : index
    %0 = vector.load %arg1[%c0, %c0_0, %c0_1] : memref<1x196x1xf32, #tpu.memory_space<vmem>>, vector<1x196x1xf32>
    %1 = vector.shape_cast %0 : vector<1x196x1xf32> to vector<196x1xf32>
    %cst = arith.constant 0.000000e+00 : f32
    %2 = vector.broadcast %cst : f32 to vector<196x32xf32>
    %c0_2 = arith.constant 0 : index
    %c0_3 = arith.constant 0 : index
    %3 = vector.load %arg5[%c0_2, %c0_3] : memref<9x32xf32, #tpu.memory_space<vmem>>, vector<1x32xf32>
    %4 = vector.broadcast %1 : vector<196x1xf32> to vector<196x32xf32>
    %5 = vector.broadcast %3 : vector<1x32xf32> to vector<196x32xf32>
    %6 = arith.mulf %4, %5 : vector<196x32xf32>
    %c0_4 = arith.constant 0 : index
    %c0_5 = arith.constant 0 : index
    %c0_6 = arith.constant 0 : index
    %7 = vector.load %arg2[%c0_4, %c0_5, %c0_6] : memref<9x196x196xf32, #tpu.memory_space<vmem>>, vector<1x196x196xf32>
    %8 = vector.shape_cast %7 : vector<1x196x196xf32> to vector<196x196xf32>
    %cst_7 = arith.constant dense<0.000000e+00> : vector<196x32xf32>
    %9 = tpu.matmul %8, %6, %cst_7 {dimension_numbers = #tpu.dot_dimension_numbers<[1], [0], [0], [1], [0, 0, 1, 1], [], []>} : vector<196x196xf32>, vector<196x32xf32>, vector<196x32xf32> -> vector<196x32xf32>
    %10 = arith.addf %2, %9 : vector<196x32xf32>
    %c1 = arith.constant 1 : index
    %c0_8 = arith.constant 0 : index
    %11 = vector.load %arg5[%c1, %c0_8] : memref<9x32xf32, #tpu.memory_space<vmem>>, vector<1x32xf32>
    %12 = vector.broadcast %1 : vector<196x1xf32> to vector<196x32xf32>
    %13 = vector.broadcast %11 : vector<1x32xf32> to vector<196x32xf32>
    %14 = arith.mulf %12, %13 : vector<196x32xf32>
    %c1_9 = arith.constant 1 : index
    %c0_10 = arith.constant 0 : index
    %c0_11 = arith.constant 0 : index
    %15 = vector.load %arg2[%c1_9, %c0_10, %c0_11] : memref<9x196x196xf32, #tpu.memory_space<vmem>>, vector<1x196x196xf32>
    %16 = vector.shape_cast %15 : vector<1x196x196xf32> to vector<196x196xf32>
    %cst_12 = arith.constant dense<0.000000e+00> : vector<196x32xf32>
    %17 = tpu.matmul %16, %14, %cst_12 {dimension_numbers = #tpu.dot_dimension_numbers<[1], [0], [0], [1], [0, 0, 1, 1], [], []>} : vector<196x196xf32>, vector<196x32xf32>, vector<196x32xf32> -> vector<196x32xf32>
    %18 = arith.addf %10, %17 : vector<196x32xf32>
    %c2 = arith.constant 2 : index
    %c0_13 = arith.constant 0 : index
    %19 = vector.load %arg5[%c2, %c0_13] : memref<9x32xf32, #tpu.memory_space<vmem>>, vector<1x32xf32>
    %20 = vector.broadcast %1 : vector<196x1xf32> to vector<196x32xf32>
    %21 = vector.broadcast %19 : vector<1x32xf32> to vector<196x32xf32>
    %22 = arith.mulf %20, %21 : vector<196x32xf32>
    %c2_14 = arith.constant 2 : index
    %c0_15 = arith.constant 0 : index
    %c0_16 = arith.constant 0 : index
    %23 = vector.load %arg2[%c2_14, %c0_15, %c0_16] : memref<9x196x196xf32, #tpu.memory_space<vmem>>, vector<1x196x196xf32>
    %24 = vector.shape_cast %23 : vector<1x196x196xf32> to vector<196x196xf32>
    %cst_17 = arith.constant dense<0.000000e+00> : vector<196x32xf32>
    %25 = tpu.matmul %24, %22, %cst_17 {dimension_numbers = #tpu.dot_dimension_numbers<[1], [0], [0], [1], [0, 0, 1, 1], [], []>} : vector<196x196xf32>, vector<196x32xf32>, vector<196x32xf32> -> vector<196x32xf32>
    %26 = arith.addf %18, %25 : vector<196x32xf32>
    %c3 = arith.constant 3 : index
    %c0_18 = arith.constant 0 : index
    %27 = vector.load %arg5[%c3, %c0_18] : memref<9x32xf32, #tpu.memory_space<vmem>>, vector<1x32xf32>
    %28 = vector.broadcast %1 : vector<196x1xf32> to vector<196x32xf32>
    %29 = vector.broadcast %27 : vector<1x32xf32> to vector<196x32xf32>
    %30 = arith.mulf %28, %29 : vector<196x32xf32>
    %c3_19 = arith.constant 3 : index
    %c0_20 = arith.constant 0 : index
    %c0_21 = arith.constant 0 : index
    %31 = vector.load %arg2[%c3_19, %c0_20, %c0_21] : memref<9x196x196xf32, #tpu.memory_space<vmem>>, vector<1x196x196xf32>
    %32 = vector.shape_cast %31 : vector<1x196x196xf32> to vector<196x196xf32>
    %cst_22 = arith.constant dense<0.000000e+00> : vector<196x32xf32>
    %33 = tpu.matmul %32, %30, %cst_22 {dimension_numbers = #tpu.dot_dimension_numbers<[1], [0], [0], [1], [0, 0, 1, 1], [], []>} : vector<196x196xf32>, vector<196x32xf32>, vector<196x32xf32> -> vector<196x32xf32>
    %34 = arith.addf %26, %33 : vector<196x32xf32>
    %c4 = arith.constant 4 : index
    %c0_23 = arith.constant 0 : index
    %35 = vector.load %arg5[%c4, %c0_23] : memref<9x32xf32, #tpu.memory_space<vmem>>, vector<1x32xf32>
    %36 = vector.broadcast %1 : vector<196x1xf32> to vector<196x32xf32>
    %37 = vector.broadcast %35 : vector<1x32xf32> to vector<196x32xf32>
    %38 = arith.mulf %36, %37 : vector<196x32xf32>
    %c4_24 = arith.constant 4 : index
    %c0_25 = arith.constant 0 : index
    %c0_26 = arith.constant 0 : index
    %39 = vector.load %arg2[%c4_24, %c0_25, %c0_26] : memref<9x196x196xf32, #tpu.memory_space<vmem>>, vector<1x196x196xf32>
    %40 = vector.shape_cast %39 : vector<1x196x196xf32> to vector<196x196xf32>
    %cst_27 = arith.constant dense<0.000000e+00> : vector<196x32xf32>
    %41 = tpu.matmul %40, %38, %cst_27 {dimension_numbers = #tpu.dot_dimension_numbers<[1], [0], [0], [1], [0, 0, 1, 1], [], []>} : vector<196x196xf32>, vector<196x32xf32>, vector<196x32xf32> -> vector<196x32xf32>
    %42 = arith.addf %34, %41 : vector<196x32xf32>
    %c5 = arith.constant 5 : index
    %c0_28 = arith.constant 0 : index
    %43 = vector.load %arg5[%c5, %c0_28] : memref<9x32xf32, #tpu.memory_space<vmem>>, vector<1x32xf32>
    %44 = vector.broadcast %1 : vector<196x1xf32> to vector<196x32xf32>
    %45 = vector.broadcast %43 : vector<1x32xf32> to vector<196x32xf32>
    %46 = arith.mulf %44, %45 : vector<196x32xf32>
    %c5_29 = arith.constant 5 : index
    %c0_30 = arith.constant 0 : index
    %c0_31 = arith.constant 0 : index
    %47 = vector.load %arg2[%c5_29, %c0_30, %c0_31] : memref<9x196x196xf32, #tpu.memory_space<vmem>>, vector<1x196x196xf32>
    %48 = vector.shape_cast %47 : vector<1x196x196xf32> to vector<196x196xf32>
    %cst_32 = arith.constant dense<0.000000e+00> : vector<196x32xf32>
    %49 = tpu.matmul %48, %46, %cst_32 {dimension_numbers = #tpu.dot_dimension_numbers<[1], [0], [0], [1], [0, 0, 1, 1], [], []>} : vector<196x196xf32>, vector<196x32xf32>, vector<196x32xf32> -> vector<196x32xf32>
    %50 = arith.addf %42, %49 : vector<196x32xf32>
    %c6 = arith.constant 6 : index
    %c0_33 = arith.constant 0 : index
    %51 = vector.load %arg5[%c6, %c0_33] : memref<9x32xf32, #tpu.memory_space<vmem>>, vector<1x32xf32>
    %52 = vector.broadcast %1 : vector<196x1xf32> to vector<196x32xf32>
    %53 = vector.broadcast %51 : vector<1x32xf32> to vector<196x32xf32>
    %54 = arith.mulf %52, %53 : vector<196x32xf32>
    %c6_34 = arith.constant 6 : index
    %c0_35 = arith.constant 0 : index
    %c0_36 = arith.constant 0 : index
    %55 = vector.load %arg2[%c6_34, %c0_35, %c0_36] : memref<9x196x196xf32, #tpu.memory_space<vmem>>, vector<1x196x196xf32>
    %56 = vector.shape_cast %55 : vector<1x196x196xf32> to vector<196x196xf32>
    %cst_37 = arith.constant dense<0.000000e+00> : vector<196x32xf32>
    %57 = tpu.matmul %56, %54, %cst_37 {dimension_numbers = #tpu.dot_dimension_numbers<[1], [0], [0], [1], [0, 0, 1, 1], [], []>} : vector<196x196xf32>, vector<196x32xf32>, vector<196x32xf32> -> vector<196x32xf32>
    %58 = arith.addf %50, %57 : vector<196x32xf32>
    %c7 = arith.constant 7 : index
    %c0_38 = arith.constant 0 : index
    %59 = vector.load %arg5[%c7, %c0_38] : memref<9x32xf32, #tpu.memory_space<vmem>>, vector<1x32xf32>
    %60 = vector.broadcast %1 : vector<196x1xf32> to vector<196x32xf32>
    %61 = vector.broadcast %59 : vector<1x32xf32> to vector<196x32xf32>
    %62 = arith.mulf %60, %61 : vector<196x32xf32>
    %c7_39 = arith.constant 7 : index
    %c0_40 = arith.constant 0 : index
    %c0_41 = arith.constant 0 : index
    %63 = vector.load %arg2[%c7_39, %c0_40, %c0_41] : memref<9x196x196xf32, #tpu.memory_space<vmem>>, vector<1x196x196xf32>
    %64 = vector.shape_cast %63 : vector<1x196x196xf32> to vector<196x196xf32>
    %cst_42 = arith.constant dense<0.000000e+00> : vector<196x32xf32>
    %65 = tpu.matmul %64, %62, %cst_42 {dimension_numbers = #tpu.dot_dimension_numbers<[1], [0], [0], [1], [0, 0, 1, 1], [], []>} : vector<196x196xf32>, vector<196x32xf32>, vector<196x32xf32> -> vector<196x32xf32>
    %66 = arith.addf %58, %65 : vector<196x32xf32>
    %c8 = arith.constant 8 : index
    %c0_43 = arith.constant 0 : index
    %67 = vector.load %arg5[%c8, %c0_43] : memref<9x32xf32, #tpu.memory_space<vmem>>, vector<1x32xf32>
    %68 = vector.broadcast %1 : vector<196x1xf32> to vector<196x32xf32>
    %69 = vector.broadcast %67 : vector<1x32xf32> to vector<196x32xf32>
    %70 = arith.mulf %68, %69 : vector<196x32xf32>
    %c8_44 = arith.constant 8 : index
    %c0_45 = arith.constant 0 : index
    %c0_46 = arith.constant 0 : index
    %71 = vector.load %arg2[%c8_44, %c0_45, %c0_46] : memref<9x196x196xf32, #tpu.memory_space<vmem>>, vector<1x196x196xf32>
    %72 = vector.shape_cast %71 : vector<1x196x196xf32> to vector<196x196xf32>
    %cst_47 = arith.constant dense<0.000000e+00> : vector<196x32xf32>
    %73 = tpu.matmul %72, %70, %cst_47 {dimension_numbers = #tpu.dot_dimension_numbers<[1], [0], [0], [1], [0, 0, 1, 1], [], []>} : vector<196x196xf32>, vector<196x32xf32>, vector<196x32xf32> -> vector<196x32xf32>
    %74 = arith.addf %66, %73 : vector<196x32xf32>
    %c0_48 = arith.constant 0 : index
    %c0_49 = arith.constant 0 : index
    %75 = vector.load %arg6[%c0_48, %c0_49] : memref<1x32xf32, #tpu.memory_space<vmem>>, vector<1x32xf32>
    %76 = vector.broadcast %75 : vector<1x32xf32> to vector<196x32xf32>
    %77 = arith.addf %74, %76 : vector<196x32xf32>
    %cst_50 = arith.constant 0.000000e+00 : f32
    %78 = vector.broadcast %cst_50 : f32 to vector<196x32xf32>
    %79 = arith.maximumf %77, %78 : vector<196x32xf32>
    %c0_51 = arith.constant 0 : index
    %c0_52 = arith.constant 0 : index
    %c0_53 = arith.constant 0 : index
    %80 = vector.load %arg3[%c0_51, %c0_52, %c0_53] : memref<4x49x196xf32, #tpu.memory_space<vmem>>, vector<1x49x196xf32>
    %81 = vector.shape_cast %80 : vector<1x49x196xf32> to vector<49x196xf32>
    %cst_54 = arith.constant dense<0.000000e+00> : vector<49x32xf32>
    %82 = tpu.matmul %81, %79, %cst_54 {dimension_numbers = #tpu.dot_dimension_numbers<[1], [0], [0], [1], [0, 0, 1, 1], [], []>} : vector<49x196xf32>, vector<196x32xf32>, vector<49x32xf32> -> vector<49x32xf32>
    %c1_55 = arith.constant 1 : index
    %c0_56 = arith.constant 0 : index
    %c0_57 = arith.constant 0 : index
    %83 = vector.load %arg3[%c1_55, %c0_56, %c0_57] : memref<4x49x196xf32, #tpu.memory_space<vmem>>, vector<1x49x196xf32>
    %84 = vector.shape_cast %83 : vector<1x49x196xf32> to vector<49x196xf32>
    %cst_58 = arith.constant dense<0.000000e+00> : vector<49x32xf32>
    %85 = tpu.matmul %84, %79, %cst_58 {dimension_numbers = #tpu.dot_dimension_numbers<[1], [0], [0], [1], [0, 0, 1, 1], [], []>} : vector<49x196xf32>, vector<196x32xf32>, vector<49x32xf32> -> vector<49x32xf32>
    %86 = arith.maximumf %82, %85 : vector<49x32xf32>
    %c2_59 = arith.constant 2 : index
    %c0_60 = arith.constant 0 : index
    %c0_61 = arith.constant 0 : index
    %87 = vector.load %arg3[%c2_59, %c0_60, %c0_61] : memref<4x49x196xf32, #tpu.memory_space<vmem>>, vector<1x49x196xf32>
    %88 = vector.shape_cast %87 : vector<1x49x196xf32> to vector<49x196xf32>
    %cst_62 = arith.constant dense<0.000000e+00> : vector<49x32xf32>
    %89 = tpu.matmul %88, %79, %cst_62 {dimension_numbers = #tpu.dot_dimension_numbers<[1], [0], [0], [1], [0, 0, 1, 1], [], []>} : vector<49x196xf32>, vector<196x32xf32>, vector<49x32xf32> -> vector<49x32xf32>
    %90 = arith.maximumf %86, %89 : vector<49x32xf32>
    %c3_63 = arith.constant 3 : index
    %c0_64 = arith.constant 0 : index
    %c0_65 = arith.constant 0 : index
    %91 = vector.load %arg3[%c3_63, %c0_64, %c0_65] : memref<4x49x196xf32, #tpu.memory_space<vmem>>, vector<1x49x196xf32>
    %92 = vector.shape_cast %91 : vector<1x49x196xf32> to vector<49x196xf32>
    %cst_66 = arith.constant dense<0.000000e+00> : vector<49x32xf32>
    %93 = tpu.matmul %92, %79, %cst_66 {dimension_numbers = #tpu.dot_dimension_numbers<[1], [0], [0], [1], [0, 0, 1, 1], [], []>} : vector<49x196xf32>, vector<196x32xf32>, vector<49x32xf32> -> vector<49x32xf32>
    %94 = arith.maximumf %90, %93 : vector<49x32xf32>
    %95 = arith.truncf %94 : vector<49x32xf32> to vector<49x32xbf16>
    %cst_67 = arith.constant 0.000000e+00 : f32
    %96 = vector.broadcast %cst_67 : f32 to vector<49x64xf32>
    %c0_68 = arith.constant 0 : index
    %c0_69 = arith.constant 0 : index
    %c0_70 = arith.constant 0 : index
    %97 = vector.load %arg7[%c0_68, %c0_69, %c0_70] : memref<9x32x64xbf16, #tpu.memory_space<vmem>>, vector<1x32x64xbf16>
    %98 = vector.shape_cast %97 : vector<1x32x64xbf16> to vector<32x64xbf16>
    %cst_71 = arith.constant dense<0.000000e+00> : vector<49x64xf32>
    %99 = tpu.matmul %95, %98, %cst_71 {dimension_numbers = #tpu.dot_dimension_numbers<[1], [0], [0], [1], [0, 0, 1, 1], [], []>} : vector<49x32xbf16>, vector<32x64xbf16>, vector<49x64xf32> -> vector<49x64xf32>
    %c0_72 = arith.constant 0 : index
    %c0_73 = arith.constant 0 : index
    %c0_74 = arith.constant 0 : index
    %100 = vector.load %arg4[%c0_72, %c0_73, %c0_74] : memref<9x49x49xf32, #tpu.memory_space<vmem>>, vector<1x49x49xf32>
    %101 = vector.shape_cast %100 : vector<1x49x49xf32> to vector<49x49xf32>
    %cst_75 = arith.constant dense<0.000000e+00> : vector<49x64xf32>
    %102 = tpu.matmul %101, %99, %cst_75 {dimension_numbers = #tpu.dot_dimension_numbers<[1], [0], [0], [1], [0, 0, 1, 1], [], []>} : vector<49x49xf32>, vector<49x64xf32>, vector<49x64xf32> -> vector<49x64xf32>
    %103 = arith.addf %96, %102 : vector<49x64xf32>
    %c1_76 = arith.constant 1 : index
    %c0_77 = arith.constant 0 : index
    %c0_78 = arith.constant 0 : index
    %104 = vector.load %arg7[%c1_76, %c0_77, %c0_78] : memref<9x32x64xbf16, #tpu.memory_space<vmem>>, vector<1x32x64xbf16>
    %105 = vector.shape_cast %104 : vector<1x32x64xbf16> to vector<32x64xbf16>
    %cst_79 = arith.constant dense<0.000000e+00> : vector<49x64xf32>
    %106 = tpu.matmul %95, %105, %cst_79 {dimension_numbers = #tpu.dot_dimension_numbers<[1], [0], [0], [1], [0, 0, 1, 1], [], []>} : vector<49x32xbf16>, vector<32x64xbf16>, vector<49x64xf32> -> vector<49x64xf32>
    %c1_80 = arith.constant 1 : index
    %c0_81 = arith.constant 0 : index
    %c0_82 = arith.constant 0 : index
    %107 = vector.load %arg4[%c1_80, %c0_81, %c0_82] : memref<9x49x49xf32, #tpu.memory_space<vmem>>, vector<1x49x49xf32>
    %108 = vector.shape_cast %107 : vector<1x49x49xf32> to vector<49x49xf32>
    %cst_83 = arith.constant dense<0.000000e+00> : vector<49x64xf32>
    %109 = tpu.matmul %108, %106, %cst_83 {dimension_numbers = #tpu.dot_dimension_numbers<[1], [0], [0], [1], [0, 0, 1, 1], [], []>} : vector<49x49xf32>, vector<49x64xf32>, vector<49x64xf32> -> vector<49x64xf32>
    %110 = arith.addf %103, %109 : vector<49x64xf32>
    %c2_84 = arith.constant 2 : index
    %c0_85 = arith.constant 0 : index
    %c0_86 = arith.constant 0 : index
    %111 = vector.load %arg7[%c2_84, %c0_85, %c0_86] : memref<9x32x64xbf16, #tpu.memory_space<vmem>>, vector<1x32x64xbf16>
    %112 = vector.shape_cast %111 : vector<1x32x64xbf16> to vector<32x64xbf16>
    %cst_87 = arith.constant dense<0.000000e+00> : vector<49x64xf32>
    %113 = tpu.matmul %95, %112, %cst_87 {dimension_numbers = #tpu.dot_dimension_numbers<[1], [0], [0], [1], [0, 0, 1, 1], [], []>} : vector<49x32xbf16>, vector<32x64xbf16>, vector<49x64xf32> -> vector<49x64xf32>
    %c2_88 = arith.constant 2 : index
    %c0_89 = arith.constant 0 : index
    %c0_90 = arith.constant 0 : index
    %114 = vector.load %arg4[%c2_88, %c0_89, %c0_90] : memref<9x49x49xf32, #tpu.memory_space<vmem>>, vector<1x49x49xf32>
    %115 = vector.shape_cast %114 : vector<1x49x49xf32> to vector<49x49xf32>
    %cst_91 = arith.constant dense<0.000000e+00> : vector<49x64xf32>
    %116 = tpu.matmul %115, %113, %cst_91 {dimension_numbers = #tpu.dot_dimension_numbers<[1], [0], [0], [1], [0, 0, 1, 1], [], []>} : vector<49x49xf32>, vector<49x64xf32>, vector<49x64xf32> -> vector<49x64xf32>
    %117 = arith.addf %110, %116 : vector<49x64xf32>
    %c3_92 = arith.constant 3 : index
    %c0_93 = arith.constant 0 : index
    %c0_94 = arith.constant 0 : index
    %118 = vector.load %arg7[%c3_92, %c0_93, %c0_94] : memref<9x32x64xbf16, #tpu.memory_space<vmem>>, vector<1x32x64xbf16>
    %119 = vector.shape_cast %118 : vector<1x32x64xbf16> to vector<32x64xbf16>
    %cst_95 = arith.constant dense<0.000000e+00> : vector<49x64xf32>
    %120 = tpu.matmul %95, %119, %cst_95 {dimension_numbers = #tpu.dot_dimension_numbers<[1], [0], [0], [1], [0, 0, 1, 1], [], []>} : vector<49x32xbf16>, vector<32x64xbf16>, vector<49x64xf32> -> vector<49x64xf32>
    %c3_96 = arith.constant 3 : index
    %c0_97 = arith.constant 0 : index
    %c0_98 = arith.constant 0 : index
    %121 = vector.load %arg4[%c3_96, %c0_97, %c0_98] : memref<9x49x49xf32, #tpu.memory_space<vmem>>, vector<1x49x49xf32>
    %122 = vector.shape_cast %121 : vector<1x49x49xf32> to vector<49x49xf32>
    %cst_99 = arith.constant dense<0.000000e+00> : vector<49x64xf32>
    %123 = tpu.matmul %122, %120, %cst_99 {dimension_numbers = #tpu.dot_dimension_numbers<[1], [0], [0], [1], [0, 0, 1, 1], [], []>} : vector<49x49xf32>, vector<49x64xf32>, vector<49x64xf32> -> vector<49x64xf32>
    %124 = arith.addf %117, %123 : vector<49x64xf32>
    %c4_100 = arith.constant 4 : index
    %c0_101 = arith.constant 0 : index
    %c0_102 = arith.constant 0 : index
    %125 = vector.load %arg7[%c4_100, %c0_101, %c0_102] : memref<9x32x64xbf16, #tpu.memory_space<vmem>>, vector<1x32x64xbf16>
    %126 = vector.shape_cast %125 : vector<1x32x64xbf16> to vector<32x64xbf16>
    %cst_103 = arith.constant dense<0.000000e+00> : vector<49x64xf32>
    %127 = tpu.matmul %95, %126, %cst_103 {dimension_numbers = #tpu.dot_dimension_numbers<[1], [0], [0], [1], [0, 0, 1, 1], [], []>} : vector<49x32xbf16>, vector<32x64xbf16>, vector<49x64xf32> -> vector<49x64xf32>
    %c4_104 = arith.constant 4 : index
    %c0_105 = arith.constant 0 : index
    %c0_106 = arith.constant 0 : index
    %128 = vector.load %arg4[%c4_104, %c0_105, %c0_106] : memref<9x49x49xf32, #tpu.memory_space<vmem>>, vector<1x49x49xf32>
    %129 = vector.shape_cast %128 : vector<1x49x49xf32> to vector<49x49xf32>
    %cst_107 = arith.constant dense<0.000000e+00> : vector<49x64xf32>
    %130 = tpu.matmul %129, %127, %cst_107 {dimension_numbers = #tpu.dot_dimension_numbers<[1], [0], [0], [1], [0, 0, 1, 1], [], []>} : vector<49x49xf32>, vector<49x64xf32>, vector<49x64xf32> -> vector<49x64xf32>
    %131 = arith.addf %124, %130 : vector<49x64xf32>
    %c5_108 = arith.constant 5 : index
    %c0_109 = arith.constant 0 : index
    %c0_110 = arith.constant 0 : index
    %132 = vector.load %arg7[%c5_108, %c0_109, %c0_110] : memref<9x32x64xbf16, #tpu.memory_space<vmem>>, vector<1x32x64xbf16>
    %133 = vector.shape_cast %132 : vector<1x32x64xbf16> to vector<32x64xbf16>
    %cst_111 = arith.constant dense<0.000000e+00> : vector<49x64xf32>
    %134 = tpu.matmul %95, %133, %cst_111 {dimension_numbers = #tpu.dot_dimension_numbers<[1], [0], [0], [1], [0, 0, 1, 1], [], []>} : vector<49x32xbf16>, vector<32x64xbf16>, vector<49x64xf32> -> vector<49x64xf32>
    %c5_112 = arith.constant 5 : index
    %c0_113 = arith.constant 0 : index
    %c0_114 = arith.constant 0 : index
    %135 = vector.load %arg4[%c5_112, %c0_113, %c0_114] : memref<9x49x49xf32, #tpu.memory_space<vmem>>, vector<1x49x49xf32>
    %136 = vector.shape_cast %135 : vector<1x49x49xf32> to vector<49x49xf32>
    %cst_115 = arith.constant dense<0.000000e+00> : vector<49x64xf32>
    %137 = tpu.matmul %136, %134, %cst_115 {dimension_numbers = #tpu.dot_dimension_numbers<[1], [0], [0], [1], [0, 0, 1, 1], [], []>} : vector<49x49xf32>, vector<49x64xf32>, vector<49x64xf32> -> vector<49x64xf32>
    %138 = arith.addf %131, %137 : vector<49x64xf32>
    %c6_116 = arith.constant 6 : index
    %c0_117 = arith.constant 0 : index
    %c0_118 = arith.constant 0 : index
    %139 = vector.load %arg7[%c6_116, %c0_117, %c0_118] : memref<9x32x64xbf16, #tpu.memory_space<vmem>>, vector<1x32x64xbf16>
    %140 = vector.shape_cast %139 : vector<1x32x64xbf16> to vector<32x64xbf16>
    %cst_119 = arith.constant dense<0.000000e+00> : vector<49x64xf32>
    %141 = tpu.matmul %95, %140, %cst_119 {dimension_numbers = #tpu.dot_dimension_numbers<[1], [0], [0], [1], [0, 0, 1, 1], [], []>} : vector<49x32xbf16>, vector<32x64xbf16>, vector<49x64xf32> -> vector<49x64xf32>
    %c6_120 = arith.constant 6 : index
    %c0_121 = arith.constant 0 : index
    %c0_122 = arith.constant 0 : index
    %142 = vector.load %arg4[%c6_120, %c0_121, %c0_122] : memref<9x49x49xf32, #tpu.memory_space<vmem>>, vector<1x49x49xf32>
    %143 = vector.shape_cast %142 : vector<1x49x49xf32> to vector<49x49xf32>
    %cst_123 = arith.constant dense<0.000000e+00> : vector<49x64xf32>
    %144 = tpu.matmul %143, %141, %cst_123 {dimension_numbers = #tpu.dot_dimension_numbers<[1], [0], [0], [1], [0, 0, 1, 1], [], []>} : vector<49x49xf32>, vector<49x64xf32>, vector<49x64xf32> -> vector<49x64xf32>
    %145 = arith.addf %138, %144 : vector<49x64xf32>
    %c7_124 = arith.constant 7 : index
    %c0_125 = arith.constant 0 : index
    %c0_126 = arith.constant 0 : index
    %146 = vector.load %arg7[%c7_124, %c0_125, %c0_126] : memref<9x32x64xbf16, #tpu.memory_space<vmem>>, vector<1x32x64xbf16>
    %147 = vector.shape_cast %146 : vector<1x32x64xbf16> to vector<32x64xbf16>
    %cst_127 = arith.constant dense<0.000000e+00> : vector<49x64xf32>
    %148 = tpu.matmul %95, %147, %cst_127 {dimension_numbers = #tpu.dot_dimension_numbers<[1], [0], [0], [1], [0, 0, 1, 1], [], []>} : vector<49x32xbf16>, vector<32x64xbf16>, vector<49x64xf32> -> vector<49x64xf32>
    %c7_128 = arith.constant 7 : index
    %c0_129 = arith.constant 0 : index
    %c0_130 = arith.constant 0 : index
    %149 = vector.load %arg4[%c7_128, %c0_129, %c0_130] : memref<9x49x49xf32, #tpu.memory_space<vmem>>, vector<1x49x49xf32>
    %150 = vector.shape_cast %149 : vector<1x49x49xf32> to vector<49x49xf32>
    %cst_131 = arith.constant dense<0.000000e+00> : vector<49x64xf32>
    %151 = tpu.matmul %150, %148, %cst_131 {dimension_numbers = #tpu.dot_dimension_numbers<[1], [0], [0], [1], [0, 0, 1, 1], [], []>} : vector<49x49xf32>, vector<49x64xf32>, vector<49x64xf32> -> vector<49x64xf32>
    %152 = arith.addf %145, %151 : vector<49x64xf32>
    %c8_132 = arith.constant 8 : index
    %c0_133 = arith.constant 0 : index
    %c0_134 = arith.constant 0 : index
    %153 = vector.load %arg7[%c8_132, %c0_133, %c0_134] : memref<9x32x64xbf16, #tpu.memory_space<vmem>>, vector<1x32x64xbf16>
    %154 = vector.shape_cast %153 : vector<1x32x64xbf16> to vector<32x64xbf16>
    %cst_135 = arith.constant dense<0.000000e+00> : vector<49x64xf32>
    %155 = tpu.matmul %95, %154, %cst_135 {dimension_numbers = #tpu.dot_dimension_numbers<[1], [0], [0], [1], [0, 0, 1, 1], [], []>} : vector<49x32xbf16>, vector<32x64xbf16>, vector<49x64xf32> -> vector<49x64xf32>
    %c8_136 = arith.constant 8 : index
    %c0_137 = arith.constant 0 : index
    %c0_138 = arith.constant 0 : index
    %156 = vector.load %arg4[%c8_136, %c0_137, %c0_138] : memref<9x49x49xf32, #tpu.memory_space<vmem>>, vector<1x49x49xf32>
    %157 = vector.shape_cast %156 : vector<1x49x49xf32> to vector<49x49xf32>
    %cst_139 = arith.constant dense<0.000000e+00> : vector<49x64xf32>
    %158 = tpu.matmul %157, %155, %cst_139 {dimension_numbers = #tpu.dot_dimension_numbers<[1], [0], [0], [1], [0, 0, 1, 1], [], []>} : vector<49x49xf32>, vector<49x64xf32>, vector<49x64xf32> -> vector<49x64xf32>
    %159 = arith.addf %152, %158 : vector<49x64xf32>
    %c0_140 = arith.constant 0 : index
    %c0_141 = arith.constant 0 : index
    %160 = vector.load %arg8[%c0_140, %c0_141] : memref<1x64xf32, #tpu.memory_space<vmem>>, vector<1x64xf32>
    %161 = vector.broadcast %160 : vector<1x64xf32> to vector<49x64xf32>
    %162 = arith.addf %159, %161 : vector<49x64xf32>
    %cst_142 = arith.constant 0.000000e+00 : f32
    %163 = vector.broadcast %cst_142 : f32 to vector<49x64xf32>
    %164 = arith.maximumf %162, %163 : vector<49x64xf32>
    %165 = arith.truncf %164 : vector<49x64xf32> to vector<49x64xbf16>
    %cst_143 = arith.constant 0.000000e+00 : f32
    %166 = vector.broadcast %cst_143 : f32 to vector<49x128xf32>
    %c0_144 = arith.constant 0 : index
    %c0_145 = arith.constant 0 : index
    %c0_146 = arith.constant 0 : index
    %167 = vector.load %arg9[%c0_144, %c0_145, %c0_146] : memref<9x64x128xbf16, #tpu.memory_space<vmem>>, vector<1x64x128xbf16>
    %168 = vector.shape_cast %167 : vector<1x64x128xbf16> to vector<64x128xbf16>
    %cst_147 = arith.constant dense<0.000000e+00> : vector<49x128xf32>
    %169 = tpu.matmul %165, %168, %cst_147 {dimension_numbers = #tpu.dot_dimension_numbers<[1], [0], [0], [1], [0, 0, 1, 1], [], []>} : vector<49x64xbf16>, vector<64x128xbf16>, vector<49x128xf32> -> vector<49x128xf32>
    %c0_148 = arith.constant 0 : index
    %c0_149 = arith.constant 0 : index
    %c0_150 = arith.constant 0 : index
    %170 = vector.load %arg4[%c0_148, %c0_149, %c0_150] : memref<9x49x49xf32, #tpu.memory_space<vmem>>, vector<1x49x49xf32>
    %171 = vector.shape_cast %170 : vector<1x49x49xf32> to vector<49x49xf32>
    %cst_151 = arith.constant dense<0.000000e+00> : vector<49x128xf32>
    %172 = tpu.matmul %171, %169, %cst_151 {dimension_numbers = #tpu.dot_dimension_numbers<[1], [0], [0], [1], [0, 0, 1, 1], [], []>} : vector<49x49xf32>, vector<49x128xf32>, vector<49x128xf32> -> vector<49x128xf32>
    %173 = arith.addf %166, %172 : vector<49x128xf32>
    %c1_152 = arith.constant 1 : index
    %c0_153 = arith.constant 0 : index
    %c0_154 = arith.constant 0 : index
    %174 = vector.load %arg9[%c1_152, %c0_153, %c0_154] : memref<9x64x128xbf16, #tpu.memory_space<vmem>>, vector<1x64x128xbf16>
    %175 = vector.shape_cast %174 : vector<1x64x128xbf16> to vector<64x128xbf16>
    %cst_155 = arith.constant dense<0.000000e+00> : vector<49x128xf32>
    %176 = tpu.matmul %165, %175, %cst_155 {dimension_numbers = #tpu.dot_dimension_numbers<[1], [0], [0], [1], [0, 0, 1, 1], [], []>} : vector<49x64xbf16>, vector<64x128xbf16>, vector<49x128xf32> -> vector<49x128xf32>
    %c1_156 = arith.constant 1 : index
    %c0_157 = arith.constant 0 : index
    %c0_158 = arith.constant 0 : index
    %177 = vector.load %arg4[%c1_156, %c0_157, %c0_158] : memref<9x49x49xf32, #tpu.memory_space<vmem>>, vector<1x49x49xf32>
    %178 = vector.shape_cast %177 : vector<1x49x49xf32> to vector<49x49xf32>
    %cst_159 = arith.constant dense<0.000000e+00> : vector<49x128xf32>
    %179 = tpu.matmul %178, %176, %cst_159 {dimension_numbers = #tpu.dot_dimension_numbers<[1], [0], [0], [1], [0, 0, 1, 1], [], []>} : vector<49x49xf32>, vector<49x128xf32>, vector<49x128xf32> -> vector<49x128xf32>
    %180 = arith.addf %173, %179 : vector<49x128xf32>
    %c2_160 = arith.constant 2 : index
    %c0_161 = arith.constant 0 : index
    %c0_162 = arith.constant 0 : index
    %181 = vector.load %arg9[%c2_160, %c0_161, %c0_162] : memref<9x64x128xbf16, #tpu.memory_space<vmem>>, vector<1x64x128xbf16>
    %182 = vector.shape_cast %181 : vector<1x64x128xbf16> to vector<64x128xbf16>
    %cst_163 = arith.constant dense<0.000000e+00> : vector<49x128xf32>
    %183 = tpu.matmul %165, %182, %cst_163 {dimension_numbers = #tpu.dot_dimension_numbers<[1], [0], [0], [1], [0, 0, 1, 1], [], []>} : vector<49x64xbf16>, vector<64x128xbf16>, vector<49x128xf32> -> vector<49x128xf32>
    %c2_164 = arith.constant 2 : index
    %c0_165 = arith.constant 0 : index
    %c0_166 = arith.constant 0 : index
    %184 = vector.load %arg4[%c2_164, %c0_165, %c0_166] : memref<9x49x49xf32, #tpu.memory_space<vmem>>, vector<1x49x49xf32>
    %185 = vector.shape_cast %184 : vector<1x49x49xf32> to vector<49x49xf32>
    %cst_167 = arith.constant dense<0.000000e+00> : vector<49x128xf32>
    %186 = tpu.matmul %185, %183, %cst_167 {dimension_numbers = #tpu.dot_dimension_numbers<[1], [0], [0], [1], [0, 0, 1, 1], [], []>} : vector<49x49xf32>, vector<49x128xf32>, vector<49x128xf32> -> vector<49x128xf32>
    %187 = arith.addf %180, %186 : vector<49x128xf32>
    %c3_168 = arith.constant 3 : index
    %c0_169 = arith.constant 0 : index
    %c0_170 = arith.constant 0 : index
    %188 = vector.load %arg9[%c3_168, %c0_169, %c0_170] : memref<9x64x128xbf16, #tpu.memory_space<vmem>>, vector<1x64x128xbf16>
    %189 = vector.shape_cast %188 : vector<1x64x128xbf16> to vector<64x128xbf16>
    %cst_171 = arith.constant dense<0.000000e+00> : vector<49x128xf32>
    %190 = tpu.matmul %165, %189, %cst_171 {dimension_numbers = #tpu.dot_dimension_numbers<[1], [0], [0], [1], [0, 0, 1, 1], [], []>} : vector<49x64xbf16>, vector<64x128xbf16>, vector<49x128xf32> -> vector<49x128xf32>
    %c3_172 = arith.constant 3 : index
    %c0_173 = arith.constant 0 : index
    %c0_174 = arith.constant 0 : index
    %191 = vector.load %arg4[%c3_172, %c0_173, %c0_174] : memref<9x49x49xf32, #tpu.memory_space<vmem>>, vector<1x49x49xf32>
    %192 = vector.shape_cast %191 : vector<1x49x49xf32> to vector<49x49xf32>
    %cst_175 = arith.constant dense<0.000000e+00> : vector<49x128xf32>
    %193 = tpu.matmul %192, %190, %cst_175 {dimension_numbers = #tpu.dot_dimension_numbers<[1], [0], [0], [1], [0, 0, 1, 1], [], []>} : vector<49x49xf32>, vector<49x128xf32>, vector<49x128xf32> -> vector<49x128xf32>
    %194 = arith.addf %187, %193 : vector<49x128xf32>
    %c4_176 = arith.constant 4 : index
    %c0_177 = arith.constant 0 : index
    %c0_178 = arith.constant 0 : index
    %195 = vector.load %arg9[%c4_176, %c0_177, %c0_178] : memref<9x64x128xbf16, #tpu.memory_space<vmem>>, vector<1x64x128xbf16>
    %196 = vector.shape_cast %195 : vector<1x64x128xbf16> to vector<64x128xbf16>
    %cst_179 = arith.constant dense<0.000000e+00> : vector<49x128xf32>
    %197 = tpu.matmul %165, %196, %cst_179 {dimension_numbers = #tpu.dot_dimension_numbers<[1], [0], [0], [1], [0, 0, 1, 1], [], []>} : vector<49x64xbf16>, vector<64x128xbf16>, vector<49x128xf32> -> vector<49x128xf32>
    %c4_180 = arith.constant 4 : index
    %c0_181 = arith.constant 0 : index
    %c0_182 = arith.constant 0 : index
    %198 = vector.load %arg4[%c4_180, %c0_181, %c0_182] : memref<9x49x49xf32, #tpu.memory_space<vmem>>, vector<1x49x49xf32>
    %199 = vector.shape_cast %198 : vector<1x49x49xf32> to vector<49x49xf32>
    %cst_183 = arith.constant dense<0.000000e+00> : vector<49x128xf32>
    %200 = tpu.matmul %199, %197, %cst_183 {dimension_numbers = #tpu.dot_dimension_numbers<[1], [0], [0], [1], [0, 0, 1, 1], [], []>} : vector<49x49xf32>, vector<49x128xf32>, vector<49x128xf32> -> vector<49x128xf32>
    %201 = arith.addf %194, %200 : vector<49x128xf32>
    %c5_184 = arith.constant 5 : index
    %c0_185 = arith.constant 0 : index
    %c0_186 = arith.constant 0 : index
    %202 = vector.load %arg9[%c5_184, %c0_185, %c0_186] : memref<9x64x128xbf16, #tpu.memory_space<vmem>>, vector<1x64x128xbf16>
    %203 = vector.shape_cast %202 : vector<1x64x128xbf16> to vector<64x128xbf16>
    %cst_187 = arith.constant dense<0.000000e+00> : vector<49x128xf32>
    %204 = tpu.matmul %165, %203, %cst_187 {dimension_numbers = #tpu.dot_dimension_numbers<[1], [0], [0], [1], [0, 0, 1, 1], [], []>} : vector<49x64xbf16>, vector<64x128xbf16>, vector<49x128xf32> -> vector<49x128xf32>
    %c5_188 = arith.constant 5 : index
    %c0_189 = arith.constant 0 : index
    %c0_190 = arith.constant 0 : index
    %205 = vector.load %arg4[%c5_188, %c0_189, %c0_190] : memref<9x49x49xf32, #tpu.memory_space<vmem>>, vector<1x49x49xf32>
    %206 = vector.shape_cast %205 : vector<1x49x49xf32> to vector<49x49xf32>
    %cst_191 = arith.constant dense<0.000000e+00> : vector<49x128xf32>
    %207 = tpu.matmul %206, %204, %cst_191 {dimension_numbers = #tpu.dot_dimension_numbers<[1], [0], [0], [1], [0, 0, 1, 1], [], []>} : vector<49x49xf32>, vector<49x128xf32>, vector<49x128xf32> -> vector<49x128xf32>
    %208 = arith.addf %201, %207 : vector<49x128xf32>
    %c6_192 = arith.constant 6 : index
    %c0_193 = arith.constant 0 : index
    %c0_194 = arith.constant 0 : index
    %209 = vector.load %arg9[%c6_192, %c0_193, %c0_194] : memref<9x64x128xbf16, #tpu.memory_space<vmem>>, vector<1x64x128xbf16>
    %210 = vector.shape_cast %209 : vector<1x64x128xbf16> to vector<64x128xbf16>
    %cst_195 = arith.constant dense<0.000000e+00> : vector<49x128xf32>
    %211 = tpu.matmul %165, %210, %cst_195 {dimension_numbers = #tpu.dot_dimension_numbers<[1], [0], [0], [1], [0, 0, 1, 1], [], []>} : vector<49x64xbf16>, vector<64x128xbf16>, vector<49x128xf32> -> vector<49x128xf32>
    %c6_196 = arith.constant 6 : index
    %c0_197 = arith.constant 0 : index
    %c0_198 = arith.constant 0 : index
    %212 = vector.load %arg4[%c6_196, %c0_197, %c0_198] : memref<9x49x49xf32, #tpu.memory_space<vmem>>, vector<1x49x49xf32>
    %213 = vector.shape_cast %212 : vector<1x49x49xf32> to vector<49x49xf32>
    %cst_199 = arith.constant dense<0.000000e+00> : vector<49x128xf32>
    %214 = tpu.matmul %213, %211, %cst_199 {dimension_numbers = #tpu.dot_dimension_numbers<[1], [0], [0], [1], [0, 0, 1, 1], [], []>} : vector<49x49xf32>, vector<49x128xf32>, vector<49x128xf32> -> vector<49x128xf32>
    %215 = arith.addf %208, %214 : vector<49x128xf32>
    %c7_200 = arith.constant 7 : index
    %c0_201 = arith.constant 0 : index
    %c0_202 = arith.constant 0 : index
    %216 = vector.load %arg9[%c7_200, %c0_201, %c0_202] : memref<9x64x128xbf16, #tpu.memory_space<vmem>>, vector<1x64x128xbf16>
    %217 = vector.shape_cast %216 : vector<1x64x128xbf16> to vector<64x128xbf16>
    %cst_203 = arith.constant dense<0.000000e+00> : vector<49x128xf32>
    %218 = tpu.matmul %165, %217, %cst_203 {dimension_numbers = #tpu.dot_dimension_numbers<[1], [0], [0], [1], [0, 0, 1, 1], [], []>} : vector<49x64xbf16>, vector<64x128xbf16>, vector<49x128xf32> -> vector<49x128xf32>
    %c7_204 = arith.constant 7 : index
    %c0_205 = arith.constant 0 : index
    %c0_206 = arith.constant 0 : index
    %219 = vector.load %arg4[%c7_204, %c0_205, %c0_206] : memref<9x49x49xf32, #tpu.memory_space<vmem>>, vector<1x49x49xf32>
    %220 = vector.shape_cast %219 : vector<1x49x49xf32> to vector<49x49xf32>
    %cst_207 = arith.constant dense<0.000000e+00> : vector<49x128xf32>
    %221 = tpu.matmul %220, %218, %cst_207 {dimension_numbers = #tpu.dot_dimension_numbers<[1], [0], [0], [1], [0, 0, 1, 1], [], []>} : vector<49x49xf32>, vector<49x128xf32>, vector<49x128xf32> -> vector<49x128xf32>
    %222 = arith.addf %215, %221 : vector<49x128xf32>
    %c8_208 = arith.constant 8 : index
    %c0_209 = arith.constant 0 : index
    %c0_210 = arith.constant 0 : index
    %223 = vector.load %arg9[%c8_208, %c0_209, %c0_210] : memref<9x64x128xbf16, #tpu.memory_space<vmem>>, vector<1x64x128xbf16>
    %224 = vector.shape_cast %223 : vector<1x64x128xbf16> to vector<64x128xbf16>
    %cst_211 = arith.constant dense<0.000000e+00> : vector<49x128xf32>
    %225 = tpu.matmul %165, %224, %cst_211 {dimension_numbers = #tpu.dot_dimension_numbers<[1], [0], [0], [1], [0, 0, 1, 1], [], []>} : vector<49x64xbf16>, vector<64x128xbf16>, vector<49x128xf32> -> vector<49x128xf32>
    %c8_212 = arith.constant 8 : index
    %c0_213 = arith.constant 0 : index
    %c0_214 = arith.constant 0 : index
    %226 = vector.load %arg4[%c8_212, %c0_213, %c0_214] : memref<9x49x49xf32, #tpu.memory_space<vmem>>, vector<1x49x49xf32>
    %227 = vector.shape_cast %226 : vector<1x49x49xf32> to vector<49x49xf32>
    %cst_215 = arith.constant dense<0.000000e+00> : vector<49x128xf32>
    %228 = tpu.matmul %227, %225, %cst_215 {dimension_numbers = #tpu.dot_dimension_numbers<[1], [0], [0], [1], [0, 0, 1, 1], [], []>} : vector<49x49xf32>, vector<49x128xf32>, vector<49x128xf32> -> vector<49x128xf32>
    %229 = arith.addf %222, %228 : vector<49x128xf32>
    %c0_216 = arith.constant 0 : index
    %c0_217 = arith.constant 0 : index
    %230 = vector.load %arg10[%c0_216, %c0_217] : memref<1x128xf32, #tpu.memory_space<vmem>>, vector<1x128xf32>
    %231 = vector.broadcast %230 : vector<1x128xf32> to vector<49x128xf32>
    %232 = arith.addf %229, %231 : vector<49x128xf32>
    %cst_218 = arith.constant 0.000000e+00 : f32
    %233 = vector.broadcast %cst_218 : f32 to vector<49x128xf32>
    %234 = arith.maximumf %232, %233 : vector<49x128xf32>
    %235 = arith.truncf %234 : vector<49x128xf32> to vector<49x128xbf16>
    %c0_219 = arith.constant 0 : index
    %c0_220 = arith.constant 0 : index
    %c0_221 = arith.constant 0 : index
    %236 = vector.load %arg11[%c0_219, %c0_220, %c0_221] : memref<1x49x128xbf16, #tpu.memory_space<vmem>>, vector<1x49x128xbf16>
    %237 = vector.shape_cast %236 : vector<1x49x128xbf16> to vector<49x128xbf16>
    %238 = vector.shape_cast %235 : vector<49x128xbf16> to vector<1x49x128xbf16>
    tpu.vector_store %arg11[%c0_219, %c0_220, %c0_221], %238 {strides = array<i32>} : memref<1x49x128xbf16, #tpu.memory_space<vmem>>, vector<1x49x128xbf16>,
    return
  }
  func.func @transform_0(%arg0: i32) -> (i32, i32, i32) {
    %c0_i32 = arith.constant 0 : i32
    %c0_i32_0 = arith.constant 0 : i32
    %c0_i32_1 = arith.constant 0 : i32
    return %arg0, %c0_i32, %c0_i32_0 : i32, i32, i32
  }
  func.func @transform_1(%arg0: i32) -> (i32, i32, i32) {
    %c0_i32 = arith.constant 0 : i32
    %c0_i32_0 = arith.constant 0 : i32
    %c0_i32_1 = arith.constant 0 : i32
    %c0_i32_2 = arith.constant 0 : i32
    return %c0_i32, %c0_i32_0, %c0_i32_1 : i32, i32, i32
  }
  func.func @transform_2(%arg0: i32) -> (i32, i32, i32) {
    %c0_i32 = arith.constant 0 : i32
    %c0_i32_0 = arith.constant 0 : i32
    %c0_i32_1 = arith.constant 0 : i32
    %c0_i32_2 = arith.constant 0 : i32
    return %c0_i32, %c0_i32_0, %c0_i32_1 : i32, i32, i32
  }
  func.func @transform_3(%arg0: i32) -> (i32, i32, i32) {
    %c0_i32 = arith.constant 0 : i32
    %c0_i32_0 = arith.constant 0 : i32
    %c0_i32_1 = arith.constant 0 : i32
    %c0_i32_2 = arith.constant 0 : i32
    return %c0_i32, %c0_i32_0, %c0_i32_1 : i32, i32, i32
  }
  func.func @transform_4(%arg0: i32) -> (i32, i32) {
    %c0_i32 = arith.constant 0 : i32
    %c0_i32_0 = arith.constant 0 : i32
    %c0_i32_1 = arith.constant 0 : i32
    return %c0_i32, %c0_i32_0 : i32, i32
  }
  func.func @transform_5(%arg0: i32) -> (i32, i32) {
    %c0_i32 = arith.constant 0 : i32
    %c0_i32_0 = arith.constant 0 : i32
    %c0_i32_1 = arith.constant 0 : i32
    return %c0_i32, %c0_i32_0 : i32, i32
  }
  func.func @transform_6(%arg0: i32) -> (i32, i32, i32) {
    %c0_i32 = arith.constant 0 : i32
    %c0_i32_0 = arith.constant 0 : i32
    %c0_i32_1 = arith.constant 0 : i32
    %c0_i32_2 = arith.constant 0 : i32
    return %c0_i32, %c0_i32_0, %c0_i32_1 : i32, i32, i32
  }
  func.func @transform_7(%arg0: i32) -> (i32, i32) {
    %c0_i32 = arith.constant 0 : i32
    %c0_i32_0 = arith.constant 0 : i32
    %c0_i32_1 = arith.constant 0 : i32
    return %c0_i32, %c0_i32_0 : i32, i32
  }
  func.func @transform_8(%arg0: i32) -> (i32, i32, i32) {
    %c0_i32 = arith.constant 0 : i32
    %c0_i32_0 = arith.constant 0 : i32
    %c0_i32_1 = arith.constant 0 : i32
    %c0_i32_2 = arith.constant 0 : i32
    return %c0_i32, %c0_i32_0, %c0_i32_1 : i32, i32, i32
  }
  func.func @transform_9(%arg0: i32) -> (i32, i32) {
    %c0_i32 = arith.constant 0 : i32
    %c0_i32_0 = arith.constant 0 : i32
    %c0_i32_1 = arith.constant 0 : i32
    return %c0_i32, %c0_i32_0 : i32, i32
  }
  func.func @transform_10(%arg0: i32) -> (i32, i32, i32) {
    %c0_i32 = arith.constant 0 : i32
    %c0_i32_0 = arith.constant 0 : i32
    %c0_i32_1 = arith.constant 0 : i32
    return %arg0, %c0_i32, %c0_i32_0 : i32, i32, i32
  }
}

</mosaic_0001>

<llo_original>
// kernel: cnn_classifier_forward.3
$region0: #{cnn_classifier_forward.3}
  #allocation0 [shape = 'u32[]', space=smem, size = 0x4, offset = 0x4, fixed_abs, tag = 'smem constant byte address 0x4 - core index']
  #allocation1 [shape = 'u32[72,128]{1,0:T(1,128)}', space=vmem, size = 0x9000, scoped, tag = 'internal scratch']
  %s0 = inlined_call_operand.vmem [shape: bf16[8,6272], index: 0, kind: input, shape index: {}]
  %s1 = inlined_call_operand.hbm [shape: bf16[6272,128], index: 1, kind: input, shape index: {}]
  %s2 = inlined_call_operand.hbm [shape: f32[1,128], index: 2, kind: input, shape index: {}]
  %s3 = inlined_call_operand.vmem [shape: bf16[128,64], index: 3, kind: input, shape index: {}]
  %s4 = inlined_call_operand.hbm [shape: f32[1,64], index: 4, kind: input, shape index: {}]
  %s5 = inlined_call_operand.vmem [shape: bf16[64,32], index: 5, kind: input, shape index: {}]
  %s6 = inlined_call_operand.hbm [shape: f32[1,32], index: 6, kind: input, shape index: {}]
  %s7 = inlined_call_operand.hbm [shape: bf16[32,128], index: 7, kind: input, shape index: {}]
  %s8 = inlined_call_operand.hbm [shape: f32[1,128], index: 8, kind: input, shape index: {}]
  %s9 = inlined_call_operand.vmem [shape: f32[8,128], index: 9, kind: output, shape index: {}]
  %s10 = sld [smem:[#allocation0]]
  $region70: #{cnn_classifier_forward.3} parent=0
    _
  %s12 = ssub.s32 1, %s10
  %s13 = scalar_select 0, %s12, %s10
  $region1: #{cnn_classifier_forward.3} parent=0
    #allocation2 [shape = 'u8[1605632]{0}', space=vmem, size = 0x188000, scoped, tag = 'input window, operand 1, single buffered']
    #allocation3 [shape = 's32[1]{0}', space=sflag, size = 0x4, scoped, tag = 'scoped memory for cnn_classifier_forward.3']
    #allocation4 [shape = 'u8[512]{0}', space=vmem, size = 0x400, scoped, tag = 'input window, operand 2, single buffered']
    #allocation5 [shape = 's32[1]{0}', space=sflag, size = 0x4, scoped, tag = 'scoped memory for cnn_classifier_forward.3']
    #allocation6 [shape = 'u8[512]{0}', space=vmem, size = 0x400, scoped, tag = 'input window, operand 4, single buffered']
    #allocation7 [shape = 'u8[512]{0}', space=vmem, size = 0x400, scoped, tag = 'input window, operand 6, single buffered']
    #allocation8 [shape = 's32[1]{0}', space=sflag, size = 0x4, scoped, tag = 'scoped memory for cnn_classifier_forward.3']
    #allocation9 [shape = 'u8[8192]{0}', space=vmem, size = 0x2000, scoped, tag = 'input window, operand 7, single buffered']
    #allocation10 [shape = 'u8[512]{0}', space=vmem, size = 0x400, scoped, tag = 'input window, operand 8, single buffered']
    #allocation11 [shape = 's32[1]{0}', space=sflag, size = 0x4, scoped, tag = 'scoped memory for cnn_classifier_forward.3']
    %14 = vsyncpa [#allocation3], 0
    %15 = vsyncpa [#allocation5], 0
    %16 = vsyncpa [#allocation8], 0
    %17 = vsyncpa [#allocation11], 0
    // Predicated region
    $region2: #{cnn_classifier_forward.3} parent=1 // pred_check
      _
    $region3: #{cnn_classifier_forward.3} parent=1 // pred_check_branch
      %19 = sbr.rel (0) target = $region5
    $region4: #{cnn_classifier_forward.3} parent=1 // pred_region
      _
    $region5: #{cnn_classifier_forward.3} parent=1 // pred_fallthru
      _
    // Predicated region
    $region6: #{cnn_classifier_forward.3} parent=1 // pred_check
      _
    $region7: #{cnn_classifier_forward.3} parent=1 // pred_check_branch
      %21 = sbr.rel (0) target = $region9
    $region8: #{cnn_classifier_forward.3} parent=1 // pred_region
      %23 = vsyncadd [#allocation3], 0
      %s24 = sshll.u32 %s1, 4
      %s25 = int_to_ptr.hbm [resolvable:$true] %s24
      %s26 = sshll.u32 [#allocation2], 4
      %s27 = int_to_ptr.vmem [resolvable:$true] %s26
      %32 = dma.hbm_to_vmem [thread:$0]  %s25, 50176, %s27, [#allocation3], 64, 64, 4
    $region9: #{cnn_classifier_forward.3} parent=1 // pred_fallthru
      _
    // Predicated region
    $region10: #{cnn_classifier_forward.3} parent=1 // pred_check
      _
    $region11: #{cnn_classifier_forward.3} parent=1 // pred_check_branch
      %34 = sbr.rel (0) target = $region13
    $region12: #{cnn_classifier_forward.3} parent=1 // pred_region
      %36 = vsyncadd [#allocation5], 0
      %s38 = sshll.u32 %s2, 4
      %s39 = int_to_ptr.hbm [resolvable:$true] %s38
      %s40 = sshll.u32 [#allocation4], 4
      %s41 = int_to_ptr.vmem [resolvable:$true] %s40
      %43 = dma.hbm_to_vmem [thread:$0]  %s39, 16, %s41, [#allocation5]
    $region13: #{cnn_classifier_forward.3} parent=1 // pred_fallthru
      _
    // Predicated region
    $region14: #{cnn_classifier_forward.3} parent=1 // pred_check
      _
    $region15: #{cnn_classifier_forward.3} parent=1 // pred_check_branch
      %45 = sbr.rel (0) target = $region17
    $region16: #{cnn_classifier_forward.3} parent=1 // pred_region
      _
    $region17: #{cnn_classifier_forward.3} parent=1 // pred_fallthru
      _
    // Predicated region
    $region18: #{cnn_classifier_forward.3} parent=1 // pred_check
      _
    $region19: #{cnn_classifier_forward.3} parent=1 // pred_check_branch
      %47 = sbr.rel (0) target = $region21
    $region20: #{cnn_classifier_forward.3} parent=1 // pred_region
      %49 = vsyncadd [#allocation5], 0
      %s51 = sshll.u32 %s4, 4
      %s52 = int_to_ptr.hbm [resolvable:$true] %s51
      %s53 = sshll.u32 [#allocation6], 4
      %s54 = int_to_ptr.vmem [resolvable:$true] %s53
      %56 = dma.hbm_to_vmem [thread:$0]  %s52, 16, %s54, [#allocation5]
    $region21: #{cnn_classifier_forward.3} parent=1 // pred_fallthru
      _
    // Predicated region
    $region22: #{cnn_classifier_forward.3} parent=1 // pred_check
      _
    $region23: #{cnn_classifier_forward.3} parent=1 // pred_check_branch
      %58 = sbr.rel (0) target = $region25
    $region24: #{cnn_classifier_forward.3} parent=1 // pred_region
      _
    $region25: #{cnn_classifier_forward.3} parent=1 // pred_fallthru
      _
    // Predicated region
    $region26: #{cnn_classifier_forward.3} parent=1 // pred_check
      _
    $region27: #{cnn_classifier_forward.3} parent=1 // pred_check_branch
      %60 = sbr.rel (0) target = $region29
    $region28: #{cnn_classifier_forward.3} parent=1 // pred_region
      %62 = vsyncadd [#allocation8], 0
      %s64 = sshll.u32 %s6, 4
      %s65 = int_to_ptr.hbm [resolvable:$true] %s64
      %s66 = sshll.u32 [#allocation7], 4
      %s67 = int_to_ptr.vmem [resolvable:$true] %s66
      %69 = dma.hbm_to_vmem [thread:$0]  %s65, 16, %s67, [#allocation8]
    $region29: #{cnn_classifier_forward.3} parent=1 // pred_fallthru
      _
    // Predicated region
    $region30: #{cnn_classifier_forward.3} parent=1 // pred_check
      _
    $region31: #{cnn_classifier_forward.3} parent=1 // pred_check_branch
      %71 = sbr.rel (0) target = $region33
    $region32: #{cnn_classifier_forward.3} parent=1 // pred_region
      %73 = vsyncadd [#allocation8], 0
      %s74 = sshll.u32 %s7, 4
      %s75 = int_to_ptr.hbm [resolvable:$true] %s74
      %s76 = sshll.u32 [#allocation9], 4
      %s77 = int_to_ptr.vmem [resolvable:$true] %s76
      %82 = dma.hbm_to_vmem [thread:$0]  %s75, 256, %s77, [#allocation8], 64, 64, 4
    $region33: #{cnn_classifier_forward.3} parent=1 // pred_fallthru
      _
    // Predicated region
    $region34: #{cnn_classifier_forward.3} parent=1 // pred_check
      _
    $region35: #{cnn_classifier_forward.3} parent=1 // pred_check_branch
      %84 = sbr.rel (0) target = $region37
    $region36: #{cnn_classifier_forward.3} parent=1 // pred_region
      %86 = vsyncadd [#allocation11], 0
      %s88 = sshll.u32 %s8, 4
      %s89 = int_to_ptr.hbm [resolvable:$true] %s88
      %s90 = sshll.u32 [#allocation10], 4
      %s91 = int_to_ptr.vmem [resolvable:$true] %s90
      %93 = dma.hbm_to_vmem [thread:$0]  %s89, 16, %s91, [#allocation11]
    $region37: #{cnn_classifier_forward.3} parent=1 // pred_fallthru
      _
    // Predicated region
    $region38: #{cnn_classifier_forward.3} parent=1 // pred_check
      _
    $region39: #{cnn_classifier_forward.3} parent=1 // pred_check_branch
      %95 = sbr.rel (0) target = $region41
    $region40: #{cnn_classifier_forward.3} parent=1 // pred_region
      %97 = dma.done [#allocation3], 50176
    $region41: #{cnn_classifier_forward.3} parent=1 // pred_fallthru
      _
    // Predicated region
    $region42: #{cnn_classifier_forward.3} parent=1 // pred_check
      _
    $region43: #{cnn_classifier_forward.3} parent=1 // pred_check_branch
      %99 = sbr.rel (0) target = $region45
    $region44: #{cnn_classifier_forward.3} parent=1 // pred_region
      %101 = dma.done [#allocation5], 16
    $region45: #{cnn_classifier_forward.3} parent=1 // pred_fallthru
      _
    // Predicated region
    $region46: #{cnn_classifier_forward.3} parent=1 // pred_check
      _
    $region47: #{cnn_classifier_forward.3} parent=1 // pred_check_branch
      %103 = sbr.rel (0) target = $region49
    $region48: #{cnn_classifier_forward.3} parent=1 // pred_region
      %105 = dma.done [#allocation5], 16
    $region49: #{cnn_classifier_forward.3} parent=1 // pred_fallthru
      _
    // Predicated region
    $region50: #{cnn_classifier_forward.3} parent=1 // pred_check
      _
    $region51: #{cnn_classifier_forward.3} parent=1 // pred_check_branch
      %107 = sbr.rel (0) target = $region53
    $region52: #{cnn_classifier_forward.3} parent=1 // pred_region
      %109 = dma.done [#allocation8], 16
    $region53: #{cnn_classifier_forward.3} parent=1 // pred_fallthru
      _
    // Predicated region
    $region54: #{cnn_classifier_forward.3} parent=1 // pred_check
      _
    $region55: #{cnn_classifier_forward.3} parent=1 // pred_check_branch
      %111 = sbr.rel (0) target = $region57
    $region56: #{cnn_classifier_forward.3} parent=1 // pred_region
      %113 = dma.done [#allocation8], 256
    $region57: #{cnn_classifier_forward.3} parent=1 // pred_fallthru
      _
    // Predicated region
    $region58: #{cnn_classifier_forward.3} parent=1 // pred_check
      _
    $region59: #{cnn_classifier_forward.3} parent=1 // pred_check_branch
      %115 = sbr.rel (0) target = $region61
    $region60: #{cnn_classifier_forward.3} parent=1 // pred_region
      %117 = dma.done [#allocation11], 16
    $region61: #{cnn_classifier_forward.3} parent=1 // pred_fallthru
      _
    %v119 = vld [vmem:[%s0] sm:$0xff]
    %v120 = vld [vmem:[%s0 + $0x8] sm:$0xff]
    %v121 = vld [vmem:[%s0 + $0x10] sm:$0xff]
    %v122 = vld [vmem:[%s0 + $0x18] sm:$0xff]
    %v123 = vld [vmem:[%s0 + $0x20] sm:$0xff]
    %v124 = vld [vmem:[%s0 + $0x28] sm:$0xff]
    %v125 = vld [vmem:[%s0 + $0x30] sm:$0xff]
    %v126 = vld [vmem:[%s0 + $0x38] sm:$0xff]
    %v127 = vld [vmem:[%s0 + $0x40] sm:$0xff]
    %v128 = vld [vmem:[%s0 + $0x48] sm:$0xff]
    %v129 = vld [vmem:[%s0 + $0x50] sm:$0xff]
    %v130 = vld [vmem:[%s0 + $0x58] sm:$0xff]
    %v131 = vld [vmem:[%s0 + $0x60] sm:$0xff]
    %v132 = vld [vmem:[%s0 + $0x68] sm:$0xff]
    %v133 = vld [vmem:[%s0 + $0x70] sm:$0xff]
    %v134 = vld [vmem:[%s0 + $0x78] sm:$0xff]
    %v135 = vld [vmem:[%s0 + $0x80] sm:$0xff]
    %v136 = vld [vmem:[%s0 + $0x88] sm:$0xff]
    %v137 = vld [vmem:[%s0 + $0x90] sm:$0xff]
    %v138 = vld [vmem:[%s0 + $0x98] sm:$0xff]
    %v139 = vld [vmem:[%s0 + $0xa0] sm:$0xff]
    %v140 = vld [vmem:[%s0 + $0xa8] sm:$0xff]
    %v141 = vld [vmem:[%s0 + $0xb0] sm:$0xff]
    %v142 = vld [vmem:[%s0 + $0xb8] sm:$0xff]
    %v143 = vld [vmem:[%s0 + $0xc0] sm:$0xf]
    %v144 = vld [vmem:[#allocation2] sm:$0xf]
    %v145 = vld [vmem:[#allocation2 + $0x4] sm:$0xf]
    %v146 = vld [vmem:[#allocation2 + $0x8] sm:$0xf]
    %v147 = vld [vmem:[#allocation2 + $0xc] sm:$0xf]
    %v148 = vld [vmem:[#allocation2 + $0x10] sm:$0xf]
    %v149 = vld [vmem:[#allocation2 + $0x14] sm:$0xf]
    %v150 = vld [vmem:[#allocation2 + $0x18] sm:$0xf]
    %v151 = vld [vmem:[#allocation2 + $0x1c] sm:$0xf]
    %v152 = vld [vmem:[#allocation2 + $0x20] sm:$0xf]
    %v153 = vld [vmem:[#allocation2 + $0x24] sm:$0xf]
    %v154 = vld [vmem:[#allocation2 + $0x28] sm:$0xf]
    %v155 = vld [vmem:[#allocation2 + $0x2c] sm:$0xf]
    %v156 = vld [vmem:[#allocation2 + $0x30] sm:$0xf]
    %v157 = vld [vmem:[#allocation2 + $0x34] sm:$0xf]
    %v158 = vld [vmem:[#allocation2 + $0x38] sm:$0xf]
    %v159 = vld [vmem:[#allocation2 + $0x3c] sm:$0xf]
    %v160 = vld [vmem:[#allocation2 + $0x40] sm:$0xf]
    %v161 = vld [vmem:[#allocation2 + $0x44] sm:$0xf]
    %v162 = vld [vmem:[#allocation2 + $0x48] sm:$0xf]
    %v163 = vld [vmem:[#allocation2 + $0x4c] sm:$0xf]
    %v164 = vld [vmem:[#allocation2 + $0x50] sm:$0xf]
    %v165 = vld [vmem:[#allocation2 + $0x54] sm:$0xf]
    %v166 = vld [vmem:[#allocation2 + $0x58] sm:$0xf]
    %v167 = vld [vmem:[#allocation2 + $0x5c] sm:$0xf]
    %v168 = vld [vmem:[#allocation2 + $0x60] sm:$0xf]
    %v169 = vld [vmem:[#allocation2 + $0x64] sm:$0xf]
    %v170 = vld [vmem:[#allocation2 + $0x68] sm:$0xf]
    %v171 = vld [vmem:[#allocation2 + $0x6c] sm:$0xf]
    %v172 = vld [vmem:[#allocation2 + $0x70] sm:$0xf]
    %v173 = vld [vmem:[#allocation2 + $0x74] sm:$0xf]
    %v174 = vld [vmem:[#allocation2 + $0x78] sm:$0xf]
    %v175 = vld [vmem:[#allocation2 + $0x7c] sm:$0xf]
    %v176 = vld [vmem:[#allocation2 + $0x80] sm:$0xf]
    %v177 = vld [vmem:[#allocation2 + $0x84] sm:$0xf]
    %v178 = vld [vmem:[#allocation2 + $0x88] sm:$0xf]
    %v179 = vld [vmem:[#allocation2 + $0x8c] sm:$0xf]
    %v180 = vld [vmem:[#allocation2 + $0x90] sm:$0xf]
    %v181 = vld [vmem:[#allocation2 + $0x94] sm:$0xf]
    %v182 = vld [vmem:[#allocation2 + $0x98] sm:$0xf]
    %v183 = vld [vmem:[#allocation2 + $0x9c] sm:$0xf]
    %v184 = vld [vmem:[#allocation2 + $0xa0] sm:$0xf]
    %v185 = vld [vmem:[#allocation2 + $0xa4] sm:$0xf]
    %v186 = vld [vmem:[#allocation2 + $0xa8] sm:$0xf]
    %v187 = vld [vmem:[#allocation2 + $0xac] sm:$0xf]
    %v188 = vld [vmem:[#allocation2 + $0xb0] sm:$0xf]
    %v189 = vld [vmem:[#allocation2 + $0xb4] sm:$0xf]
    %v190 = vld [vmem:[#allocation2 + $0xb8] sm:$0xf]
    %v191 = vld [vmem:[#allocation2 + $0xbc] sm:$0xf]
    %v192 = vld [vmem:[#allocation2 + $0xc0] sm:$0xf]
    %v193 = vld [vmem:[#allocation2 + $0xc4] sm:$0xf]
    %v194 = vld [vmem:[#allocation2 + $0xc8] sm:$0xf]
    %v195 = vld [vmem:[#allocation2 + $0xcc] sm:$0xf]
    %v196 = vld [vmem:[#allocation2 + $0xd0] sm:$0xf]
    %v197 = vld [vmem:[#allocation2 + $0xd4] sm:$0xf]
    %v198 = vld [vmem:[#allocation2 + $0xd8] sm:$0xf]
    %v199 = vld [vmem:[#allocation2 + $0xdc] sm:$0xf]
    %v200 = vld [vmem:[#allocation2 + $0xe0] sm:$0xf]
    %v201 = vld [vmem:[#allocation2 + $0xe4] sm:$0xf]
    %v202 = vld [vmem:[#allocation2 + $0xe8] sm:$0xf]
    %v203 = vld [vmem:[#allocation2 + $0xec] sm:$0xf]
    %v204 = vld [vmem:[#allocation2 + $0xf0] sm:$0xf]
    %v205 = vld [vmem:[#allocation2 + $0xf4] sm:$0xf]
    %v206 = vld [vmem:[#allocation2 + $0xf8] sm:$0xf]
    %v207 = vld [vmem:[#allocation2 + $0xfc] sm:$0xf]
    %v208 = vld [vmem:[#allocation2 + $0x100] sm:$0xf]
    %v209 = vld [vmem:[#allocation2 + $0x104] sm:$0xf]
    %v210 = vld [vmem:[#allocation2 + $0x108] sm:$0xf]
    %v211 = vld [vmem:[#allocation2 + $0x10c] sm:$0xf]
    %v212 = vld [vmem:[#allocation2 + $0x110] sm:$0xf]
    %v213 = vld [vmem:[#allocation2 + $0x114] sm:$0xf]
    %v214 = vld [vmem:[#allocation2 + $0x118] sm:$0xf]
    %v215 = vld [vmem:[#allocation2 + $0x11c] sm:$0xf]
    %v216 = vld [vmem:[#allocation2 + $0x120] sm:$0xf]
    %v217 = vld [vmem:[#allocation2 + $0x124] sm:$0xf]
    %v218 = vld [vmem:[#allocation2 + $0x128] sm:$0xf]
    %v219 = vld [vmem:[#allocation2 + $0x12c] sm:$0xf]
    %v220 = vld [vmem:[#allocation2 + $0x130] sm:$0xf]
    %v221 = vld [vmem:[#allocation2 + $0x134] sm:$0xf]
    %v222 = vld [vmem:[#allocation2 + $0x138] sm:$0xf]
    %v223 = vld [vmem:[#allocation2 + $0x13c] sm:$0xf]
    %v224 = vld [vmem:[#allocation2 + $0x140] sm:$0xf]
    %v225 = vld [vmem:[#allocation2 + $0x144] sm:$0xf]
    %v226 = vld [vmem:[#allocation2 + $0x148] sm:$0xf]
    %v227 = vld [vmem:[#allocation2 + $0x14c] sm:$0xf]
    %v228 = vld [vmem:[#allocation2 + $0x150] sm:$0xf]
    %v229 = vld [vmem:[#allocation2 + $0x154] sm:$0xf]
    %v230 = vld [vmem:[#allocation2 + $0x158] sm:$0xf]
    %v231 = vld [vmem:[#allocation2 + $0x15c] sm:$0xf]
    %v232 = vld [vmem:[#allocation2 + $0x160] sm:$0xf]
    %v233 = vld [vmem:[#allocation2 + $0x164] sm:$0xf]
    %v234 = vld [vmem:[#allocation2 + $0x168] sm:$0xf]
    %v235 = vld [vmem:[#allocation2 + $0x16c] sm:$0xf]
    %v236 = vld [vmem:[#allocation2 + $0x170] sm:$0xf]
    %v237 = vld [vmem:[#allocation2 + $0x174] sm:$0xf]
    %v238 = vld [vmem:[#allocation2 + $0x178] sm:$0xf]
    %v239 = vld [vmem:[#allocation2 + $0x17c] sm:$0xf]
    %v240 = vld [vmem:[#allocation2 + $0x180] sm:$0xf]
    %v241 = vld [vmem:[#allocation2 + $0x184] sm:$0xf]
    %v242 = vld [vmem:[#allocation2 + $0x188] sm:$0xf]
    %v243 = vld [vmem:[#allocation2 + $0x18c] sm:$0xf]
    %v244 = vld [vmem:[#allocation2 + $0x190] sm:$0xf]
    %v245 = vld [vmem:[#allocation2 + $0x194] sm:$0xf]
    %v246 = vld [vmem:[#allocation2 + $0x198] sm:$0xf]
    %v247 = vld [vmem:[#allocation2 + $0x19c] sm:$0xf]
    %v248 = vld [vmem:[#allocation2 + $0x1a0] sm:$0xf]
    %v249 = vld [vmem:[#allocation2 + $0x1a4] sm:$0xf]
    %v250 = vld [vmem:[#allocation2 + $0x1a8] sm:$0xf]
    %v251 = vld [vmem:[#allocation2 + $0x1ac] sm:$0xf]
    %v252 = vld [vmem:[#allocation2 + $0x1b0] sm:$0xf]
    %v253 = vld [vmem:[#allocation2 + $0x1b4] sm:$0xf]
    %v254 = vld [vmem:[#allocation2 + $0x1b8] sm:$0xf]
    %v255 = vld [vmem:[#allocation2 + $0x1bc] sm:$0xf]
    %v256 = vld [vmem:[#allocation2 + $0x1c0] sm:$0xf]
    %v257 = vld [vmem:[#allocation2 + $0x1c4] sm:$0xf]
    %v258 = vld [vmem:[#allocation2 + $0x1c8] sm:$0xf]
    %v259 = vld [vmem:[#allocation2 + $0x1cc] sm:$0xf]
    %v260 = vld [vmem:[#allocation2 + $0x1d0] sm:$0xf]
    %v261 = vld [vmem:[#allocation2 + $0x1d4] sm:$0xf]
    %v262 = vld [vmem:[#allocation2 + $0x1d8] sm:$0xf]
    %v263 = vld [vmem:[#allocation2 + $0x1dc] sm:$0xf]
    %v264 = vld [vmem:[#allocation2 + $0x1e0] sm:$0xf]
    %v265 = vld [vmem:[#allocation2 + $0x1e4] sm:$0xf]
    %v266 = vld [vmem:[#allocation2 + $0x1e8] sm:$0xf]
    %v267 = vld [vmem:[#allocation2 + $0x1ec] sm:$0xf]
    %v268 = vld [vmem:[#allocation2 + $0x1f0] sm:$0xf]
    %v269 = vld [vmem:[#allocation2 + $0x1f4] sm:$0xf]
    %v270 = vld [vmem:[#allocation2 + $0x1f8] sm:$0xf]
    %v271 = vld [vmem:[#allocation2 + $0x1fc] sm:$0xf]
    %v272 = vld [vmem:[#allocation2 + $0x200] sm:$0xf]
    %v273 = vld [vmem:[#allocation2 + $0x204] sm:$0xf]
    %v274 = vld [vmem:[#allocation2 + $0x208] sm:$0xf]
    %v275 = vld [vmem:[#allocation2 + $0x20c] sm:$0xf]
    %v276 = vld [vmem:[#allocation2 + $0x210] sm:$0xf]
    %v277 = vld [vmem:[#allocation2 + $0x214] sm:$0xf]
    %v278 = vld [vmem:[#allocation2 + $0x218] sm:$0xf]
    %v279 = vld [vmem:[#allocation2 + $0x21c] sm:$0xf]
    %v280 = vld [vmem:[#allocation2 + $0x220] sm:$0xf]
    %v281 = vld [vmem:[#allocation2 + $0x224] sm:$0xf]
    %v282 = vld [vmem:[#allocation2 + $0x228] sm:$0xf]
    %v283 = vld [vmem:[#allocation2 + $0x22c] sm:$0xf]
    %v284 = vld [vmem:[#allocation2 + $0x230] sm:$0xf]
    %v285 = vld [vmem:[#allocation2 + $0x234] sm:$0xf]
    %v286 = vld [vmem:[#allocation2 + $0x238] sm:$0xf]
    %v287 = vld [vmem:[#allocation2 + $0x23c] sm:$0xf]
    %v288 = vld [vmem:[#allocation2 + $0x240] sm:$0xf]
    %v289 = vld [vmem:[#allocation2 + $0x244] sm:$0xf]
    %v290 = vld [vmem:[#allocation2 + $0x248] sm:$0xf]
    %v291 = vld [vmem:[#allocation2 + $0x24c] sm:$0xf]
    %v292 = vld [vmem:[#allocation2 + $0x250] sm:$0xf]
    %v293 = vld [vmem:[#allocation2 + $0x254] sm:$0xf]
    %v294 = vld [vmem:[#allocation2 + $0x258] sm:$0xf]
    %v295 = vld [vmem:[#allocation2 + $0x25c] sm:$0xf]
    %v296 = vld [vmem:[#allocation2 + $0x260] sm:$0xf]
    %v297 = vld [vmem:[#allocation2 + $0x264] sm:$0xf]
    %v298 = vld [vmem:[#allocation2 + $0x268] sm:$0xf]
    %v299 = vld [vmem:[#allocation2 + $0x26c] sm:$0xf]
    %v300 = vld [vmem:[#allocation2 + $0x270] sm:$0xf]
    %v301 = vld [vmem:[#allocation2 + $0x274] sm:$0xf]
    %v302 = vld [vmem:[#allocation2 + $0x278] sm:$0xf]
    %v303 = vld [vmem:[#allocation2 + $0x27c] sm:$0xf]
    %v304 = vld [vmem:[#allocation2 + $0x280] sm:$0xf]
    %v305 = vld [vmem:[#allocation2 + $0x284] sm:$0xf]
    %v306 = vld [vmem:[#allocation2 + $0x288] sm:$0xf]
    %v307 = vld [vmem:[#allocation2 + $0x28c] sm:$0xf]
    %v308 = vld [vmem:[#allocation2 + $0x290] sm:$0xf]
    %v309 = vld [vmem:[#allocation2 + $0x294] sm:$0xf]
    %v310 = vld [vmem:[#allocation2 + $0x298] sm:$0xf]
    %v311 = vld [vmem:[#allocation2 + $0x29c] sm:$0xf]
    %v312 = vld [vmem:[#allocation2 + $0x2a0] sm:$0xf]
    %v313 = vld [vmem:[#allocation2 + $0x2a4] sm:$0xf]
    %v314 = vld [vmem:[#allocation2 + $0x2a8] sm:$0xf]
    %v315 = vld [vmem:[#allocation2 + $0x2ac] sm:$0xf]
    %v316 = vld [vmem:[#allocation2 + $0x2b0] sm:$0xf]
    %v317 = vld [vmem:[#allocation2 + $0x2b4] sm:$0xf]
    %v318 = vld [vmem:[#allocation2 + $0x2b8] sm:$0xf]
    %v319 = vld [vmem:[#allocation2 + $0x2bc] sm:$0xf]
    %v320 = vld [vmem:[#allocation2 + $0x2c0] sm:$0xf]
    %v321 = vld [vmem:[#allocation2 + $0x2c4] sm:$0xf]
    %v322 = vld [vmem:[#allocation2 + $0x2c8] sm:$0xf]
    %v323 = vld [vmem:[#allocation2 + $0x2cc] sm:$0xf]
    %v324 = vld [vmem:[#allocation2 + $0x2d0] sm:$0xf]
    %v325 = vld [vmem:[#allocation2 + $0x2d4] sm:$0xf]
    %v326 = vld [vmem:[#allocation2 + $0x2d8] sm:$0xf]
    %v327 = vld [vmem:[#allocation2 + $0x2dc] sm:$0xf]
    %v328 = vld [vmem:[#allocation2 + $0x2e0] sm:$0xf]
    %v329 = vld [vmem:[#allocation2 + $0x2e4] sm:$0xf]
    %v330 = vld [vmem:[#allocation2 + $0x2e8] sm:$0xf]
    %v331 = vld [vmem:[#allocation2 + $0x2ec] sm:$0xf]
    %v332 = vld [vmem:[#allocation2 + $0x2f0] sm:$0xf]
    %v333 = vld [vmem:[#allocation2 + $0x2f4] sm:$0xf]
    %v334 = vld [vmem:[#allocation2 + $0x2f8] sm:$0xf]
    %v335 = vld [vmem:[#allocation2 + $0x2fc] sm:$0xf]
    %v336 = vld [vmem:[#allocation2 + $0x300] sm:$0xf]
    %v337 = vld [vmem:[#allocation2 + $0x304] sm:$0xf]
    %v338 = vld [vmem:[#allocation2 + $0x308] sm:$0xf]
    %v339 = vld [vmem:[#allocation2 + $0x30c] sm:$0xf]
    %v340 = vld [vmem:[#allocation2 + $0x310] sm:$0xf]
    %v341 = vld [vmem:[#allocation2 + $0x314] sm:$0xf]
    %v342 = vld [vmem:[#allocation2 + $0x318] sm:$0xf]
    %v343 = vld [vmem:[#allocation2 + $0x31c] sm:$0xf]
    %v344 = vld [vmem:[#allocation2 + $0x320] sm:$0xf]
    %v345 = vld [vmem:[#allocation2 + $0x324] sm:$0xf]
    %v346 = vld [vmem:[#allocation2 + $0x328] sm:$0xf]
    %v347 = vld [vmem:[#allocation2 + $0x32c] sm:$0xf]
    %v348 = vld [vmem:[#allocation2 + $0x330] sm:$0xf]
    %v349 = vld [vmem:[#allocation2 + $0x334] sm:$0xf]
    %v350 = vld [vmem:[#allocation2 + $0x338] sm:$0xf]
    %v351 = vld [vmem:[#allocation2 + $0x33c] sm:$0xf]
    %v352 = vld [vmem:[#allocation2 + $0x340] sm:$0xf]
    %v353 = vld [vmem:[#allocation2 + $0x344] sm:$0xf]
    %v354 = vld [vmem:[#allocation2 + $0x348] sm:$0xf]
    %v355 = vld [vmem:[#allocation2 + $0x34c] sm:$0xf]
    %v356 = vld [vmem:[#allocation2 + $0x350] sm:$0xf]
    %v357 = vld [vmem:[#allocation2 + $0x354] sm:$0xf]
    %v358 = vld [vmem:[#allocation2 + $0x358] sm:$0xf]
    %v359 = vld [vmem:[#allocation2 + $0x35c] sm:$0xf]
    %v360 = vld [vmem:[#allocation2 + $0x360] sm:$0xf]
    %v361 = vld [vmem:[#allocation2 + $0x364] sm:$0xf]
    %v362 = vld [vmem:[#allocation2 + $0x368] sm:$0xf]
    %v363 = vld [vmem:[#allocation2 + $0x36c] sm:$0xf]
    %v364 = vld [vmem:[#allocation2 + $0x370] sm:$0xf]
    %v365 = vld [vmem:[#allocation2 + $0x374] sm:$0xf]
    %v366 = vld [vmem:[#allocation2 + $0x378] sm:$0xf]
    %v367 = vld [vmem:[#allocation2 + $0x37c] sm:$0xf]
    %v368 = vld [vmem:[#allocation2 + $0x380] sm:$0xf]
    %v369 = vld [vmem:[#allocation2 + $0x384] sm:$0xf]
    %v370 = vld [vmem:[#allocation2 + $0x388] sm:$0xf]
    %v371 = vld [vmem:[#allocation2 + $0x38c] sm:$0xf]
    %v372 = vld [vmem:[#allocation2 + $0x390] sm:$0xf]
    %v373 = vld [vmem:[#allocation2 + $0x394] sm:$0xf]
    %v374 = vld [vmem:[#allocation2 + $0x398] sm:$0xf]
    %v375 = vld [vmem:[#allocation2 + $0x39c] sm:$0xf]
    %v376 = vld [vmem:[#allocation2 + $0x3a0] sm:$0xf]
    %v377 = vld [vmem:[#allocation2 + $0x3a4] sm:$0xf]
    %v378 = vld [vmem:[#allocation2 + $0x3a8] sm:$0xf]
    %v379 = vld [vmem:[#allocation2 + $0x3ac] sm:$0xf]
    %v380 = vld [vmem:[#allocation2 + $0x3b0] sm:$0xf]
    %v381 = vld [vmem:[#allocation2 + $0x3b4] sm:$0xf]
    %v382 = vld [vmem:[#allocation2 + $0x3b8] sm:$0xf]
    %v383 = vld [vmem:[#allocation2 + $0x3bc] sm:$0xf]
    %v384 = vld [vmem:[#allocation2 + $0x3c0] sm:$0xf]
    %v385 = vld [vmem:[#allocation2 + $0x3c4] sm:$0xf]
    %v386 = vld [vmem:[#allocation2 + $0x3c8] sm:$0xf]
    %v387 = vld [vmem:[#allocation2 + $0x3cc] sm:$0xf]
    %v388 = vld [vmem:[#allocation2 + $0x3d0] sm:$0xf]
    %v389 = vld [vmem:[#allocation2 + $0x3d4] sm:$0xf]
    %v390 = vld [vmem:[#allocation2 + $0x3d8] sm:$0xf]
    %v391 = vld [vmem:[#allocation2 + $0x3dc] sm:$0xf]
    %v392 = vld [vmem:[#allocation2 + $0x3e0] sm:$0xf]
    %v393 = vld [vmem:[#allocation2 + $0x3e4] sm:$0xf]
    %v394 = vld [vmem:[#allocation2 + $0x3e8] sm:$0xf]
    %v395 = vld [vmem:[#allocation2 + $0x3ec] sm:$0xf]
    %v396 = vld [vmem:[#allocation2 + $0x3f0] sm:$0xf]
    %v397 = vld [vmem:[#allocation2 + $0x3f4] sm:$0xf]
    %v398 = vld [vmem:[#allocation2 + $0x3f8] sm:$0xf]
    %v399 = vld [vmem:[#allocation2 + $0x3fc] sm:$0xf]
    %v400 = vld [vmem:[#allocation2 + $0x400] sm:$0xf]
    %v401 = vld [vmem:[#allocation2 + $0x404] sm:$0xf]
    %v402 = vld [vmem:[#allocation2 + $0x408] sm:$0xf]
    %v403 = vld [vmem:[#allocation2 + $0x40c] sm:$0xf]
    %v404 = vld [vmem:[#allocation2 + $0x410] sm:$0xf]
    %v405 = vld [vmem:[#allocation2 + $0x414] sm:$0xf]
    %v406 = vld [vmem:[#allocation2 + $0x418] sm:$0xf]
    %v407 = vld [vmem:[#allocation2 + $0x41c] sm:$0xf]
    %v408 = vld [vmem:[#allocation2 + $0x420] sm:$0xf]
    %v409 = vld [vmem:[#allocation2 + $0x424] sm:$0xf]
    %v410 = vld [vmem:[#allocation2 + $0x428] sm:$0xf]
    %v411 = vld [vmem:[#allocation2 + $0x42c] sm:$0xf]
    %v412 = vld [vmem:[#allocation2 + $0x430] sm:$0xf]
    %v413 = vld [vmem:[#allocation2 + $0x434] sm:$0xf]
    %v414 = vld [vmem:[#allocation2 + $0x438] sm:$0xf]
    %v415 = vld [vmem:[#allocation2 + $0x43c] sm:$0xf]
    %v416 = vld [vmem:[#allocation2 + $0x440] sm:$0xf]
    %v417 = vld [vmem:[#allocation2 + $0x444] sm:$0xf]
    %v418 = vld [vmem:[#allocation2 + $0x448] sm:$0xf]
    %v419 = vld [vmem:[#allocation2 + $0x44c] sm:$0xf]
    %v420 = vld [vmem:[#allocation2 + $0x450] sm:$0xf]
    %v421 = vld [vmem:[#allocation2 + $0x454] sm:$0xf]
    %v422 = vld [vmem:[#allocation2 + $0x458] sm:$0xf]
    %v423 = vld [vmem:[#allocation2 + $0x45c] sm:$0xf]
    %v424 = vld [vmem:[#allocation2 + $0x460] sm:$0xf]
    %v425 = vld [vmem:[#allocation2 + $0x464] sm:$0xf]
    %v426 = vld [vmem:[#allocation2 + $0x468] sm:$0xf]
    %v427 = vld [vmem:[#allocation2 + $0x46c] sm:$0xf]
    %v428 = vld [vmem:[#allocation2 + $0x470] sm:$0xf]
    %v429 = vld [vmem:[#allocation2 + $0x474] sm:$0xf]
    %v430 = vld [vmem:[#allocation2 + $0x478] sm:$0xf]
    %v431 = vld [vmem:[#allocation2 + $0x47c] sm:$0xf]
    %v432 = vld [vmem:[#allocation2 + $0x480] sm:$0xf]
    %v433 = vld [vmem:[#allocation2 + $0x484] sm:$0xf]
    %v434 = vld [vmem:[#allocation2 + $0x488] sm:$0xf]
    %v435 = vld [vmem:[#allocation2 + $0x48c] sm:$0xf]
    %v436 = vld [vmem:[#allocation2 + $0x490] sm:$0xf]
    %v437 = vld [vmem:[#allocation2 + $0x494] sm:$0xf]
    %v438 = vld [vmem:[#allocation2 + $0x498] sm:$0xf]
    %v439 = vld [vmem:[#allocation2 + $0x49c] sm:$0xf]
    %v440 = vld [vmem:[#allocation2 + $0x4a0] sm:$0xf]
    %v441 = vld [vmem:[#allocation2 + $0x4a4] sm:$0xf]
    %v442 = vld [vmem:[#allocation2 + $0x4a8] sm:$0xf]
    %v443 = vld [vmem:[#allocation2 + $0x4ac] sm:$0xf]
    %v444 = vld [vmem:[#allocation2 + $0x4b0] sm:$0xf]
    %v445 = vld [vmem:[#allocation2 + $0x4b4] sm:$0xf]
    %v446 = vld [vmem:[#allocation2 + $0x4b8] sm:$0xf]
    %v447 = vld [vmem:[#allocation2 + $0x4bc] sm:$0xf]
    %v448 = vld [vmem:[#allocation2 + $0x4c0] sm:$0xf]
    %v449 = vld [vmem:[#allocation2 + $0x4c4] sm:$0xf]
    %v450 = vld [vmem:[#allocation2 + $0x4c8] sm:$0xf]
    %v451 = vld [vmem:[#allocation2 + $0x4cc] sm:$0xf]
    %v452 = vld [vmem:[#allocation2 + $0x4d0] sm:$0xf]
    %v453 = vld [vmem:[#allocation2 + $0x4d4] sm:$0xf]
    %v454 = vld [vmem:[#allocation2 + $0x4d8] sm:$0xf]
    %v455 = vld [vmem:[#allocation2 + $0x4dc] sm:$0xf]
    %v456 = vld [vmem:[#allocation2 + $0x4e0] sm:$0xf]
    %v457 = vld [vmem:[#allocation2 + $0x4e4] sm:$0xf]
    %v458 = vld [vmem:[#allocation2 + $0x4e8] sm:$0xf]
    %v459 = vld [vmem:[#allocation2 + $0x4ec] sm:$0xf]
    %v460 = vld [vmem:[#allocation2 + $0x4f0] sm:$0xf]
    %v461 = vld [vmem:[#allocation2 + $0x4f4] sm:$0xf]
    %v462 = vld [vmem:[#allocation2 + $0x4f8] sm:$0xf]
    %v463 = vld [vmem:[#allocation2 + $0x4fc] sm:$0xf]
    %v464 = vld [vmem:[#allocation2 + $0x500] sm:$0xf]
    %v465 = vld [vmem:[#allocation2 + $0x504] sm:$0xf]
    %v466 = vld [vmem:[#allocation2 + $0x508] sm:$0xf]
    %v467 = vld [vmem:[#allocation2 + $0x50c] sm:$0xf]
    %v468 = vld [vmem:[#allocation2 + $0x510] sm:$0xf]
    %v469 = vld [vmem:[#allocation2 + $0x514] sm:$0xf]
    %v470 = vld [vmem:[#allocation2 + $0x518] sm:$0xf]
    %v471 = vld [vmem:[#allocation2 + $0x51c] sm:$0xf]
    %v472 = vld [vmem:[#allocation2 + $0x520] sm:$0xf]
    %v473 = vld [vmem:[#allocation2 + $0x524] sm:$0xf]
    %v474 = vld [vmem:[#allocation2 + $0x528] sm:$0xf]
    %v475 = vld [vmem:[#allocation2 + $0x52c] sm:$0xf]
    %v476 = vld [vmem:[#allocation2 + $0x530] sm:$0xf]
    %v477 = vld [vmem:[#allocation2 + $0x534] sm:$0xf]
    %v478 = vld [vmem:[#allocation2 + $0x538] sm:$0xf]
    %v479 = vld [vmem:[#allocation2 + $0x53c] sm:$0xf]
    %v480 = vld [vmem:[#allocation2 + $0x540] sm:$0xf]
    %v481 = vld [vmem:[#allocation2 + $0x544] sm:$0xf]
    %v482 = vld [vmem:[#allocation2 + $0x548] sm:$0xf]
    %v483 = vld [vmem:[#allocation2 + $0x54c] sm:$0xf]
    %v484 = vld [vmem:[#allocation2 + $0x550] sm:$0xf]
    %v485 = vld [vmem:[#allocation2 + $0x554] sm:$0xf]
    %v486 = vld [vmem:[#allocation2 + $0x558] sm:$0xf]
    %v487 = vld [vmem:[#allocation2 + $0x55c] sm:$0xf]
    %v488 = vld [vmem:[#allocation2 + $0x560] sm:$0xf]
    %v489 = vld [vmem:[#allocation2 + $0x564] sm:$0xf]
    %v490 = vld [vmem:[#allocation2 + $0x568] sm:$0xf]
    %v491 = vld [vmem:[#allocation2 + $0x56c] sm:$0xf]
    %v492 = vld [vmem:[#allocation2 + $0x570] sm:$0xf]
    %v493 = vld [vmem:[#allocation2 + $0x574] sm:$0xf]
    %v494 = vld [vmem:[#allocation2 + $0x578] sm:$0xf]
    %v495 = vld [vmem:[#allocation2 + $0x57c] sm:$0xf]
    %v496 = vld [vmem:[#allocation2 + $0x580] sm:$0xf]
    %v497 = vld [vmem:[#allocation2 + $0x584] sm:$0xf]
    %v498 = vld [vmem:[#allocation2 + $0x588] sm:$0xf]
    %v499 = vld [vmem:[#allocation2 + $0x58c] sm:$0xf]
    %v500 = vld [vmem:[#allocation2 + $0x590] sm:$0xf]
    %v501 = vld [vmem:[#allocation2 + $0x594] sm:$0xf]
    %v502 = vld [vmem:[#allocation2 + $0x598] sm:$0xf]
    %v503 = vld [vmem:[#allocation2 + $0x59c] sm:$0xf]
    %v504 = vld [vmem:[#allocation2 + $0x5a0] sm:$0xf]
    %v505 = vld [vmem:[#allocation2 + $0x5a4] sm:$0xf]
    %v506 = vld [vmem:[#allocation2 + $0x5a8] sm:$0xf]
    %v507 = vld [vmem:[#allocation2 + $0x5ac] sm:$0xf]
    %v508 = vld [vmem:[#allocation2 + $0x5b0] sm:$0xf]
    %v509 = vld [vmem:[#allocation2 + $0x5b4] sm:$0xf]
    %v510 = vld [vmem:[#allocation2 + $0x5b8] sm:$0xf]
    %v511 = vld [vmem:[#allocation2 + $0x5bc] sm:$0xf]
    %v512 = vld [vmem:[#allocation2 + $0x5c0] sm:$0xf]
    %v513 = vld [vmem:[#allocation2 + $0x5c4] sm:$0xf]
    %v514 = vld [vmem:[#allocation2 + $0x5c8] sm:$0xf]
    %v515 = vld [vmem:[#allocation2 + $0x5cc] sm:$0xf]
    %v516 = vld [vmem:[#allocation2 + $0x5d0] sm:$0xf]
    %v517 = vld [vmem:[#allocation2 + $0x5d4] sm:$0xf]
    %v518 = vld [vmem:[#allocation2 + $0x5d8] sm:$0xf]
    %v519 = vld [vmem:[#allocation2 + $0x5dc] sm:$0xf]
    %v520 = vld [vmem:[#allocation2 + $0x5e0] sm:$0xf]
    %v521 = vld [vmem:[#allocation2 + $0x5e4] sm:$0xf]
    %v522 = vld [vmem:[#allocation2 + $0x5e8] sm:$0xf]
    %v523 = vld [vmem:[#allocation2 + $0x5ec] sm:$0xf]
    %v524 = vld [vmem:[#allocation2 + $0x5f0] sm:$0xf]
    %v525 = vld [vmem:[#allocation2 + $0x5f4] sm:$0xf]
    %v526 = vld [vmem:[#allocation2 + $0x5f8] sm:$0xf]
    %v527 = vld [vmem:[#allocation2 + $0x5fc] sm:$0xf]
    %v528 = vld [vmem:[#allocation2 + $0x600] sm:$0xf]
    %v529 = vld [vmem:[#allocation2 + $0x604] sm:$0xf]
    %v530 = vld [vmem:[#allocation2 + $0x608] sm:$0xf]
    %v531 = vld [vmem:[#allocation2 + $0x60c] sm:$0xf]
    %v532 = vld [vmem:[#allocation2 + $0x610] sm:$0xf]
    %v533 = vld [vmem:[#allocation2 + $0x614] sm:$0xf]
    %v534 = vld [vmem:[#allocation2 + $0x618] sm:$0xf]
    %v535 = vld [vmem:[#allocation2 + $0x61c] sm:$0xf]
    %v536 = vld [vmem:[#allocation2 + $0x620] sm:$0xf]
    %v537 = vld [vmem:[#allocation2 + $0x624] sm:$0xf]
    %v538 = vld [vmem:[#allocation2 + $0x628] sm:$0xf]
    %v539 = vld [vmem:[#allocation2 + $0x62c] sm:$0xf]
    %v540 = vld [vmem:[#allocation2 + $0x630] sm:$0xf]
    %v541 = vld [vmem:[#allocation2 + $0x634] sm:$0xf]
    %v542 = vld [vmem:[#allocation2 + $0x638] sm:$0xf]
    %v543 = vld [vmem:[#allocation2 + $0x63c] sm:$0xf]
    %v544 = vld [vmem:[#allocation2 + $0x640] sm:$0xf]
    %v545 = vld [vmem:[#allocation2 + $0x644] sm:$0xf]
    %v546 = vld [vmem:[#allocation2 + $0x648] sm:$0xf]
    %v547 = vld [vmem:[#allocation2 + $0x64c] sm:$0xf]
    %v548 = vld [vmem:[#allocation2 + $0x650] sm:$0xf]
    %v549 = vld [vmem:[#allocation2 + $0x654] sm:$0xf]
    %v550 = vld [vmem:[#allocation2 + $0x658] sm:$0xf]
    %v551 = vld [vmem:[#allocation2 + $0x65c] sm:$0xf]
    %v552 = vld [vmem:[#allocation2 + $0x660] sm:$0xf]
    %v553 = vld [vmem:[#allocation2 + $0x664] sm:$0xf]
    %v554 = vld [vmem:[#allocation2 + $0x668] sm:$0xf]
    %v555 = vld [vmem:[#allocation2 + $0x66c] sm:$0xf]
    %v556 = vld [vmem:[#allocation2 + $0x670] sm:$0xf]
    %v557 = vld [vmem:[#allocation2 + $0x674] sm:$0xf]
    %v558 = vld [vmem:[#allocation2 + $0x678] sm:$0xf]
    %v559 = vld [vmem:[#allocation2 + $0x67c] sm:$0xf]
    %v560 = vld [vmem:[#allocation2 + $0x680] sm:$0xf]
    %v561 = vld [vmem:[#allocation2 + $0x684] sm:$0xf]
    %v562 = vld [vmem:[#allocation2 + $0x688] sm:$0xf]
    %v563 = vld [vmem:[#allocation2 + $0x68c] sm:$0xf]
    %v564 = vld [vmem:[#allocation2 + $0x690] sm:$0xf]
    %v565 = vld [vmem:[#allocation2 + $0x694] sm:$0xf]
    %v566 = vld [vmem:[#allocation2 + $0x698] sm:$0xf]
    %v567 = vld [vmem:[#allocation2 + $0x69c] sm:$0xf]
    %v568 = vld [vmem:[#allocation2 + $0x6a0] sm:$0xf]
    %v569 = vld [vmem:[#allocation2 + $0x6a4] sm:$0xf]
    %v570 = vld [vmem:[#allocation2 + $0x6a8] sm:$0xf]
    %v571 = vld [vmem:[#allocation2 + $0x6ac] sm:$0xf]
    %v572 = vld [vmem:[#allocation2 + $0x6b0] sm:$0xf]
    %v573 = vld [vmem:[#allocation2 + $0x6b4] sm:$0xf]
    %v574 = vld [vmem:[#allocation2 + $0x6b8] sm:$0xf]
    %v575 = vld [vmem:[#allocation2 + $0x6bc] sm:$0xf]
    %v576 = vld [vmem:[#allocation2 + $0x6c0] sm:$0xf]
    %v577 = vld [vmem:[#allocation2 + $0x6c4] sm:$0xf]
    %v578 = vld [vmem:[#allocation2 + $0x6c8] sm:$0xf]
    %v579 = vld [vmem:[#allocation2 + $0x6cc] sm:$0xf]
    %v580 = vld [vmem:[#allocation2 + $0x6d0] sm:$0xf]
    %v581 = vld [vmem:[#allocation2 + $0x6d4] sm:$0xf]
    %v582 = vld [vmem:[#allocation2 + $0x6d8] sm:$0xf]
    %v583 = vld [vmem:[#allocation2 + $0x6dc] sm:$0xf]
    %v584 = vld [vmem:[#allocation2 + $0x6e0] sm:$0xf]
    %v585 = vld [vmem:[#allocation2 + $0x6e4] sm:$0xf]
    %v586 = vld [vmem:[#allocation2 + $0x6e8] sm:$0xf]
    %v587 = vld [vmem:[#allocation2 + $0x6ec] sm:$0xf]
    %v588 = vld [vmem:[#allocation2 + $0x6f0] sm:$0xf]
    %v589 = vld [vmem:[#allocation2 + $0x6f4] sm:$0xf]
    %v590 = vld [vmem:[#allocation2 + $0x6f8] sm:$0xf]
    %v591 = vld [vmem:[#allocation2 + $0x6fc] sm:$0xf]
    %v592 = vld [vmem:[#allocation2 + $0x700] sm:$0xf]
    %v593 = vld [vmem:[#allocation2 + $0x704] sm:$0xf]
    %v594 = vld [vmem:[#allocation2 + $0x708] sm:$0xf]
    %v595 = vld [vmem:[#allocation2 + $0x70c] sm:$0xf]
    %v596 = vld [vmem:[#allocation2 + $0x710] sm:$0xf]
    %v597 = vld [vmem:[#allocation2 + $0x714] sm:$0xf]
    %v598 = vld [vmem:[#allocation2 + $0x718] sm:$0xf]
    %v599 = vld [vmem:[#allocation2 + $0x71c] sm:$0xf]
    %v600 = vld [vmem:[#allocation2 + $0x720] sm:$0xf]
    %v601 = vld [vmem:[#allocation2 + $0x724] sm:$0xf]
    %v602 = vld [vmem:[#allocation2 + $0x728] sm:$0xf]
    %v603 = vld [vmem:[#allocation2 + $0x72c] sm:$0xf]
    %v604 = vld [vmem:[#allocation2 + $0x730] sm:$0xf]
    %v605 = vld [vmem:[#allocation2 + $0x734] sm:$0xf]
    %v606 = vld [vmem:[#allocation2 + $0x738] sm:$0xf]
    %v607 = vld [vmem:[#allocation2 + $0x73c] sm:$0xf]
    %v608 = vld [vmem:[#allocation2 + $0x740] sm:$0xf]
    %v609 = vld [vmem:[#allocation2 + $0x744] sm:$0xf]
    %v610 = vld [vmem:[#allocation2 + $0x748] sm:$0xf]
    %v611 = vld [vmem:[#allocation2 + $0x74c] sm:$0xf]
    %v612 = vld [vmem:[#allocation2 + $0x750] sm:$0xf]
    %v613 = vld [vmem:[#allocation2 + $0x754] sm:$0xf]
    %v614 = vld [vmem:[#allocation2 + $0x758] sm:$0xf]
    %v615 = vld [vmem:[#allocation2 + $0x75c] sm:$0xf]
    %v616 = vld [vmem:[#allocation2 + $0x760] sm:$0xf]
    %v617 = vld [vmem:[#allocation2 + $0x764] sm:$0xf]
    %v618 = vld [vmem:[#allocation2 + $0x768] sm:$0xf]
    %v619 = vld [vmem:[#allocation2 + $0x76c] sm:$0xf]
    %v620 = vld [vmem:[#allocation2 + $0x770] sm:$0xf]
    %v621 = vld [vmem:[#allocation2 + $0x774] sm:$0xf]
    %v622 = vld [vmem:[#allocation2 + $0x778] sm:$0xf]
    %v623 = vld [vmem:[#allocation2 + $0x77c] sm:$0xf]
    %v624 = vld [vmem:[#allocation2 + $0x780] sm:$0xf]
    %v625 = vld [vmem:[#allocation2 + $0x784] sm:$0xf]
    %v626 = vld [vmem:[#allocation2 + $0x788] sm:$0xf]
    %v627 = vld [vmem:[#allocation2 + $0x78c] sm:$0xf]
    %v628 = vld [vmem:[#allocation2 + $0x790] sm:$0xf]
    %v629 = vld [vmem:[#allocation2 + $0x794] sm:$0xf]
    %v630 = vld [vmem:[#allocation2 + $0x798] sm:$0xf]
    %v631 = vld [vmem:[#allocation2 + $0x79c] sm:$0xf]
    %v632 = vld [vmem:[#allocation2 + $0x7a0] sm:$0xf]
    %v633 = vld [vmem:[#allocation2 + $0x7a4] sm:$0xf]
    %v634 = vld [vmem:[#allocation2 + $0x7a8] sm:$0xf]
    %v635 = vld [vmem:[#allocation2 + $0x7ac] sm:$0xf]
    %v636 = vld [vmem:[#allocation2 + $0x7b0] sm:$0xf]
    %v637 = vld [vmem:[#allocation2 + $0x7b4] sm:$0xf]
    %v638 = vld [vmem:[#allocation2 + $0x7b8] sm:$0xf]
    %v639 = vld [vmem:[#allocation2 + $0x7bc] sm:$0xf]
    %v640 = vld [vmem:[#allocation2 + $0x7c0] sm:$0xf]
    %v641 = vld [vmem:[#allocation2 + $0x7c4] sm:$0xf]
    %v642 = vld [vmem:[#allocation2 + $0x7c8] sm:$0xf]
    %v643 = vld [vmem:[#allocation2 + $0x7cc] sm:$0xf]
    %v644 = vld [vmem:[#allocation2 + $0x7d0] sm:$0xf]
    %v645 = vld [vmem:[#allocation2 + $0x7d4] sm:$0xf]
    %v646 = vld [vmem:[#allocation2 + $0x7d8] sm:$0xf]
    %v647 = vld [vmem:[#allocation2 + $0x7dc] sm:$0xf]
    %v648 = vld [vmem:[#allocation2 + $0x7e0] sm:$0xf]
    %v649 = vld [vmem:[#allocation2 + $0x7e4] sm:$0xf]
    %v650 = vld [vmem:[#allocation2 + $0x7e8] sm:$0xf]
    %v651 = vld [vmem:[#allocation2 + $0x7ec] sm:$0xf]
    %v652 = vld [vmem:[#allocation2 + $0x7f0] sm:$0xf]
    %v653 = vld [vmem:[#allocation2 + $0x7f4] sm:$0xf]
    %v654 = vld [vmem:[#allocation2 + $0x7f8] sm:$0xf]
    %v655 = vld [vmem:[#allocation2 + $0x7fc] sm:$0xf]
    %v656 = vld [vmem:[#allocation2 + $0x800] sm:$0xf]
    %v657 = vld [vmem:[#allocation2 + $0x804] sm:$0xf]
    %v658 = vld [vmem:[#allocation2 + $0x808] sm:$0xf]
    %v659 = vld [vmem:[#allocation2 + $0x80c] sm:$0xf]
    %v660 = vld [vmem:[#allocation2 + $0x810] sm:$0xf]
    %v661 = vld [vmem:[#allocation2 + $0x814] sm:$0xf]
    %v662 = vld [vmem:[#allocation2 + $0x818] sm:$0xf]
    %v663 = vld [vmem:[#allocation2 + $0x81c] sm:$0xf]
    %v664 = vld [vmem:[#allocation2 + $0x820] sm:$0xf]
    %v665 = vld [vmem:[#allocation2 + $0x824] sm:$0xf]
    %v666 = vld [vmem:[#allocation2 + $0x828] sm:$0xf]
    %v667 = vld [vmem:[#allocation2 + $0x82c] sm:$0xf]
    %v668 = vld [vmem:[#allocation2 + $0x830] sm:$0xf]
    %v669 = vld [vmem:[#allocation2 + $0x834] sm:$0xf]
    %v670 = vld [vmem:[#allocation2 + $0x838] sm:$0xf]
    %v671 = vld [vmem:[#allocation2 + $0x83c] sm:$0xf]
    %v672 = vld [vmem:[#allocation2 + $0x840] sm:$0xf]
    %v673 = vld [vmem:[#allocation2 + $0x844] sm:$0xf]
    %v674 = vld [vmem:[#allocation2 + $0x848] sm:$0xf]
    %v675 = vld [vmem:[#allocation2 + $0x84c] sm:$0xf]
    %v676 = vld [vmem:[#allocation2 + $0x850] sm:$0xf]
    %v677 = vld [vmem:[#allocation2 + $0x854] sm:$0xf]
    %v678 = vld [vmem:[#allocation2 + $0x858] sm:$0xf]
    %v679 = vld [vmem:[#allocation2 + $0x85c] sm:$0xf]
    %v680 = vld [vmem:[#allocation2 + $0x860] sm:$0xf]
    %v681 = vld [vmem:[#allocation2 + $0x864] sm:$0xf]
    %v682 = vld [vmem:[#allocation2 + $0x868] sm:$0xf]
    %v683 = vld [vmem:[#allocation2 + $0x86c] sm:$0xf]
    %v684 = vld [vmem:[#allocation2 + $0x870] sm:$0xf]
    %v685 = vld [vmem:[#allocation2 + $0x874] sm:$0xf]
    %v686 = vld [vmem:[#allocation2 + $0x878] sm:$0xf]
    %v687 = vld [vmem:[#allocation2 + $0x87c] sm:$0xf]
    %v688 = vld [vmem:[#allocation2 + $0x880] sm:$0xf]
    %v689 = vld [vmem:[#allocation2 + $0x884] sm:$0xf]
    %v690 = vld [vmem:[#allocation2 + $0x888] sm:$0xf]
    %v691 = vld [vmem:[#allocation2 + $0x88c] sm:$0xf]
    %v692 = vld [vmem:[#allocation2 + $0x890] sm:$0xf]
    %v693 = vld [vmem:[#allocation2 + $0x894] sm:$0xf]
    %v694 = vld [vmem:[#allocation2 + $0x898] sm:$0xf]
    %v695 = vld [vmem:[#allocation2 + $0x89c] sm:$0xf]
    %v696 = vld [vmem:[#allocation2 + $0x8a0] sm:$0xf]
    %v697 = vld [vmem:[#allocation2 + $0x8a4] sm:$0xf]
    %v698 = vld [vmem:[#allocation2 + $0x8a8] sm:$0xf]
    %v699 = vld [vmem:[#allocation2 + $0x8ac] sm:$0xf]
    %v700 = vld [vmem:[#allocation2 + $0x8b0] sm:$0xf]
    %v701 = vld [vmem:[#allocation2 + $0x8b4] sm:$0xf]
    %v702 = vld [vmem:[#allocation2 + $0x8b8] sm:$0xf]
    %v703 = vld [vmem:[#allocation2 + $0x8bc] sm:$0xf]
    %v704 = vld [vmem:[#allocation2 + $0x8c0] sm:$0xf]
    %v705 = vld [vmem:[#allocation2 + $0x8c4] sm:$0xf]
    %v706 = vld [vmem:[#allocation2 + $0x8c8] sm:$0xf]
    %v707 = vld [vmem:[#allocation2 + $0x8cc] sm:$0xf]
    %v708 = vld [vmem:[#allocation2 + $0x8d0] sm:$0xf]
    %v709 = vld [vmem:[#allocation2 + $0x8d4] sm:$0xf]
    %v710 = vld [vmem:[#allocation2 + $0x8d8] sm:$0xf]
    %v711 = vld [vmem:[#allocation2 + $0x8dc] sm:$0xf]
    %v712 = vld [vmem:[#allocation2 + $0x8e0] sm:$0xf]
    %v713 = vld [vmem:[#allocation2 + $0x8e4] sm:$0xf]
    %v714 = vld [vmem:[#allocation2 + $0x8e8] sm:$0xf]
    %v715 = vld [vmem:[#allocation2 + $0x8ec] sm:$0xf]
    %v716 = vld [vmem:[#allocation2 + $0x8f0] sm:$0xf]
    %v717 = vld [vmem:[#allocation2 + $0x8f4] sm:$0xf]
    %v718 = vld [vmem:[#allocation2 + $0x8f8] sm:$0xf]
    %v719 = vld [vmem:[#allocation2 + $0x8fc] sm:$0xf]
    %v720 = vld [vmem:[#allocation2 + $0x900] sm:$0xf]
    %v721 = vld [vmem:[#allocation2 + $0x904] sm:$0xf]
    %v722 = vld [vmem:[#allocation2 + $0x908] sm:$0xf]
    %v723 = vld [vmem:[#allocation2 + $0x90c] sm:$0xf]
    %v724 = vld [vmem:[#allocation2 + $0x910] sm:$0xf]
    %v725 = vld [vmem:[#allocation2 + $0x914] sm:$0xf]
    %v726 = vld [vmem:[#allocation2 + $0x918] sm:$0xf]
    %v727 = vld [vmem:[#allocation2 + $0x91c] sm:$0xf]
    %v728 = vld [vmem:[#allocation2 + $0x920] sm:$0xf]
    %v729 = vld [vmem:[#allocation2 + $0x924] sm:$0xf]
    %v730 = vld [vmem:[#allocation2 + $0x928] sm:$0xf]
    %v731 = vld [vmem:[#allocation2 + $0x92c] sm:$0xf]
    %v732 = vld [vmem:[#allocation2 + $0x930] sm:$0xf]
    %v733 = vld [vmem:[#allocation2 + $0x934] sm:$0xf]
    %v734 = vld [vmem:[#allocation2 + $0x938] sm:$0xf]
    %v735 = vld [vmem:[#allocation2 + $0x93c] sm:$0xf]
    %v736 = vld [vmem:[#allocation2 + $0x940] sm:$0xf]
    %v737 = vld [vmem:[#allocation2 + $0x944] sm:$0xf]
    %v738 = vld [vmem:[#allocation2 + $0x948] sm:$0xf]
    %v739 = vld [vmem:[#allocation2 + $0x94c] sm:$0xf]
    %v740 = vld [vmem:[#allocation2 + $0x950] sm:$0xf]
    %v741 = vld [vmem:[#allocation2 + $0x954] sm:$0xf]
    %v742 = vld [vmem:[#allocation2 + $0x958] sm:$0xf]
    %v743 = vld [vmem:[#allocation2 + $0x95c] sm:$0xf]
    %v744 = vld [vmem:[#allocation2 + $0x960] sm:$0xf]
    %v745 = vld [vmem:[#allocation2 + $0x964] sm:$0xf]
    %v746 = vld [vmem:[#allocation2 + $0x968] sm:$0xf]
    %v747 = vld [vmem:[#allocation2 + $0x96c] sm:$0xf]
    %v748 = vld [vmem:[#allocation2 + $0x970] sm:$0xf]
    %v749 = vld [vmem:[#allocation2 + $0x974] sm:$0xf]
    %v750 = vld [vmem:[#allocation2 + $0x978] sm:$0xf]
    %v751 = vld [vmem:[#allocation2 + $0x97c] sm:$0xf]
    %v752 = vld [vmem:[#allocation2 + $0x980] sm:$0xf]
    %v753 = vld [vmem:[#allocation2 + $0x984] sm:$0xf]
    %v754 = vld [vmem:[#allocation2 + $0x988] sm:$0xf]
    %v755 = vld [vmem:[#allocation2 + $0x98c] sm:$0xf]
    %v756 = vld [vmem:[#allocation2 + $0x990] sm:$0xf]
    %v757 = vld [vmem:[#allocation2 + $0x994] sm:$0xf]
    %v758 = vld [vmem:[#allocation2 + $0x998] sm:$0xf]
    %v759 = vld [vmem:[#allocation2 + $0x99c] sm:$0xf]
    %v760 = vld [vmem:[#allocation2 + $0x9a0] sm:$0xf]
    %v761 = vld [vmem:[#allocation2 + $0x9a4] sm:$0xf]
    %v762 = vld [vmem:[#allocation2 + $0x9a8] sm:$0xf]
    %v763 = vld [vmem:[#allocation2 + $0x9ac] sm:$0xf]
    %v764 = vld [vmem:[#allocation2 + $0x9b0] sm:$0xf]
    %v765 = vld [vmem:[#allocation2 + $0x9b4] sm:$0xf]
    %v766 = vld [vmem:[#allocation2 + $0x9b8] sm:$0xf]
    %v767 = vld [vmem:[#allocation2 + $0x9bc] sm:$0xf]
    %v768 = vld [vmem:[#allocation2 + $0x9c0] sm:$0xf]
    %v769 = vld [vmem:[#allocation2 + $0x9c4] sm:$0xf]
    %v770 = vld [vmem:[#allocation2 + $0x9c8] sm:$0xf]
    %v771 = vld [vmem:[#allocation2 + $0x9cc] sm:$0xf]
    %v772 = vld [vmem:[#allocation2 + $0x9d0] sm:$0xf]
    %v773 = vld [vmem:[#allocation2 + $0x9d4] sm:$0xf]
    %v774 = vld [vmem:[#allocation2 + $0x9d8] sm:$0xf]
    %v775 = vld [vmem:[#allocation2 + $0x9dc] sm:$0xf]
    %v776 = vld [vmem:[#allocation2 + $0x9e0] sm:$0xf]
    %v777 = vld [vmem:[#allocation2 + $0x9e4] sm:$0xf]
    %v778 = vld [vmem:[#allocation2 + $0x9e8] sm:$0xf]
    %v779 = vld [vmem:[#allocation2 + $0x9ec] sm:$0xf]
    %v780 = vld [vmem:[#allocation2 + $0x9f0] sm:$0xf]
    %v781 = vld [vmem:[#allocation2 + $0x9f4] sm:$0xf]
    %v782 = vld [vmem:[#allocation2 + $0x9f8] sm:$0xf]
    %v783 = vld [vmem:[#allocation2 + $0x9fc] sm:$0xf]
    %v784 = vld [vmem:[#allocation2 + $0xa00] sm:$0xf]
    %v785 = vld [vmem:[#allocation2 + $0xa04] sm:$0xf]
    %v786 = vld [vmem:[#allocation2 + $0xa08] sm:$0xf]
    %v787 = vld [vmem:[#allocation2 + $0xa0c] sm:$0xf]
    %v788 = vld [vmem:[#allocation2 + $0xa10] sm:$0xf]
    %v789 = vld [vmem:[#allocation2 + $0xa14] sm:$0xf]
    %v790 = vld [vmem:[#allocation2 + $0xa18] sm:$0xf]
    %v791 = vld [vmem:[#allocation2 + $0xa1c] sm:$0xf]
    %v792 = vld [vmem:[#allocation2 + $0xa20] sm:$0xf]
    %v793 = vld [vmem:[#allocation2 + $0xa24] sm:$0xf]
    %v794 = vld [vmem:[#allocation2 + $0xa28] sm:$0xf]
    %v795 = vld [vmem:[#allocation2 + $0xa2c] sm:$0xf]
    %v796 = vld [vmem:[#allocation2 + $0xa30] sm:$0xf]
    %v797 = vld [vmem:[#allocation2 + $0xa34] sm:$0xf]
    %v798 = vld [vmem:[#allocation2 + $0xa38] sm:$0xf]
    %v799 = vld [vmem:[#allocation2 + $0xa3c] sm:$0xf]
    %v800 = vld [vmem:[#allocation2 + $0xa40] sm:$0xf]
    %v801 = vld [vmem:[#allocation2 + $0xa44] sm:$0xf]
    %v802 = vld [vmem:[#allocation2 + $0xa48] sm:$0xf]
    %v803 = vld [vmem:[#allocation2 + $0xa4c] sm:$0xf]
    %v804 = vld [vmem:[#allocation2 + $0xa50] sm:$0xf]
    %v805 = vld [vmem:[#allocation2 + $0xa54] sm:$0xf]
    %v806 = vld [vmem:[#allocation2 + $0xa58] sm:$0xf]
    %v807 = vld [vmem:[#allocation2 + $0xa5c] sm:$0xf]
    %v808 = vld [vmem:[#allocation2 + $0xa60] sm:$0xf]
    %v809 = vld [vmem:[#allocation2 + $0xa64] sm:$0xf]
    %v810 = vld [vmem:[#allocation2 + $0xa68] sm:$0xf]
    %v811 = vld [vmem:[#allocation2 + $0xa6c] sm:$0xf]
    %v812 = vld [vmem:[#allocation2 + $0xa70] sm:$0xf]
    %v813 = vld [vmem:[#allocation2 + $0xa74] sm:$0xf]
    %v814 = vld [vmem:[#allocation2 + $0xa78] sm:$0xf]
    %v815 = vld [vmem:[#allocation2 + $0xa7c] sm:$0xf]
    %v816 = vld [vmem:[#allocation2 + $0xa80] sm:$0xf]
    %v817 = vld [vmem:[#allocation2 + $0xa84] sm:$0xf]
    %v818 = vld [vmem:[#allocation2 + $0xa88] sm:$0xf]
    %v819 = vld [vmem:[#allocation2 + $0xa8c] sm:$0xf]
    %v820 = vld [vmem:[#allocation2 + $0xa90] sm:$0xf]
    %v821 = vld [vmem:[#allocation2 + $0xa94] sm:$0xf]
    %v822 = vld [vmem:[#allocation2 + $0xa98] sm:$0xf]
    %v823 = vld [vmem:[#allocation2 + $0xa9c] sm:$0xf]
    %v824 = vld [vmem:[#allocation2 + $0xaa0] sm:$0xf]
    %v825 = vld [vmem:[#allocation2 + $0xaa4] sm:$0xf]
    %v826 = vld [vmem:[#allocation2 + $0xaa8] sm:$0xf]
    %v827 = vld [vmem:[#allocation2 + $0xaac] sm:$0xf]
    %v828 = vld [vmem:[#allocation2 + $0xab0] sm:$0xf]
    %v829 = vld [vmem:[#allocation2 + $0xab4] sm:$0xf]
    %v830 = vld [vmem:[#allocation2 + $0xab8] sm:$0xf]
    %v831 = vld [vmem:[#allocation2 + $0xabc] sm:$0xf]
    %v832 = vld [vmem:[#allocation2 + $0xac0] sm:$0xf]
    %v833 = vld [vmem:[#allocation2 + $0xac4] sm:$0xf]
    %v834 = vld [vmem:[#allocation2 + $0xac8] sm:$0xf]
    %v835 = vld [vmem:[#allocation2 + $0xacc] sm:$0xf]
    %v836 = vld [vmem:[#allocation2 + $0xad0] sm:$0xf]
    %v837 = vld [vmem:[#allocation2 + $0xad4] sm:$0xf]
    %v838 = vld [vmem:[#allocation2 + $0xad8] sm:$0xf]
    %v839 = vld [vmem:[#allocation2 + $0xadc] sm:$0xf]
    %v840 = vld [vmem:[#allocation2 + $0xae0] sm:$0xf]
    %v841 = vld [vmem:[#allocation2 + $0xae4] sm:$0xf]
    %v842 = vld [vmem:[#allocation2 + $0xae8] sm:$0xf]
    %v843 = vld [vmem:[#allocation2 + $0xaec] sm:$0xf]
    %v844 = vld [vmem:[#allocation2 + $0xaf0] sm:$0xf]
    %v845 = vld [vmem:[#allocation2 + $0xaf4] sm:$0xf]
    %v846 = vld [vmem:[#allocation2 + $0xaf8] sm:$0xf]
    %v847 = vld [vmem:[#allocation2 + $0xafc] sm:$0xf]
    %v848 = vld [vmem:[#allocation2 + $0xb00] sm:$0xf]
    %v849 = vld [vmem:[#allocation2 + $0xb04] sm:$0xf]
    %v850 = vld [vmem:[#allocation2 + $0xb08] sm:$0xf]
    %v851 = vld [vmem:[#allocation2 + $0xb0c] sm:$0xf]
    %v852 = vld [vmem:[#allocation2 + $0xb10] sm:$0xf]
    %v853 = vld [vmem:[#allocation2 + $0xb14] sm:$0xf]
    %v854 = vld [vmem:[#allocation2 + $0xb18] sm:$0xf]
    %v855 = vld [vmem:[#allocation2 + $0xb1c] sm:$0xf]
    %v856 = vld [vmem:[#allocation2 + $0xb20] sm:$0xf]
    %v857 = vld [vmem:[#allocation2 + $0xb24] sm:$0xf]
    %v858 = vld [vmem:[#allocation2 + $0xb28] sm:$0xf]
    %v859 = vld [vmem:[#allocation2 + $0xb2c] sm:$0xf]
    %v860 = vld [vmem:[#allocation2 + $0xb30] sm:$0xf]
    %v861 = vld [vmem:[#allocation2 + $0xb34] sm:$0xf]
    %v862 = vld [vmem:[#allocation2 + $0xb38] sm:$0xf]
    %v863 = vld [vmem:[#allocation2 + $0xb3c] sm:$0xf]
    %v864 = vld [vmem:[#allocation2 + $0xb40] sm:$0xf]
    %v865 = vld [vmem:[#allocation2 + $0xb44] sm:$0xf]
    %v866 = vld [vmem:[#allocation2 + $0xb48] sm:$0xf]
    %v867 = vld [vmem:[#allocation2 + $0xb4c] sm:$0xf]
    %v868 = vld [vmem:[#allocation2 + $0xb50] sm:$0xf]
    %v869 = vld [vmem:[#allocation2 + $0xb54] sm:$0xf]
    %v870 = vld [vmem:[#allocation2 + $0xb58] sm:$0xf]
    %v871 = vld [vmem:[#allocation2 + $0xb5c] sm:$0xf]
    %v872 = vld [vmem:[#allocation2 + $0xb60] sm:$0xf]
    %v873 = vld [vmem:[#allocation2 + $0xb64] sm:$0xf]
    %v874 = vld [vmem:[#allocation2 + $0xb68] sm:$0xf]
    %v875 = vld [vmem:[#allocation2 + $0xb6c] sm:$0xf]
    %v876 = vld [vmem:[#allocation2 + $0xb70] sm:$0xf]
    %v877 = vld [vmem:[#allocation2 + $0xb74] sm:$0xf]
    %v878 = vld [vmem:[#allocation2 + $0xb78] sm:$0xf]
    %v879 = vld [vmem:[#allocation2 + $0xb7c] sm:$0xf]
    %v880 = vld [vmem:[#allocation2 + $0xb80] sm:$0xf]
    %v881 = vld [vmem:[#allocation2 + $0xb84] sm:$0xf]
    %v882 = vld [vmem:[#allocation2 + $0xb88] sm:$0xf]
    %v883 = vld [vmem:[#allocation2 + $0xb8c] sm:$0xf]
    %v884 = vld [vmem:[#allocation2 + $0xb90] sm:$0xf]
    %v885 = vld [vmem:[#allocation2 + $0xb94] sm:$0xf]
    %v886 = vld [vmem:[#allocation2 + $0xb98] sm:$0xf]
    %v887 = vld [vmem:[#allocation2 + $0xb9c] sm:$0xf]
    %v888 = vld [vmem:[#allocation2 + $0xba0] sm:$0xf]
    %v889 = vld [vmem:[#allocation2 + $0xba4] sm:$0xf]
    %v890 = vld [vmem:[#allocation2 + $0xba8] sm:$0xf]
    %v891 = vld [vmem:[#allocation2 + $0xbac] sm:$0xf]
    %v892 = vld [vmem:[#allocation2 + $0xbb0] sm:$0xf]
    %v893 = vld [vmem:[#allocation2 + $0xbb4] sm:$0xf]
    %v894 = vld [vmem:[#allocation2 + $0xbb8] sm:$0xf]
    %v895 = vld [vmem:[#allocation2 + $0xbbc] sm:$0xf]
    %v896 = vld [vmem:[#allocation2 + $0xbc0] sm:$0xf]
    %v897 = vld [vmem:[#allocation2 + $0xbc4] sm:$0xf]
    %v898 = vld [vmem:[#allocation2 + $0xbc8] sm:$0xf]
    %v899 = vld [vmem:[#allocation2 + $0xbcc] sm:$0xf]
    %v900 = vld [vmem:[#allocation2 + $0xbd0] sm:$0xf]
    %v901 = vld [vmem:[#allocation2 + $0xbd4] sm:$0xf]
    %v902 = vld [vmem:[#allocation2 + $0xbd8] sm:$0xf]
    %v903 = vld [vmem:[#allocation2 + $0xbdc] sm:$0xf]
    %v904 = vld [vmem:[#allocation2 + $0xbe0] sm:$0xf]
    %v905 = vld [vmem:[#allocation2 + $0xbe4] sm:$0xf]
    %v906 = vld [vmem:[#allocation2 + $0xbe8] sm:$0xf]
    %v907 = vld [vmem:[#allocation2 + $0xbec] sm:$0xf]
    %v908 = vld [vmem:[#allocation2 + $0xbf0] sm:$0xf]
    %v909 = vld [vmem:[#allocation2 + $0xbf4] sm:$0xf]
    %v910 = vld [vmem:[#allocation2 + $0xbf8] sm:$0xf]
    %v911 = vld [vmem:[#allocation2 + $0xbfc] sm:$0xf]
    %v912 = vld [vmem:[#allocation2 + $0xc00] sm:$0xf]
    %v913 = vld [vmem:[#allocation2 + $0xc04] sm:$0xf]
    %v914 = vld [vmem:[#allocation2 + $0xc08] sm:$0xf]
    %v915 = vld [vmem:[#allocation2 + $0xc0c] sm:$0xf]
    %v916 = vld [vmem:[#allocation2 + $0xc10] sm:$0xf]
    %v917 = vld [vmem:[#allocation2 + $0xc14] sm:$0xf]
    %v918 = vld [vmem:[#allocation2 + $0xc18] sm:$0xf]
    %v919 = vld [vmem:[#allocation2 + $0xc1c] sm:$0xf]
    %v920 = vld [vmem:[#allocation2 + $0xc20] sm:$0xf]
    %v921 = vld [vmem:[#allocation2 + $0xc24] sm:$0xf]
    %v922 = vld [vmem:[#allocation2 + $0xc28] sm:$0xf]
    %v923 = vld [vmem:[#allocation2 + $0xc2c] sm:$0xf]
    %v924 = vld [vmem:[#allocation2 + $0xc30] sm:$0xf]
    %v925 = vld [vmem:[#allocation2 + $0xc34] sm:$0xf]
    %v926 = vld [vmem:[#allocation2 + $0xc38] sm:$0xf]
    %v927 = vld [vmem:[#allocation2 + $0xc3c] sm:$0xf]
    %v928 = vld [vmem:[#allocation4] sm:$0x1]
    %v930 = vperm.slane %v928, 0
    %v957 = vunpack.c.l.b16 %v119
    %v958 = vunpack.c.h.b16 %v119
    %v959 = vunpack.c.l.b16 %v120
    %v960 = vunpack.c.h.b16 %v120
    %v961 = vunpack.c.l.b16 %v121
    %v962 = vunpack.c.h.b16 %v121
    %v963 = vunpack.c.l.b16 %v122
    %v964 = vunpack.c.h.b16 %v122
    %v965 = vunpack.c.l.b16 %v123
    %v966 = vunpack.c.h.b16 %v123
    %v967 = vunpack.c.l.b16 %v124
    %v968 = vunpack.c.h.b16 %v124
    %v969 = vunpack.c.l.b16 %v125
    %v970 = vunpack.c.h.b16 %v125
    %v971 = vunpack.c.l.b16 %v126
    %v972 = vunpack.c.h.b16 %v126
    %v973 = vunpack.c.l.b16 %v127
    %v974 = vunpack.c.h.b16 %v127
    %v975 = vunpack.c.l.b16 %v128
    %v976 = vunpack.c.h.b16 %v128
    %v977 = vunpack.c.l.b16 %v129
    %v978 = vunpack.c.h.b16 %v129
    %v979 = vunpack.c.l.b16 %v130
    %v980 = vunpack.c.h.b16 %v130
    %v981 = vunpack.c.l.b16 %v131
    %v982 = vunpack.c.h.b16 %v131
    %v983 = vunpack.c.l.b16 %v132
    %v984 = vunpack.c.h.b16 %v132
    %v985 = vunpack.c.l.b16 %v133
    %v986 = vunpack.c.h.b16 %v133
    %v987 = vunpack.c.l.b16 %v134
    %v988 = vunpack.c.h.b16 %v134
    %v989 = vunpack.c.l.b16 %v135
    %v990 = vunpack.c.h.b16 %v135
    %v991 = vunpack.c.l.b16 %v136
    %v992 = vunpack.c.h.b16 %v136
    %v993 = vunpack.c.l.b16 %v137
    %v994 = vunpack.c.h.b16 %v137
    %v995 = vunpack.c.l.b16 %v138
    %v996 = vunpack.c.h.b16 %v138
    %v997 = vunpack.c.l.b16 %v139
    %v998 = vunpack.c.h.b16 %v139
    %v999 = vunpack.c.l.b16 %v140
    %v1000 = vunpack.c.h.b16 %v140
    %v1001 = vunpack.c.l.b16 %v141
    %v1002 = vunpack.c.h.b16 %v141
    %v1003 = vunpack.c.l.b16 %v142
    %v1004 = vunpack.c.h.b16 %v142
    %v1005 = vunpack.c.l.b16 %v143
    %v1006 = vpack.c.b16 %v957, %v957
    %v1007 = vpack.c.b16 %v958, %v958
    %v1008 = vpack.c.b16 %v959, %v959
    %v1009 = vpack.c.b16 %v960, %v960
    %v1010 = vpack.c.b16 %v961, %v961
    %v1011 = vpack.c.b16 %v962, %v962
    %v1012 = vpack.c.b16 %v963, %v963
    %v1013 = vpack.c.b16 %v964, %v964
    %v1014 = vpack.c.b16 %v965, %v965
    %v1015 = vpack.c.b16 %v966, %v966
    %v1016 = vpack.c.b16 %v967, %v967
    %v1017 = vpack.c.b16 %v968, %v968
    %v1018 = vpack.c.b16 %v969, %v969
    %v1019 = vpack.c.b16 %v970, %v970
    %v1020 = vpack.c.b16 %v971, %v971
    %v1021 = vpack.c.b16 %v972, %v972
    %v1022 = vpack.c.b16 %v973, %v973
    %v1023 = vpack.c.b16 %v974, %v974
    %v1024 = vpack.c.b16 %v975, %v975
    %v1025 = vpack.c.b16 %v976, %v976
    %v1026 = vpack.c.b16 %v977, %v977
    %v1027 = vpack.c.b16 %v978, %v978
    %v1028 = vpack.c.b16 %v979, %v979
    %v1029 = vpack.c.b16 %v980, %v980
    %v1030 = vpack.c.b16 %v981, %v981
    %v1031 = vpack.c.b16 %v982, %v982
    %v1032 = vpack.c.b16 %v983, %v983
    %v1033 = vpack.c.b16 %v984, %v984
    %v1034 = vpack.c.b16 %v985, %v985
    %v1035 = vpack.c.b16 %v986, %v986
    %v1036 = vpack.c.b16 %v987, %v987
    %v1037 = vpack.c.b16 %v988, %v988
    %v1038 = vpack.c.b16 %v989, %v989
    %v1039 = vpack.c.b16 %v990, %v990
    %v1040 = vpack.c.b16 %v991, %v991
    %v1041 = vpack.c.b16 %v992, %v992
    %v1042 = vpack.c.b16 %v993, %v993
    %v1043 = vpack.c.b16 %v994, %v994
    %v1044 = vpack.c.b16 %v995, %v995
    %v1045 = vpack.c.b16 %v996, %v996
    %v1046 = vpack.c.b16 %v997, %v997
    %v1047 = vpack.c.b16 %v998, %v998
    %v1048 = vpack.c.b16 %v999, %v999
    %v1049 = vpack.c.b16 %v1000, %v1000
    %v1050 = vpack.c.b16 %v1001, %v1001
    %v1051 = vpack.c.b16 %v1002, %v1002
    %v1052 = vpack.c.b16 %v1003, %v1003
    %v1053 = vpack.c.b16 %v1004, %v1004
    %v1054 = vpack.c.b16 %v1005, %v1005
    %v1888 = vunpack.c.l.b16 %v144
    %v1889 = vunpack.c.l.b16 %v145
    %v1890 = vunpack.c.l.b16 %v146
    %v1891 = vunpack.c.l.b16 %v147
    %v1892 = vunpack.c.l.b16 %v148
    %v1893 = vunpack.c.l.b16 %v149
    %v1894 = vunpack.c.l.b16 %v150
    %v1895 = vunpack.c.l.b16 %v151
    %v1896 = vunpack.c.l.b16 %v152
    %v1897 = vunpack.c.l.b16 %v153
    %v1898 = vunpack.c.l.b16 %v154
    %v1899 = vunpack.c.l.b16 %v155
    %v1900 = vunpack.c.l.b16 %v156
    %v1901 = vunpack.c.l.b16 %v157
    %v1902 = vunpack.c.l.b16 %v158
    %v1903 = vunpack.c.l.b16 %v159
    %v1904 = vunpack.c.l.b16 %v160
    %v1905 = vunpack.c.l.b16 %v161
    %v1906 = vunpack.c.l.b16 %v162
    %v1907 = vunpack.c.l.b16 %v163
    %v1908 = vunpack.c.l.b16 %v164
    %v1909 = vunpack.c.l.b16 %v165
    %v1910 = vunpack.c.l.b16 %v166
    %v1911 = vunpack.c.l.b16 %v167
    %v1912 = vunpack.c.l.b16 %v168
    %v1913 = vunpack.c.l.b16 %v169
    %v1914 = vunpack.c.l.b16 %v170
    %v1915 = vunpack.c.l.b16 %v171
    %v1916 = vunpack.c.l.b16 %v172
    %v1917 = vunpack.c.l.b16 %v173
    %v1918 = vunpack.c.l.b16 %v174
    %v1919 = vunpack.c.l.b16 %v175
    %v1920 = vunpack.c.l.b16 %v176
    %v1921 = vunpack.c.l.b16 %v177
    %v1922 = vunpack.c.l.b16 %v178
    %v1923 = vunpack.c.l.b16 %v179
    %v1924 = vunpack.c.l.b16 %v180
    %v1925 = vunpack.c.l.b16 %v181
    %v1926 = vunpack.c.l.b16 %v182
    %v1927 = vunpack.c.l.b16 %v183
    %v1928 = vunpack.c.l.b16 %v184
    %v1929 = vunpack.c.l.b16 %v185
    %v1930 = vunpack.c.l.b16 %v186
    %v1931 = vunpack.c.l.b16 %v187
    %v1932 = vunpack.c.l.b16 %v188
    %v1933 = vunpack.c.l.b16 %v189
    %v1934 = vunpack.c.l.b16 %v190
    %v1935 = vunpack.c.l.b16 %v191
    %v1936 = vunpack.c.l.b16 %v192
    %v1937 = vunpack.c.l.b16 %v193
    %v1938 = vunpack.c.l.b16 %v194
    %v1939 = vunpack.c.l.b16 %v195
    %v1940 = vunpack.c.l.b16 %v196
    %v1941 = vunpack.c.l.b16 %v197
    %v1942 = vunpack.c.l.b16 %v198
    %v1943 = vunpack.c.l.b16 %v199
    %v1944 = vunpack.c.l.b16 %v200
    %v1945 = vunpack.c.l.b16 %v201
    %v1946 = vunpack.c.l.b16 %v202
    %v1947 = vunpack.c.l.b16 %v203
    %v1948 = vunpack.c.l.b16 %v204
    %v1949 = vunpack.c.l.b16 %v205
    %v1950 = vunpack.c.l.b16 %v206
    %v1951 = vunpack.c.l.b16 %v207
    %v1952 = vunpack.c.l.b16 %v208
    %v1953 = vunpack.c.l.b16 %v209
    %v1954 = vunpack.c.l.b16 %v210
    %v1955 = vunpack.c.l.b16 %v211
    %v1956 = vunpack.c.l.b16 %v212
    %v1957 = vunpack.c.l.b16 %v213
    %v1958 = vunpack.c.l.b16 %v214
    %v1959 = vunpack.c.l.b16 %v215
    %v1960 = vunpack.c.l.b16 %v216
    %v1961 = vunpack.c.l.b16 %v217
    %v1962 = vunpack.c.l.b16 %v218
    %v1963 = vunpack.c.l.b16 %v219
    %v1964 = vunpack.c.l.b16 %v220
    %v1965 = vunpack.c.l.b16 %v221
    %v1966 = vunpack.c.l.b16 %v222
    %v1967 = vunpack.c.l.b16 %v223
    %v1968 = vunpack.c.l.b16 %v224
    %v1969 = vunpack.c.l.b16 %v225
    %v1970 = vunpack.c.l.b16 %v226
    %v1971 = vunpack.c.l.b16 %v227
    %v1972 = vunpack.c.l.b16 %v228
    %v1973 = vunpack.c.l.b16 %v229
    %v1974 = vunpack.c.l.b16 %v230
    %v1975 = vunpack.c.l.b16 %v231
    %v1976 = vunpack.c.l.b16 %v232
    %v1977 = vunpack.c.l.b16 %v233
    %v1978 = vunpack.c.l.b16 %v234
    %v1979 = vunpack.c.l.b16 %v235
    %v1980 = vunpack.c.l.b16 %v236
    %v1981 = vunpack.c.l.b16 %v237
    %v1982 = vunpack.c.l.b16 %v238
    %v1983 = vunpack.c.l.b16 %v239
    %v1984 = vunpack.c.l.b16 %v240
    %v1985 = vunpack.c.l.b16 %v241
    %v1986 = vunpack.c.l.b16 %v242
    %v1987 = vunpack.c.l.b16 %v243
    %v1988 = vunpack.c.l.b16 %v244
    %v1989 = vunpack.c.l.b16 %v245
    %v1990 = vunpack.c.l.b16 %v246
    %v1991 = vunpack.c.l.b16 %v247
    %v1992 = vunpack.c.l.b16 %v248
    %v1993 = vunpack.c.l.b16 %v249
    %v1994 = vunpack.c.l.b16 %v250
    %v1995 = vunpack.c.l.b16 %v251
    %v1996 = vunpack.c.l.b16 %v252
    %v1997 = vunpack.c.l.b16 %v253
    %v1998 = vunpack.c.l.b16 %v254
    %v1999 = vunpack.c.l.b16 %v255
    %v2000 = vunpack.c.l.b16 %v256
    %v2001 = vunpack.c.l.b16 %v257
    %v2002 = vunpack.c.l.b16 %v258
    %v2003 = vunpack.c.l.b16 %v259
    %v2004 = vunpack.c.l.b16 %v260
    %v2005 = vunpack.c.l.b16 %v261
    %v2006 = vunpack.c.l.b16 %v262
    %v2007 = vunpack.c.l.b16 %v263
    %v2008 = vunpack.c.l.b16 %v264
    %v2009 = vunpack.c.l.b16 %v265
    %v2010 = vunpack.c.l.b16 %v266
    %v2011 = vunpack.c.l.b16 %v267
    %v2012 = vunpack.c.l.b16 %v268
    %v2013 = vunpack.c.l.b16 %v269
    %v2014 = vunpack.c.l.b16 %v270
    %v2015 = vunpack.c.l.b16 %v271
    %v2016 = vunpack.c.l.b16 %v272
    %v2017 = vunpack.c.l.b16 %v273
    %v2018 = vunpack.c.l.b16 %v274
    %v2019 = vunpack.c.l.b16 %v275
    %v2020 = vunpack.c.l.b16 %v276
    %v2021 = vunpack.c.l.b16 %v277
    %v2022 = vunpack.c.l.b16 %v278
    %v2023 = vunpack.c.l.b16 %v279
    %v2024 = vunpack.c.l.b16 %v280
    %v2025 = vunpack.c.l.b16 %v281
    %v2026 = vunpack.c.l.b16 %v282
    %v2027 = vunpack.c.l.b16 %v283
    %v2028 = vunpack.c.l.b16 %v284
    %v2029 = vunpack.c.l.b16 %v285
    %v2030 = vunpack.c.l.b16 %v286
    %v2031 = vunpack.c.l.b16 %v287
    %v2032 = vunpack.c.l.b16 %v288
    %v2033 = vunpack.c.l.b16 %v289
    %v2034 = vunpack.c.l.b16 %v290
    %v2035 = vunpack.c.l.b16 %v291
    %v2036 = vunpack.c.l.b16 %v292
    %v2037 = vunpack.c.l.b16 %v293
    %v2038 = vunpack.c.l.b16 %v294
    %v2039 = vunpack.c.l.b16 %v295
    %v2040 = vunpack.c.l.b16 %v296
    %v2041 = vunpack.c.l.b16 %v297
    %v2042 = vunpack.c.l.b16 %v298
    %v2043 = vunpack.c.l.b16 %v299
    %v2044 = vunpack.c.l.b16 %v300
    %v2045 = vunpack.c.l.b16 %v301
    %v2046 = vunpack.c.l.b16 %v302
    %v2047 = vunpack.c.l.b16 %v303
    %v2048 = vunpack.c.l.b16 %v304
    %v2049 = vunpack.c.l.b16 %v305
    %v2050 = vunpack.c.l.b16 %v306
    %v2051 = vunpack.c.l.b16 %v307
    %v2052 = vunpack.c.l.b16 %v308
    %v2053 = vunpack.c.l.b16 %v309
    %v2054 = vunpack.c.l.b16 %v310
    %v2055 = vunpack.c.l.b16 %v311
    %v2056 = vunpack.c.l.b16 %v312
    %v2057 = vunpack.c.l.b16 %v313
    %v2058 = vunpack.c.l.b16 %v314
    %v2059 = vunpack.c.l.b16 %v315
    %v2060 = vunpack.c.l.b16 %v316
    %v2061 = vunpack.c.l.b16 %v317
    %v2062 = vunpack.c.l.b16 %v318
    %v2063 = vunpack.c.l.b16 %v319
    %v2064 = vunpack.c.l.b16 %v320
    %v2065 = vunpack.c.l.b16 %v321
    %v2066 = vunpack.c.l.b16 %v322
    %v2067 = vunpack.c.l.b16 %v323
    %v2068 = vunpack.c.l.b16 %v324
    %v2069 = vunpack.c.l.b16 %v325
    %v2070 = vunpack.c.l.b16 %v326
    %v2071 = vunpack.c.l.b16 %v327
    %v2072 = vunpack.c.l.b16 %v328
    %v2073 = vunpack.c.l.b16 %v329
    %v2074 = vunpack.c.l.b16 %v330
    %v2075 = vunpack.c.l.b16 %v331
    %v2076 = vunpack.c.l.b16 %v332
    %v2077 = vunpack.c.l.b16 %v333
    %v2078 = vunpack.c.l.b16 %v334
    %v2079 = vunpack.c.l.b16 %v335
    %v2080 = vunpack.c.l.b16 %v336
    %v2081 = vunpack.c.l.b16 %v337
    %v2082 = vunpack.c.l.b16 %v338
    %v2083 = vunpack.c.l.b16 %v339
    %v2084 = vunpack.c.l.b16 %v340
    %v2085 = vunpack.c.l.b16 %v341
    %v2086 = vunpack.c.l.b16 %v342
    %v2087 = vunpack.c.l.b16 %v343
    %v2088 = vunpack.c.l.b16 %v344
    %v2089 = vunpack.c.l.b16 %v345
    %v2090 = vunpack.c.l.b16 %v346
    %v2091 = vunpack.c.l.b16 %v347
    %v2092 = vunpack.c.l.b16 %v348
    %v2093 = vunpack.c.l.b16 %v349
    %v2094 = vunpack.c.l.b16 %v350
    %v2095 = vunpack.c.l.b16 %v351
    %v2096 = vunpack.c.l.b16 %v352
    %v2097 = vunpack.c.l.b16 %v353
    %v2098 = vunpack.c.l.b16 %v354
    %v2099 = vunpack.c.l.b16 %v355
    %v2100 = vunpack.c.l.b16 %v356
    %v2101 = vunpack.c.l.b16 %v357
    %v2102 = vunpack.c.l.b16 %v358
    %v2103 = vunpack.c.l.b16 %v359
    %v2104 = vunpack.c.l.b16 %v360
    %v2105 = vunpack.c.l.b16 %v361
    %v2106 = vunpack.c.l.b16 %v362
    %v2107 = vunpack.c.l.b16 %v363
    %v2108 = vunpack.c.l.b16 %v364
    %v2109 = vunpack.c.l.b16 %v365
    %v2110 = vunpack.c.l.b16 %v366
    %v2111 = vunpack.c.l.b16 %v367
    %v2112 = vunpack.c.l.b16 %v368
    %v2113 = vunpack.c.l.b16 %v369
    %v2114 = vunpack.c.l.b16 %v370
    %v2115 = vunpack.c.l.b16 %v371
    %v2116 = vunpack.c.l.b16 %v372
    %v2117 = vunpack.c.l.b16 %v373
    %v2118 = vunpack.c.l.b16 %v374
    %v2119 = vunpack.c.l.b16 %v375
    %v2120 = vunpack.c.l.b16 %v376
    %v2121 = vunpack.c.l.b16 %v377
    %v2122 = vunpack.c.l.b16 %v378
    %v2123 = vunpack.c.l.b16 %v379
    %v2124 = vunpack.c.l.b16 %v380
    %v2125 = vunpack.c.l.b16 %v381
    %v2126 = vunpack.c.l.b16 %v382
    %v2127 = vunpack.c.l.b16 %v383
    %v2128 = vunpack.c.l.b16 %v384
    %v2129 = vunpack.c.l.b16 %v385
    %v2130 = vunpack.c.l.b16 %v386
    %v2131 = vunpack.c.l.b16 %v387
    %v2132 = vunpack.c.l.b16 %v388
    %v2133 = vunpack.c.l.b16 %v389
    %v2134 = vunpack.c.l.b16 %v390
    %v2135 = vunpack.c.l.b16 %v391
    %v2136 = vunpack.c.l.b16 %v392
    %v2137 = vunpack.c.l.b16 %v393
    %v2138 = vunpack.c.l.b16 %v394
    %v2139 = vunpack.c.l.b16 %v395
    %v2140 = vunpack.c.l.b16 %v396
    %v2141 = vunpack.c.l.b16 %v397
    %v2142 = vunpack.c.l.b16 %v398
    %v2143 = vunpack.c.l.b16 %v399
    %v2144 = vunpack.c.l.b16 %v400
    %v2145 = vunpack.c.l.b16 %v401
    %v2146 = vunpack.c.l.b16 %v402
    %v2147 = vunpack.c.l.b16 %v403
    %v2148 = vunpack.c.l.b16 %v404
    %v2149 = vunpack.c.l.b16 %v405
    %v2150 = vunpack.c.l.b16 %v406
    %v2151 = vunpack.c.l.b16 %v407
    %v2152 = vunpack.c.l.b16 %v408
    %v2153 = vunpack.c.l.b16 %v409
    %v2154 = vunpack.c.l.b16 %v410
    %v2155 = vunpack.c.l.b16 %v411
    %v2156 = vunpack.c.l.b16 %v412
    %v2157 = vunpack.c.l.b16 %v413
    %v2158 = vunpack.c.l.b16 %v414
    %v2159 = vunpack.c.l.b16 %v415
    %v2160 = vunpack.c.l.b16 %v416
    %v2161 = vunpack.c.l.b16 %v417
    %v2162 = vunpack.c.l.b16 %v418
    %v2163 = vunpack.c.l.b16 %v419
    %v2164 = vunpack.c.l.b16 %v420
    %v2165 = vunpack.c.l.b16 %v421
    %v2166 = vunpack.c.l.b16 %v422
    %v2167 = vunpack.c.l.b16 %v423
    %v2168 = vunpack.c.l.b16 %v424
    %v2169 = vunpack.c.l.b16 %v425
    %v2170 = vunpack.c.l.b16 %v426
    %v2171 = vunpack.c.l.b16 %v427
    %v2172 = vunpack.c.l.b16 %v428
    %v2173 = vunpack.c.l.b16 %v429
    %v2174 = vunpack.c.l.b16 %v430
    %v2175 = vunpack.c.l.b16 %v431
    %v2176 = vunpack.c.l.b16 %v432
    %v2177 = vunpack.c.l.b16 %v433
    %v2178 = vunpack.c.l.b16 %v434
    %v2179 = vunpack.c.l.b16 %v435
    %v2180 = vunpack.c.l.b16 %v436
    %v2181 = vunpack.c.l.b16 %v437
    %v2182 = vunpack.c.l.b16 %v438
    %v2183 = vunpack.c.l.b16 %v439
    %v2184 = vunpack.c.l.b16 %v440
    %v2185 = vunpack.c.l.b16 %v441
    %v2186 = vunpack.c.l.b16 %v442
    %v2187 = vunpack.c.l.b16 %v443
    %v2188 = vunpack.c.l.b16 %v444
    %v2189 = vunpack.c.l.b16 %v445
    %v2190 = vunpack.c.l.b16 %v446
    %v2191 = vunpack.c.l.b16 %v447
    %v2192 = vunpack.c.l.b16 %v448
    %v2193 = vunpack.c.l.b16 %v449
    %v2194 = vunpack.c.l.b16 %v450
    %v2195 = vunpack.c.l.b16 %v451
    %v2196 = vunpack.c.l.b16 %v452
    %v2197 = vunpack.c.l.b16 %v453
    %v2198 = vunpack.c.l.b16 %v454
    %v2199 = vunpack.c.l.b16 %v455
    %v2200 = vunpack.c.l.b16 %v456
    %v2201 = vunpack.c.l.b16 %v457
    %v2202 = vunpack.c.l.b16 %v458
    %v2203 = vunpack.c.l.b16 %v459
    %v2204 = vunpack.c.l.b16 %v460
    %v2205 = vunpack.c.l.b16 %v461
    %v2206 = vunpack.c.l.b16 %v462
    %v2207 = vunpack.c.l.b16 %v463
    %v2208 = vunpack.c.l.b16 %v464
    %v2209 = vunpack.c.l.b16 %v465
    %v2210 = vunpack.c.l.b16 %v466
    %v2211 = vunpack.c.l.b16 %v467
    %v2212 = vunpack.c.l.b16 %v468
    %v2213 = vunpack.c.l.b16 %v469
    %v2214 = vunpack.c.l.b16 %v470
    %v2215 = vunpack.c.l.b16 %v471
    %v2216 = vunpack.c.l.b16 %v472
    %v2217 = vunpack.c.l.b16 %v473
    %v2218 = vunpack.c.l.b16 %v474
    %v2219 = vunpack.c.l.b16 %v475
    %v2220 = vunpack.c.l.b16 %v476
    %v2221 = vunpack.c.l.b16 %v477
    %v2222 = vunpack.c.l.b16 %v478
    %v2223 = vunpack.c.l.b16 %v479
    %v2224 = vunpack.c.l.b16 %v480
    %v2225 = vunpack.c.l.b16 %v481
    %v2226 = vunpack.c.l.b16 %v482
    %v2227 = vunpack.c.l.b16 %v483
    %v2228 = vunpack.c.l.b16 %v484
    %v2229 = vunpack.c.l.b16 %v485
    %v2230 = vunpack.c.l.b16 %v486
    %v2231 = vunpack.c.l.b16 %v487
    %v2232 = vunpack.c.l.b16 %v488
    %v2233 = vunpack.c.l.b16 %v489
    %v2234 = vunpack.c.l.b16 %v490
    %v2235 = vunpack.c.l.b16 %v491
    %v2236 = vunpack.c.l.b16 %v492
    %v2237 = vunpack.c.l.b16 %v493
    %v2238 = vunpack.c.l.b16 %v494
    %v2239 = vunpack.c.l.b16 %v495
    %v2240 = vunpack.c.l.b16 %v496
    %v2241 = vunpack.c.l.b16 %v497
    %v2242 = vunpack.c.l.b16 %v498
    %v2243 = vunpack.c.l.b16 %v499
    %v2244 = vunpack.c.l.b16 %v500
    %v2245 = vunpack.c.l.b16 %v501
    %v2246 = vunpack.c.l.b16 %v502
    %v2247 = vunpack.c.l.b16 %v503
    %v2248 = vunpack.c.l.b16 %v504
    %v2249 = vunpack.c.l.b16 %v505
    %v2250 = vunpack.c.l.b16 %v506
    %v2251 = vunpack.c.l.b16 %v507
    %v2252 = vunpack.c.l.b16 %v508
    %v2253 = vunpack.c.l.b16 %v509
    %v2254 = vunpack.c.l.b16 %v510
    %v2255 = vunpack.c.l.b16 %v511
    %v2256 = vunpack.c.l.b16 %v512
    %v2257 = vunpack.c.l.b16 %v513
    %v2258 = vunpack.c.l.b16 %v514
    %v2259 = vunpack.c.l.b16 %v515
    %v2260 = vunpack.c.l.b16 %v516
    %v2261 = vunpack.c.l.b16 %v517
    %v2262 = vunpack.c.l.b16 %v518
    %v2263 = vunpack.c.l.b16 %v519
    %v2264 = vunpack.c.l.b16 %v520
    %v2265 = vunpack.c.l.b16 %v521
    %v2266 = vunpack.c.l.b16 %v522
    %v2267 = vunpack.c.l.b16 %v523
    %v2268 = vunpack.c.l.b16 %v524
    %v2269 = vunpack.c.l.b16 %v525
    %v2270 = vunpack.c.l.b16 %v526
    %v2271 = vunpack.c.l.b16 %v527
    %v2272 = vunpack.c.l.b16 %v528
    %v2273 = vunpack.c.l.b16 %v529
    %v2274 = vunpack.c.l.b16 %v530
    %v2275 = vunpack.c.l.b16 %v531
    %v2276 = vunpack.c.l.b16 %v532
    %v2277 = vunpack.c.l.b16 %v533
    %v2278 = vunpack.c.l.b16 %v534
    %v2279 = vunpack.c.l.b16 %v535
    %v2280 = vunpack.c.l.b16 %v536
    %v2281 = vunpack.c.l.b16 %v537
    %v2282 = vunpack.c.l.b16 %v538
    %v2283 = vunpack.c.l.b16 %v539
    %v2284 = vunpack.c.l.b16 %v540
    %v2285 = vunpack.c.l.b16 %v541
    %v2286 = vunpack.c.l.b16 %v542
    %v2287 = vunpack.c.l.b16 %v543
    %v2288 = vunpack.c.l.b16 %v544
    %v2289 = vunpack.c.l.b16 %v545
    %v2290 = vunpack.c.l.b16 %v546
    %v2291 = vunpack.c.l.b16 %v547
    %v2292 = vunpack.c.l.b16 %v548
    %v2293 = vunpack.c.l.b16 %v549
    %v2294 = vunpack.c.l.b16 %v550
    %v2295 = vunpack.c.l.b16 %v551
    %v2296 = vunpack.c.l.b16 %v552
    %v2297 = vunpack.c.l.b16 %v553
    %v2298 = vunpack.c.l.b16 %v554
    %v2299 = vunpack.c.l.b16 %v555
    %v2300 = vunpack.c.l.b16 %v556
    %v2301 = vunpack.c.l.b16 %v557
    %v2302 = vunpack.c.l.b16 %v558
    %v2303 = vunpack.c.l.b16 %v559
    %v2304 = vunpack.c.l.b16 %v560
    %v2305 = vunpack.c.l.b16 %v561
    %v2306 = vunpack.c.l.b16 %v562
    %v2307 = vunpack.c.l.b16 %v563
    %v2308 = vunpack.c.l.b16 %v564
    %v2309 = vunpack.c.l.b16 %v565
    %v2310 = vunpack.c.l.b16 %v566
    %v2311 = vunpack.c.l.b16 %v567
    %v2312 = vunpack.c.l.b16 %v568
    %v2313 = vunpack.c.l.b16 %v569
    %v2314 = vunpack.c.l.b16 %v570
    %v2315 = vunpack.c.l.b16 %v571
    %v2316 = vunpack.c.l.b16 %v572
    %v2317 = vunpack.c.l.b16 %v573
    %v2318 = vunpack.c.l.b16 %v574
    %v2319 = vunpack.c.l.b16 %v575
    %v2320 = vunpack.c.l.b16 %v576
    %v2321 = vunpack.c.l.b16 %v577
    %v2322 = vunpack.c.l.b16 %v578
    %v2323 = vunpack.c.l.b16 %v579
    %v2324 = vunpack.c.l.b16 %v580
    %v2325 = vunpack.c.l.b16 %v581
    %v2326 = vunpack.c.l.b16 %v582
    %v2327 = vunpack.c.l.b16 %v583
    %v2328 = vunpack.c.l.b16 %v584
    %v2329 = vunpack.c.l.b16 %v585
    %v2330 = vunpack.c.l.b16 %v586
    %v2331 = vunpack.c.l.b16 %v587
    %v2332 = vunpack.c.l.b16 %v588
    %v2333 = vunpack.c.l.b16 %v589
    %v2334 = vunpack.c.l.b16 %v590
    %v2335 = vunpack.c.l.b16 %v591
    %v2336 = vunpack.c.l.b16 %v592
    %v2337 = vunpack.c.l.b16 %v593
    %v2338 = vunpack.c.l.b16 %v594
    %v2339 = vunpack.c.l.b16 %v595
    %v2340 = vunpack.c.l.b16 %v596
    %v2341 = vunpack.c.l.b16 %v597
    %v2342 = vunpack.c.l.b16 %v598
    %v2343 = vunpack.c.l.b16 %v599
    %v2344 = vunpack.c.l.b16 %v600
    %v2345 = vunpack.c.l.b16 %v601
    %v2346 = vunpack.c.l.b16 %v602
    %v2347 = vunpack.c.l.b16 %v603
    %v2348 = vunpack.c.l.b16 %v604
    %v2349 = vunpack.c.l.b16 %v605
    %v2350 = vunpack.c.l.b16 %v606
    %v2351 = vunpack.c.l.b16 %v607
    %v2352 = vunpack.c.l.b16 %v608
    %v2353 = vunpack.c.l.b16 %v609
    %v2354 = vunpack.c.l.b16 %v610
    %v2355 = vunpack.c.l.b16 %v611
    %v2356 = vunpack.c.l.b16 %v612
    %v2357 = vunpack.c.l.b16 %v613
    %v2358 = vunpack.c.l.b16 %v614
    %v2359 = vunpack.c.l.b16 %v615
    %v2360 = vunpack.c.l.b16 %v616
    %v2361 = vunpack.c.l.b16 %v617
    %v2362 = vunpack.c.l.b16 %v618
    %v2363 = vunpack.c.l.b16 %v619
    %v2364 = vunpack.c.l.b16 %v620
    %v2365 = vunpack.c.l.b16 %v621
    %v2366 = vunpack.c.l.b16 %v622
    %v2367 = vunpack.c.l.b16 %v623
    %v2368 = vunpack.c.l.b16 %v624
    %v2369 = vunpack.c.l.b16 %v625
    %v2370 = vunpack.c.l.b16 %v626
    %v2371 = vunpack.c.l.b16 %v627
    %v2372 = vunpack.c.l.b16 %v628
    %v2373 = vunpack.c.l.b16 %v629
    %v2374 = vunpack.c.l.b16 %v630
    %v2375 = vunpack.c.l.b16 %v631
    %v2376 = vunpack.c.l.b16 %v632
    %v2377 = vunpack.c.l.b16 %v633
    %v2378 = vunpack.c.l.b16 %v634
    %v2379 = vunpack.c.l.b16 %v635
    %v2380 = vunpack.c.l.b16 %v636
    %v2381 = vunpack.c.l.b16 %v637
    %v2382 = vunpack.c.l.b16 %v638
    %v2383 = vunpack.c.l.b16 %v639
    %v2384 = vunpack.c.l.b16 %v640
    %v2385 = vunpack.c.l.b16 %v641
    %v2386 = vunpack.c.l.b16 %v642
    %v2387 = vunpack.c.l.b16 %v643
    %v2388 = vunpack.c.l.b16 %v644
    %v2389 = vunpack.c.l.b16 %v645
    %v2390 = vunpack.c.l.b16 %v646
    %v2391 = vunpack.c.l.b16 %v647
    %v2392 = vunpack.c.l.b16 %v648
    %v2393 = vunpack.c.l.b16 %v649
    %v2394 = vunpack.c.l.b16 %v650
    %v2395 = vunpack.c.l.b16 %v651
    %v2396 = vunpack.c.l.b16 %v652
    %v2397 = vunpack.c.l.b16 %v653
    %v2398 = vunpack.c.l.b16 %v654
    %v2399 = vunpack.c.l.b16 %v655
    %v2400 = vunpack.c.l.b16 %v656
    %v2401 = vunpack.c.l.b16 %v657
    %v2402 = vunpack.c.l.b16 %v658
    %v2403 = vunpack.c.l.b16 %v659
    %v2404 = vunpack.c.l.b16 %v660
    %v2405 = vunpack.c.l.b16 %v661
    %v2406 = vunpack.c.l.b16 %v662
    %v2407 = vunpack.c.l.b16 %v663
    %v2408 = vunpack.c.l.b16 %v664
    %v2409 = vunpack.c.l.b16 %v665
    %v2410 = vunpack.c.l.b16 %v666
    %v2411 = vunpack.c.l.b16 %v667
    %v2412 = vunpack.c.l.b16 %v668
    %v2413 = vunpack.c.l.b16 %v669
    %v2414 = vunpack.c.l.b16 %v670
    %v2415 = vunpack.c.l.b16 %v671
    %v2416 = vunpack.c.l.b16 %v672
    %v2417 = vunpack.c.l.b16 %v673
    %v2418 = vunpack.c.l.b16 %v674
    %v2419 = vunpack.c.l.b16 %v675
    %v2420 = vunpack.c.l.b16 %v676
    %v2421 = vunpack.c.l.b16 %v677
    %v2422 = vunpack.c.l.b16 %v678
    %v2423 = vunpack.c.l.b16 %v679
    %v2424 = vunpack.c.l.b16 %v680
    %v2425 = vunpack.c.l.b16 %v681
    %v2426 = vunpack.c.l.b16 %v682
    %v2427 = vunpack.c.l.b16 %v683
    %v2428 = vunpack.c.l.b16 %v684
    %v2429 = vunpack.c.l.b16 %v685
    %v2430 = vunpack.c.l.b16 %v686
    %v2431 = vunpack.c.l.b16 %v687
    %v2432 = vunpack.c.l.b16 %v688
    %v2433 = vunpack.c.l.b16 %v689
    %v2434 = vunpack.c.l.b16 %v690
    %v2435 = vunpack.c.l.b16 %v691
    %v2436 = vunpack.c.l.b16 %v692
    %v2437 = vunpack.c.l.b16 %v693
    %v2438 = vunpack.c.l.b16 %v694
    %v2439 = vunpack.c.l.b16 %v695
    %v2440 = vunpack.c.l.b16 %v696
    %v2441 = vunpack.c.l.b16 %v697
    %v2442 = vunpack.c.l.b16 %v698
    %v2443 = vunpack.c.l.b16 %v699
    %v2444 = vunpack.c.l.b16 %v700
    %v2445 = vunpack.c.l.b16 %v701
    %v2446 = vunpack.c.l.b16 %v702
    %v2447 = vunpack.c.l.b16 %v703
    %v2448 = vunpack.c.l.b16 %v704
    %v2449 = vunpack.c.l.b16 %v705
    %v2450 = vunpack.c.l.b16 %v706
    %v2451 = vunpack.c.l.b16 %v707
    %v2452 = vunpack.c.l.b16 %v708
    %v2453 = vunpack.c.l.b16 %v709
    %v2454 = vunpack.c.l.b16 %v710
    %v2455 = vunpack.c.l.b16 %v711
    %v2456 = vunpack.c.l.b16 %v712
    %v2457 = vunpack.c.l.b16 %v713
    %v2458 = vunpack.c.l.b16 %v714
    %v2459 = vunpack.c.l.b16 %v715
    %v2460 = vunpack.c.l.b16 %v716
    %v2461 = vunpack.c.l.b16 %v717
    %v2462 = vunpack.c.l.b16 %v718
    %v2463 = vunpack.c.l.b16 %v719
    %v2464 = vunpack.c.l.b16 %v720
    %v2465 = vunpack.c.l.b16 %v721
    %v2466 = vunpack.c.l.b16 %v722
    %v2467 = vunpack.c.l.b16 %v723
    %v2468 = vunpack.c.l.b16 %v724
    %v2469 = vunpack.c.l.b16 %v725
    %v2470 = vunpack.c.l.b16 %v726
    %v2471 = vunpack.c.l.b16 %v727
    %v2472 = vunpack.c.l.b16 %v728
    %v2473 = vunpack.c.l.b16 %v729
    %v2474 = vunpack.c.l.b16 %v730
    %v2475 = vunpack.c.l.b16 %v731
    %v2476 = vunpack.c.l.b16 %v732
    %v2477 = vunpack.c.l.b16 %v733
    %v2478 = vunpack.c.l.b16 %v734
    %v2479 = vunpack.c.l.b16 %v735
    %v2480 = vunpack.c.l.b16 %v736
    %v2481 = vunpack.c.l.b16 %v737
    %v2482 = vunpack.c.l.b16 %v738
    %v2483 = vunpack.c.l.b16 %v739
    %v2484 = vunpack.c.l.b16 %v740
    %v2485 = vunpack.c.l.b16 %v741
    %v2486 = vunpack.c.l.b16 %v742
    %v2487 = vunpack.c.l.b16 %v743
    %v2488 = vunpack.c.l.b16 %v744
    %v2489 = vunpack.c.l.b16 %v745
    %v2490 = vunpack.c.l.b16 %v746
    %v2491 = vunpack.c.l.b16 %v747
    %v2492 = vunpack.c.l.b16 %v748
    %v2493 = vunpack.c.l.b16 %v749
    %v2494 = vunpack.c.l.b16 %v750
    %v2495 = vunpack.c.l.b16 %v751
    %v2496 = vunpack.c.l.b16 %v752
    %v2497 = vunpack.c.l.b16 %v753
    %v2498 = vunpack.c.l.b16 %v754
    %v2499 = vunpack.c.l.b16 %v755
    %v2500 = vunpack.c.l.b16 %v756
    %v2501 = vunpack.c.l.b16 %v757
    %v2502 = vunpack.c.l.b16 %v758
    %v2503 = vunpack.c.l.b16 %v759
    %v2504 = vunpack.c.l.b16 %v760
    %v2505 = vunpack.c.l.b16 %v761
    %v2506 = vunpack.c.l.b16 %v762
    %v2507 = vunpack.c.l.b16 %v763
    %v2508 = vunpack.c.l.b16 %v764
    %v2509 = vunpack.c.l.b16 %v765
    %v2510 = vunpack.c.l.b16 %v766
    %v2511 = vunpack.c.l.b16 %v767
    %v2512 = vunpack.c.l.b16 %v768
    %v2513 = vunpack.c.l.b16 %v769
    %v2514 = vunpack.c.l.b16 %v770
    %v2515 = vunpack.c.l.b16 %v771
    %v2516 = vunpack.c.l.b16 %v772
    %v2517 = vunpack.c.l.b16 %v773
    %v2518 = vunpack.c.l.b16 %v774
    %v2519 = vunpack.c.l.b16 %v775
    %v2520 = vunpack.c.l.b16 %v776
    %v2521 = vunpack.c.l.b16 %v777
    %v2522 = vunpack.c.l.b16 %v778
    %v2523 = vunpack.c.l.b16 %v779
    %v2524 = vunpack.c.l.b16 %v780
    %v2525 = vunpack.c.l.b16 %v781
    %v2526 = vunpack.c.l.b16 %v782
    %v2527 = vunpack.c.l.b16 %v783
    %v2528 = vunpack.c.l.b16 %v784
    %v2529 = vunpack.c.l.b16 %v785
    %v2530 = vunpack.c.l.b16 %v786
    %v2531 = vunpack.c.l.b16 %v787
    %v2532 = vunpack.c.l.b16 %v788
    %v2533 = vunpack.c.l.b16 %v789
    %v2534 = vunpack.c.l.b16 %v790
    %v2535 = vunpack.c.l.b16 %v791
    %v2536 = vunpack.c.l.b16 %v792
    %v2537 = vunpack.c.l.b16 %v793
    %v2538 = vunpack.c.l.b16 %v794
    %v2539 = vunpack.c.l.b16 %v795
    %v2540 = vunpack.c.l.b16 %v796
    %v2541 = vunpack.c.l.b16 %v797
    %v2542 = vunpack.c.l.b16 %v798
    %v2543 = vunpack.c.l.b16 %v799
    %v2544 = vunpack.c.l.b16 %v800
    %v2545 = vunpack.c.l.b16 %v801
    %v2546 = vunpack.c.l.b16 %v802
    %v2547 = vunpack.c.l.b16 %v803
    %v2548 = vunpack.c.l.b16 %v804
    %v2549 = vunpack.c.l.b16 %v805
    %v2550 = vunpack.c.l.b16 %v806
    %v2551 = vunpack.c.l.b16 %v807
    %v2552 = vunpack.c.l.b16 %v808
    %v2553 = vunpack.c.l.b16 %v809
    %v2554 = vunpack.c.l.b16 %v810
    %v2555 = vunpack.c.l.b16 %v811
    %v2556 = vunpack.c.l.b16 %v812
    %v2557 = vunpack.c.l.b16 %v813
    %v2558 = vunpack.c.l.b16 %v814
    %v2559 = vunpack.c.l.b16 %v815
    %v2560 = vunpack.c.l.b16 %v816
    %v2561 = vunpack.c.l.b16 %v817
    %v2562 = vunpack.c.l.b16 %v818
    %v2563 = vunpack.c.l.b16 %v819
    %v2564 = vunpack.c.l.b16 %v820
    %v2565 = vunpack.c.l.b16 %v821
    %v2566 = vunpack.c.l.b16 %v822
    %v2567 = vunpack.c.l.b16 %v823
    %v2568 = vunpack.c.l.b16 %v824
    %v2569 = vunpack.c.l.b16 %v825
    %v2570 = vunpack.c.l.b16 %v826
    %v2571 = vunpack.c.l.b16 %v827
    %v2572 = vunpack.c.l.b16 %v828
    %v2573 = vunpack.c.l.b16 %v829
    %v2574 = vunpack.c.l.b16 %v830
    %v2575 = vunpack.c.l.b16 %v831
    %v2576 = vunpack.c.l.b16 %v832
    %v2577 = vunpack.c.l.b16 %v833
    %v2578 = vunpack.c.l.b16 %v834
    %v2579 = vunpack.c.l.b16 %v835
    %v2580 = vunpack.c.l.b16 %v836
    %v2581 = vunpack.c.l.b16 %v837
    %v2582 = vunpack.c.l.b16 %v838
    %v2583 = vunpack.c.l.b16 %v839
    %v2584 = vunpack.c.l.b16 %v840
    %v2585 = vunpack.c.l.b16 %v841
    %v2586 = vunpack.c.l.b16 %v842
    %v2587 = vunpack.c.l.b16 %v843
    %v2588 = vunpack.c.l.b16 %v844
    %v2589 = vunpack.c.l.b16 %v845
    %v2590 = vunpack.c.l.b16 %v846
    %v2591 = vunpack.c.l.b16 %v847
    %v2592 = vunpack.c.l.b16 %v848
    %v2593 = vunpack.c.l.b16 %v849
    %v2594 = vunpack.c.l.b16 %v850
    %v2595 = vunpack.c.l.b16 %v851
    %v2596 = vunpack.c.l.b16 %v852
    %v2597 = vunpack.c.l.b16 %v853
    %v2598 = vunpack.c.l.b16 %v854
    %v2599 = vunpack.c.l.b16 %v855
    %v2600 = vunpack.c.l.b16 %v856
    %v2601 = vunpack.c.l.b16 %v857
    %v2602 = vunpack.c.l.b16 %v858
    %v2603 = vunpack.c.l.b16 %v859
    %v2604 = vunpack.c.l.b16 %v860
    %v2605 = vunpack.c.l.b16 %v861
    %v2606 = vunpack.c.l.b16 %v862
    %v2607 = vunpack.c.l.b16 %v863
    %v2608 = vunpack.c.l.b16 %v864
    %v2609 = vunpack.c.l.b16 %v865
    %v2610 = vunpack.c.l.b16 %v866
    %v2611 = vunpack.c.l.b16 %v867
    %v2612 = vunpack.c.l.b16 %v868
    %v2613 = vunpack.c.l.b16 %v869
    %v2614 = vunpack.c.l.b16 %v870
    %v2615 = vunpack.c.l.b16 %v871
    %v2616 = vunpack.c.l.b16 %v872
    %v2617 = vunpack.c.l.b16 %v873
    %v2618 = vunpack.c.l.b16 %v874
    %v2619 = vunpack.c.l.b16 %v875
    %v2620 = vunpack.c.l.b16 %v876
    %v2621 = vunpack.c.l.b16 %v877
    %v2622 = vunpack.c.l.b16 %v878
    %v2623 = vunpack.c.l.b16 %v879
    %v2624 = vunpack.c.l.b16 %v880
    %v2625 = vunpack.c.l.b16 %v881
    %v2626 = vunpack.c.l.b16 %v882
    %v2627 = vunpack.c.l.b16 %v883
    %v2628 = vunpack.c.l.b16 %v884
    %v2629 = vunpack.c.l.b16 %v885
    %v2630 = vunpack.c.l.b16 %v886
    %v2631 = vunpack.c.l.b16 %v887
    %v2632 = vunpack.c.l.b16 %v888
    %v2633 = vunpack.c.l.b16 %v889
    %v2634 = vunpack.c.l.b16 %v890
    %v2635 = vunpack.c.l.b16 %v891
    %v2636 = vunpack.c.l.b16 %v892
    %v2637 = vunpack.c.l.b16 %v893
    %v2638 = vunpack.c.l.b16 %v894
    %v2639 = vunpack.c.l.b16 %v895
    %v2640 = vunpack.c.l.b16 %v896
    %v2641 = vunpack.c.l.b16 %v897
    %v2642 = vunpack.c.l.b16 %v898
    %v2643 = vunpack.c.l.b16 %v899
    %v2644 = vunpack.c.l.b16 %v900
    %v2645 = vunpack.c.l.b16 %v901
    %v2646 = vunpack.c.l.b16 %v902
    %v2647 = vunpack.c.l.b16 %v903
    %v2648 = vunpack.c.l.b16 %v904
    %v2649 = vunpack.c.l.b16 %v905
    %v2650 = vunpack.c.l.b16 %v906
    %v2651 = vunpack.c.l.b16 %v907
    %v2652 = vunpack.c.l.b16 %v908
    %v2653 = vunpack.c.l.b16 %v909
    %v2654 = vunpack.c.l.b16 %v910
    %v2655 = vunpack.c.l.b16 %v911
    %v2656 = vunpack.c.l.b16 %v912
    %v2657 = vunpack.c.l.b16 %v913
    %v2658 = vunpack.c.l.b16 %v914
    %v2659 = vunpack.c.l.b16 %v915
    %v2660 = vunpack.c.l.b16 %v916
    %v2661 = vunpack.c.l.b16 %v917
    %v2662 = vunpack.c.l.b16 %v918
    %v2663 = vunpack.c.l.b16 %v919
    %v2664 = vunpack.c.l.b16 %v920
    %v2665 = vunpack.c.l.b16 %v921
    %v2666 = vunpack.c.l.b16 %v922
    %v2667 = vunpack.c.l.b16 %v923
    %v2668 = vunpack.c.l.b16 %v924
    %v2669 = vunpack.c.l.b16 %v925
    %v2670 = vunpack.c.l.b16 %v926
    %v2671 = vunpack.c.l.b16 %v927
    %v2672 = vpack.c.b16 %v1889, %v1888
    %v2673 = vpack.c.b16 %v1891, %v1890
    %v2674 = vpack.c.b16 %v1893, %v1892
    %v2675 = vpack.c.b16 %v1895, %v1894
    %v2676 = vpack.c.b16 %v1897, %v1896
    %v2677 = vpack.c.b16 %v1899, %v1898
    %v2678 = vpack.c.b16 %v1901, %v1900
    %v2679 = vpack.c.b16 %v1903, %v1902
    %v2680 = vpack.c.b16 %v1905, %v1904
    %v2681 = vpack.c.b16 %v1907, %v1906
    %v2682 = vpack.c.b16 %v1909, %v1908
    %v2683 = vpack.c.b16 %v1911, %v1910
    %v2684 = vpack.c.b16 %v1913, %v1912
    %v2685 = vpack.c.b16 %v1915, %v1914
    %v2686 = vpack.c.b16 %v1917, %v1916
    %v2687 = vpack.c.b16 %v1919, %v1918
    %v2688 = vpack.c.b16 %v1921, %v1920
    %v2689 = vpack.c.b16 %v1923, %v1922
    %v2690 = vpack.c.b16 %v1925, %v1924
    %v2691 = vpack.c.b16 %v1927, %v1926
    %v2692 = vpack.c.b16 %v1929, %v1928
    %v2693 = vpack.c.b16 %v1931, %v1930
    %v2694 = vpack.c.b16 %v1933, %v1932
    %v2695 = vpack.c.b16 %v1935, %v1934
    %v2696 = vpack.c.b16 %v1937, %v1936
    %v2697 = vpack.c.b16 %v1939, %v1938
    %v2698 = vpack.c.b16 %v1941, %v1940
    %v2699 = vpack.c.b16 %v1943, %v1942
    %v2700 = vpack.c.b16 %v1945, %v1944
    %v2701 = vpack.c.b16 %v1947, %v1946
    %v2702 = vpack.c.b16 %v1949, %v1948
    %v2703 = vpack.c.b16 %v1951, %v1950
    %v2704 = vpack.c.b16 %v1953, %v1952
    %v2705 = vpack.c.b16 %v1955, %v1954
    %v2706 = vpack.c.b16 %v1957, %v1956
    %v2707 = vpack.c.b16 %v1959, %v1958
    %v2708 = vpack.c.b16 %v1961, %v1960
    %v2709 = vpack.c.b16 %v1963, %v1962
    %v2710 = vpack.c.b16 %v1965, %v1964
    %v2711 = vpack.c.b16 %v1967, %v1966
    %v2712 = vpack.c.b16 %v1969, %v1968
    %v2713 = vpack.c.b16 %v1971, %v1970
    %v2714 = vpack.c.b16 %v1973, %v1972
    %v2715 = vpack.c.b16 %v1975, %v1974
    %v2716 = vpack.c.b16 %v1977, %v1976
    %v2717 = vpack.c.b16 %v1979, %v1978
    %v2718 = vpack.c.b16 %v1981, %v1980
    %v2719 = vpack.c.b16 %v1983, %v1982
    %v2720 = vpack.c.b16 %v1985, %v1984
    %v2721 = vpack.c.b16 %v1987, %v1986
    %v2722 = vpack.c.b16 %v1989, %v1988
    %v2723 = vpack.c.b16 %v1991, %v1990
    %v2724 = vpack.c.b16 %v1993, %v1992
    %v2725 = vpack.c.b16 %v1995, %v1994
    %v2726 = vpack.c.b16 %v1997, %v1996
    %v2727 = vpack.c.b16 %v1999, %v1998
    %v2728 = vpack.c.b16 %v2001, %v2000
    %v2729 = vpack.c.b16 %v2003, %v2002
    %v2730 = vpack.c.b16 %v2005, %v2004
    %v2731 = vpack.c.b16 %v2007, %v2006
    %v2732 = vpack.c.b16 %v2009, %v2008
    %v2733 = vpack.c.b16 %v2011, %v2010
    %v2734 = vpack.c.b16 %v2013, %v2012
    %v2735 = vpack.c.b16 %v2015, %v2014
    %v2736 = vpack.c.b16 %v2017, %v2016
    %v2737 = vpack.c.b16 %v2019, %v2018
    %v2738 = vpack.c.b16 %v2021, %v2020
    %v2739 = vpack.c.b16 %v2023, %v2022
    %v2740 = vpack.c.b16 %v2025, %v2024
    %v2741 = vpack.c.b16 %v2027, %v2026
    %v2742 = vpack.c.b16 %v2029, %v2028
    %v2743 = vpack.c.b16 %v2031, %v2030
    %v2744 = vpack.c.b16 %v2033, %v2032
    %v2745 = vpack.c.b16 %v2035, %v2034
    %v2746 = vpack.c.b16 %v2037, %v2036
    %v2747 = vpack.c.b16 %v2039, %v2038
    %v2748 = vpack.c.b16 %v2041, %v2040
    %v2749 = vpack.c.b16 %v2043, %v2042
    %v2750 = vpack.c.b16 %v2045, %v2044
    %v2751 = vpack.c.b16 %v2047, %v2046
    %v2752 = vpack.c.b16 %v2049, %v2048
    %v2753 = vpack.c.b16 %v2051, %v2050
    %v2754 = vpack.c.b16 %v2053, %v2052
    %v2755 = vpack.c.b16 %v2055, %v2054
    %v2756 = vpack.c.b16 %v2057, %v2056
    %v2757 = vpack.c.b16 %v2059, %v2058
    %v2758 = vpack.c.b16 %v2061, %v2060
    %v2759 = vpack.c.b16 %v2063, %v2062
    %v2760 = vpack.c.b16 %v2065, %v2064
    %v2761 = vpack.c.b16 %v2067, %v2066
    %v2762 = vpack.c.b16 %v2069, %v2068
    %v2763 = vpack.c.b16 %v2071, %v2070
    %v2764 = vpack.c.b16 %v2073, %v2072
    %v2765 = vpack.c.b16 %v2075, %v2074
    %v2766 = vpack.c.b16 %v2077, %v2076
    %v2767 = vpack.c.b16 %v2079, %v2078
    %v2768 = vpack.c.b16 %v2081, %v2080
    %v2769 = vpack.c.b16 %v2083, %v2082
    %v2770 = vpack.c.b16 %v2085, %v2084
    %v2771 = vpack.c.b16 %v2087, %v2086
    %v2772 = vpack.c.b16 %v2089, %v2088
    %v2773 = vpack.c.b16 %v2091, %v2090
    %v2774 = vpack.c.b16 %v2093, %v2092
    %v2775 = vpack.c.b16 %v2095, %v2094
    %v2776 = vpack.c.b16 %v2097, %v2096
    %v2777 = vpack.c.b16 %v2099, %v2098
    %v2778 = vpack.c.b16 %v2101, %v2100
    %v2779 = vpack.c.b16 %v2103, %v2102
    %v2780 = vpack.c.b16 %v2105, %v2104
    %v2781 = vpack.c.b16 %v2107, %v2106
    %v2782 = vpack.c.b16 %v2109, %v2108
    %v2783 = vpack.c.b16 %v2111, %v2110
    %v2784 = vpack.c.b16 %v2113, %v2112
    %v2785 = vpack.c.b16 %v2115, %v2114
    %v2786 = vpack.c.b16 %v2117, %v2116
    %v2787 = vpack.c.b16 %v2119, %v2118
    %v2788 = vpack.c.b16 %v2121, %v2120
    %v2789 = vpack.c.b16 %v2123, %v2122
    %v2790 = vpack.c.b16 %v2125, %v2124
    %v2791 = vpack.c.b16 %v2127, %v2126
    %v2792 = vpack.c.b16 %v2129, %v2128
    %v2793 = vpack.c.b16 %v2131, %v2130
    %v2794 = vpack.c.b16 %v2133, %v2132
    %v2795 = vpack.c.b16 %v2135, %v2134
    %v2796 = vpack.c.b16 %v2137, %v2136
    %v2797 = vpack.c.b16 %v2139, %v2138
    %v2798 = vpack.c.b16 %v2141, %v2140
    %v2799 = vpack.c.b16 %v2143, %v2142
    %v2800 = vpack.c.b16 %v2145, %v2144
    %v2801 = vpack.c.b16 %v2147, %v2146
    %v2802 = vpack.c.b16 %v2149, %v2148
    %v2803 = vpack.c.b16 %v2151, %v2150
    %v2804 = vpack.c.b16 %v2153, %v2152
    %v2805 = vpack.c.b16 %v2155, %v2154
    %v2806 = vpack.c.b16 %v2157, %v2156
    %v2807 = vpack.c.b16 %v2159, %v2158
    %v2808 = vpack.c.b16 %v2161, %v2160
    %v2809 = vpack.c.b16 %v2163, %v2162
    %v2810 = vpack.c.b16 %v2165, %v2164
    %v2811 = vpack.c.b16 %v2167, %v2166
    %v2812 = vpack.c.b16 %v2169, %v2168
    %v2813 = vpack.c.b16 %v2171, %v2170
    %v2814 = vpack.c.b16 %v2173, %v2172
    %v2815 = vpack.c.b16 %v2175, %v2174
    %v2816 = vpack.c.b16 %v2177, %v2176
    %v2817 = vpack.c.b16 %v2179, %v2178
    %v2818 = vpack.c.b16 %v2181, %v2180
    %v2819 = vpack.c.b16 %v2183, %v2182
    %v2820 = vpack.c.b16 %v2185, %v2184
    %v2821 = vpack.c.b16 %v2187, %v2186
    %v2822 = vpack.c.b16 %v2189, %v2188
    %v2823 = vpack.c.b16 %v2191, %v2190
    %v2824 = vpack.c.b16 %v2193, %v2192
    %v2825 = vpack.c.b16 %v2195, %v2194
    %v2826 = vpack.c.b16 %v2197, %v2196
    %v2827 = vpack.c.b16 %v2199, %v2198
    %v2828 = vpack.c.b16 %v2201, %v2200
    %v2829 = vpack.c.b16 %v2203, %v2202
    %v2830 = vpack.c.b16 %v2205, %v2204
    %v2831 = vpack.c.b16 %v2207, %v2206
    %v2832 = vpack.c.b16 %v2209, %v2208
    %v2833 = vpack.c.b16 %v2211, %v2210
    %v2834 = vpack.c.b16 %v2213, %v2212
    %v2835 = vpack.c.b16 %v2215, %v2214
    %v2836 = vpack.c.b16 %v2217, %v2216
    %v2837 = vpack.c.b16 %v2219, %v2218
    %v2838 = vpack.c.b16 %v2221, %v2220
    %v2839 = vpack.c.b16 %v2223, %v2222
    %v2840 = vpack.c.b16 %v2225, %v2224
    %v2841 = vpack.c.b16 %v2227, %v2226
    %v2842 = vpack.c.b16 %v2229, %v2228
    %v2843 = vpack.c.b16 %v2231, %v2230
    %v2844 = vpack.c.b16 %v2233, %v2232
    %v2845 = vpack.c.b16 %v2235, %v2234
    %v2846 = vpack.c.b16 %v2237, %v2236
    %v2847 = vpack.c.b16 %v2239, %v2238
    %v2848 = vpack.c.b16 %v2241, %v2240
    %v2849 = vpack.c.b16 %v2243, %v2242
    %v2850 = vpack.c.b16 %v2245, %v2244
    %v2851 = vpack.c.b16 %v2247, %v2246
    %v2852 = vpack.c.b16 %v2249, %v2248
    %v2853 = vpack.c.b16 %v2251, %v2250
    %v2854 = vpack.c.b16 %v2253, %v2252
    %v2855 = vpack.c.b16 %v2255, %v2254
    %v2856 = vpack.c.b16 %v2257, %v2256
    %v2857 = vpack.c.b16 %v2259, %v2258
    %v2858 = vpack.c.b16 %v2261, %v2260
    %v2859 = vpack.c.b16 %v2263, %v2262
    %v2860 = vpack.c.b16 %v2265, %v2264
    %v2861 = vpack.c.b16 %v2267, %v2266
    %v2862 = vpack.c.b16 %v2269, %v2268
    %v2863 = vpack.c.b16 %v2271, %v2270
    %v2864 = vpack.c.b16 %v2273, %v2272
    %v2865 = vpack.c.b16 %v2275, %v2274
    %v2866 = vpack.c.b16 %v2277, %v2276
    %v2867 = vpack.c.b16 %v2279, %v2278
    %v2868 = vpack.c.b16 %v2281, %v2280
    %v2869 = vpack.c.b16 %v2283, %v2282
    %v2870 = vpack.c.b16 %v2285, %v2284
    %v2871 = vpack.c.b16 %v2287, %v2286
    %v2872 = vpack.c.b16 %v2289, %v2288
    %v2873 = vpack.c.b16 %v2291, %v2290
    %v2874 = vpack.c.b16 %v2293, %v2292
    %v2875 = vpack.c.b16 %v2295, %v2294
    %v2876 = vpack.c.b16 %v2297, %v2296
    %v2877 = vpack.c.b16 %v2299, %v2298
    %v2878 = vpack.c.b16 %v2301, %v2300
    %v2879 = vpack.c.b16 %v2303, %v2302
    %v2880 = vpack.c.b16 %v2305, %v2304
    %v2881 = vpack.c.b16 %v2307, %v2306
    %v2882 = vpack.c.b16 %v2309, %v2308
    %v2883 = vpack.c.b16 %v2311, %v2310
    %v2884 = vpack.c.b16 %v2313, %v2312
    %v2885 = vpack.c.b16 %v2315, %v2314
    %v2886 = vpack.c.b16 %v2317, %v2316
    %v2887 = vpack.c.b16 %v2319, %v2318
    %v2888 = vpack.c.b16 %v2321, %v2320
    %v2889 = vpack.c.b16 %v2323, %v2322
    %v2890 = vpack.c.b16 %v2325, %v2324
    %v2891 = vpack.c.b16 %v2327, %v2326
    %v2892 = vpack.c.b16 %v2329, %v2328
    %v2893 = vpack.c.b16 %v2331, %v2330
    %v2894 = vpack.c.b16 %v2333, %v2332
    %v2895 = vpack.c.b16 %v2335, %v2334
    %v2896 = vpack.c.b16 %v2337, %v2336
    %v2897 = vpack.c.b16 %v2339, %v2338
    %v2898 = vpack.c.b16 %v2341, %v2340
    %v2899 = vpack.c.b16 %v2343, %v2342
    %v2900 = vpack.c.b16 %v2345, %v2344
    %v2901 = vpack.c.b16 %v2347, %v2346
    %v2902 = vpack.c.b16 %v2349, %v2348
    %v2903 = vpack.c.b16 %v2351, %v2350
    %v2904 = vpack.c.b16 %v2353, %v2352
    %v2905 = vpack.c.b16 %v2355, %v2354
    %v2906 = vpack.c.b16 %v2357, %v2356
    %v2907 = vpack.c.b16 %v2359, %v2358
    %v2908 = vpack.c.b16 %v2361, %v2360
    %v2909 = vpack.c.b16 %v2363, %v2362
    %v2910 = vpack.c.b16 %v2365, %v2364
    %v2911 = vpack.c.b16 %v2367, %v2366
    %v2912 = vpack.c.b16 %v2369, %v2368
    %v2913 = vpack.c.b16 %v2371, %v2370
    %v2914 = vpack.c.b16 %v2373, %v2372
    %v2915 = vpack.c.b16 %v2375, %v2374
    %v2916 = vpack.c.b16 %v2377, %v2376
    %v2917 = vpack.c.b16 %v2379, %v2378
    %v2918 = vpack.c.b16 %v2381, %v2380
    %v2919 = vpack.c.b16 %v2383, %v2382
    %v2920 = vpack.c.b16 %v2385, %v2384
    %v2921 = vpack.c.b16 %v2387, %v2386
    %v2922 = vpack.c.b16 %v2389, %v2388
    %v2923 = vpack.c.b16 %v2391, %v2390
    %v2924 = vpack.c.b16 %v2393, %v2392
    %v2925 = vpack.c.b16 %v2395, %v2394
    %v2926 = vpack.c.b16 %v2397, %v2396
    %v2927 = vpack.c.b16 %v2399, %v2398
    %v2928 = vpack.c.b16 %v2401, %v2400
    %v2929 = vpack.c.b16 %v2403, %v2402
    %v2930 = vpack.c.b16 %v2405, %v2404
    %v2931 = vpack.c.b16 %v2407, %v2406
    %v2932 = vpack.c.b16 %v2409, %v2408
    %v2933 = vpack.c.b16 %v2411, %v2410
    %v2934 = vpack.c.b16 %v2413, %v2412
    %v2935 = vpack.c.b16 %v2415, %v2414
    %v2936 = vpack.c.b16 %v2417, %v2416
    %v2937 = vpack.c.b16 %v2419, %v2418
    %v2938 = vpack.c.b16 %v2421, %v2420
    %v2939 = vpack.c.b16 %v2423, %v2422
    %v2940 = vpack.c.b16 %v2425, %v2424
    %v2941 = vpack.c.b16 %v2427, %v2426
    %v2942 = vpack.c.b16 %v2429, %v2428
    %v2943 = vpack.c.b16 %v2431, %v2430
    %v2944 = vpack.c.b16 %v2433, %v2432
    %v2945 = vpack.c.b16 %v2435, %v2434
    %v2946 = vpack.c.b16 %v2437, %v2436
    %v2947 = vpack.c.b16 %v2439, %v2438
    %v2948 = vpack.c.b16 %v2441, %v2440
    %v2949 = vpack.c.b16 %v2443, %v2442
    %v2950 = vpack.c.b16 %v2445, %v2444
    %v2951 = vpack.c.b16 %v2447, %v2446
    %v2952 = vpack.c.b16 %v2449, %v2448
    %v2953 = vpack.c.b16 %v2451, %v2450
    %v2954 = vpack.c.b16 %v2453, %v2452
    %v2955 = vpack.c.b16 %v2455, %v2454
    %v2956 = vpack.c.b16 %v2457, %v2456
    %v2957 = vpack.c.b16 %v2459, %v2458
    %v2958 = vpack.c.b16 %v2461, %v2460
    %v2959 = vpack.c.b16 %v2463, %v2462
    %v2960 = vpack.c.b16 %v2465, %v2464
    %v2961 = vpack.c.b16 %v2467, %v2466
    %v2962 = vpack.c.b16 %v2469, %v2468
    %v2963 = vpack.c.b16 %v2471, %v2470
    %v2964 = vpack.c.b16 %v2473, %v2472
    %v2965 = vpack.c.b16 %v2475, %v2474
    %v2966 = vpack.c.b16 %v2477, %v2476
    %v2967 = vpack.c.b16 %v2479, %v2478
    %v2968 = vpack.c.b16 %v2481, %v2480
    %v2969 = vpack.c.b16 %v2483, %v2482
    %v2970 = vpack.c.b16 %v2485, %v2484
    %v2971 = vpack.c.b16 %v2487, %v2486
    %v2972 = vpack.c.b16 %v2489, %v2488
    %v2973 = vpack.c.b16 %v2491, %v2490
    %v2974 = vpack.c.b16 %v2493, %v2492
    %v2975 = vpack.c.b16 %v2495, %v2494
    %v2976 = vpack.c.b16 %v2497, %v2496
    %v2977 = vpack.c.b16 %v2499, %v2498
    %v2978 = vpack.c.b16 %v2501, %v2500
    %v2979 = vpack.c.b16 %v2503, %v2502
    %v2980 = vpack.c.b16 %v2505, %v2504
    %v2981 = vpack.c.b16 %v2507, %v2506
    %v2982 = vpack.c.b16 %v2509, %v2508
    %v2983 = vpack.c.b16 %v2511, %v2510
    %v2984 = vpack.c.b16 %v2513, %v2512
    %v2985 = vpack.c.b16 %v2515, %v2514
    %v2986 = vpack.c.b16 %v2517, %v2516
    %v2987 = vpack.c.b16 %v2519, %v2518
    %v2988 = vpack.c.b16 %v2521, %v2520
    %v2989 = vpack.c.b16 %v2523, %v2522
    %v2990 = vpack.c.b16 %v2525, %v2524
    %v2991 = vpack.c.b16 %v2527, %v2526
    %v2992 = vpack.c.b16 %v2529, %v2528
    %v2993 = vpack.c.b16 %v2531, %v2530
    %v2994 = vpack.c.b16 %v2533, %v2532
    %v2995 = vpack.c.b16 %v2535, %v2534
    %v2996 = vpack.c.b16 %v2537, %v2536
    %v2997 = vpack.c.b16 %v2539, %v2538
    %v2998 = vpack.c.b16 %v2541, %v2540
    %v2999 = vpack.c.b16 %v2543, %v2542
    %v3000 = vpack.c.b16 %v2545, %v2544
    %v3001 = vpack.c.b16 %v2547, %v2546
    %v3002 = vpack.c.b16 %v2549, %v2548
    %v3003 = vpack.c.b16 %v2551, %v2550
    %v3004 = vpack.c.b16 %v2553, %v2552
    %v3005 = vpack.c.b16 %v2555, %v2554
    %v3006 = vpack.c.b16 %v2557, %v2556
    %v3007 = vpack.c.b16 %v2559, %v2558
    %v3008 = vpack.c.b16 %v2561, %v2560
    %v3009 = vpack.c.b16 %v2563, %v2562
    %v3010 = vpack.c.b16 %v2565, %v2564
    %v3011 = vpack.c.b16 %v2567, %v2566
    %v3012 = vpack.c.b16 %v2569, %v2568
    %v3013 = vpack.c.b16 %v2571, %v2570
    %v3014 = vpack.c.b16 %v2573, %v2572
    %v3015 = vpack.c.b16 %v2575, %v2574
    %v3016 = vpack.c.b16 %v2577, %v2576
    %v3017 = vpack.c.b16 %v2579, %v2578
    %v3018 = vpack.c.b16 %v2581, %v2580
    %v3019 = vpack.c.b16 %v2583, %v2582
    %v3020 = vpack.c.b16 %v2585, %v2584
    %v3021 = vpack.c.b16 %v2587, %v2586
    %v3022 = vpack.c.b16 %v2589, %v2588
    %v3023 = vpack.c.b16 %v2591, %v2590
    %v3024 = vpack.c.b16 %v2593, %v2592
    %v3025 = vpack.c.b16 %v2595, %v2594
    %v3026 = vpack.c.b16 %v2597, %v2596
    %v3027 = vpack.c.b16 %v2599, %v2598
    %v3028 = vpack.c.b16 %v2601, %v2600
    %v3029 = vpack.c.b16 %v2603, %v2602
    %v3030 = vpack.c.b16 %v2605, %v2604
    %v3031 = vpack.c.b16 %v2607, %v2606
    %v3032 = vpack.c.b16 %v2609, %v2608
    %v3033 = vpack.c.b16 %v2611, %v2610
    %v3034 = vpack.c.b16 %v2613, %v2612
    %v3035 = vpack.c.b16 %v2615, %v2614
    %v3036 = vpack.c.b16 %v2617, %v2616
    %v3037 = vpack.c.b16 %v2619, %v2618
    %v3038 = vpack.c.b16 %v2621, %v2620
    %v3039 = vpack.c.b16 %v2623, %v2622
    %v3040 = vpack.c.b16 %v2625, %v2624
    %v3041 = vpack.c.b16 %v2627, %v2626
    %v3042 = vpack.c.b16 %v2629, %v2628
    %v3043 = vpack.c.b16 %v2631, %v2630
    %v3044 = vpack.c.b16 %v2633, %v2632
    %v3045 = vpack.c.b16 %v2635, %v2634
    %v3046 = vpack.c.b16 %v2637, %v2636
    %v3047 = vpack.c.b16 %v2639, %v2638
    %v3048 = vpack.c.b16 %v2641, %v2640
    %v3049 = vpack.c.b16 %v2643, %v2642
    %v3050 = vpack.c.b16 %v2645, %v2644
    %v3051 = vpack.c.b16 %v2647, %v2646
    %v3052 = vpack.c.b16 %v2649, %v2648
    %v3053 = vpack.c.b16 %v2651, %v2650
    %v3054 = vpack.c.b16 %v2653, %v2652
    %v3055 = vpack.c.b16 %v2655, %v2654
    %v3056 = vpack.c.b16 %v2657, %v2656
    %v3057 = vpack.c.b16 %v2659, %v2658
    %v3058 = vpack.c.b16 %v2661, %v2660
    %v3059 = vpack.c.b16 %v2663, %v2662
    %v3060 = vpack.c.b16 %v2665, %v2664
    %v3061 = vpack.c.b16 %v2667, %v2666
    %v3062 = vpack.c.b16 %v2669, %v2668
    %v3063 = vpack.c.b16 %v2671, %v2670
    %3456 = vmatpush.bf16.msra.mxu0 %v2679
    %3457 = vmatpush.bf16.msra.mxu0 %v2678
    %3458 = vmatpush.bf16.msra.mxu0 %v2677
    %3459 = vmatpush.bf16.msra.mxu0 %v2676
    %3460 = vmatpush.bf16.msra.mxu0 %v2675
    %3461 = vmatpush.bf16.msra.mxu0 %v2674
    %3462 = vmatpush.bf16.msra.mxu0 %v2673
    %3463 = vmatpush.bf16.msra.mxu0 %v2672
    %3464 = vmatmul.bf16.gmra.mxu0 %v1006
    %v3465 = vpop.f32.mrf.mxu0
    %v3466 = vadd.f32 %v930, %v3465
    %v3467 = vpop.f32.mrf.mxu0
    %3468 = vdwg.mxu0
    %3469 = vmatpush.bf16.msra.mxu0 %v2687
    %3470 = vmatpush.bf16.msra.mxu0 %v2686
    %3471 = vmatpush.bf16.msra.mxu0 %v2685
    %3472 = vmatpush.bf16.msra.mxu0 %v2684
    %3473 = vmatpush.bf16.msra.mxu0 %v2683
    %3474 = vmatpush.bf16.msra.mxu0 %v2682
    %3475 = vmatpush.bf16.msra.mxu0 %v2681
    %3476 = vmatpush.bf16.msra.mxu0 %v2680
    %3477 = vmatmul.bf16.gmra.mxu0 %v1007
    %v3478 = vpop.f32.mrf.mxu0
    %v3479 = vadd.f32 %v3466, %v3478
    %v3480 = vpop.f32.mrf.mxu0
    %3481 = vdwg.mxu0
    %3482 = vmatpush.bf16.msra.mxu0 %v2695
    %3483 = vmatpush.bf16.msra.mxu0 %v2694
    %3484 = vmatpush.bf16.msra.mxu0 %v2693
    %3485 = vmatpush.bf16.msra.mxu0 %v2692
    %3486 = vmatpush.bf16.msra.mxu0 %v2691
    %3487 = vmatpush.bf16.msra.mxu0 %v2690
    %3488 = vmatpush.bf16.msra.mxu0 %v2689
    %3489 = vmatpush.bf16.msra.mxu0 %v2688
    %3490 = vmatmul.bf16.gmra.mxu0 %v1008
    %v3491 = vpop.f32.mrf.mxu0
    %v3492 = vadd.f32 %v3479, %v3491
    %v3493 = vpop.f32.mrf.mxu0
    %3494 = vdwg.mxu0
    %3495 = vmatpush.bf16.msra.mxu0 %v2703
    %3496 = vmatpush.bf16.msra.mxu0 %v2702
    %3497 = vmatpush.bf16.msra.mxu0 %v2701
    %3498 = vmatpush.bf16.msra.mxu0 %v2700
    %3499 = vmatpush.bf16.msra.mxu0 %v2699
    %3500 = vmatpush.bf16.msra.mxu0 %v2698
    %3501 = vmatpush.bf16.msra.mxu0 %v2697
    %3502 = vmatpush.bf16.msra.mxu0 %v2696
    %3503 = vmatmul.bf16.gmra.mxu0 %v1009
    %v3504 = vpop.f32.mrf.mxu0
    %v3505 = vadd.f32 %v3492, %v3504
    %v3506 = vpop.f32.mrf.mxu0
    %3507 = vdwg.mxu0
    %3508 = vmatpush.bf16.msra.mxu0 %v2711
    %3509 = vmatpush.bf16.msra.mxu0 %v2710
    %3510 = vmatpush.bf16.msra.mxu0 %v2709
    %3511 = vmatpush.bf16.msra.mxu0 %v2708
    %3512 = vmatpush.bf16.msra.mxu0 %v2707
    %3513 = vmatpush.bf16.msra.mxu0 %v2706
    %3514 = vmatpush.bf16.msra.mxu0 %v2705
    %3515 = vmatpush.bf16.msra.mxu0 %v2704
    %3516 = vmatmul.bf16.gmra.mxu0 %v1010
    %v3517 = vpop.f32.mrf.mxu0
    %v3518 = vadd.f32 %v3505, %v3517
    %v3519 = vpop.f32.mrf.mxu0
    %3520 = vdwg.mxu0
    %3521 = vmatpush.bf16.msra.mxu0 %v2719
    %3522 = vmatpush.bf16.msra.mxu0 %v2718
    %3523 = vmatpush.bf16.msra.mxu0 %v2717
    %3524 = vmatpush.bf16.msra.mxu0 %v2716
    %3525 = vmatpush.bf16.msra.mxu0 %v2715
    %3526 = vmatpush.bf16.msra.mxu0 %v2714
    %3527 = vmatpush.bf16.msra.mxu0 %v2713
    %3528 = vmatpush.bf16.msra.mxu0 %v2712
    %3529 = vmatmul.bf16.gmra.mxu0 %v1011
    %v3530 = vpop.f32.mrf.mxu0
    %v3531 = vadd.f32 %v3518, %v3530
    %v3532 = vpop.f32.mrf.mxu0
    %3533 = vdwg.mxu0
    %3534 = vmatpush.bf16.msra.mxu0 %v2727
    %3535 = vmatpush.bf16.msra.mxu0 %v2726
    %3536 = vmatpush.bf16.msra.mxu0 %v2725
    %3537 = vmatpush.bf16.msra.mxu0 %v2724
    %3538 = vmatpush.bf16.msra.mxu0 %v2723
    %3539 = vmatpush.bf16.msra.mxu0 %v2722
    %3540 = vmatpush.bf16.msra.mxu0 %v2721
    %3541 = vmatpush.bf16.msra.mxu0 %v2720
    %3542 = vmatmul.bf16.gmra.mxu0 %v1012
    %v3543 = vpop.f32.mrf.mxu0
    %v3544 = vadd.f32 %v3531, %v3543
    %v3545 = vpop.f32.mrf.mxu0
    %3546 = vdwg.mxu0
    %3547 = vmatpush.bf16.msra.mxu0 %v2735
    %3548 = vmatpush.bf16.msra.mxu0 %v2734
    %3549 = vmatpush.bf16.msra.mxu0 %v2733
    %3550 = vmatpush.bf16.msra.mxu0 %v2732
    %3551 = vmatpush.bf16.msra.mxu0 %v2731
    %3552 = vmatpush.bf16.msra.mxu0 %v2730
    %3553 = vmatpush.bf16.msra.mxu0 %v2729
    %3554 = vmatpush.bf16.msra.mxu0 %v2728
    %3555 = vmatmul.bf16.gmra.mxu0 %v1013
    %v3556 = vpop.f32.mrf.mxu0
    %v3557 = vadd.f32 %v3544, %v3556
    %v3558 = vpop.f32.mrf.mxu0
    %3559 = vdwg.mxu0
    %3560 = vmatpush.bf16.msra.mxu0 %v2743
    %3561 = vmatpush.bf16.msra.mxu0 %v2742
    %3562 = vmatpush.bf16.msra.mxu0 %v2741
    %3563 = vmatpush.bf16.msra.mxu0 %v2740
    %3564 = vmatpush.bf16.msra.mxu0 %v2739
    %3565 = vmatpush.bf16.msra.mxu0 %v2738
    %3566 = vmatpush.bf16.msra.mxu0 %v2737
    %3567 = vmatpush.bf16.msra.mxu0 %v2736
    %3568 = vmatmul.bf16.gmra.mxu0 %v1014
    %v3569 = vpop.f32.mrf.mxu0
    %v3570 = vadd.f32 %v3557, %v3569
    %v3571 = vpop.f32.mrf.mxu0
    %3572 = vdwg.mxu0
    %3573 = vmatpush.bf16.msra.mxu0 %v2751
    %3574 = vmatpush.bf16.msra.mxu0 %v2750
    %3575 = vmatpush.bf16.msra.mxu0 %v2749
    %3576 = vmatpush.bf16.msra.mxu0 %v2748
    %3577 = vmatpush.bf16.msra.mxu0 %v2747
    %3578 = vmatpush.bf16.msra.mxu0 %v2746
    %3579 = vmatpush.bf16.msra.mxu0 %v2745
    %3580 = vmatpush.bf16.msra.mxu0 %v2744
    %3581 = vmatmul.bf16.gmra.mxu0 %v1015
    %v3582 = vpop.f32.mrf.mxu0
    %v3583 = vadd.f32 %v3570, %v3582
    %v3584 = vpop.f32.mrf.mxu0
    %3585 = vdwg.mxu0
    %3586 = vmatpush.bf16.msra.mxu0 %v2759
    %3587 = vmatpush.bf16.msra.mxu0 %v2758
    %3588 = vmatpush.bf16.msra.mxu0 %v2757
    %3589 = vmatpush.bf16.msra.mxu0 %v2756
    %3590 = vmatpush.bf16.msra.mxu0 %v2755
    %3591 = vmatpush.bf16.msra.mxu0 %v2754
    %3592 = vmatpush.bf16.msra.mxu0 %v2753
    %3593 = vmatpush.bf16.msra.mxu0 %v2752
    %3594 = vmatmul.bf16.gmra.mxu0 %v1016
    %v3595 = vpop.f32.mrf.mxu0
    %v3596 = vadd.f32 %v3583, %v3595
    %v3597 = vpop.f32.mrf.mxu0
    %3598 = vdwg.mxu0
    %3599 = vmatpush.bf16.msra.mxu0 %v2767
    %3600 = vmatpush.bf16.msra.mxu0 %v2766
    %3601 = vmatpush.bf16.msra.mxu0 %v2765
    %3602 = vmatpush.bf16.msra.mxu0 %v2764
    %3603 = vmatpush.bf16.msra.mxu0 %v2763
    %3604 = vmatpush.bf16.msra.mxu0 %v2762
    %3605 = vmatpush.bf16.msra.mxu0 %v2761
    %3606 = vmatpush.bf16.msra.mxu0 %v2760
    %3607 = vmatmul.bf16.gmra.mxu0 %v1017
    %v3608 = vpop.f32.mrf.mxu0
    %v3609 = vadd.f32 %v3596, %v3608
    %v3610 = vpop.f32.mrf.mxu0
    %3611 = vdwg.mxu0
    %3612 = vmatpush.bf16.msra.mxu0 %v2775
    %3613 = vmatpush.bf16.msra.mxu0 %v2774
    %3614 = vmatpush.bf16.msra.mxu0 %v2773
    %3615 = vmatpush.bf16.msra.mxu0 %v2772
    %3616 = vmatpush.bf16.msra.mxu0 %v2771
    %3617 = vmatpush.bf16.msra.mxu0 %v2770
    %3618 = vmatpush.bf16.msra.mxu0 %v2769
    %3619 = vmatpush.bf16.msra.mxu0 %v2768
    %3620 = vmatmul.bf16.gmra.mxu0 %v1018
    %v3621 = vpop.f32.mrf.mxu0
    %v3622 = vadd.f32 %v3609, %v3621
    %v3623 = vpop.f32.mrf.mxu0
    %3624 = vdwg.mxu0
    %3625 = vmatpush.bf16.msra.mxu0 %v2783
    %3626 = vmatpush.bf16.msra.mxu0 %v2782
    %3627 = vmatpush.bf16.msra.mxu0 %v2781
    %3628 = vmatpush.bf16.msra.mxu0 %v2780
    %3629 = vmatpush.bf16.msra.mxu0 %v2779
    %3630 = vmatpush.bf16.msra.mxu0 %v2778
    %3631 = vmatpush.bf16.msra.mxu0 %v2777
    %3632 = vmatpush.bf16.msra.mxu0 %v2776
    %3633 = vmatmul.bf16.gmra.mxu0 %v1019
    %v3634 = vpop.f32.mrf.mxu0
    %v3635 = vadd.f32 %v3622, %v3634
    %v3636 = vpop.f32.mrf.mxu0
    %3637 = vdwg.mxu0
    %3638 = vmatpush.bf16.msra.mxu0 %v2791
    %3639 = vmatpush.bf16.msra.mxu0 %v2790
    %3640 = vmatpush.bf16.msra.mxu0 %v2789
    %3641 = vmatpush.bf16.msra.mxu0 %v2788
    %3642 = vmatpush.bf16.msra.mxu0 %v2787
    %3643 = vmatpush.bf16.msra.mxu0 %v2786
    %3644 = vmatpush.bf16.msra.mxu0 %v2785
    %3645 = vmatpush.bf16.msra.mxu0 %v2784
    %3646 = vmatmul.bf16.gmra.mxu0 %v1020
    %v3647 = vpop.f32.mrf.mxu0
    %v3648 = vadd.f32 %v3635, %v3647
    %v3649 = vpop.f32.mrf.mxu0
    %3650 = vdwg.mxu0
    %3651 = vmatpush.bf16.msra.mxu0 %v2799
    %3652 = vmatpush.bf16.msra.mxu0 %v2798
    %3653 = vmatpush.bf16.msra.mxu0 %v2797
    %3654 = vmatpush.bf16.msra.mxu0 %v2796
    %3655 = vmatpush.bf16.msra.mxu0 %v2795
    %3656 = vmatpush.bf16.msra.mxu0 %v2794
    %3657 = vmatpush.bf16.msra.mxu0 %v2793
    %3658 = vmatpush.bf16.msra.mxu0 %v2792
    %3659 = vmatmul.bf16.gmra.mxu0 %v1021
    %v3660 = vpop.f32.mrf.mxu0
    %v3661 = vadd.f32 %v3648, %v3660
    %v3662 = vpop.f32.mrf.mxu0
    %3663 = vdwg.mxu0
    %3664 = vmatpush.bf16.msra.mxu0 %v2807
    %3665 = vmatpush.bf16.msra.mxu0 %v2806
    %3666 = vmatpush.bf16.msra.mxu0 %v2805
    %3667 = vmatpush.bf16.msra.mxu0 %v2804
    %3668 = vmatpush.bf16.msra.mxu0 %v2803
    %3669 = vmatpush.bf16.msra.mxu0 %v2802
    %3670 = vmatpush.bf16.msra.mxu0 %v2801
    %3671 = vmatpush.bf16.msra.mxu0 %v2800
    %3672 = vmatmul.bf16.gmra.mxu0 %v1022
    %v3673 = vpop.f32.mrf.mxu0
    %v3674 = vadd.f32 %v3661, %v3673
    %v3675 = vpop.f32.mrf.mxu0
    %3676 = vdwg.mxu0
    %3677 = vmatpush.bf16.msra.mxu0 %v2815
    %3678 = vmatpush.bf16.msra.mxu0 %v2814
    %3679 = vmatpush.bf16.msra.mxu0 %v2813
    %3680 = vmatpush.bf16.msra.mxu0 %v2812
    %3681 = vmatpush.bf16.msra.mxu0 %v2811
    %3682 = vmatpush.bf16.msra.mxu0 %v2810
    %3683 = vmatpush.bf16.msra.mxu0 %v2809
    %3684 = vmatpush.bf16.msra.mxu0 %v2808
    %3685 = vmatmul.bf16.gmra.mxu0 %v1023
    %v3686 = vpop.f32.mrf.mxu0
    %v3687 = vadd.f32 %v3674, %v3686
    %v3688 = vpop.f32.mrf.mxu0
    %3689 = vdwg.mxu0
    %3690 = vmatpush.bf16.msra.mxu0 %v2823
    %3691 = vmatpush.bf16.msra.mxu0 %v2822
    %3692 = vmatpush.bf16.msra.mxu0 %v2821
    %3693 = vmatpush.bf16.msra.mxu0 %v2820
    %3694 = vmatpush.bf16.msra.mxu0 %v2819
    %3695 = vmatpush.bf16.msra.mxu0 %v2818
    %3696 = vmatpush.bf16.msra.mxu0 %v2817
    %3697 = vmatpush.bf16.msra.mxu0 %v2816
    %3698 = vmatmul.bf16.gmra.mxu0 %v1024
    %v3699 = vpop.f32.mrf.mxu0
    %v3700 = vadd.f32 %v3687, %v3699
    %v3701 = vpop.f32.mrf.mxu0
    %3702 = vdwg.mxu0
    %3703 = vmatpush.bf16.msra.mxu0 %v2831
    %3704 = vmatpush.bf16.msra.mxu0 %v2830
    %3705 = vmatpush.bf16.msra.mxu0 %v2829
    %3706 = vmatpush.bf16.msra.mxu0 %v2828
    %3707 = vmatpush.bf16.msra.mxu0 %v2827
    %3708 = vmatpush.bf16.msra.mxu0 %v2826
    %3709 = vmatpush.bf16.msra.mxu0 %v2825
    %3710 = vmatpush.bf16.msra.mxu0 %v2824
    %3711 = vmatmul.bf16.gmra.mxu0 %v1025
    %v3712 = vpop.f32.mrf.mxu0
    %v3713 = vadd.f32 %v3700, %v3712
    %v3714 = vpop.f32.mrf.mxu0
    %3715 = vdwg.mxu0
    %3716 = vmatpush.bf16.msra.mxu0 %v2839
    %3717 = vmatpush.bf16.msra.mxu0 %v2838
    %3718 = vmatpush.bf16.msra.mxu0 %v2837
    %3719 = vmatpush.bf16.msra.mxu0 %v2836
    %3720 = vmatpush.bf16.msra.mxu0 %v2835
    %3721 = vmatpush.bf16.msra.mxu0 %v2834
    %3722 = vmatpush.bf16.msra.mxu0 %v2833
    %3723 = vmatpush.bf16.msra.mxu0 %v2832
    %3724 = vmatmul.bf16.gmra.mxu0 %v1026
    %v3725 = vpop.f32.mrf.mxu0
    %v3726 = vadd.f32 %v3713, %v3725
    %v3727 = vpop.f32.mrf.mxu0
    %3728 = vdwg.mxu0
    %3729 = vmatpush.bf16.msra.mxu0 %v2847
    %3730 = vmatpush.bf16.msra.mxu0 %v2846
    %3731 = vmatpush.bf16.msra.mxu0 %v2845
    %3732 = vmatpush.bf16.msra.mxu0 %v2844
    %3733 = vmatpush.bf16.msra.mxu0 %v2843
    %3734 = vmatpush.bf16.msra.mxu0 %v2842
    %3735 = vmatpush.bf16.msra.mxu0 %v2841
    %3736 = vmatpush.bf16.msra.mxu0 %v2840
    %3737 = vmatmul.bf16.gmra.mxu0 %v1027
    %v3738 = vpop.f32.mrf.mxu0
    %v3739 = vadd.f32 %v3726, %v3738
    %v3740 = vpop.f32.mrf.mxu0
    %3741 = vdwg.mxu0
    %3742 = vmatpush.bf16.msra.mxu0 %v2855
    %3743 = vmatpush.bf16.msra.mxu0 %v2854
    %3744 = vmatpush.bf16.msra.mxu0 %v2853
    %3745 = vmatpush.bf16.msra.mxu0 %v2852
    %3746 = vmatpush.bf16.msra.mxu0 %v2851
    %3747 = vmatpush.bf16.msra.mxu0 %v2850
    %3748 = vmatpush.bf16.msra.mxu0 %v2849
    %3749 = vmatpush.bf16.msra.mxu0 %v2848
    %3750 = vmatmul.bf16.gmra.mxu0 %v1028
    %v3751 = vpop.f32.mrf.mxu0
    %v3752 = vadd.f32 %v3739, %v3751
    %v3753 = vpop.f32.mrf.mxu0
    %3754 = vdwg.mxu0
    %3755 = vmatpush.bf16.msra.mxu0 %v2863
    %3756 = vmatpush.bf16.msra.mxu0 %v2862
    %3757 = vmatpush.bf16.msra.mxu0 %v2861
    %3758 = vmatpush.bf16.msra.mxu0 %v2860
    %3759 = vmatpush.bf16.msra.mxu0 %v2859
    %3760 = vmatpush.bf16.msra.mxu0 %v2858
    %3761 = vmatpush.bf16.msra.mxu0 %v2857
    %3762 = vmatpush.bf16.msra.mxu0 %v2856
    %3763 = vmatmul.bf16.gmra.mxu0 %v1029
    %v3764 = vpop.f32.mrf.mxu0
    %v3765 = vadd.f32 %v3752, %v3764
    %v3766 = vpop.f32.mrf.mxu0
    %3767 = vdwg.mxu0
    %3768 = vmatpush.bf16.msra.mxu0 %v2871
    %3769 = vmatpush.bf16.msra.mxu0 %v2870
    %3770 = vmatpush.bf16.msra.mxu0 %v2869
    %3771 = vmatpush.bf16.msra.mxu0 %v2868
    %3772 = vmatpush.bf16.msra.mxu0 %v2867
    %3773 = vmatpush.bf16.msra.mxu0 %v2866
    %3774 = vmatpush.bf16.msra.mxu0 %v2865
    %3775 = vmatpush.bf16.msra.mxu0 %v2864
    %3776 = vmatmul.bf16.gmra.mxu0 %v1030
    %v3777 = vpop.f32.mrf.mxu0
    %v3778 = vadd.f32 %v3765, %v3777
    %v3779 = vpop.f32.mrf.mxu0
    %3780 = vdwg.mxu0
    %3781 = vmatpush.bf16.msra.mxu0 %v2879
    %3782 = vmatpush.bf16.msra.mxu0 %v2878
    %3783 = vmatpush.bf16.msra.mxu0 %v2877
    %3784 = vmatpush.bf16.msra.mxu0 %v2876
    %3785 = vmatpush.bf16.msra.mxu0 %v2875
    %3786 = vmatpush.bf16.msra.mxu0 %v2874
    %3787 = vmatpush.bf16.msra.mxu0 %v2873
    %3788 = vmatpush.bf16.msra.mxu0 %v2872
    %3789 = vmatmul.bf16.gmra.mxu0 %v1031
    %v3790 = vpop.f32.mrf.mxu0
    %v3791 = vadd.f32 %v3778, %v3790
    %v3792 = vpop.f32.mrf.mxu0
    %3793 = vdwg.mxu0
    %3794 = vmatpush.bf16.msra.mxu0 %v2887
    %3795 = vmatpush.bf16.msra.mxu0 %v2886
    %3796 = vmatpush.bf16.msra.mxu0 %v2885
    %3797 = vmatpush.bf16.msra.mxu0 %v2884
    %3798 = vmatpush.bf16.msra.mxu0 %v2883
    %3799 = vmatpush.bf16.msra.mxu0 %v2882
    %3800 = vmatpush.bf16.msra.mxu0 %v2881
    %3801 = vmatpush.bf16.msra.mxu0 %v2880
    %3802 = vmatmul.bf16.gmra.mxu0 %v1032
    %v3803 = vpop.f32.mrf.mxu0
    %v3804 = vadd.f32 %v3791, %v3803
    %v3805 = vpop.f32.mrf.mxu0
    %3806 = vdwg.mxu0
    %3807 = vmatpush.bf16.msra.mxu0 %v2895
    %3808 = vmatpush.bf16.msra.mxu0 %v2894
    %3809 = vmatpush.bf16.msra.mxu0 %v2893
    %3810 = vmatpush.bf16.msra.mxu0 %v2892
    %3811 = vmatpush.bf16.msra.mxu0 %v2891
    %3812 = vmatpush.bf16.msra.mxu0 %v2890
    %3813 = vmatpush.bf16.msra.mxu0 %v2889
    %3814 = vmatpush.bf16.msra.mxu0 %v2888
    %3815 = vmatmul.bf16.gmra.mxu0 %v1033
    %v3816 = vpop.f32.mrf.mxu0
    %v3817 = vadd.f32 %v3804, %v3816
    %v3818 = vpop.f32.mrf.mxu0
    %3819 = vdwg.mxu0
    %3820 = vmatpush.bf16.msra.mxu0 %v2903
    %3821 = vmatpush.bf16.msra.mxu0 %v2902
    %3822 = vmatpush.bf16.msra.mxu0 %v2901
    %3823 = vmatpush.bf16.msra.mxu0 %v2900
    %3824 = vmatpush.bf16.msra.mxu0 %v2899
    %3825 = vmatpush.bf16.msra.mxu0 %v2898
    %3826 = vmatpush.bf16.msra.mxu0 %v2897
    %3827 = vmatpush.bf16.msra.mxu0 %v2896
    %3828 = vmatmul.bf16.gmra.mxu0 %v1034
    %v3829 = vpop.f32.mrf.mxu0
    %v3830 = vadd.f32 %v3817, %v3829
    %v3831 = vpop.f32.mrf.mxu0
    %3832 = vdwg.mxu0
    %3833 = vmatpush.bf16.msra.mxu0 %v2911
    %3834 = vmatpush.bf16.msra.mxu0 %v2910
    %3835 = vmatpush.bf16.msra.mxu0 %v2909
    %3836 = vmatpush.bf16.msra.mxu0 %v2908
    %3837 = vmatpush.bf16.msra.mxu0 %v2907
    %3838 = vmatpush.bf16.msra.mxu0 %v2906
    %3839 = vmatpush.bf16.msra.mxu0 %v2905
    %3840 = vmatpush.bf16.msra.mxu0 %v2904
    %3841 = vmatmul.bf16.gmra.mxu0 %v1035
    %v3842 = vpop.f32.mrf.mxu0
    %v3843 = vadd.f32 %v3830, %v3842
    %v3844 = vpop.f32.mrf.mxu0
    %3845 = vdwg.mxu0
    %3846 = vmatpush.bf16.msra.mxu0 %v2919
    %3847 = vmatpush.bf16.msra.mxu0 %v2918
    %3848 = vmatpush.bf16.msra.mxu0 %v2917
    %3849 = vmatpush.bf16.msra.mxu0 %v2916
    %3850 = vmatpush.bf16.msra.mxu0 %v2915
    %3851 = vmatpush.bf16.msra.mxu0 %v2914
    %3852 = vmatpush.bf16.msra.mxu0 %v2913
    %3853 = vmatpush.bf16.msra.mxu0 %v2912
    %3854 = vmatmul.bf16.gmra.mxu0 %v1036
    %v3855 = vpop.f32.mrf.mxu0
    %v3856 = vadd.f32 %v3843, %v3855
    %v3857 = vpop.f32.mrf.mxu0
    %3858 = vdwg.mxu0
    %3859 = vmatpush.bf16.msra.mxu0 %v2927
    %3860 = vmatpush.bf16.msra.mxu0 %v2926
    %3861 = vmatpush.bf16.msra.mxu0 %v2925
    %3862 = vmatpush.bf16.msra.mxu0 %v2924
    %3863 = vmatpush.bf16.msra.mxu0 %v2923
    %3864 = vmatpush.bf16.msra.mxu0 %v2922
    %3865 = vmatpush.bf16.msra.mxu0 %v2921
    %3866 = vmatpush.bf16.msra.mxu0 %v2920
    %3867 = vmatmul.bf16.gmra.mxu0 %v1037
    %v3868 = vpop.f32.mrf.mxu0
    %v3869 = vadd.f32 %v3856, %v3868
    %v3870 = vpop.f32.mrf.mxu0
    %3871 = vdwg.mxu0
    %3872 = vmatpush.bf16.msra.mxu0 %v2935
    %3873 = vmatpush.bf16.msra.mxu0 %v2934
    %3874 = vmatpush.bf16.msra.mxu0 %v2933
    %3875 = vmatpush.bf16.msra.mxu0 %v2932
    %3876 = vmatpush.bf16.msra.mxu0 %v2931
    %3877 = vmatpush.bf16.msra.mxu0 %v2930
    %3878 = vmatpush.bf16.msra.mxu0 %v2929
    %3879 = vmatpush.bf16.msra.mxu0 %v2928
    %3880 = vmatmul.bf16.gmra.mxu0 %v1038
    %v3881 = vpop.f32.mrf.mxu0
    %v3882 = vadd.f32 %v3869, %v3881
    %v3883 = vpop.f32.mrf.mxu0
    %3884 = vdwg.mxu0
    %3885 = vmatpush.bf16.msra.mxu0 %v2943
    %3886 = vmatpush.bf16.msra.mxu0 %v2942
    %3887 = vmatpush.bf16.msra.mxu0 %v2941
    %3888 = vmatpush.bf16.msra.mxu0 %v2940
    %3889 = vmatpush.bf16.msra.mxu0 %v2939
    %3890 = vmatpush.bf16.msra.mxu0 %v2938
    %3891 = vmatpush.bf16.msra.mxu0 %v2937
    %3892 = vmatpush.bf16.msra.mxu0 %v2936
    %3893 = vmatmul.bf16.gmra.mxu0 %v1039
    %v3894 = vpop.f32.mrf.mxu0
    %v3895 = vadd.f32 %v3882, %v3894
    %v3896 = vpop.f32.mrf.mxu0
    %3897 = vdwg.mxu0
    %3898 = vmatpush.bf16.msra.mxu0 %v2951
    %3899 = vmatpush.bf16.msra.mxu0 %v2950
    %3900 = vmatpush.bf16.msra.mxu0 %v2949
    %3901 = vmatpush.bf16.msra.mxu0 %v2948
    %3902 = vmatpush.bf16.msra.mxu0 %v2947
    %3903 = vmatpush.bf16.msra.mxu0 %v2946
    %3904 = vmatpush.bf16.msra.mxu0 %v2945
    %3905 = vmatpush.bf16.msra.mxu0 %v2944
    %3906 = vmatmul.bf16.gmra.mxu0 %v1040
    %v3907 = vpop.f32.mrf.mxu0
    %v3908 = vadd.f32 %v3895, %v3907
    %v3909 = vpop.f32.mrf.mxu0
    %3910 = vdwg.mxu0
    %3911 = vmatpush.bf16.msra.mxu0 %v2959
    %3912 = vmatpush.bf16.msra.mxu0 %v2958
    %3913 = vmatpush.bf16.msra.mxu0 %v2957
    %3914 = vmatpush.bf16.msra.mxu0 %v2956
    %3915 = vmatpush.bf16.msra.mxu0 %v2955
    %3916 = vmatpush.bf16.msra.mxu0 %v2954
    %3917 = vmatpush.bf16.msra.mxu0 %v2953
    %3918 = vmatpush.bf16.msra.mxu0 %v2952
    %3919 = vmatmul.bf16.gmra.mxu0 %v1041
    %v3920 = vpop.f32.mrf.mxu0
    %v3921 = vadd.f32 %v3908, %v3920
    %v3922 = vpop.f32.mrf.mxu0
    %3923 = vdwg.mxu0
    %3924 = vmatpush.bf16.msra.mxu0 %v2967
    %3925 = vmatpush.bf16.msra.mxu0 %v2966
    %3926 = vmatpush.bf16.msra.mxu0 %v2965
    %3927 = vmatpush.bf16.msra.mxu0 %v2964
    %3928 = vmatpush.bf16.msra.mxu0 %v2963
    %3929 = vmatpush.bf16.msra.mxu0 %v2962
    %3930 = vmatpush.bf16.msra.mxu0 %v2961
    %3931 = vmatpush.bf16.msra.mxu0 %v2960
    %3932 = vmatmul.bf16.gmra.mxu0 %v1042
    %v3933 = vpop.f32.mrf.mxu0
    %v3934 = vadd.f32 %v3921, %v3933
    %v3935 = vpop.f32.mrf.mxu0
    %3936 = vdwg.mxu0
    %3937 = vmatpush.bf16.msra.mxu0 %v2975
    %3938 = vmatpush.bf16.msra.mxu0 %v2974
    %3939 = vmatpush.bf16.msra.mxu0 %v2973
    %3940 = vmatpush.bf16.msra.mxu0 %v2972
    %3941 = vmatpush.bf16.msra.mxu0 %v2971
    %3942 = vmatpush.bf16.msra.mxu0 %v2970
    %3943 = vmatpush.bf16.msra.mxu0 %v2969
    %3944 = vmatpush.bf16.msra.mxu0 %v2968
    %3945 = vmatmul.bf16.gmra.mxu0 %v1043
    %v3946 = vpop.f32.mrf.mxu0
    %v3947 = vadd.f32 %v3934, %v3946
    %v3948 = vpop.f32.mrf.mxu0
    %3949 = vdwg.mxu0
    %3950 = vmatpush.bf16.msra.mxu0 %v2983
    %3951 = vmatpush.bf16.msra.mxu0 %v2982
    %3952 = vmatpush.bf16.msra.mxu0 %v2981
    %3953 = vmatpush.bf16.msra.mxu0 %v2980
    %3954 = vmatpush.bf16.msra.mxu0 %v2979
    %3955 = vmatpush.bf16.msra.mxu0 %v2978
    %3956 = vmatpush.bf16.msra.mxu0 %v2977
    %3957 = vmatpush.bf16.msra.mxu0 %v2976
    %3958 = vmatmul.bf16.gmra.mxu0 %v1044
    %v3959 = vpop.f32.mrf.mxu0
    %v3960 = vadd.f32 %v3947, %v3959
    %v3961 = vpop.f32.mrf.mxu0
    %3962 = vdwg.mxu0
    %3963 = vmatpush.bf16.msra.mxu0 %v2991
    %3964 = vmatpush.bf16.msra.mxu0 %v2990
    %3965 = vmatpush.bf16.msra.mxu0 %v2989
    %3966 = vmatpush.bf16.msra.mxu0 %v2988
    %3967 = vmatpush.bf16.msra.mxu0 %v2987
    %3968 = vmatpush.bf16.msra.mxu0 %v2986
    %3969 = vmatpush.bf16.msra.mxu0 %v2985
    %3970 = vmatpush.bf16.msra.mxu0 %v2984
    %3971 = vmatmul.bf16.gmra.mxu0 %v1045
    %v3972 = vpop.f32.mrf.mxu0
    %v3973 = vadd.f32 %v3960, %v3972
    %v3974 = vpop.f32.mrf.mxu0
    %3975 = vdwg.mxu0
    %3976 = vmatpush.bf16.msra.mxu0 %v2999
    %3977 = vmatpush.bf16.msra.mxu0 %v2998
    %3978 = vmatpush.bf16.msra.mxu0 %v2997
    %3979 = vmatpush.bf16.msra.mxu0 %v2996
    %3980 = vmatpush.bf16.msra.mxu0 %v2995
    %3981 = vmatpush.bf16.msra.mxu0 %v2994
    %3982 = vmatpush.bf16.msra.mxu0 %v2993
    %3983 = vmatpush.bf16.msra.mxu0 %v2992
    %3984 = vmatmul.bf16.gmra.mxu0 %v1046
    %v3985 = vpop.f32.mrf.mxu0
    %v3986 = vadd.f32 %v3973, %v3985
    %v3987 = vpop.f32.mrf.mxu0
    %3988 = vdwg.mxu0
    %3989 = vmatpush.bf16.msra.mxu0 %v3007
    %3990 = vmatpush.bf16.msra.mxu0 %v3006
    %3991 = vmatpush.bf16.msra.mxu0 %v3005
    %3992 = vmatpush.bf16.msra.mxu0 %v3004
    %3993 = vmatpush.bf16.msra.mxu0 %v3003
    %3994 = vmatpush.bf16.msra.mxu0 %v3002
    %3995 = vmatpush.bf16.msra.mxu0 %v3001
    %3996 = vmatpush.bf16.msra.mxu0 %v3000
    %3997 = vmatmul.bf16.gmra.mxu0 %v1047
    %v3998 = vpop.f32.mrf.mxu0
    %v3999 = vadd.f32 %v3986, %v3998
    %v4000 = vpop.f32.mrf.mxu0
    %4001 = vdwg.mxu0
    %4002 = vmatpush.bf16.msra.mxu0 %v3015
    %4003 = vmatpush.bf16.msra.mxu0 %v3014
    %4004 = vmatpush.bf16.msra.mxu0 %v3013
    %4005 = vmatpush.bf16.msra.mxu0 %v3012
    %4006 = vmatpush.bf16.msra.mxu0 %v3011
    %4007 = vmatpush.bf16.msra.mxu0 %v3010
    %4008 = vmatpush.bf16.msra.mxu0 %v3009
    %4009 = vmatpush.bf16.msra.mxu0 %v3008
    %4010 = vmatmul.bf16.gmra.mxu0 %v1048
    %v4011 = vpop.f32.mrf.mxu0
    %v4012 = vadd.f32 %v3999, %v4011
    %v4013 = vpop.f32.mrf.mxu0
    %4014 = vdwg.mxu0
    %4015 = vmatpush.bf16.msra.mxu0 %v3023
    %4016 = vmatpush.bf16.msra.mxu0 %v3022
    %4017 = vmatpush.bf16.msra.mxu0 %v3021
    %4018 = vmatpush.bf16.msra.mxu0 %v3020
    %4019 = vmatpush.bf16.msra.mxu0 %v3019
    %4020 = vmatpush.bf16.msra.mxu0 %v3018
    %4021 = vmatpush.bf16.msra.mxu0 %v3017
    %4022 = vmatpush.bf16.msra.mxu0 %v3016
    %4023 = vmatmul.bf16.gmra.mxu0 %v1049
    %v4024 = vpop.f32.mrf.mxu0
    %v4025 = vadd.f32 %v4012, %v4024
    %v4026 = vpop.f32.mrf.mxu0
    %4027 = vdwg.mxu0
    %4028 = vmatpush.bf16.msra.mxu0 %v3031
    %4029 = vmatpush.bf16.msra.mxu0 %v3030
    %4030 = vmatpush.bf16.msra.mxu0 %v3029
    %4031 = vmatpush.bf16.msra.mxu0 %v3028
    %4032 = vmatpush.bf16.msra.mxu0 %v3027
    %4033 = vmatpush.bf16.msra.mxu0 %v3026
    %4034 = vmatpush.bf16.msra.mxu0 %v3025
    %4035 = vmatpush.bf16.msra.mxu0 %v3024
    %4036 = vmatmul.bf16.gmra.mxu0 %v1050
    %v4037 = vpop.f32.mrf.mxu0
    %v4038 = vadd.f32 %v4025, %v4037
    %v4039 = vpop.f32.mrf.mxu0
    %4040 = vdwg.mxu0
    %4041 = vmatpush.bf16.msra.mxu0 %v3039
    %4042 = vmatpush.bf16.msra.mxu0 %v3038
    %4043 = vmatpush.bf16.msra.mxu0 %v3037
    %4044 = vmatpush.bf16.msra.mxu0 %v3036
    %4045 = vmatpush.bf16.msra.mxu0 %v3035
    %4046 = vmatpush.bf16.msra.mxu0 %v3034
    %4047 = vmatpush.bf16.msra.mxu0 %v3033
    %4048 = vmatpush.bf16.msra.mxu0 %v3032
    %4049 = vmatmul.bf16.gmra.mxu0 %v1051
    %v4050 = vpop.f32.mrf.mxu0
    %v4051 = vadd.f32 %v4038, %v4050
    %v4052 = vpop.f32.mrf.mxu0
    %4053 = vdwg.mxu0
    %4054 = vmatpush.bf16.msra.mxu0 %v3047
    %4055 = vmatpush.bf16.msra.mxu0 %v3046
    %4056 = vmatpush.bf16.msra.mxu0 %v3045
    %4057 = vmatpush.bf16.msra.mxu0 %v3044
    %4058 = vmatpush.bf16.msra.mxu0 %v3043
    %4059 = vmatpush.bf16.msra.mxu0 %v3042
    %4060 = vmatpush.bf16.msra.mxu0 %v3041
    %4061 = vmatpush.bf16.msra.mxu0 %v3040
    %4062 = vmatmul.bf16.gmra.mxu0 %v1052
    %v4063 = vpop.f32.mrf.mxu0
    %v4064 = vadd.f32 %v4051, %v4063
    %v4065 = vpop.f32.mrf.mxu0
    %4066 = vdwg.mxu0
    %4067 = vmatpush.bf16.msra.mxu0 %v3055
    %4068 = vmatpush.bf16.msra.mxu0 %v3054
    %4069 = vmatpush.bf16.msra.mxu0 %v3053
    %4070 = vmatpush.bf16.msra.mxu0 %v3052
    %4071 = vmatpush.bf16.msra.mxu0 %v3051
    %4072 = vmatpush.bf16.msra.mxu0 %v3050
    %4073 = vmatpush.bf16.msra.mxu0 %v3049
    %4074 = vmatpush.bf16.msra.mxu0 %v3048
    %4075 = vmatmul.bf16.gmra.mxu0 %v1053
    %v4076 = vpop.f32.mrf.mxu0
    %v4077 = vadd.f32 %v4064, %v4076
    %v4078 = vpop.f32.mrf.mxu0
    %4079 = vdwg.mxu0
    %4080 = vmatpush.bf16.msra.mxu0 %v3063
    %4081 = vmatpush.bf16.msra.mxu0 %v3062
    %4082 = vmatpush.bf16.msra.mxu0 %v3061
    %4083 = vmatpush.bf16.msra.mxu0 %v3060
    %4084 = vmatpush.bf16.msra.mxu0 %v3059
    %4085 = vmatpush.bf16.msra.mxu0 %v3058
    %4086 = vmatpush.bf16.msra.mxu0 %v3057
    %4087 = vmatpush.bf16.msra.mxu0 %v3056
    %4088 = vmatmul.bf16.gmra.mxu0 %v1054
    %v4089 = vpop.f32.mrf.mxu0
    %v4090 = vadd.f32 %v4077, %v4089
    %v4091 = vpop.f32.mrf.mxu0
    %4092 = vdwg.mxu0
    %v4093 = vmax.f32 %v4090, 0.0
    %v4094 = vpack.c.bf16 %v4093, %v4093
    %v4095 = vld [vmem:[%s3] sm:$0xf]
    %v4096 = vld [vmem:[%s3 + $0x4] sm:$0xf]
    %v4097 = vld [vmem:[%s3 + $0x8] sm:$0xf]
    %v4098 = vld [vmem:[%s3 + $0xc] sm:$0xf]
    %v4099 = vld [vmem:[%s3 + $0x10] sm:$0xf]
    %v4100 = vld [vmem:[%s3 + $0x14] sm:$0xf]
    %v4101 = vld [vmem:[%s3 + $0x18] sm:$0xf]
    %v4102 = vld [vmem:[%s3 + $0x1c] sm:$0xf]
    %v4103 = vld [vmem:[%s3 + $0x20] sm:$0xf]
    %v4104 = vld [vmem:[%s3 + $0x24] sm:$0xf]
    %v4105 = vld [vmem:[%s3 + $0x28] sm:$0xf]
    %v4106 = vld [vmem:[%s3 + $0x2c] sm:$0xf]
    %v4107 = vld [vmem:[%s3 + $0x30] sm:$0xf]
    %v4108 = vld [vmem:[%s3 + $0x34] sm:$0xf]
    %v4109 = vld [vmem:[%s3 + $0x38] sm:$0xf]
    %v4110 = vld [vmem:[%s3 + $0x3c] sm:$0xf]
    %v4111 = vld [vmem:[#allocation6] sm:$0x1]
    %v4113 = vperm.slane %v4111, 0
    %v4131 = vunpack.c.l.b16 %v4095
    %v4132 = vunpack.c.l.b16 %v4096
    %v4133 = vunpack.c.l.b16 %v4097
    %v4134 = vunpack.c.l.b16 %v4098
    %v4135 = vunpack.c.l.b16 %v4099
    %v4136 = vunpack.c.l.b16 %v4100
    %v4137 = vunpack.c.l.b16 %v4101
    %v4138 = vunpack.c.l.b16 %v4102
    %v4139 = vunpack.c.l.b16 %v4103
    %v4140 = vunpack.c.l.b16 %v4104
    %v4141 = vunpack.c.l.b16 %v4105
    %v4142 = vunpack.c.l.b16 %v4106
    %v4143 = vunpack.c.l.b16 %v4107
    %v4144 = vunpack.c.l.b16 %v4108
    %v4145 = vunpack.c.l.b16 %v4109
    %v4146 = vunpack.c.l.b16 %v4110
    %v4147 = vpack.c.b16 %v4132, %v4131
    %v4148 = vpack.c.b16 %v4134, %v4133
    %v4149 = vpack.c.b16 %v4136, %v4135
    %v4150 = vpack.c.b16 %v4138, %v4137
    %v4151 = vpack.c.b16 %v4140, %v4139
    %v4152 = vpack.c.b16 %v4142, %v4141
    %v4153 = vpack.c.b16 %v4144, %v4143
    %v4154 = vpack.c.b16 %v4146, %v4145
    %4163 = vmatpush.bf16.msra.mxu0 %v4154
    %4164 = vmatpush.bf16.msra.mxu0 %v4153
    %4165 = vmatpush.bf16.msra.mxu0 %v4152
    %4166 = vmatpush.bf16.msra.mxu0 %v4151
    %4167 = vmatpush.bf16.msra.mxu0 %v4150
    %4168 = vmatpush.bf16.msra.mxu0 %v4149
    %4169 = vmatpush.bf16.msra.mxu0 %v4148
    %4170 = vmatpush.bf16.msra.mxu0 %v4147
    %4171 = vmatmul.bf16.gmra.mxu0 %v4094
    %v4172 = vpop.f32.mrf.mxu0
    %v4173 = vadd.f32 %v4113, %v4172
    %v4174 = vpop.f32.mrf.mxu0
    %4175 = vdwg.mxu0
    %v4176 = vmax.f32 %v4173, 0.0
    %v4177 = vpack.c.bf16 %v4176, %v4176
    %v4178 = vld [vmem:[%s5] sm:$0xf]
    %v4179 = vld [vmem:[%s5 + $0x4] sm:$0xf]
    %v4180 = vld [vmem:[%s5 + $0x8] sm:$0xf]
    %v4181 = vld [vmem:[%s5 + $0xc] sm:$0xf]
    %v4182 = vld [vmem:[%s5 + $0x10] sm:$0xf]
    %v4183 = vld [vmem:[%s5 + $0x14] sm:$0xf]
    %v4184 = vld [vmem:[%s5 + $0x18] sm:$0xf]
    %v4185 = vld [vmem:[%s5 + $0x1c] sm:$0xf]
    %v4186 = vld [vmem:[#allocation7] sm:$0x1]
    %v4188 = vperm.slane %v4186, 0
    %v4198 = vunpack.c.l.b16 %v4178
    %v4199 = vunpack.c.l.b16 %v4179
    %v4200 = vunpack.c.l.b16 %v4180
    %v4201 = vunpack.c.l.b16 %v4181
    %v4202 = vunpack.c.l.b16 %v4182
    %v4203 = vunpack.c.l.b16 %v4183
    %v4204 = vunpack.c.l.b16 %v4184
    %v4205 = vunpack.c.l.b16 %v4185
    %v4206 = vpack.c.b16 %v4199, %v4198
    %v4207 = vpack.c.b16 %v4201, %v4200
    %v4208 = vpack.c.b16 %v4203, %v4202
    %v4209 = vpack.c.b16 %v4205, %v4204
    %vm4214 = vcmask 523264
    %v4216 = vsel %vm4214, %v4177, 0
    %4218 = vmatpush.bf16.msra.mxu0 0
    %4219 = vmatpush.bf16.msra.mxu0 0
    %4220 = vmatpush.bf16.msra.mxu0 0
    %4221 = vmatpush.bf16.msra.mxu0 0
    %4222 = vmatpush.bf16.msra.mxu0 %v4209
    %4223 = vmatpush.bf16.msra.mxu0 %v4208
    %4224 = vmatpush.bf16.msra.mxu0 %v4207
    %4225 = vmatpush.bf16.msra.mxu0 %v4206
    %4226 = vmatmul.bf16.gmra.mxu0 %v4216
    %v4227 = vpop.f32.mrf.mxu0
    %v4228 = vadd.f32 %v4188, %v4227
    %v4229 = vpop.f32.mrf.mxu0
    %4230 = vdwg.mxu0
    %v4231 = vmax.f32 %v4228, 0.0
    %v4232 = vpack.c.bf16 %v4231, %v4231
    %v4233 = vld [vmem:[#allocation9] sm:$0xf]
    %v4234 = vld [vmem:[#allocation9 + $0x4] sm:$0xf]
    %v4235 = vld [vmem:[#allocation9 + $0x8] sm:$0xf]
    %v4236 = vld [vmem:[#allocation9 + $0xc] sm:$0xf]
    %v4237 = vld [vmem:[#allocation10] sm:$0x1]
    %v4239 = vperm.slane %v4237, 0
    %v4245 = vunpack.c.l.b16 %v4233
    %v4246 = vunpack.c.l.b16 %v4234
    %v4247 = vunpack.c.l.b16 %v4235
    %v4248 = vunpack.c.l.b16 %v4236
    %v4249 = vpack.c.b16 %v4246, %v4245
    %v4250 = vpack.c.b16 %v4248, %v4247
    %vm4253 = vcmask 261120
    %v4255 = vsel %vm4253, %v4232, 0
    %4257 = vmatpush.bf16.msra.mxu0 0
    %4258 = vmatpush.bf16.msra.mxu0 0
    %4259 = vmatpush.bf16.msra.mxu0 0
    %4260 = vmatpush.bf16.msra.mxu0 0
    %4261 = vmatpush.bf16.msra.mxu0 0
    %4262 = vmatpush.bf16.msra.mxu0 0
    %4263 = vmatpush.bf16.msra.mxu0 %v4250
    %4264 = vmatpush.bf16.msra.mxu0 %v4249
    %4265 = vmatmul.bf16.gmra.mxu0 %v4255
    %v4266 = vpop.f32.mrf.mxu0
    %v4267 = vadd.f32 %v4239, %v4266
    %v4268 = vpop.f32.mrf.mxu0
    %4269 = vdwg.mxu0
    %4270 = vst [vmem:[%s9] sm:$0xff] %v4267
    // Predicated region
    $region62: #{cnn_classifier_forward.3} parent=1 // pred_check
      _
    $region63: #{cnn_classifier_forward.3} parent=1 // pred_check_branch
      %4272 = sbr.rel (0) target = $region65
    $region64: #{cnn_classifier_forward.3} parent=1 // pred_region
      _
    $region65: #{cnn_classifier_forward.3} parent=1 // pred_fallthru
      _
    // Predicated region
    $region66: #{cnn_classifier_forward.3} parent=1 // pred_check
      _
    $region67: #{cnn_classifier_forward.3} parent=1 // pred_check_branch
      %4274 = sbr.rel (0) target = $region69
    $region68: #{cnn_classifier_forward.3} parent=1 // pred_region
      _
    $region69: #{cnn_classifier_forward.3} parent=1 // pred_fallthru
      _
    %4275 = vsyncpa [#allocation3], 1
    %4276 = vsyncpa [#allocation5], 1
    %4277 = vsyncpa [#allocation8], 1
    %4278 = vsyncpa [#allocation11], 1

// kernel: cnn_classifier_forward.2
$region0: #{cnn_classifier_forward.2}
  #allocation0 [shape = 'u32[]', space=smem, size = 0x4, offset = 0x4, fixed_abs, tag = 'smem constant byte address 0x4 - core index']
  #allocation1 [shape = 'u32[72,128]{1,0:T(1,128)}', space=vmem, size = 0x9000, scoped, tag = 'internal scratch']
  %s0 = inlined_call_operand.vmem [shape: f32[2,196,1], index: 0, kind: input, shape index: {}]
  %s1 = inlined_call_operand.hbm [shape: f32[9,196,196], index: 1, kind: input, shape index: {}]
  %s2 = inlined_call_operand.vmem [shape: f32[4,49,196], index: 2, kind: input, shape index: {}]
  %s3 = inlined_call_operand.hbm [shape: f32[9,49,49], index: 3, kind: input, shape index: {}]
  %s4 = inlined_call_operand.hbm [shape: f32[9,32], index: 4, kind: input, shape index: {}]
  %s5 = inlined_call_operand.hbm [shape: f32[1,32], index: 5, kind: input, shape index: {}]
  %s6 = inlined_call_operand.hbm [shape: bf16[9,32,64], index: 6, kind: input, shape index: {}]
  %s7 = inlined_call_operand.hbm [shape: f32[1,64], index: 7, kind: input, shape index: {}]
  %s8 = inlined_call_operand.hbm [shape: bf16[9,64,128], index: 8, kind: input, shape index: {}]
  %s9 = inlined_call_operand.hbm [shape: f32[1,128], index: 9, kind: input, shape index: {}]
  %s10 = inlined_call_operand.vmem [shape: bf16[2,49,128], index: 10, kind: output, shape index: {}]
  %s11 = sld [smem:[#allocation0]]
  $region105: #{cnn_classifier_forward.2} parent=0
    _
  %s13 = ssub.s32 1, %s11
  %s14 = scalar_select 0, %s13, %s11
  $region1: #{cnn_classifier_forward.2} parent=0
    #allocation2 [shape = 'u8[1843200]{0}', space=vmem, size = 0x1c2000, scoped, tag = 'input window, operand 1, single buffered']
    #allocation3 [shape = 's32[2]{0}', space=sflag, size = 0x8, scoped, tag = 'scoped memory for cnn_classifier_forward.2']
    #allocation4 [shape = 'u8[258048]{0}', space=vmem, size = 0x3f000, scoped, tag = 'input window, operand 3, single buffered']
    #allocation5 [shape = 's32[1]{0}', space=sflag, size = 0x4, scoped, tag = 'scoped memory for cnn_classifier_forward.2']
    #allocation6 [shape = 'u8[8192]{0}', space=vmem, size = 0x2000, scoped, tag = 'input window, operand 4, single buffered']
    #allocation7 [shape = 'u8[512]{0}', space=vmem, size = 0x400, scoped, tag = 'input window, operand 5, single buffered']
    #allocation8 [shape = 's32[1]{0}', space=sflag, size = 0x4, scoped, tag = 'scoped memory for cnn_classifier_forward.2']
    #allocation9 [shape = 'u8[73728]{0}', space=vmem, size = 0x12000, scoped, tag = 'input window, operand 6, single buffered']
    #allocation10 [shape = 'u8[512]{0}', space=vmem, size = 0x400, scoped, tag = 'input window, operand 7, single buffered']
    #allocation11 [shape = 's32[1]{0}', space=sflag, size = 0x4, scoped, tag = 'scoped memory for cnn_classifier_forward.2']
    #allocation12 [shape = 'u8[147456]{0}', space=vmem, size = 0x24000, scoped, tag = 'input window, operand 8, single buffered']
    #allocation13 [shape = 'u8[512]{0}', space=vmem, size = 0x400, scoped, tag = 'input window, operand 9, single buffered']
    #allocation14 [shape = 's32[1]{0}', space=sflag, size = 0x4, scoped, tag = 'scoped memory for cnn_classifier_forward.2']
    %15 = vsyncpa [#allocation3], 0
    %16 = vsyncpa [#allocation5], 0
    %17 = vsyncpa [#allocation8], 0
    %18 = vsyncpa [#allocation11], 0
    %19 = vsyncpa [#allocation14], 0
    loop: start=0, step=1, limit=4
    $region2: #{cnn_classifier_forward.2} parent=1 // loop_pre_header
      _
    $region3: #{cnn_classifier_forward.2} parent=1 // loop_header
      %s21 = sphi 0, %s25
      %p22 = scmp.ge.s32.totalorder %s21, 4
      %s31 = sphi 0, %s33
      %s34 = sphi 0, %s31
      %s35 = sphi 0, %s34
      %s51 = sphi 0, %s35
      %s55 = sphi 0, %s55
      %s57 = sphi 0, %s55
      %s58 = sphi 0, %s57
      %s72 = sphi 0, %s58
      %s76 = sphi 0, %s76
      %s78 = sphi 0, %s76
      %s79 = sphi 0, %s78
      %s93 = sphi 0, %s79
      %s97 = sphi 0, %s97
      %s99 = sphi 0, %s97
      %s100 = sphi 0, %s99
      %s114 = sphi 0, %s100
      %s118 = sphi 0, %s118
      %s120 = sphi 0, %s118
      %s121 = sphi 0, %s120
      %s135 = sphi 0, %s121
      %s139 = sphi 0, %s139
      %s141 = sphi 0, %s139
      %s142 = sphi 0, %s141
      %s156 = sphi 0, %s142
      %s160 = sphi 0, %s160
      %s162 = sphi 0, %s160
      %s163 = sphi 0, %s162
      %s177 = sphi 0, %s163
      %s181 = sphi 0, %s181
      %s183 = sphi 0, %s181
      %s184 = sphi 0, %s183
      %s198 = sphi 0, %s184
      %s202 = sphi 0, %s202
      %s204 = sphi 0, %s202
      %s205 = sphi 0, %s204
      %s219 = sphi 0, %s205
      %s223 = sphi 0, %s223
      %s225 = sphi 0, %s223
      %s226 = sphi 0, %s225
      %s240 = sphi 0, %s226
      %s246 = sphi 0, %s248
      %s249 = sphi 0, %s246
      %s250 = sphi 0, %s249
      %s266 = sphi 0, %s250
    $region4: #{cnn_classifier_forward.2} parent=1 // loop_header_branch
      %24 = sbr.rel (%p22) target = $region8
    $region5: #{cnn_classifier_forward.2} parent=1 // loop_body
      %s26 = ssub.s32 %s21, 1
      %s27 = ssub.s32 %s21, 2
      %s28 = sadd.s32 %s21, 1
      %s29 = ssub.s32 %s21, %s28
      %p30 = scmp.eq.s32.totalorder %s29, 0
      %s32 = sadd.s32 %s31, 1
      %s33 = scalar_select %p30, %s31, %s32
      %p36 = pneg %p30
      %p37 = scmp.eq.s32.totalorder %s21, 1
      %p38 = por %p36, %p37
      %p39 = scmp.ne.s32.totalorder %s31, %s34
      %p40 = scmp.eq.s32.totalorder %s21, 0
      %p41 = por %p39, %p40
      %p42 = scmp.ne.s32.totalorder %s31, %s34
      %p43 = scmp.eq.s32.totalorder %s26, 1
      %p44 = por %p42, %p43
      %p45 = scmp.ne.s32.totalorder %s34, %s35
      %p46 = scmp.eq.s32.totalorder %s26, 0
      %p47 = por %p45, %p46
      %p48 = scmp.ne.s32.totalorder %s34, %s35
      %p49 = scmp.eq.s32.totalorder %s27, 1
      %p50 = por %p48, %p49
      %p52 = scmp.ne.s32.totalorder %s35, %s51
      %p53 = scmp.eq.s32.totalorder %s27, 0
      %p54 = por %p52, %p53
      %s56 = sadd.s32 %s55, 1
      %p59 = scmp.eq.s32.totalorder %s21, 1
      %p60 = scmp.ne.s32.totalorder %s55, %s57
      %p61 = scmp.eq.s32.totalorder %s21, 0
      %p62 = por %p60, %p61
      %p63 = scmp.ne.s32.totalorder %s55, %s57
      %p64 = scmp.eq.s32.totalorder %s26, 1
      %p65 = por %p63, %p64
      %p66 = scmp.ne.s32.totalorder %s57, %s58
      %p67 = scmp.eq.s32.totalorder %s26, 0
      %p68 = por %p66, %p67
      %p69 = scmp.ne.s32.totalorder %s57, %s58
      %p70 = scmp.eq.s32.totalorder %s27, 1
      %p71 = por %p69, %p70
      %p73 = scmp.ne.s32.totalorder %s58, %s72
      %p74 = scmp.eq.s32.totalorder %s27, 0
      %p75 = por %p73, %p74
      %s77 = sadd.s32 %s76, 1
      %p80 = scmp.eq.s32.totalorder %s21, 1
      %p81 = scmp.ne.s32.totalorder %s76, %s78
      %p82 = scmp.eq.s32.totalorder %s21, 0
      %p83 = por %p81, %p82
      %p84 = scmp.ne.s32.totalorder %s76, %s78
      %p85 = scmp.eq.s32.totalorder %s26, 1
      %p86 = por %p84, %p85
      %p87 = scmp.ne.s32.totalorder %s78, %s79
      %p88 = scmp.eq.s32.totalorder %s26, 0
      %p89 = por %p87, %p88
      %p90 = scmp.ne.s32.totalorder %s78, %s79
      %p91 = scmp.eq.s32.totalorder %s27, 1
      %p92 = por %p90, %p91
      %p94 = scmp.ne.s32.totalorder %s79, %s93
      %p95 = scmp.eq.s32.totalorder %s27, 0
      %p96 = por %p94, %p95
      %s98 = sadd.s32 %s97, 1
      %p101 = scmp.eq.s32.totalorder %s21, 1
      %p102 = scmp.ne.s32.totalorder %s97, %s99
      %p103 = scmp.eq.s32.totalorder %s21, 0
      %p104 = por %p102, %p103
      %p105 = scmp.ne.s32.totalorder %s97, %s99
      %p106 = scmp.eq.s32.totalorder %s26, 1
      %p107 = por %p105, %p106
      %p108 = scmp.ne.s32.totalorder %s99, %s100
      %p109 = scmp.eq.s32.totalorder %s26, 0
      %p110 = por %p108, %p109
      %p111 = scmp.ne.s32.totalorder %s99, %s100
      %p112 = scmp.eq.s32.totalorder %s27, 1
      %p113 = por %p111, %p112
      %p115 = scmp.ne.s32.totalorder %s100, %s114
      %p116 = scmp.eq.s32.totalorder %s27, 0
      %p117 = por %p115, %p116
      %s119 = sadd.s32 %s118, 1
      %p122 = scmp.eq.s32.totalorder %s21, 1
      %p123 = scmp.ne.s32.totalorder %s118, %s120
      %p124 = scmp.eq.s32.totalorder %s21, 0
      %p125 = por %p123, %p124
      %p126 = scmp.ne.s32.totalorder %s118, %s120
      %p127 = scmp.eq.s32.totalorder %s26, 1
      %p128 = por %p126, %p127
      %p129 = scmp.ne.s32.totalorder %s120, %s121
      %p130 = scmp.eq.s32.totalorder %s26, 0
      %p131 = por %p129, %p130
      %p132 = scmp.ne.s32.totalorder %s120, %s121
      %p133 = scmp.eq.s32.totalorder %s27, 1
      %p134 = por %p132, %p133
      %p136 = scmp.ne.s32.totalorder %s121, %s135
      %p137 = scmp.eq.s32.totalorder %s27, 0
      %p138 = por %p136, %p137
      %s140 = sadd.s32 %s139, 1
      %p143 = scmp.eq.s32.totalorder %s21, 1
      %p144 = scmp.ne.s32.totalorder %s139, %s141
      %p145 = scmp.eq.s32.totalorder %s21, 0
      %p146 = por %p144, %p145
      %p147 = scmp.ne.s32.totalorder %s139, %s141
      %p148 = scmp.eq.s32.totalorder %s26, 1
      %p149 = por %p147, %p148
      %p150 = scmp.ne.s32.totalorder %s141, %s142
      %p151 = scmp.eq.s32.totalorder %s26, 0
      %p152 = por %p150, %p151
      %p153 = scmp.ne.s32.totalorder %s141, %s142
      %p154 = scmp.eq.s32.totalorder %s27, 1
      %p155 = por %p153, %p154
      %p157 = scmp.ne.s32.totalorder %s142, %s156
      %p158 = scmp.eq.s32.totalorder %s27, 0
      %p159 = por %p157, %p158
      %s161 = sadd.s32 %s160, 1
      %p164 = scmp.eq.s32.totalorder %s21, 1
      %p165 = scmp.ne.s32.totalorder %s160, %s162
      %p166 = scmp.eq.s32.totalorder %s21, 0
      %p167 = por %p165, %p166
      %p168 = scmp.ne.s32.totalorder %s160, %s162
      %p169 = scmp.eq.s32.totalorder %s26, 1
      %p170 = por %p168, %p169
      %p171 = scmp.ne.s32.totalorder %s162, %s163
      %p172 = scmp.eq.s32.totalorder %s26, 0
      %p173 = por %p171, %p172
      %p174 = scmp.ne.s32.totalorder %s162, %s163
      %p175 = scmp.eq.s32.totalorder %s27, 1
      %p176 = por %p174, %p175
      %p178 = scmp.ne.s32.totalorder %s163, %s177
      %p179 = scmp.eq.s32.totalorder %s27, 0
      %p180 = por %p178, %p179
      %s182 = sadd.s32 %s181, 1
      %p185 = scmp.eq.s32.totalorder %s21, 1
      %p186 = scmp.ne.s32.totalorder %s181, %s183
      %p187 = scmp.eq.s32.totalorder %s21, 0
      %p188 = por %p186, %p187
      %p189 = scmp.ne.s32.totalorder %s181, %s183
      %p190 = scmp.eq.s32.totalorder %s26, 1
      %p191 = por %p189, %p190
      %p192 = scmp.ne.s32.totalorder %s183, %s184
      %p193 = scmp.eq.s32.totalorder %s26, 0
      %p194 = por %p192, %p193
      %p195 = scmp.ne.s32.totalorder %s183, %s184
      %p196 = scmp.eq.s32.totalorder %s27, 1
      %p197 = por %p195, %p196
      %p199 = scmp.ne.s32.totalorder %s184, %s198
      %p200 = scmp.eq.s32.totalorder %s27, 0
      %p201 = por %p199, %p200
      %s203 = sadd.s32 %s202, 1
      %p206 = scmp.eq.s32.totalorder %s21, 1
      %p207 = scmp.ne.s32.totalorder %s202, %s204
      %p208 = scmp.eq.s32.totalorder %s21, 0
      %p209 = por %p207, %p208
      %p210 = scmp.ne.s32.totalorder %s202, %s204
      %p211 = scmp.eq.s32.totalorder %s26, 1
      %p212 = por %p210, %p211
      %p213 = scmp.ne.s32.totalorder %s204, %s205
      %p214 = scmp.eq.s32.totalorder %s26, 0
      %p215 = por %p213, %p214
      %p216 = scmp.ne.s32.totalorder %s204, %s205
      %p217 = scmp.eq.s32.totalorder %s27, 1
      %p218 = por %p216, %p217
      %p220 = scmp.ne.s32.totalorder %s205, %s219
      %p221 = scmp.eq.s32.totalorder %s27, 0
      %p222 = por %p220, %p221
      %s224 = sadd.s32 %s223, 1
      %p227 = scmp.eq.s32.totalorder %s21, 1
      %p228 = scmp.ne.s32.totalorder %s223, %s225
      %p229 = scmp.eq.s32.totalorder %s21, 0
      %p230 = por %p228, %p229
      %p231 = scmp.ne.s32.totalorder %s223, %s225
      %p232 = scmp.eq.s32.totalorder %s26, 1
      %p233 = por %p231, %p232
      %p234 = scmp.ne.s32.totalorder %s225, %s226
      %p235 = scmp.eq.s32.totalorder %s26, 0
      %p236 = por %p234, %p235
      %p237 = scmp.ne.s32.totalorder %s225, %s226
      %p238 = scmp.eq.s32.totalorder %s27, 1
      %p239 = por %p237, %p238
      %p241 = scmp.ne.s32.totalorder %s226, %s240
      %p242 = scmp.eq.s32.totalorder %s27, 0
      %p243 = por %p241, %p242
      %s244 = ssub.s32 %s21, %s28
      %p245 = scmp.eq.s32.totalorder %s244, 0
      %s247 = sadd.s32 %s246, 1
      %s248 = scalar_select %p245, %s246, %s247
      %p251 = pneg %p245
      %p252 = scmp.eq.s32.totalorder %s21, 1
      %p253 = por %p251, %p252
      %p254 = scmp.ne.s32.totalorder %s246, %s249
      %p255 = scmp.eq.s32.totalorder %s21, 0
      %p256 = por %p254, %p255
      %p257 = scmp.ne.s32.totalorder %s246, %s249
      %p258 = scmp.eq.s32.totalorder %s26, 1
      %p259 = por %p257, %p258
      %p260 = scmp.ne.s32.totalorder %s249, %s250
      %p261 = scmp.eq.s32.totalorder %s26, 0
      %p262 = por %p260, %p261
      %p263 = scmp.ne.s32.totalorder %s249, %s250
      %p264 = scmp.eq.s32.totalorder %s27, 1
      %p265 = por %p263, %p264
      %p267 = scmp.ne.s32.totalorder %s250, %s266
      %p268 = scmp.eq.s32.totalorder %s27, 0
      %p269 = por %p267, %p268
      %p270 = scmp.le.s32.totalorder 1, %s21
      %p271 = scmp.lt.s32.totalorder %s21, 3
      %p272 = pnand %p270, %p271
      %p273 = pneg %p272
      // Predicated region
      $region9: #{cnn_classifier_forward.2} parent=5 // pred_check
        _
      $region10: #{cnn_classifier_forward.2} parent=5 // pred_check_branch
        %275 = sbr.rel (%p272) target = $region12
      $region11: #{cnn_classifier_forward.2} parent=5 // pred_region
        %s276 = ssub.s32 %s21, 1
        // Predicated region
        $region13: #{cnn_classifier_forward.2} parent=11 // pred_check
          %p277 = pneg %p68
        $region14: #{cnn_classifier_forward.2} parent=11 // pred_check_branch
          %279 = sbr.rel (%p277) target = $region16
        $region15: #{cnn_classifier_forward.2} parent=11 // pred_region
          %281 = vsyncadd [#allocation3], 0
          %s282 = sshll.u32 %s1, 4
          %s283 = int_to_ptr.hbm [resolvable:$true] %s282
          %s284 = sshll.u32 [#allocation2], 4
          %s285 = int_to_ptr.vmem [resolvable:$true] %s284
          %290 = dma.hbm_to_vmem [thread:$0]  %s283, 57600, %s285, [#allocation3], 256, 256, 16
        $region16: #{cnn_classifier_forward.2} parent=11 // pred_fallthru
          _
        // Predicated region
        $region17: #{cnn_classifier_forward.2} parent=11 // pred_check
          %p291 = pneg %p89
        $region18: #{cnn_classifier_forward.2} parent=11 // pred_check_branch
          %293 = sbr.rel (%p291) target = $region20
        $region19: #{cnn_classifier_forward.2} parent=11 // pred_region
          _
        $region20: #{cnn_classifier_forward.2} parent=11 // pred_fallthru
          _
        // Predicated region
        $region21: #{cnn_classifier_forward.2} parent=11 // pred_check
          %p294 = pneg %p110
        $region22: #{cnn_classifier_forward.2} parent=11 // pred_check_branch
          %296 = sbr.rel (%p294) target = $region24
        $region23: #{cnn_classifier_forward.2} parent=11 // pred_region
          %298 = vsyncadd [#allocation5], 0
          %s299 = sshll.u32 %s3, 4
          %s300 = int_to_ptr.hbm [resolvable:$true] %s299
          %s301 = sshll.u32 [#allocation4], 4
          %s302 = int_to_ptr.vmem [resolvable:$true] %s301
          %307 = dma.hbm_to_vmem [thread:$0]  %s300, 8064, %s302, [#allocation5], 128, 128, 8
        $region24: #{cnn_classifier_forward.2} parent=11 // pred_fallthru
          _
        // Predicated region
        $region25: #{cnn_classifier_forward.2} parent=11 // pred_check
          %p308 = pneg %p131
        $region26: #{cnn_classifier_forward.2} parent=11 // pred_check_branch
          %310 = sbr.rel (%p308) target = $region28
        $region27: #{cnn_classifier_forward.2} parent=11 // pred_region
          %312 = vsyncadd [#allocation5], 0
          %s313 = sshll.u32 %s4, 4
          %s314 = int_to_ptr.hbm [resolvable:$true] %s313
          %s315 = sshll.u32 [#allocation6], 4
          %s316 = int_to_ptr.vmem [resolvable:$true] %s315
          %321 = dma.hbm_to_vmem [thread:$0]  %s314, 256, %s316, [#allocation5], 128, 128, 8
        $region28: #{cnn_classifier_forward.2} parent=11 // pred_fallthru
          _
        // Predicated region
        $region29: #{cnn_classifier_forward.2} parent=11 // pred_check
          %p322 = pneg %p152
        $region30: #{cnn_classifier_forward.2} parent=11 // pred_check_branch
          %324 = sbr.rel (%p322) target = $region32
        $region31: #{cnn_classifier_forward.2} parent=11 // pred_region
          %326 = vsyncadd [#allocation8], 0
          %s328 = sshll.u32 %s5, 4
          %s329 = int_to_ptr.hbm [resolvable:$true] %s328
          %s330 = sshll.u32 [#allocation7], 4
          %s331 = int_to_ptr.vmem [resolvable:$true] %s330
          %333 = dma.hbm_to_vmem [thread:$0]  %s329, 16, %s331, [#allocation8]
        $region32: #{cnn_classifier_forward.2} parent=11 // pred_fallthru
          _
        // Predicated region
        $region33: #{cnn_classifier_forward.2} parent=11 // pred_check
          %p334 = pneg %p173
        $region34: #{cnn_classifier_forward.2} parent=11 // pred_check_branch
          %336 = sbr.rel (%p334) target = $region36
        $region35: #{cnn_classifier_forward.2} parent=11 // pred_region
          %338 = vsyncadd [#allocation8], 0
          %s339 = sshll.u32 %s6, 4
          %s340 = int_to_ptr.hbm [resolvable:$true] %s339
          %s341 = sshll.u32 [#allocation9], 4
          %s342 = int_to_ptr.vmem [resolvable:$true] %s341
          %347 = dma.hbm_to_vmem [thread:$0]  %s340, 2304, %s342, [#allocation8], 64, 64, 4
        $region36: #{cnn_classifier_forward.2} parent=11 // pred_fallthru
          _
        // Predicated region
        $region37: #{cnn_classifier_forward.2} parent=11 // pred_check
          %p348 = pneg %p194
        $region38: #{cnn_classifier_forward.2} parent=11 // pred_check_branch
          %350 = sbr.rel (%p348) target = $region40
        $region39: #{cnn_classifier_forward.2} parent=11 // pred_region
          %352 = vsyncadd [#allocation11], 0
          %s354 = sshll.u32 %s7, 4
          %s355 = int_to_ptr.hbm [resolvable:$true] %s354
          %s356 = sshll.u32 [#allocation10], 4
          %s357 = int_to_ptr.vmem [resolvable:$true] %s356
          %359 = dma.hbm_to_vmem [thread:$0]  %s355, 16, %s357, [#allocation11]
        $region40: #{cnn_classifier_forward.2} parent=11 // pred_fallthru
          _
        // Predicated region
        $region41: #{cnn_classifier_forward.2} parent=11 // pred_check
          %p360 = pneg %p215
        $region42: #{cnn_classifier_forward.2} parent=11 // pred_check_branch
          %362 = sbr.rel (%p360) target = $region44
        $region43: #{cnn_classifier_forward.2} parent=11 // pred_region
          %364 = vsyncadd [#allocation11], 0
          %s365 = sshll.u32 %s8, 4
          %s366 = int_to_ptr.hbm [resolvable:$true] %s365
          %s367 = sshll.u32 [#allocation12], 4
          %s368 = int_to_ptr.vmem [resolvable:$true] %s367
          %373 = dma.hbm_to_vmem [thread:$0]  %s366, 4608, %s368, [#allocation11], 64, 64, 4
        $region44: #{cnn_classifier_forward.2} parent=11 // pred_fallthru
          _
        // Predicated region
        $region45: #{cnn_classifier_forward.2} parent=11 // pred_check
          %p374 = pneg %p236
        $region46: #{cnn_classifier_forward.2} parent=11 // pred_check_branch
          %376 = sbr.rel (%p374) target = $region48
        $region47: #{cnn_classifier_forward.2} parent=11 // pred_region
          %378 = vsyncadd [#allocation14], 0
          %s380 = sshll.u32 %s9, 4
          %s381 = int_to_ptr.hbm [resolvable:$true] %s380
          %s382 = sshll.u32 [#allocation13], 4
          %s383 = int_to_ptr.vmem [resolvable:$true] %s382
          %385 = dma.hbm_to_vmem [thread:$0]  %s381, 16, %s383, [#allocation14]
        $region48: #{cnn_classifier_forward.2} parent=11 // pred_fallthru
          _
      $region12: #{cnn_classifier_forward.2} parent=5 // pred_fallthru
        _
      %p386 = scmp.lt.s32.totalorder %s21, 2
      // Predicated region
      $region49: #{cnn_classifier_forward.2} parent=5 // pred_check
        %p387 = pneg %p386
      $region50: #{cnn_classifier_forward.2} parent=5 // pred_check_branch
        %389 = sbr.rel (%p387) target = $region52
      $region51: #{cnn_classifier_forward.2} parent=5 // pred_region
        // Predicated region
        $region53: #{cnn_classifier_forward.2} parent=51 // pred_check
          %p390 = pneg %p41
        $region54: #{cnn_classifier_forward.2} parent=51 // pred_check_branch
          %392 = sbr.rel (%p390) target = $region56
        $region55: #{cnn_classifier_forward.2} parent=51 // pred_region
          %p393 = scmp.lt.s32.totalorder %s21, 1
          %s394 = scalar_select %p393, %s21, 1
          %s395 = smul.addr %s394, 25
          %s396 = smul.addr %s395, 8
          %s397 = scalar_lea.vmem %s0, %s396
        $region56: #{cnn_classifier_forward.2} parent=51 // pred_fallthru
          _
      $region52: #{cnn_classifier_forward.2} parent=5 // pred_fallthru
        _
      %p398 = scmp.le.s32.totalorder 1, %s21
      %p399 = scmp.lt.s32.totalorder %s21, 3
      %p400 = pnand %p398, %p399
      %p401 = pneg %p400
      // Predicated region
      $region57: #{cnn_classifier_forward.2} parent=5 // pred_check
        _
      $region58: #{cnn_classifier_forward.2} parent=5 // pred_check_branch
        %403 = sbr.rel (%p400) target = $region60
      $region59: #{cnn_classifier_forward.2} parent=5 // pred_region
        %s404 = ssub.s32 %s21, 1
        // Predicated region
        $region61: #{cnn_classifier_forward.2} parent=59 // pred_check
          %p405 = pneg %p68
        $region62: #{cnn_classifier_forward.2} parent=59 // pred_check_branch
          %407 = sbr.rel (%p405) target = $region64
        $region63: #{cnn_classifier_forward.2} parent=59 // pred_region
          %409 = dma.done [#allocation3], 57600
        $region64: #{cnn_classifier_forward.2} parent=59 // pred_fallthru
          _
        // Predicated region
        $region65: #{cnn_classifier_forward.2} parent=59 // pred_check
          %p410 = pneg %p110
        $region66: #{cnn_classifier_forward.2} parent=59 // pred_check_branch
          %412 = sbr.rel (%p410) target = $region68
        $region67: #{cnn_classifier_forward.2} parent=59 // pred_region
          %414 = dma.done [#allocation5], 8064
        $region68: #{cnn_classifier_forward.2} parent=59 // pred_fallthru
          _
        // Predicated region
        $region69: #{cnn_classifier_forward.2} parent=59 // pred_check
          %p415 = pneg %p131
        $region70: #{cnn_classifier_forward.2} parent=59 // pred_check_branch
          %417 = sbr.rel (%p415) target = $region72
        $region71: #{cnn_classifier_forward.2} parent=59 // pred_region
          %419 = dma.done [#allocation5], 256
        $region72: #{cnn_classifier_forward.2} parent=59 // pred_fallthru
          _
        // Predicated region
        $region73: #{cnn_classifier_forward.2} parent=59 // pred_check
          %p420 = pneg %p152
        $region74: #{cnn_classifier_forward.2} parent=59 // pred_check_branch
          %422 = sbr.rel (%p420) target = $region76
        $region75: #{cnn_classifier_forward.2} parent=59 // pred_region
          %424 = dma.done [#allocation8], 16
        $region76: #{cnn_classifier_forward.2} parent=59 // pred_fallthru
          _
        // Predicated region
        $region77: #{cnn_classifier_forward.2} parent=59 // pred_check
          %p425 = pneg %p173
        $region78: #{cnn_classifier_forward.2} parent=59 // pred_check_branch
          %427 = sbr.rel (%p425) target = $region80
        $region79: #{cnn_classifier_forward.2} parent=59 // pred_region
          %429 = dma.done [#allocation8], 2304
        $region80: #{cnn_classifier_forward.2} parent=59 // pred_fallthru
          _
        // Predicated region
        $region81: #{cnn_classifier_forward.2} parent=59 // pred_check
          %p430 = pneg %p194
        $region82: #{cnn_classifier_forward.2} parent=59 // pred_check_branch
          %432 = sbr.rel (%p430) target = $region84
        $region83: #{cnn_classifier_forward.2} parent=59 // pred_region
          %434 = dma.done [#allocation11], 16
        $region84: #{cnn_classifier_forward.2} parent=59 // pred_fallthru
          _
        // Predicated region
        $region85: #{cnn_classifier_forward.2} parent=59 // pred_check
          %p435 = pneg %p215
        $region86: #{cnn_classifier_forward.2} parent=59 // pred_check_branch
          %437 = sbr.rel (%p435) target = $region88
        $region87: #{cnn_classifier_forward.2} parent=59 // pred_region
          %439 = dma.done [#allocation11], 4608
        $region88: #{cnn_classifier_forward.2} parent=59 // pred_fallthru
          _
        // Predicated region
        $region89: #{cnn_classifier_forward.2} parent=59 // pred_check
          %p440 = pneg %p236
        $region90: #{cnn_classifier_forward.2} parent=59 // pred_check_branch
          %442 = sbr.rel (%p440) target = $region92
        $region91: #{cnn_classifier_forward.2} parent=59 // pred_region
          %444 = dma.done [#allocation14], 16
        $region92: #{cnn_classifier_forward.2} parent=59 // pred_fallthru
          _
        %p445 = scmp.lt.s32.totalorder %s26, 1
        %s446 = scalar_select %p445, %s26, 1
        %s447 = smul.addr %s446, 25
        %s448 = smul.addr %s447, 8
        %s449 = scalar_lea.vmem %s0, %s448
        %p450 = pneg %p47
        %p451 = pneg %p44
        %p452 = pneg %p68
        %p453 = pneg %p65
        %p454 = pneg %p89
        %p455 = pneg %p86
        %p456 = pneg %p110
        %p457 = pneg %p107
        %p458 = pneg %p131
        %p459 = pneg %p128
        %p460 = pneg %p152
        %p461 = pneg %p149
        %p462 = pneg %p173
        %p463 = pneg %p170
        %p464 = pneg %p194
        %p465 = pneg %p191
        %p466 = pneg %p215
        %p467 = pneg %p212
        %p468 = pneg %p236
        %p469 = pneg %p233
        %p470 = pneg %p262
        %p471 = pneg %p259
        %p472 = scmp.lt.s32.totalorder %s26, 1
        %s473 = scalar_select %p472, %s26, 1
        %s474 = smul.addr %s473, 7
        %s475 = smul.addr %s474, 4
        %s476 = scalar_lea.vmem %s10, %s475
        %p477 = scmp.lt.s32.totalorder %s26, 1
        %s478 = scalar_select %p477, %s26, 1
        %s479 = smul.addr %s478, 25
        %s480 = smul.addr %s479, 8
        %s481 = scalar_lea.vmem %s0, %s480
        %p482 = scmp.lt.s32.totalorder %s26, 1
        %s483 = scalar_select %p482, %s26, 1
        %s484 = smul.addr %s483, 7
        %s485 = smul.addr %s484, 4
        %s486 = scalar_lea.vmem %s10, %s485
        %v488 = vld [vmem:[%s481] sm:$0xff]
        %v489 = vld [vmem:[%s481 + $0x8] sm:$0xff]
        %v490 = vld [vmem:[%s481 + $0x10] sm:$0xff]
        %v491 = vld [vmem:[%s481 + $0x18] sm:$0xff]
        %v492 = vld [vmem:[%s481 + $0x20] sm:$0xff]
        %v493 = vld [vmem:[%s481 + $0x28] sm:$0xff]
        %v494 = vld [vmem:[%s481 + $0x30] sm:$0xff]
        %v495 = vld [vmem:[%s481 + $0x38] sm:$0xff]
        %v496 = vld [vmem:[%s481 + $0x40] sm:$0xff]
        %v497 = vld [vmem:[%s481 + $0x48] sm:$0xff]
        %v498 = vld [vmem:[%s481 + $0x50] sm:$0xff]
        %v499 = vld [vmem:[%s481 + $0x58] sm:$0xff]
        %v500 = vld [vmem:[%s481 + $0x60] sm:$0xff]
        %v501 = vld [vmem:[%s481 + $0x68] sm:$0xff]
        %v502 = vld [vmem:[%s481 + $0x70] sm:$0xff]
        %v503 = vld [vmem:[%s481 + $0x78] sm:$0xff]
        %v504 = vld [vmem:[%s481 + $0x80] sm:$0xff]
        %v505 = vld [vmem:[%s481 + $0x88] sm:$0xff]
        %v506 = vld [vmem:[%s481 + $0x90] sm:$0xff]
        %v507 = vld [vmem:[%s481 + $0x98] sm:$0xff]
        %v508 = vld [vmem:[%s481 + $0xa0] sm:$0xff]
        %v509 = vld [vmem:[%s481 + $0xa8] sm:$0xff]
        %v510 = vld [vmem:[%s481 + $0xb0] sm:$0xff]
        %v511 = vld [vmem:[%s481 + $0xb8] sm:$0xff]
        %v512 = vld [vmem:[%s481 + $0xc0] sm:$0xf]
        %v513 = vld [vmem:[#allocation6] sm:$0x1]
        %515 = vset.pattern.permute.xlu0 0
        %516 = vperm.xlu0 %515, %v488
        %v517 = vpop.permute.xlu0 %516
        %520 = vset.pattern.permute.xlu0 0
        %521 = vperm.xlu0 %520, %v489
        %v522 = vpop.permute.xlu0 %521
        %525 = vset.pattern.permute.xlu0 0
        %526 = vperm.xlu0 %525, %v490
        %v527 = vpop.permute.xlu0 %526
        %530 = vset.pattern.permute.xlu0 0
        %531 = vperm.xlu0 %530, %v491
        %v532 = vpop.permute.xlu0 %531
        %535 = vset.pattern.permute.xlu0 0
        %536 = vperm.xlu0 %535, %v492
        %v537 = vpop.permute.xlu0 %536
        %540 = vset.pattern.permute.xlu0 0
        %541 = vperm.xlu0 %540, %v493
        %v542 = vpop.permute.xlu0 %541
        %545 = vset.pattern.permute.xlu0 0
        %546 = vperm.xlu0 %545, %v494
        %v547 = vpop.permute.xlu0 %546
        %550 = vset.pattern.permute.xlu0 0
        %551 = vperm.xlu0 %550, %v495
        %v552 = vpop.permute.xlu0 %551
        %555 = vset.pattern.permute.xlu0 0
        %556 = vperm.xlu0 %555, %v496
        %v557 = vpop.permute.xlu0 %556
        %560 = vset.pattern.permute.xlu0 0
        %561 = vperm.xlu0 %560, %v497
        %v562 = vpop.permute.xlu0 %561
        %565 = vset.pattern.permute.xlu0 0
        %566 = vperm.xlu0 %565, %v498
        %v567 = vpop.permute.xlu0 %566
        %570 = vset.pattern.permute.xlu0 0
        %571 = vperm.xlu0 %570, %v499
        %v572 = vpop.permute.xlu0 %571
        %575 = vset.pattern.permute.xlu0 0
        %576 = vperm.xlu0 %575, %v500
        %v577 = vpop.permute.xlu0 %576
        %580 = vset.pattern.permute.xlu0 0
        %581 = vperm.xlu0 %580, %v501
        %v582 = vpop.permute.xlu0 %581
        %585 = vset.pattern.permute.xlu0 0
        %586 = vperm.xlu0 %585, %v502
        %v587 = vpop.permute.xlu0 %586
        %590 = vset.pattern.permute.xlu0 0
        %591 = vperm.xlu0 %590, %v503
        %v592 = vpop.permute.xlu0 %591
        %595 = vset.pattern.permute.xlu0 0
        %596 = vperm.xlu0 %595, %v504
        %v597 = vpop.permute.xlu0 %596
        %600 = vset.pattern.permute.xlu0 0
        %601 = vperm.xlu0 %600, %v505
        %v602 = vpop.permute.xlu0 %601
        %605 = vset.pattern.permute.xlu0 0
        %606 = vperm.xlu0 %605, %v506
        %v607 = vpop.permute.xlu0 %606
        %610 = vset.pattern.permute.xlu0 0
        %611 = vperm.xlu0 %610, %v507
        %v612 = vpop.permute.xlu0 %611
        %615 = vset.pattern.permute.xlu0 0
        %616 = vperm.xlu0 %615, %v508
        %v617 = vpop.permute.xlu0 %616
        %620 = vset.pattern.permute.xlu0 0
        %621 = vperm.xlu0 %620, %v509
        %v622 = vpop.permute.xlu0 %621
        %625 = vset.pattern.permute.xlu0 0
        %626 = vperm.xlu0 %625, %v510
        %v627 = vpop.permute.xlu0 %626
        %630 = vset.pattern.permute.xlu0 0
        %631 = vperm.xlu0 %630, %v511
        %v632 = vpop.permute.xlu0 %631
        %635 = vset.pattern.permute.xlu0 0
        %636 = vperm.xlu0 %635, %v512
        %v637 = vpop.permute.xlu0 %636
        %v639 = vperm.slane %v513, 0
        %v640 = vmul.f32 %v517, %v639
        %v641 = vmul.f32 %v522, %v639
        %v642 = vmul.f32 %v527, %v639
        %v643 = vmul.f32 %v532, %v639
        %v644 = vmul.f32 %v537, %v639
        %v645 = vmul.f32 %v542, %v639
        %v646 = vmul.f32 %v547, %v639
        %v647 = vmul.f32 %v552, %v639
        %v648 = vmul.f32 %v557, %v639
        %v649 = vmul.f32 %v562, %v639
        %v650 = vmul.f32 %v567, %v639
        %v651 = vmul.f32 %v572, %v639
        %v652 = vmul.f32 %v577, %v639
        %v653 = vmul.f32 %v582, %v639
        %v654 = vmul.f32 %v587, %v639
        %v655 = vmul.f32 %v592, %v639
        %v656 = vmul.f32 %v597, %v639
        %v657 = vmul.f32 %v602, %v639
        %v658 = vmul.f32 %v607, %v639
        %v659 = vmul.f32 %v612, %v639
        %v660 = vmul.f32 %v617, %v639
        %v661 = vmul.f32 %v622, %v639
        %v662 = vmul.f32 %v627, %v639
        %v663 = vmul.f32 %v632, %v639
        %v664 = vmul.f32 %v637, %v639
        %v665 = vld [vmem:[#allocation2] sm:$0xff]
        %v666 = vld [vmem:[#allocation2 + $0x8] sm:$0xff]
        %v667 = vld [vmem:[#allocation2 + $0x10] sm:$0xff]
        %v668 = vld [vmem:[#allocation2 + $0x18] sm:$0xff]
        %v669 = vld [vmem:[#allocation2 + $0x20] sm:$0xff]
        %v670 = vld [vmem:[#allocation2 + $0x28] sm:$0xff]
        %v671 = vld [vmem:[#allocation2 + $0x30] sm:$0xff]
        %v672 = vld [vmem:[#allocation2 + $0x38] sm:$0xff]
        %v673 = vld [vmem:[#allocation2 + $0x40] sm:$0xff]
        %v674 = vld [vmem:[#allocation2 + $0x48] sm:$0xff]
        %v675 = vld [vmem:[#allocation2 + $0x50] sm:$0xff]
        %v676 = vld [vmem:[#allocation2 + $0x58] sm:$0xff]
        %v677 = vld [vmem:[#allocation2 + $0x60] sm:$0xff]
        %v678 = vld [vmem:[#allocation2 + $0x68] sm:$0xff]
        %v679 = vld [vmem:[#allocation2 + $0x70] sm:$0xff]
        %v680 = vld [vmem:[#allocation2 + $0x78] sm:$0xff]
        %v681 = vld [vmem:[#allocation2 + $0x80] sm:$0xff]
        %v682 = vld [vmem:[#allocation2 + $0x88] sm:$0xff]
        %v683 = vld [vmem:[#allocation2 + $0x90] sm:$0xff]
        %v684 = vld [vmem:[#allocation2 + $0x98] sm:$0xff]
        %v685 = vld [vmem:[#allocation2 + $0xa0] sm:$0xff]
        %v686 = vld [vmem:[#allocation2 + $0xa8] sm:$0xff]
        %v687 = vld [vmem:[#allocation2 + $0xb0] sm:$0xff]
        %v688 = vld [vmem:[#allocation2 + $0xb8] sm:$0xff]
        %v689 = vld [vmem:[#allocation2 + $0xc0] sm:$0xff]
        %v690 = vld [vmem:[#allocation2 + $0xc8] sm:$0xff]
        %v691 = vld [vmem:[#allocation2 + $0xd0] sm:$0xff]
        %v692 = vld [vmem:[#allocation2 + $0xd8] sm:$0xff]
        %v693 = vld [vmem:[#allocation2 + $0xe0] sm:$0xff]
        %v694 = vld [vmem:[#allocation2 + $0xe8] sm:$0xff]
        %v695 = vld [vmem:[#allocation2 + $0xf0] sm:$0xff]
        %v696 = vld [vmem:[#allocation2 + $0xf8] sm:$0xff]
        %v697 = vld [vmem:[#allocation2 + $0x100] sm:$0xff]
        %v698 = vld [vmem:[#allocation2 + $0x108] sm:$0xff]
        %v699 = vld [vmem:[#allocation2 + $0x110] sm:$0xff]
        %v700 = vld [vmem:[#allocation2 + $0x118] sm:$0xff]
        %v701 = vld [vmem:[#allocation2 + $0x120] sm:$0xff]
        %v702 = vld [vmem:[#allocation2 + $0x128] sm:$0xff]
        %v703 = vld [vmem:[#allocation2 + $0x130] sm:$0xff]
        %v704 = vld [vmem:[#allocation2 + $0x138] sm:$0xff]
        %v705 = vld [vmem:[#allocation2 + $0x140] sm:$0xff]
        %v706 = vld [vmem:[#allocation2 + $0x148] sm:$0xff]
        %v707 = vld [vmem:[#allocation2 + $0x150] sm:$0xff]
        %v708 = vld [vmem:[#allocation2 + $0x158] sm:$0xff]
        %v709 = vld [vmem:[#allocation2 + $0x160] sm:$0xff]
        %v710 = vld [vmem:[#allocation2 + $0x168] sm:$0xff]
        %v711 = vld [vmem:[#allocation2 + $0x170] sm:$0xff]
        %v712 = vld [vmem:[#allocation2 + $0x178] sm:$0xff]
        %v713 = vld [vmem:[#allocation2 + $0x180] sm:$0xf]
        %v714 = vld [vmem:[#allocation2 + $0x188] sm:$0xf]
        %v715 = vld [vmem:[#allocation6 + $0x1] sm:$0x1]
        %v716 = vperm.slane %v715, 0
        %v717 = vmul.f32 %v517, %v716
        %v718 = vmul.f32 %v522, %v716
        %v719 = vmul.f32 %v527, %v716
        %v720 = vmul.f32 %v532, %v716
        %v721 = vmul.f32 %v537, %v716
        %v722 = vmul.f32 %v542, %v716
        %v723 = vmul.f32 %v547, %v716
        %v724 = vmul.f32 %v552, %v716
        %v725 = vmul.f32 %v557, %v716
        %v726 = vmul.f32 %v562, %v716
        %v727 = vmul.f32 %v567, %v716
        %v728 = vmul.f32 %v572, %v716
        %v729 = vmul.f32 %v577, %v716
        %v730 = vmul.f32 %v582, %v716
        %v731 = vmul.f32 %v587, %v716
        %v732 = vmul.f32 %v592, %v716
        %v733 = vmul.f32 %v597, %v716
        %v734 = vmul.f32 %v602, %v716
        %v735 = vmul.f32 %v607, %v716
        %v736 = vmul.f32 %v612, %v716
        %v737 = vmul.f32 %v617, %v716
        %v738 = vmul.f32 %v622, %v716
        %v739 = vmul.f32 %v627, %v716
        %v740 = vmul.f32 %v632, %v716
        %v741 = vmul.f32 %v637, %v716
        %s742 = scalar_lea.vmem [#allocation2], 400
        %v743 = vld [vmem:[%s742] sm:$0xff]
        %v744 = vld [vmem:[%s742 + $0x8] sm:$0xff]
        %v745 = vld [vmem:[%s742 + $0x10] sm:$0xff]
        %v746 = vld [vmem:[%s742 + $0x18] sm:$0xff]
        %v747 = vld [vmem:[%s742 + $0x20] sm:$0xff]
        %v748 = vld [vmem:[%s742 + $0x28] sm:$0xff]
        %v749 = vld [vmem:[%s742 + $0x30] sm:$0xff]
        %v750 = vld [vmem:[%s742 + $0x38] sm:$0xff]
        %v751 = vld [vmem:[%s742 + $0x40] sm:$0xff]
        %v752 = vld [vmem:[%s742 + $0x48] sm:$0xff]
        %v753 = vld [vmem:[%s742 + $0x50] sm:$0xff]
        %v754 = vld [vmem:[%s742 + $0x58] sm:$0xff]
        %v755 = vld [vmem:[%s742 + $0x60] sm:$0xff]
        %v756 = vld [vmem:[%s742 + $0x68] sm:$0xff]
        %v757 = vld [vmem:[%s742 + $0x70] sm:$0xff]
        %v758 = vld [vmem:[%s742 + $0x78] sm:$0xff]
        %v759 = vld [vmem:[%s742 + $0x80] sm:$0xff]
        %v760 = vld [vmem:[%s742 + $0x88] sm:$0xff]
        %v761 = vld [vmem:[%s742 + $0x90] sm:$0xff]
        %v762 = vld [vmem:[%s742 + $0x98] sm:$0xff]
        %v763 = vld [vmem:[%s742 + $0xa0] sm:$0xff]
        %v764 = vld [vmem:[%s742 + $0xa8] sm:$0xff]
        %v765 = vld [vmem:[%s742 + $0xb0] sm:$0xff]
        %v766 = vld [vmem:[%s742 + $0xb8] sm:$0xff]
        %v767 = vld [vmem:[%s742 + $0xc0] sm:$0xff]
        %v768 = vld [vmem:[%s742 + $0xc8] sm:$0xff]
        %v769 = vld [vmem:[%s742 + $0xd0] sm:$0xff]
        %v770 = vld [vmem:[%s742 + $0xd8] sm:$0xff]
        %v771 = vld [vmem:[%s742 + $0xe0] sm:$0xff]
        %v772 = vld [vmem:[%s742 + $0xe8] sm:$0xff]
        %v773 = vld [vmem:[%s742 + $0xf0] sm:$0xff]
        %v774 = vld [vmem:[%s742 + $0xf8] sm:$0xff]
        %v775 = vld [vmem:[%s742 + $0x100] sm:$0xff]
        %v776 = vld [vmem:[%s742 + $0x108] sm:$0xff]
        %v777 = vld [vmem:[%s742 + $0x110] sm:$0xff]
        %v778 = vld [vmem:[%s742 + $0x118] sm:$0xff]
        %v779 = vld [vmem:[%s742 + $0x120] sm:$0xff]
        %v780 = vld [vmem:[%s742 + $0x128] sm:$0xff]
        %v781 = vld [vmem:[%s742 + $0x130] sm:$0xff]
        %v782 = vld [vmem:[%s742 + $0x138] sm:$0xff]
        %v783 = vld [vmem:[%s742 + $0x140] sm:$0xff]
        %v784 = vld [vmem:[%s742 + $0x148] sm:$0xff]
        %v785 = vld [vmem:[%s742 + $0x150] sm:$0xff]
        %v786 = vld [vmem:[%s742 + $0x158] sm:$0xff]
        %v787 = vld [vmem:[%s742 + $0x160] sm:$0xff]
        %v788 = vld [vmem:[%s742 + $0x168] sm:$0xff]
        %v789 = vld [vmem:[%s742 + $0x170] sm:$0xff]
        %v790 = vld [vmem:[%s742 + $0x178] sm:$0xff]
        %v791 = vld [vmem:[%s742 + $0x180] sm:$0xf]
        %v792 = vld [vmem:[%s742 + $0x188] sm:$0xf]
        %vm793 = vcmask 556032
        %v795 = vsel %vm793, %v744, 0
        %v798 = vsel %vm793, %v746, 0
        %v801 = vsel %vm793, %v748, 0
        %v804 = vsel %vm793, %v750, 0
        %v807 = vsel %vm793, %v752, 0
        %v810 = vsel %vm793, %v754, 0
        %v813 = vsel %vm793, %v756, 0
        %v816 = vsel %vm793, %v758, 0
        %v819 = vsel %vm793, %v760, 0
        %v822 = vsel %vm793, %v762, 0
        %v825 = vsel %vm793, %v764, 0
        %v828 = vsel %vm793, %v766, 0
        %v831 = vsel %vm793, %v768, 0
        %v834 = vsel %vm793, %v770, 0
        %v837 = vsel %vm793, %v772, 0
        %v840 = vsel %vm793, %v774, 0
        %v843 = vsel %vm793, %v776, 0
        %v846 = vsel %vm793, %v778, 0
        %v849 = vsel %vm793, %v780, 0
        %v852 = vsel %vm793, %v782, 0
        %v855 = vsel %vm793, %v784, 0
        %v858 = vsel %vm793, %v786, 0
        %v861 = vsel %vm793, %v788, 0
        %v864 = vsel %vm793, %v790, 0
        %v867 = vsel %vm793, %v792, 0
        %vm869 = vcmask 1043456
        %v871 = vsel %vm869, %v741, 0
        %873 = vmatpush.msra.mxu0 %v732
        %874 = vmatpush.msra.mxu0 %v731
        %875 = vmatpush.msra.mxu0 %v730
        %876 = vmatpush.msra.mxu0 %v729
        %877 = vmatpush.msra.mxu0 %v728
        %878 = vmatpush.msra.mxu0 %v727
        %879 = vmatpush.msra.mxu0 %v726
        %880 = vmatpush.msra.mxu0 %v725
        %881 = vmatpush.msra.mxu0 %v724
        %882 = vmatpush.msra.mxu0 %v723
        %883 = vmatpush.msra.mxu0 %v722
        %884 = vmatpush.msra.mxu0 %v721
        %885 = vmatpush.msra.mxu0 %v720
        %886 = vmatpush.msra.mxu0 %v719
        %887 = vmatpush.msra.mxu0 %v718
        %888 = vmatpush.msra.mxu0 %v717
        %889 = vmatmul.f32.gmra.mxu0 %v743
        %v890 = vpop.f32.mrf.mxu0
        %v891 = vadd.f32 0.0, %v890
        %892 = vmatmul.f32.gmra.mxu0 %v745
        %v893 = vpop.f32.mrf.mxu0
        %v894 = vadd.f32 0.0, %v893
        %895 = vmatmul.f32.gmra.mxu0 %v747
        %v896 = vpop.f32.mrf.mxu0
        %v897 = vadd.f32 0.0, %v896
        %898 = vmatmul.f32.gmra.mxu0 %v749
        %v899 = vpop.f32.mrf.mxu0
        %v900 = vadd.f32 0.0, %v899
        %901 = vmatmul.f32.gmra.mxu0 %v751
        %v902 = vpop.f32.mrf.mxu0
        %v903 = vadd.f32 0.0, %v902
        %904 = vmatmul.f32.gmra.mxu0 %v753
        %v905 = vpop.f32.mrf.mxu0
        %v906 = vadd.f32 0.0, %v905
        %907 = vmatmul.f32.gmra.mxu0 %v755
        %v908 = vpop.f32.mrf.mxu0
        %v909 = vadd.f32 0.0, %v908
        %910 = vmatmul.f32.gmra.mxu0 %v757
        %v911 = vpop.f32.mrf.mxu0
        %v912 = vadd.f32 0.0, %v911
        %913 = vmatmul.f32.gmra.mxu0 %v759
        %v914 = vpop.f32.mrf.mxu0
        %v915 = vadd.f32 0.0, %v914
        %916 = vmatmul.f32.gmra.mxu0 %v761
        %v917 = vpop.f32.mrf.mxu0
        %v918 = vadd.f32 0.0, %v917
        %919 = vmatmul.f32.gmra.mxu0 %v763
        %v920 = vpop.f32.mrf.mxu0
        %v921 = vadd.f32 0.0, %v920
        %922 = vmatmul.f32.gmra.mxu0 %v765
        %v923 = vpop.f32.mrf.mxu0
        %v924 = vadd.f32 0.0, %v923
        %925 = vmatmul.f32.gmra.mxu0 %v767
        %v926 = vpop.f32.mrf.mxu0
        %v927 = vadd.f32 0.0, %v926
        %928 = vmatmul.f32.gmra.mxu0 %v769
        %v929 = vpop.f32.mrf.mxu0
        %v930 = vadd.f32 0.0, %v929
        %931 = vmatmul.f32.gmra.mxu0 %v771
        %v932 = vpop.f32.mrf.mxu0
        %v933 = vadd.f32 0.0, %v932
        %934 = vmatmul.f32.gmra.mxu0 %v773
        %v935 = vpop.f32.mrf.mxu0
        %v936 = vadd.f32 0.0, %v935
        %937 = vmatmul.f32.gmra.mxu0 %v775
        %v938 = vpop.f32.mrf.mxu0
        %v939 = vadd.f32 0.0, %v938
        %940 = vmatmul.f32.gmra.mxu0 %v777
        %v941 = vpop.f32.mrf.mxu0
        %v942 = vadd.f32 0.0, %v941
        %943 = vmatmul.f32.gmra.mxu0 %v779
        %v944 = vpop.f32.mrf.mxu0
        %v945 = vadd.f32 0.0, %v944
        %946 = vmatmul.f32.gmra.mxu0 %v781
        %v947 = vpop.f32.mrf.mxu0
        %v948 = vadd.f32 0.0, %v947
        %949 = vmatmul.f32.gmra.mxu0 %v783
        %v950 = vpop.f32.mrf.mxu0
        %v951 = vadd.f32 0.0, %v950
        %952 = vmatmul.f32.gmra.mxu0 %v785
        %v953 = vpop.f32.mrf.mxu0
        %v954 = vadd.f32 0.0, %v953
        %955 = vmatmul.f32.gmra.mxu0 %v787
        %v956 = vpop.f32.mrf.mxu0
        %v957 = vadd.f32 0.0, %v956
        %958 = vmatmul.f32.gmra.mxu0 %v789
        %v959 = vpop.f32.mrf.mxu0
        %v960 = vadd.f32 0.0, %v959
        %961 = vmatmul.f32.gmra.mxu0 %v791
        %v962 = vpop.f32.mrf.mxu0
        %v963 = vadd.f32 0.0, %v962
        %964 = vdwg.mxu0
        %965 = vmatpush.msra.mxu0 0.0
        %966 = vmatpush.msra.mxu0 0.0
        %967 = vmatpush.msra.mxu0 0.0
        %968 = vmatpush.msra.mxu0 0.0
        %969 = vmatpush.msra.mxu0 0.0
        %970 = vmatpush.msra.mxu0 0.0
        %971 = vmatpush.msra.mxu0 0.0
        %972 = vmatpush.msra.mxu0 %v871
        %973 = vmatpush.msra.mxu0 %v740
        %974 = vmatpush.msra.mxu0 %v739
        %975 = vmatpush.msra.mxu0 %v738
        %976 = vmatpush.msra.mxu0 %v737
        %977 = vmatpush.msra.mxu0 %v736
        %978 = vmatpush.msra.mxu0 %v735
        %979 = vmatpush.msra.mxu0 %v734
        %980 = vmatpush.msra.mxu0 %v733
        %981 = vmatmul.f32.gmra.mxu0 %v795
        %v982 = vpop.f32.mrf.mxu0
        %v983 = vadd.f32 %v891, %v982
        %984 = vmatmul.f32.gmra.mxu0 %v798
        %v985 = vpop.f32.mrf.mxu0
        %v986 = vadd.f32 %v894, %v985
        %987 = vmatmul.f32.gmra.mxu0 %v801
        %v988 = vpop.f32.mrf.mxu0
        %v989 = vadd.f32 %v897, %v988
        %990 = vmatmul.f32.gmra.mxu0 %v804
        %v991 = vpop.f32.mrf.mxu0
        %v992 = vadd.f32 %v900, %v991
        %993 = vmatmul.f32.gmra.mxu0 %v807
        %v994 = vpop.f32.mrf.mxu0
        %v995 = vadd.f32 %v903, %v994
        %996 = vmatmul.f32.gmra.mxu0 %v810
        %v997 = vpop.f32.mrf.mxu0
        %v998 = vadd.f32 %v906, %v997
        %999 = vmatmul.f32.gmra.mxu0 %v813
        %v1000 = vpop.f32.mrf.mxu0
        %v1001 = vadd.f32 %v909, %v1000
        %1002 = vmatmul.f32.gmra.mxu0 %v816
        %v1003 = vpop.f32.mrf.mxu0
        %v1004 = vadd.f32 %v912, %v1003
        %1005 = vmatmul.f32.gmra.mxu0 %v819
        %v1006 = vpop.f32.mrf.mxu0
        %v1007 = vadd.f32 %v915, %v1006
        %1008 = vmatmul.f32.gmra.mxu0 %v822
        %v1009 = vpop.f32.mrf.mxu0
        %v1010 = vadd.f32 %v918, %v1009
        %1011 = vmatmul.f32.gmra.mxu0 %v825
        %v1012 = vpop.f32.mrf.mxu0
        %v1013 = vadd.f32 %v921, %v1012
        %1014 = vmatmul.f32.gmra.mxu0 %v828
        %v1015 = vpop.f32.mrf.mxu0
        %v1016 = vadd.f32 %v924, %v1015
        %1017 = vmatmul.f32.gmra.mxu0 %v831
        %v1018 = vpop.f32.mrf.mxu0
        %v1019 = vadd.f32 %v927, %v1018
        %1020 = vmatmul.f32.gmra.mxu0 %v834
        %v1021 = vpop.f32.mrf.mxu0
        %v1022 = vadd.f32 %v930, %v1021
        %1023 = vmatmul.f32.gmra.mxu0 %v837
        %v1024 = vpop.f32.mrf.mxu0
        %v1025 = vadd.f32 %v933, %v1024
        %1026 = vmatmul.f32.gmra.mxu0 %v840
        %v1027 = vpop.f32.mrf.mxu0
        %v1028 = vadd.f32 %v936, %v1027
        %1029 = vmatmul.f32.gmra.mxu0 %v843
        %v1030 = vpop.f32.mrf.mxu0
        %v1031 = vadd.f32 %v939, %v1030
        %1032 = vmatmul.f32.gmra.mxu0 %v846
        %v1033 = vpop.f32.mrf.mxu0
        %v1034 = vadd.f32 %v942, %v1033
        %1035 = vmatmul.f32.gmra.mxu0 %v849
        %v1036 = vpop.f32.mrf.mxu0
        %v1037 = vadd.f32 %v945, %v1036
        %1038 = vmatmul.f32.gmra.mxu0 %v852
        %v1039 = vpop.f32.mrf.mxu0
        %v1040 = vadd.f32 %v948, %v1039
        %1041 = vmatmul.f32.gmra.mxu0 %v855
        %v1042 = vpop.f32.mrf.mxu0
        %v1043 = vadd.f32 %v951, %v1042
        %1044 = vmatmul.f32.gmra.mxu0 %v858
        %v1045 = vpop.f32.mrf.mxu0
        %v1046 = vadd.f32 %v954, %v1045
        %1047 = vmatmul.f32.gmra.mxu0 %v861
        %v1048 = vpop.f32.mrf.mxu0
        %v1049 = vadd.f32 %v957, %v1048
        %1050 = vmatmul.f32.gmra.mxu0 %v864
        %v1051 = vpop.f32.mrf.mxu0
        %v1052 = vadd.f32 %v960, %v1051
        %1053 = vmatmul.f32.gmra.mxu0 %v867
        %v1054 = vpop.f32.mrf.mxu0
        %v1055 = vadd.f32 %v963, %v1054
        %1056 = vdwg.mxu0
        %v1058 = vsel %vm793, %v666, 0
        %v1061 = vsel %vm793, %v668, 0
        %v1064 = vsel %vm793, %v670, 0
        %v1067 = vsel %vm793, %v672, 0
        %v1070 = vsel %vm793, %v674, 0
        %v1073 = vsel %vm793, %v676, 0
        %v1076 = vsel %vm793, %v678, 0
        %v1079 = vsel %vm793, %v680, 0
        %v1082 = vsel %vm793, %v682, 0
        %v1085 = vsel %vm793, %v684, 0
        %v1088 = vsel %vm793, %v686, 0
        %v1091 = vsel %vm793, %v688, 0
        %v1094 = vsel %vm793, %v690, 0
        %v1097 = vsel %vm793, %v692, 0
        %v1100 = vsel %vm793, %v694, 0
        %v1103 = vsel %vm793, %v696, 0
        %v1106 = vsel %vm793, %v698, 0
        %v1109 = vsel %vm793, %v700, 0
        %v1112 = vsel %vm793, %v702, 0
        %v1115 = vsel %vm793, %v704, 0
        %v1118 = vsel %vm793, %v706, 0
        %v1121 = vsel %vm793, %v708, 0
        %v1124 = vsel %vm793, %v710, 0
        %v1127 = vsel %vm793, %v712, 0
        %v1130 = vsel %vm793, %v714, 0
        %v1133 = vsel %vm869, %v664, 0
        %1135 = vmatpush.msra.mxu0 %v655
        %1136 = vmatpush.msra.mxu0 %v654
        %1137 = vmatpush.msra.mxu0 %v653
        %1138 = vmatpush.msra.mxu0 %v652
        %1139 = vmatpush.msra.mxu0 %v651
        %1140 = vmatpush.msra.mxu0 %v650
        %1141 = vmatpush.msra.mxu0 %v649
        %1142 = vmatpush.msra.mxu0 %v648
        %1143 = vmatpush.msra.mxu0 %v647
        %1144 = vmatpush.msra.mxu0 %v646
        %1145 = vmatpush.msra.mxu0 %v645
        %1146 = vmatpush.msra.mxu0 %v644
        %1147 = vmatpush.msra.mxu0 %v643
        %1148 = vmatpush.msra.mxu0 %v642
        %1149 = vmatpush.msra.mxu0 %v641
        %1150 = vmatpush.msra.mxu0 %v640
        %1151 = vmatmul.f32.gmra.mxu0 %v665
        %v1152 = vpop.f32.mrf.mxu0
        %v1153 = vadd.f32 %v983, %v1152
        %1154 = vmatmul.f32.gmra.mxu0 %v667
        %v1155 = vpop.f32.mrf.mxu0
        %v1156 = vadd.f32 %v986, %v1155
        %1157 = vmatmul.f32.gmra.mxu0 %v669
        %v1158 = vpop.f32.mrf.mxu0
        %v1159 = vadd.f32 %v989, %v1158
        %1160 = vmatmul.f32.gmra.mxu0 %v671
        %v1161 = vpop.f32.mrf.mxu0
        %v1162 = vadd.f32 %v992, %v1161
        %1163 = vmatmul.f32.gmra.mxu0 %v673
        %v1164 = vpop.f32.mrf.mxu0
        %v1165 = vadd.f32 %v995, %v1164
        %1166 = vmatmul.f32.gmra.mxu0 %v675
        %v1167 = vpop.f32.mrf.mxu0
        %v1168 = vadd.f32 %v998, %v1167
        %1169 = vmatmul.f32.gmra.mxu0 %v677
        %v1170 = vpop.f32.mrf.mxu0
        %v1171 = vadd.f32 %v1001, %v1170
        %1172 = vmatmul.f32.gmra.mxu0 %v679
        %v1173 = vpop.f32.mrf.mxu0
        %v1174 = vadd.f32 %v1004, %v1173
        %1175 = vmatmul.f32.gmra.mxu0 %v681
        %v1176 = vpop.f32.mrf.mxu0
        %v1177 = vadd.f32 %v1007, %v1176
        %1178 = vmatmul.f32.gmra.mxu0 %v683
        %v1179 = vpop.f32.mrf.mxu0
        %v1180 = vadd.f32 %v1010, %v1179
        %1181 = vmatmul.f32.gmra.mxu0 %v685
        %v1182 = vpop.f32.mrf.mxu0
        %v1183 = vadd.f32 %v1013, %v1182
        %1184 = vmatmul.f32.gmra.mxu0 %v687
        %v1185 = vpop.f32.mrf.mxu0
        %v1186 = vadd.f32 %v1016, %v1185
        %1187 = vmatmul.f32.gmra.mxu0 %v689
        %v1188 = vpop.f32.mrf.mxu0
        %v1189 = vadd.f32 %v1019, %v1188
        %1190 = vmatmul.f32.gmra.mxu0 %v691
        %v1191 = vpop.f32.mrf.mxu0
        %v1192 = vadd.f32 %v1022, %v1191
        %1193 = vmatmul.f32.gmra.mxu0 %v693
        %v1194 = vpop.f32.mrf.mxu0
        %v1195 = vadd.f32 %v1025, %v1194
        %1196 = vmatmul.f32.gmra.mxu0 %v695
        %v1197 = vpop.f32.mrf.mxu0
        %v1198 = vadd.f32 %v1028, %v1197
        %1199 = vmatmul.f32.gmra.mxu0 %v697
        %v1200 = vpop.f32.mrf.mxu0
        %v1201 = vadd.f32 %v1031, %v1200
        %1202 = vmatmul.f32.gmra.mxu0 %v699
        %v1203 = vpop.f32.mrf.mxu0
        %v1204 = vadd.f32 %v1034, %v1203
        %1205 = vmatmul.f32.gmra.mxu0 %v701
        %v1206 = vpop.f32.mrf.mxu0
        %v1207 = vadd.f32 %v1037, %v1206
        %1208 = vmatmul.f32.gmra.mxu0 %v703
        %v1209 = vpop.f32.mrf.mxu0
        %v1210 = vadd.f32 %v1040, %v1209
        %1211 = vmatmul.f32.gmra.mxu0 %v705
        %v1212 = vpop.f32.mrf.mxu0
        %v1213 = vadd.f32 %v1043, %v1212
        %1214 = vmatmul.f32.gmra.mxu0 %v707
        %v1215 = vpop.f32.mrf.mxu0
        %v1216 = vadd.f32 %v1046, %v1215
        %1217 = vmatmul.f32.gmra.mxu0 %v709
        %v1218 = vpop.f32.mrf.mxu0
        %v1219 = vadd.f32 %v1049, %v1218
        %1220 = vmatmul.f32.gmra.mxu0 %v711
        %v1221 = vpop.f32.mrf.mxu0
        %v1222 = vadd.f32 %v1052, %v1221
        %1223 = vmatmul.f32.gmra.mxu0 %v713
        %v1224 = vpop.f32.mrf.mxu0
        %v1225 = vadd.f32 %v1055, %v1224
        %1226 = vdwg.mxu0
        %1227 = vmatpush.msra.mxu0 0.0
        %1228 = vmatpush.msra.mxu0 0.0
        %1229 = vmatpush.msra.mxu0 0.0
        %1230 = vmatpush.msra.mxu0 0.0
        %1231 = vmatpush.msra.mxu0 0.0
        %1232 = vmatpush.msra.mxu0 0.0
        %1233 = vmatpush.msra.mxu0 0.0
        %1234 = vmatpush.msra.mxu0 %v1133
        %1235 = vmatpush.msra.mxu0 %v663
        %1236 = vmatpush.msra.mxu0 %v662
        %1237 = vmatpush.msra.mxu0 %v661
        %1238 = vmatpush.msra.mxu0 %v660
        %1239 = vmatpush.msra.mxu0 %v659
        %1240 = vmatpush.msra.mxu0 %v658
        %1241 = vmatpush.msra.mxu0 %v657
        %1242 = vmatpush.msra.mxu0 %v656
        %1243 = vmatmul.f32.gmra.mxu0 %v1058
        %v1244 = vpop.f32.mrf.mxu0
        %v1245 = vadd.f32 %v1153, %v1244
        %1246 = vmatmul.f32.gmra.mxu0 %v1061
        %v1247 = vpop.f32.mrf.mxu0
        %v1248 = vadd.f32 %v1156, %v1247
        %1249 = vmatmul.f32.gmra.mxu0 %v1064
        %v1250 = vpop.f32.mrf.mxu0
        %v1251 = vadd.f32 %v1159, %v1250
        %1252 = vmatmul.f32.gmra.mxu0 %v1067
        %v1253 = vpop.f32.mrf.mxu0
        %v1254 = vadd.f32 %v1162, %v1253
        %1255 = vmatmul.f32.gmra.mxu0 %v1070
        %v1256 = vpop.f32.mrf.mxu0
        %v1257 = vadd.f32 %v1165, %v1256
        %1258 = vmatmul.f32.gmra.mxu0 %v1073
        %v1259 = vpop.f32.mrf.mxu0
        %v1260 = vadd.f32 %v1168, %v1259
        %1261 = vmatmul.f32.gmra.mxu0 %v1076
        %v1262 = vpop.f32.mrf.mxu0
        %v1263 = vadd.f32 %v1171, %v1262
        %1264 = vmatmul.f32.gmra.mxu0 %v1079
        %v1265 = vpop.f32.mrf.mxu0
        %v1266 = vadd.f32 %v1174, %v1265
        %1267 = vmatmul.f32.gmra.mxu0 %v1082
        %v1268 = vpop.f32.mrf.mxu0
        %v1269 = vadd.f32 %v1177, %v1268
        %1270 = vmatmul.f32.gmra.mxu0 %v1085
        %v1271 = vpop.f32.mrf.mxu0
        %v1272 = vadd.f32 %v1180, %v1271
        %1273 = vmatmul.f32.gmra.mxu0 %v1088
        %v1274 = vpop.f32.mrf.mxu0
        %v1275 = vadd.f32 %v1183, %v1274
        %1276 = vmatmul.f32.gmra.mxu0 %v1091
        %v1277 = vpop.f32.mrf.mxu0
        %v1278 = vadd.f32 %v1186, %v1277
        %1279 = vmatmul.f32.gmra.mxu0 %v1094
        %v1280 = vpop.f32.mrf.mxu0
        %v1281 = vadd.f32 %v1189, %v1280
        %1282 = vmatmul.f32.gmra.mxu0 %v1097
        %v1283 = vpop.f32.mrf.mxu0
        %v1284 = vadd.f32 %v1192, %v1283
        %1285 = vmatmul.f32.gmra.mxu0 %v1100
        %v1286 = vpop.f32.mrf.mxu0
        %v1287 = vadd.f32 %v1195, %v1286
        %1288 = vmatmul.f32.gmra.mxu0 %v1103
        %v1289 = vpop.f32.mrf.mxu0
        %v1290 = vadd.f32 %v1198, %v1289
        %1291 = vmatmul.f32.gmra.mxu0 %v1106
        %v1292 = vpop.f32.mrf.mxu0
        %v1293 = vadd.f32 %v1201, %v1292
        %1294 = vmatmul.f32.gmra.mxu0 %v1109
        %v1295 = vpop.f32.mrf.mxu0
        %v1296 = vadd.f32 %v1204, %v1295
        %1297 = vmatmul.f32.gmra.mxu0 %v1112
        %v1298 = vpop.f32.mrf.mxu0
        %v1299 = vadd.f32 %v1207, %v1298
        %1300 = vmatmul.f32.gmra.mxu0 %v1115
        %v1301 = vpop.f32.mrf.mxu0
        %v1302 = vadd.f32 %v1210, %v1301
        %1303 = vmatmul.f32.gmra.mxu0 %v1118
        %v1304 = vpop.f32.mrf.mxu0
        %v1305 = vadd.f32 %v1213, %v1304
        %1306 = vmatmul.f32.gmra.mxu0 %v1121
        %v1307 = vpop.f32.mrf.mxu0
        %v1308 = vadd.f32 %v1216, %v1307
        %1309 = vmatmul.f32.gmra.mxu0 %v1124
        %v1310 = vpop.f32.mrf.mxu0
        %v1311 = vadd.f32 %v1219, %v1310
        %1312 = vmatmul.f32.gmra.mxu0 %v1127
        %v1313 = vpop.f32.mrf.mxu0
        %v1314 = vadd.f32 %v1222, %v1313
        %1315 = vmatmul.f32.gmra.mxu0 %v1130
        %v1316 = vpop.f32.mrf.mxu0
        %v1317 = vadd.f32 %v1225, %v1316
        %1318 = vdwg.mxu0
        %v1319 = vld [vmem:[#allocation6 + $0x2] sm:$0x1]
        %v1320 = vperm.slane %v1319, 0
        %v1321 = vmul.f32 %v517, %v1320
        %v1322 = vmul.f32 %v522, %v1320
        %v1323 = vmul.f32 %v527, %v1320
        %v1324 = vmul.f32 %v532, %v1320
        %v1325 = vmul.f32 %v537, %v1320
        %v1326 = vmul.f32 %v542, %v1320
        %v1327 = vmul.f32 %v547, %v1320
        %v1328 = vmul.f32 %v552, %v1320
        %v1329 = vmul.f32 %v557, %v1320
        %v1330 = vmul.f32 %v562, %v1320
        %v1331 = vmul.f32 %v567, %v1320
        %v1332 = vmul.f32 %v572, %v1320
        %v1333 = vmul.f32 %v577, %v1320
        %v1334 = vmul.f32 %v582, %v1320
        %v1335 = vmul.f32 %v587, %v1320
        %v1336 = vmul.f32 %v592, %v1320
        %v1337 = vmul.f32 %v597, %v1320
        %v1338 = vmul.f32 %v602, %v1320
        %v1339 = vmul.f32 %v607, %v1320
        %v1340 = vmul.f32 %v612, %v1320
        %v1341 = vmul.f32 %v617, %v1320
        %v1342 = vmul.f32 %v622, %v1320
        %v1343 = vmul.f32 %v627, %v1320
        %v1344 = vmul.f32 %v632, %v1320
        %v1345 = vmul.f32 %v637, %v1320
        %s1346 = scalar_lea.vmem [#allocation2], 800
        %v1347 = vld [vmem:[%s1346] sm:$0xff]
        %v1348 = vld [vmem:[%s1346 + $0x8] sm:$0xff]
        %v1349 = vld [vmem:[%s1346 + $0x10] sm:$0xff]
        %v1350 = vld [vmem:[%s1346 + $0x18] sm:$0xff]
        %v1351 = vld [vmem:[%s1346 + $0x20] sm:$0xff]
        %v1352 = vld [vmem:[%s1346 + $0x28] sm:$0xff]
        %v1353 = vld [vmem:[%s1346 + $0x30] sm:$0xff]
        %v1354 = vld [vmem:[%s1346 + $0x38] sm:$0xff]
        %v1355 = vld [vmem:[%s1346 + $0x40] sm:$0xff]
        %v1356 = vld [vmem:[%s1346 + $0x48] sm:$0xff]
        %v1357 = vld [vmem:[%s1346 + $0x50] sm:$0xff]
        %v1358 = vld [vmem:[%s1346 + $0x58] sm:$0xff]
        %v1359 = vld [vmem:[%s1346 + $0x60] sm:$0xff]
        %v1360 = vld [vmem:[%s1346 + $0x68] sm:$0xff]
        %v1361 = vld [vmem:[%s1346 + $0x70] sm:$0xff]
        %v1362 = vld [vmem:[%s1346 + $0x78] sm:$0xff]
        %v1363 = vld [vmem:[%s1346 + $0x80] sm:$0xff]
        %v1364 = vld [vmem:[%s1346 + $0x88] sm:$0xff]
        %v1365 = vld [vmem:[%s1346 + $0x90] sm:$0xff]
        %v1366 = vld [vmem:[%s1346 + $0x98] sm:$0xff]
        %v1367 = vld [vmem:[%s1346 + $0xa0] sm:$0xff]
        %v1368 = vld [vmem:[%s1346 + $0xa8] sm:$0xff]
        %v1369 = vld [vmem:[%s1346 + $0xb0] sm:$0xff]
        %v1370 = vld [vmem:[%s1346 + $0xb8] sm:$0xff]
        %v1371 = vld [vmem:[%s1346 + $0xc0] sm:$0xff]
        %v1372 = vld [vmem:[%s1346 + $0xc8] sm:$0xff]
        %v1373 = vld [vmem:[%s1346 + $0xd0] sm:$0xff]
        %v1374 = vld [vmem:[%s1346 + $0xd8] sm:$0xff]
        %v1375 = vld [vmem:[%s1346 + $0xe0] sm:$0xff]
        %v1376 = vld [vmem:[%s1346 + $0xe8] sm:$0xff]
        %v1377 = vld [vmem:[%s1346 + $0xf0] sm:$0xff]
        %v1378 = vld [vmem:[%s1346 + $0xf8] sm:$0xff]
        %v1379 = vld [vmem:[%s1346 + $0x100] sm:$0xff]
        %v1380 = vld [vmem:[%s1346 + $0x108] sm:$0xff]
        %v1381 = vld [vmem:[%s1346 + $0x110] sm:$0xff]
        %v1382 = vld [vmem:[%s1346 + $0x118] sm:$0xff]
        %v1383 = vld [vmem:[%s1346 + $0x120] sm:$0xff]
        %v1384 = vld [vmem:[%s1346 + $0x128] sm:$0xff]
        %v1385 = vld [vmem:[%s1346 + $0x130] sm:$0xff]
        %v1386 = vld [vmem:[%s1346 + $0x138] sm:$0xff]
        %v1387 = vld [vmem:[%s1346 + $0x140] sm:$0xff]
        %v1388 = vld [vmem:[%s1346 + $0x148] sm:$0xff]
        %v1389 = vld [vmem:[%s1346 + $0x150] sm:$0xff]
        %v1390 = vld [vmem:[%s1346 + $0x158] sm:$0xff]
        %v1391 = vld [vmem:[%s1346 + $0x160] sm:$0xff]
        %v1392 = vld [vmem:[%s1346 + $0x168] sm:$0xff]
        %v1393 = vld [vmem:[%s1346 + $0x170] sm:$0xff]
        %v1394 = vld [vmem:[%s1346 + $0x178] sm:$0xff]
        %v1395 = vld [vmem:[%s1346 + $0x180] sm:$0xf]
        %v1396 = vld [vmem:[%s1346 + $0x188] sm:$0xf]
        %v1398 = vsel %vm793, %v1348, 0
        %v1401 = vsel %vm793, %v1350, 0
        %v1404 = vsel %vm793, %v1352, 0
        %v1407 = vsel %vm793, %v1354, 0
        %v1410 = vsel %vm793, %v1356, 0
        %v1413 = vsel %vm793, %v1358, 0
        %v1416 = vsel %vm793, %v1360, 0
        %v1419 = vsel %vm793, %v1362, 0
        %v1422 = vsel %vm793, %v1364, 0
        %v1425 = vsel %vm793, %v1366, 0
        %v1428 = vsel %vm793, %v1368, 0
        %v1431 = vsel %vm793, %v1370, 0
        %v1434 = vsel %vm793, %v1372, 0
        %v1437 = vsel %vm793, %v1374, 0
        %v1440 = vsel %vm793, %v1376, 0
        %v1443 = vsel %vm793, %v1378, 0
        %v1446 = vsel %vm793, %v1380, 0
        %v1449 = vsel %vm793, %v1382, 0
        %v1452 = vsel %vm793, %v1384, 0
        %v1455 = vsel %vm793, %v1386, 0
        %v1458 = vsel %vm793, %v1388, 0
        %v1461 = vsel %vm793, %v1390, 0
        %v1464 = vsel %vm793, %v1392, 0
        %v1467 = vsel %vm793, %v1394, 0
        %v1470 = vsel %vm793, %v1396, 0
        %v1473 = vsel %vm869, %v1345, 0
        %1475 = vmatpush.msra.mxu0 %v1336
        %1476 = vmatpush.msra.mxu0 %v1335
        %1477 = vmatpush.msra.mxu0 %v1334
        %1478 = vmatpush.msra.mxu0 %v1333
        %1479 = vmatpush.msra.mxu0 %v1332
        %1480 = vmatpush.msra.mxu0 %v1331
        %1481 = vmatpush.msra.mxu0 %v1330
        %1482 = vmatpush.msra.mxu0 %v1329
        %1483 = vmatpush.msra.mxu0 %v1328
        %1484 = vmatpush.msra.mxu0 %v1327
        %1485 = vmatpush.msra.mxu0 %v1326
        %1486 = vmatpush.msra.mxu0 %v1325
        %1487 = vmatpush.msra.mxu0 %v1324
        %1488 = vmatpush.msra.mxu0 %v1323
        %1489 = vmatpush.msra.mxu0 %v1322
        %1490 = vmatpush.msra.mxu0 %v1321
        %1491 = vmatmul.f32.gmra.mxu0 %v1347
        %v1492 = vpop.f32.mrf.mxu0
        %v1493 = vadd.f32 0.0, %v1492
        %1494 = vmatmul.f32.gmra.mxu0 %v1349
        %v1495 = vpop.f32.mrf.mxu0
        %v1496 = vadd.f32 0.0, %v1495
        %1497 = vmatmul.f32.gmra.mxu0 %v1351
        %v1498 = vpop.f32.mrf.mxu0
        %v1499 = vadd.f32 0.0, %v1498
        %1500 = vmatmul.f32.gmra.mxu0 %v1353
        %v1501 = vpop.f32.mrf.mxu0
        %v1502 = vadd.f32 0.0, %v1501
        %1503 = vmatmul.f32.gmra.mxu0 %v1355
        %v1504 = vpop.f32.mrf.mxu0
        %v1505 = vadd.f32 0.0, %v1504
        %1506 = vmatmul.f32.gmra.mxu0 %v1357
        %v1507 = vpop.f32.mrf.mxu0
        %v1508 = vadd.f32 0.0, %v1507
        %1509 = vmatmul.f32.gmra.mxu0 %v1359
        %v1510 = vpop.f32.mrf.mxu0
        %v1511 = vadd.f32 0.0, %v1510
        %1512 = vmatmul.f32.gmra.mxu0 %v1361
        %v1513 = vpop.f32.mrf.mxu0
        %v1514 = vadd.f32 0.0, %v1513
        %1515 = vmatmul.f32.gmra.mxu0 %v1363
        %v1516 = vpop.f32.mrf.mxu0
        %v1517 = vadd.f32 0.0, %v1516
        %1518 = vmatmul.f32.gmra.mxu0 %v1365
        %v1519 = vpop.f32.mrf.mxu0
        %v1520 = vadd.f32 0.0, %v1519
        %1521 = vmatmul.f32.gmra.mxu0 %v1367
        %v1522 = vpop.f32.mrf.mxu0
        %v1523 = vadd.f32 0.0, %v1522
        %1524 = vmatmul.f32.gmra.mxu0 %v1369
        %v1525 = vpop.f32.mrf.mxu0
        %v1526 = vadd.f32 0.0, %v1525
        %1527 = vmatmul.f32.gmra.mxu0 %v1371
        %v1528 = vpop.f32.mrf.mxu0
        %v1529 = vadd.f32 0.0, %v1528
        %1530 = vmatmul.f32.gmra.mxu0 %v1373
        %v1531 = vpop.f32.mrf.mxu0
        %v1532 = vadd.f32 0.0, %v1531
        %1533 = vmatmul.f32.gmra.mxu0 %v1375
        %v1534 = vpop.f32.mrf.mxu0
        %v1535 = vadd.f32 0.0, %v1534
        %1536 = vmatmul.f32.gmra.mxu0 %v1377
        %v1537 = vpop.f32.mrf.mxu0
        %v1538 = vadd.f32 0.0, %v1537
        %1539 = vmatmul.f32.gmra.mxu0 %v1379
        %v1540 = vpop.f32.mrf.mxu0
        %v1541 = vadd.f32 0.0, %v1540
        %1542 = vmatmul.f32.gmra.mxu0 %v1381
        %v1543 = vpop.f32.mrf.mxu0
        %v1544 = vadd.f32 0.0, %v1543
        %1545 = vmatmul.f32.gmra.mxu0 %v1383
        %v1546 = vpop.f32.mrf.mxu0
        %v1547 = vadd.f32 0.0, %v1546
        %1548 = vmatmul.f32.gmra.mxu0 %v1385
        %v1549 = vpop.f32.mrf.mxu0
        %v1550 = vadd.f32 0.0, %v1549
        %1551 = vmatmul.f32.gmra.mxu0 %v1387
        %v1552 = vpop.f32.mrf.mxu0
        %v1553 = vadd.f32 0.0, %v1552
        %1554 = vmatmul.f32.gmra.mxu0 %v1389
        %v1555 = vpop.f32.mrf.mxu0
        %v1556 = vadd.f32 0.0, %v1555
        %1557 = vmatmul.f32.gmra.mxu0 %v1391
        %v1558 = vpop.f32.mrf.mxu0
        %v1559 = vadd.f32 0.0, %v1558
        %1560 = vmatmul.f32.gmra.mxu0 %v1393
        %v1561 = vpop.f32.mrf.mxu0
        %v1562 = vadd.f32 0.0, %v1561
        %1563 = vmatmul.f32.gmra.mxu0 %v1395
        %v1564 = vpop.f32.mrf.mxu0
        %v1565 = vadd.f32 0.0, %v1564
        %1566 = vdwg.mxu0
        %1567 = vmatpush.msra.mxu0 0.0
        %1568 = vmatpush.msra.mxu0 0.0
        %1569 = vmatpush.msra.mxu0 0.0
        %1570 = vmatpush.msra.mxu0 0.0
        %1571 = vmatpush.msra.mxu0 0.0
        %1572 = vmatpush.msra.mxu0 0.0
        %1573 = vmatpush.msra.mxu0 0.0
        %1574 = vmatpush.msra.mxu0 %v1473
        %1575 = vmatpush.msra.mxu0 %v1344
        %1576 = vmatpush.msra.mxu0 %v1343
        %1577 = vmatpush.msra.mxu0 %v1342
        %1578 = vmatpush.msra.mxu0 %v1341
        %1579 = vmatpush.msra.mxu0 %v1340
        %1580 = vmatpush.msra.mxu0 %v1339
        %1581 = vmatpush.msra.mxu0 %v1338
        %1582 = vmatpush.msra.mxu0 %v1337
        %1583 = vmatmul.f32.gmra.mxu0 %v1398
        %v1584 = vpop.f32.mrf.mxu0
        %v1585 = vadd.f32 %v1493, %v1584
        %1586 = vmatmul.f32.gmra.mxu0 %v1401
        %v1587 = vpop.f32.mrf.mxu0
        %v1588 = vadd.f32 %v1496, %v1587
        %1589 = vmatmul.f32.gmra.mxu0 %v1404
        %v1590 = vpop.f32.mrf.mxu0
        %v1591 = vadd.f32 %v1499, %v1590
        %1592 = vmatmul.f32.gmra.mxu0 %v1407
        %v1593 = vpop.f32.mrf.mxu0
        %v1594 = vadd.f32 %v1502, %v1593
        %1595 = vmatmul.f32.gmra.mxu0 %v1410
        %v1596 = vpop.f32.mrf.mxu0
        %v1597 = vadd.f32 %v1505, %v1596
        %1598 = vmatmul.f32.gmra.mxu0 %v1413
        %v1599 = vpop.f32.mrf.mxu0
        %v1600 = vadd.f32 %v1508, %v1599
        %1601 = vmatmul.f32.gmra.mxu0 %v1416
        %v1602 = vpop.f32.mrf.mxu0
        %v1603 = vadd.f32 %v1511, %v1602
        %1604 = vmatmul.f32.gmra.mxu0 %v1419
        %v1605 = vpop.f32.mrf.mxu0
        %v1606 = vadd.f32 %v1514, %v1605
        %1607 = vmatmul.f32.gmra.mxu0 %v1422
        %v1608 = vpop.f32.mrf.mxu0
        %v1609 = vadd.f32 %v1517, %v1608
        %1610 = vmatmul.f32.gmra.mxu0 %v1425
        %v1611 = vpop.f32.mrf.mxu0
        %v1612 = vadd.f32 %v1520, %v1611
        %1613 = vmatmul.f32.gmra.mxu0 %v1428
        %v1614 = vpop.f32.mrf.mxu0
        %v1615 = vadd.f32 %v1523, %v1614
        %1616 = vmatmul.f32.gmra.mxu0 %v1431
        %v1617 = vpop.f32.mrf.mxu0
        %v1618 = vadd.f32 %v1526, %v1617
        %1619 = vmatmul.f32.gmra.mxu0 %v1434
        %v1620 = vpop.f32.mrf.mxu0
        %v1621 = vadd.f32 %v1529, %v1620
        %1622 = vmatmul.f32.gmra.mxu0 %v1437
        %v1623 = vpop.f32.mrf.mxu0
        %v1624 = vadd.f32 %v1532, %v1623
        %1625 = vmatmul.f32.gmra.mxu0 %v1440
        %v1626 = vpop.f32.mrf.mxu0
        %v1627 = vadd.f32 %v1535, %v1626
        %1628 = vmatmul.f32.gmra.mxu0 %v1443
        %v1629 = vpop.f32.mrf.mxu0
        %v1630 = vadd.f32 %v1538, %v1629
        %1631 = vmatmul.f32.gmra.mxu0 %v1446
        %v1632 = vpop.f32.mrf.mxu0
        %v1633 = vadd.f32 %v1541, %v1632
        %1634 = vmatmul.f32.gmra.mxu0 %v1449
        %v1635 = vpop.f32.mrf.mxu0
        %v1636 = vadd.f32 %v1544, %v1635
        %1637 = vmatmul.f32.gmra.mxu0 %v1452
        %v1638 = vpop.f32.mrf.mxu0
        %v1639 = vadd.f32 %v1547, %v1638
        %1640 = vmatmul.f32.gmra.mxu0 %v1455
        %v1641 = vpop.f32.mrf.mxu0
        %v1642 = vadd.f32 %v1550, %v1641
        %1643 = vmatmul.f32.gmra.mxu0 %v1458
        %v1644 = vpop.f32.mrf.mxu0
        %v1645 = vadd.f32 %v1553, %v1644
        %1646 = vmatmul.f32.gmra.mxu0 %v1461
        %v1647 = vpop.f32.mrf.mxu0
        %v1648 = vadd.f32 %v1556, %v1647
        %1649 = vmatmul.f32.gmra.mxu0 %v1464
        %v1650 = vpop.f32.mrf.mxu0
        %v1651 = vadd.f32 %v1559, %v1650
        %1652 = vmatmul.f32.gmra.mxu0 %v1467
        %v1653 = vpop.f32.mrf.mxu0
        %v1654 = vadd.f32 %v1562, %v1653
        %1655 = vmatmul.f32.gmra.mxu0 %v1470
        %v1656 = vpop.f32.mrf.mxu0
        %v1657 = vadd.f32 %v1565, %v1656
        %1658 = vdwg.mxu0
        %v1659 = vadd.f32 %v1245, %v1585
        %v1660 = vadd.f32 %v1248, %v1588
        %v1661 = vadd.f32 %v1251, %v1591
        %v1662 = vadd.f32 %v1254, %v1594
        %v1663 = vadd.f32 %v1257, %v1597
        %v1664 = vadd.f32 %v1260, %v1600
        %v1665 = vadd.f32 %v1263, %v1603
        %v1666 = vadd.f32 %v1266, %v1606
        %v1667 = vadd.f32 %v1269, %v1609
        %v1668 = vadd.f32 %v1272, %v1612
        %v1669 = vadd.f32 %v1275, %v1615
        %v1670 = vadd.f32 %v1278, %v1618
        %v1671 = vadd.f32 %v1281, %v1621
        %v1672 = vadd.f32 %v1284, %v1624
        %v1673 = vadd.f32 %v1287, %v1627
        %v1674 = vadd.f32 %v1290, %v1630
        %v1675 = vadd.f32 %v1293, %v1633
        %v1676 = vadd.f32 %v1296, %v1636
        %v1677 = vadd.f32 %v1299, %v1639
        %v1678 = vadd.f32 %v1302, %v1642
        %v1679 = vadd.f32 %v1305, %v1645
        %v1680 = vadd.f32 %v1308, %v1648
        %v1681 = vadd.f32 %v1311, %v1651
        %v1682 = vadd.f32 %v1314, %v1654
        %v1683 = vadd.f32 %v1317, %v1657
        %v1684 = vld [vmem:[#allocation6 + $0x3] sm:$0x1]
        %v1685 = vperm.slane %v1684, 0
        %v1686 = vmul.f32 %v517, %v1685
        %v1687 = vmul.f32 %v522, %v1685
        %v1688 = vmul.f32 %v527, %v1685
        %v1689 = vmul.f32 %v532, %v1685
        %v1690 = vmul.f32 %v537, %v1685
        %v1691 = vmul.f32 %v542, %v1685
        %v1692 = vmul.f32 %v547, %v1685
        %v1693 = vmul.f32 %v552, %v1685
        %v1694 = vmul.f32 %v557, %v1685
        %v1695 = vmul.f32 %v562, %v1685
        %v1696 = vmul.f32 %v567, %v1685
        %v1697 = vmul.f32 %v572, %v1685
        %v1698 = vmul.f32 %v577, %v1685
        %v1699 = vmul.f32 %v582, %v1685
        %v1700 = vmul.f32 %v587, %v1685
        %v1701 = vmul.f32 %v592, %v1685
        %v1702 = vmul.f32 %v597, %v1685
        %v1703 = vmul.f32 %v602, %v1685
        %v1704 = vmul.f32 %v607, %v1685
        %v1705 = vmul.f32 %v612, %v1685
        %v1706 = vmul.f32 %v617, %v1685
        %v1707 = vmul.f32 %v622, %v1685
        %v1708 = vmul.f32 %v627, %v1685
        %v1709 = vmul.f32 %v632, %v1685
        %v1710 = vmul.f32 %v637, %v1685
        %s1711 = scalar_lea.vmem [#allocation2], 1200
        %v1712 = vld [vmem:[%s1711] sm:$0xff]
        %v1713 = vld [vmem:[%s1711 + $0x8] sm:$0xff]
        %v1714 = vld [vmem:[%s1711 + $0x10] sm:$0xff]
        %v1715 = vld [vmem:[%s1711 + $0x18] sm:$0xff]
        %v1716 = vld [vmem:[%s1711 + $0x20] sm:$0xff]
        %v1717 = vld [vmem:[%s1711 + $0x28] sm:$0xff]
        %v1718 = vld [vmem:[%s1711 + $0x30] sm:$0xff]
        %v1719 = vld [vmem:[%s1711 + $0x38] sm:$0xff]
        %v1720 = vld [vmem:[%s1711 + $0x40] sm:$0xff]
        %v1721 = vld [vmem:[%s1711 + $0x48] sm:$0xff]
        %v1722 = vld [vmem:[%s1711 + $0x50] sm:$0xff]
        %v1723 = vld [vmem:[%s1711 + $0x58] sm:$0xff]
        %v1724 = vld [vmem:[%s1711 + $0x60] sm:$0xff]
        %v1725 = vld [vmem:[%s1711 + $0x68] sm:$0xff]
        %v1726 = vld [vmem:[%s1711 + $0x70] sm:$0xff]
        %v1727 = vld [vmem:[%s1711 + $0x78] sm:$0xff]
        %v1728 = vld [vmem:[%s1711 + $0x80] sm:$0xff]
        %v1729 = vld [vmem:[%s1711 + $0x88] sm:$0xff]
        %v1730 = vld [vmem:[%s1711 + $0x90] sm:$0xff]
        %v1731 = vld [vmem:[%s1711 + $0x98] sm:$0xff]
        %v1732 = vld [vmem:[%s1711 + $0xa0] sm:$0xff]
        %v1733 = vld [vmem:[%s1711 + $0xa8] sm:$0xff]
        %v1734 = vld [vmem:[%s1711 + $0xb0] sm:$0xff]
        %v1735 = vld [vmem:[%s1711 + $0xb8] sm:$0xff]
        %v1736 = vld [vmem:[%s1711 + $0xc0] sm:$0xff]
        %v1737 = vld [vmem:[%s1711 + $0xc8] sm:$0xff]
        %v1738 = vld [vmem:[%s1711 + $0xd0] sm:$0xff]
        %v1739 = vld [vmem:[%s1711 + $0xd8] sm:$0xff]
        %v1740 = vld [vmem:[%s1711 + $0xe0] sm:$0xff]
        %v1741 = vld [vmem:[%s1711 + $0xe8] sm:$0xff]
        %v1742 = vld [vmem:[%s1711 + $0xf0] sm:$0xff]
        %v1743 = vld [vmem:[%s1711 + $0xf8] sm:$0xff]
        %v1744 = vld [vmem:[%s1711 + $0x100] sm:$0xff]
        %v1745 = vld [vmem:[%s1711 + $0x108] sm:$0xff]
        %v1746 = vld [vmem:[%s1711 + $0x110] sm:$0xff]
        %v1747 = vld [vmem:[%s1711 + $0x118] sm:$0xff]
        %v1748 = vld [vmem:[%s1711 + $0x120] sm:$0xff]
        %v1749 = vld [vmem:[%s1711 + $0x128] sm:$0xff]
        %v1750 = vld [vmem:[%s1711 + $0x130] sm:$0xff]
        %v1751 = vld [vmem:[%s1711 + $0x138] sm:$0xff]
        %v1752 = vld [vmem:[%s1711 + $0x140] sm:$0xff]
        %v1753 = vld [vmem:[%s1711 + $0x148] sm:$0xff]
        %v1754 = vld [vmem:[%s1711 + $0x150] sm:$0xff]
        %v1755 = vld [vmem:[%s1711 + $0x158] sm:$0xff]
        %v1756 = vld [vmem:[%s1711 + $0x160] sm:$0xff]
        %v1757 = vld [vmem:[%s1711 + $0x168] sm:$0xff]
        %v1758 = vld [vmem:[%s1711 + $0x170] sm:$0xff]
        %v1759 = vld [vmem:[%s1711 + $0x178] sm:$0xff]
        %v1760 = vld [vmem:[%s1711 + $0x180] sm:$0xf]
        %v1761 = vld [vmem:[%s1711 + $0x188] sm:$0xf]
        %v1763 = vsel %vm793, %v1713, 0
        %v1766 = vsel %vm793, %v1715, 0
        %v1769 = vsel %vm793, %v1717, 0
        %v1772 = vsel %vm793, %v1719, 0
        %v1775 = vsel %vm793, %v1721, 0
        %v1778 = vsel %vm793, %v1723, 0
        %v1781 = vsel %vm793, %v1725, 0
        %v1784 = vsel %vm793, %v1727, 0
        %v1787 = vsel %vm793, %v1729, 0
        %v1790 = vsel %vm793, %v1731, 0
        %v1793 = vsel %vm793, %v1733, 0
        %v1796 = vsel %vm793, %v1735, 0
        %v1799 = vsel %vm793, %v1737, 0
        %v1802 = vsel %vm793, %v1739, 0
        %v1805 = vsel %vm793, %v1741, 0
        %v1808 = vsel %vm793, %v1743, 0
        %v1811 = vsel %vm793, %v1745, 0
        %v1814 = vsel %vm793, %v1747, 0
        %v1817 = vsel %vm793, %v1749, 0
        %v1820 = vsel %vm793, %v1751, 0
        %v1823 = vsel %vm793, %v1753, 0
        %v1826 = vsel %vm793, %v1755, 0
        %v1829 = vsel %vm793, %v1757, 0
        %v1832 = vsel %vm793, %v1759, 0
        %v1835 = vsel %vm793, %v1761, 0
        %v1838 = vsel %vm869, %v1710, 0
        %1840 = vmatpush.msra.mxu0 %v1701
        %1841 = vmatpush.msra.mxu0 %v1700
        %1842 = vmatpush.msra.mxu0 %v1699
        %1843 = vmatpush.msra.mxu0 %v1698
        %1844 = vmatpush.msra.mxu0 %v1697
        %1845 = vmatpush.msra.mxu0 %v1696
        %1846 = vmatpush.msra.mxu0 %v1695
        %1847 = vmatpush.msra.mxu0 %v1694
        %1848 = vmatpush.msra.mxu0 %v1693
        %1849 = vmatpush.msra.mxu0 %v1692
        %1850 = vmatpush.msra.mxu0 %v1691
        %1851 = vmatpush.msra.mxu0 %v1690
        %1852 = vmatpush.msra.mxu0 %v1689
        %1853 = vmatpush.msra.mxu0 %v1688
        %1854 = vmatpush.msra.mxu0 %v1687
        %1855 = vmatpush.msra.mxu0 %v1686
        %1856 = vmatmul.f32.gmra.mxu0 %v1712
        %v1857 = vpop.f32.mrf.mxu0
        %v1858 = vadd.f32 0.0, %v1857
        %1859 = vmatmul.f32.gmra.mxu0 %v1714
        %v1860 = vpop.f32.mrf.mxu0
        %v1861 = vadd.f32 0.0, %v1860
        %1862 = vmatmul.f32.gmra.mxu0 %v1716
        %v1863 = vpop.f32.mrf.mxu0
        %v1864 = vadd.f32 0.0, %v1863
        %1865 = vmatmul.f32.gmra.mxu0 %v1718
        %v1866 = vpop.f32.mrf.mxu0
        %v1867 = vadd.f32 0.0, %v1866
        %1868 = vmatmul.f32.gmra.mxu0 %v1720
        %v1869 = vpop.f32.mrf.mxu0
        %v1870 = vadd.f32 0.0, %v1869
        %1871 = vmatmul.f32.gmra.mxu0 %v1722
        %v1872 = vpop.f32.mrf.mxu0
        %v1873 = vadd.f32 0.0, %v1872
        %1874 = vmatmul.f32.gmra.mxu0 %v1724
        %v1875 = vpop.f32.mrf.mxu0
        %v1876 = vadd.f32 0.0, %v1875
        %1877 = vmatmul.f32.gmra.mxu0 %v1726
        %v1878 = vpop.f32.mrf.mxu0
        %v1879 = vadd.f32 0.0, %v1878
        %1880 = vmatmul.f32.gmra.mxu0 %v1728
        %v1881 = vpop.f32.mrf.mxu0
        %v1882 = vadd.f32 0.0, %v1881
        %1883 = vmatmul.f32.gmra.mxu0 %v1730
        %v1884 = vpop.f32.mrf.mxu0
        %v1885 = vadd.f32 0.0, %v1884
        %1886 = vmatmul.f32.gmra.mxu0 %v1732
        %v1887 = vpop.f32.mrf.mxu0
        %v1888 = vadd.f32 0.0, %v1887
        %1889 = vmatmul.f32.gmra.mxu0 %v1734
        %v1890 = vpop.f32.mrf.mxu0
        %v1891 = vadd.f32 0.0, %v1890
        %1892 = vmatmul.f32.gmra.mxu0 %v1736
        %v1893 = vpop.f32.mrf.mxu0
        %v1894 = vadd.f32 0.0, %v1893
        %1895 = vmatmul.f32.gmra.mxu0 %v1738
        %v1896 = vpop.f32.mrf.mxu0
        %v1897 = vadd.f32 0.0, %v1896
        %1898 = vmatmul.f32.gmra.mxu0 %v1740
        %v1899 = vpop.f32.mrf.mxu0
        %v1900 = vadd.f32 0.0, %v1899
        %1901 = vmatmul.f32.gmra.mxu0 %v1742
        %v1902 = vpop.f32.mrf.mxu0
        %v1903 = vadd.f32 0.0, %v1902
        %1904 = vmatmul.f32.gmra.mxu0 %v1744
        %v1905 = vpop.f32.mrf.mxu0
        %v1906 = vadd.f32 0.0, %v1905
        %1907 = vmatmul.f32.gmra.mxu0 %v1746
        %v1908 = vpop.f32.mrf.mxu0
        %v1909 = vadd.f32 0.0, %v1908
        %1910 = vmatmul.f32.gmra.mxu0 %v1748
        %v1911 = vpop.f32.mrf.mxu0
        %v1912 = vadd.f32 0.0, %v1911
        %1913 = vmatmul.f32.gmra.mxu0 %v1750
        %v1914 = vpop.f32.mrf.mxu0
        %v1915 = vadd.f32 0.0, %v1914
        %1916 = vmatmul.f32.gmra.mxu0 %v1752
        %v1917 = vpop.f32.mrf.mxu0
        %v1918 = vadd.f32 0.0, %v1917
        %1919 = vmatmul.f32.gmra.mxu0 %v1754
        %v1920 = vpop.f32.mrf.mxu0
        %v1921 = vadd.f32 0.0, %v1920
        %1922 = vmatmul.f32.gmra.mxu0 %v1756
        %v1923 = vpop.f32.mrf.mxu0
        %v1924 = vadd.f32 0.0, %v1923
        %1925 = vmatmul.f32.gmra.mxu0 %v1758
        %v1926 = vpop.f32.mrf.mxu0
        %v1927 = vadd.f32 0.0, %v1926
        %1928 = vmatmul.f32.gmra.mxu0 %v1760
        %v1929 = vpop.f32.mrf.mxu0
        %v1930 = vadd.f32 0.0, %v1929
        %1931 = vdwg.mxu0
        %1932 = vmatpush.msra.mxu0 0.0
        %1933 = vmatpush.msra.mxu0 0.0
        %1934 = vmatpush.msra.mxu0 0.0
        %1935 = vmatpush.msra.mxu0 0.0
        %1936 = vmatpush.msra.mxu0 0.0
        %1937 = vmatpush.msra.mxu0 0.0
        %1938 = vmatpush.msra.mxu0 0.0
        %1939 = vmatpush.msra.mxu0 %v1838
        %1940 = vmatpush.msra.mxu0 %v1709
        %1941 = vmatpush.msra.mxu0 %v1708
        %1942 = vmatpush.msra.mxu0 %v1707
        %1943 = vmatpush.msra.mxu0 %v1706
        %1944 = vmatpush.msra.mxu0 %v1705
        %1945 = vmatpush.msra.mxu0 %v1704
        %1946 = vmatpush.msra.mxu0 %v1703
        %1947 = vmatpush.msra.mxu0 %v1702
        %1948 = vmatmul.f32.gmra.mxu0 %v1763
        %v1949 = vpop.f32.mrf.mxu0
        %v1950 = vadd.f32 %v1858, %v1949
        %1951 = vmatmul.f32.gmra.mxu0 %v1766
        %v1952 = vpop.f32.mrf.mxu0
        %v1953 = vadd.f32 %v1861, %v1952
        %1954 = vmatmul.f32.gmra.mxu0 %v1769
        %v1955 = vpop.f32.mrf.mxu0
        %v1956 = vadd.f32 %v1864, %v1955
        %1957 = vmatmul.f32.gmra.mxu0 %v1772
        %v1958 = vpop.f32.mrf.mxu0
        %v1959 = vadd.f32 %v1867, %v1958
        %1960 = vmatmul.f32.gmra.mxu0 %v1775
        %v1961 = vpop.f32.mrf.mxu0
        %v1962 = vadd.f32 %v1870, %v1961
        %1963 = vmatmul.f32.gmra.mxu0 %v1778
        %v1964 = vpop.f32.mrf.mxu0
        %v1965 = vadd.f32 %v1873, %v1964
        %1966 = vmatmul.f32.gmra.mxu0 %v1781
        %v1967 = vpop.f32.mrf.mxu0
        %v1968 = vadd.f32 %v1876, %v1967
        %1969 = vmatmul.f32.gmra.mxu0 %v1784
        %v1970 = vpop.f32.mrf.mxu0
        %v1971 = vadd.f32 %v1879, %v1970
        %1972 = vmatmul.f32.gmra.mxu0 %v1787
        %v1973 = vpop.f32.mrf.mxu0
        %v1974 = vadd.f32 %v1882, %v1973
        %1975 = vmatmul.f32.gmra.mxu0 %v1790
        %v1976 = vpop.f32.mrf.mxu0
        %v1977 = vadd.f32 %v1885, %v1976
        %1978 = vmatmul.f32.gmra.mxu0 %v1793
        %v1979 = vpop.f32.mrf.mxu0
        %v1980 = vadd.f32 %v1888, %v1979
        %1981 = vmatmul.f32.gmra.mxu0 %v1796
        %v1982 = vpop.f32.mrf.mxu0
        %v1983 = vadd.f32 %v1891, %v1982
        %1984 = vmatmul.f32.gmra.mxu0 %v1799
        %v1985 = vpop.f32.mrf.mxu0
        %v1986 = vadd.f32 %v1894, %v1985
        %1987 = vmatmul.f32.gmra.mxu0 %v1802
        %v1988 = vpop.f32.mrf.mxu0
        %v1989 = vadd.f32 %v1897, %v1988
        %1990 = vmatmul.f32.gmra.mxu0 %v1805
        %v1991 = vpop.f32.mrf.mxu0
        %v1992 = vadd.f32 %v1900, %v1991
        %1993 = vmatmul.f32.gmra.mxu0 %v1808
        %v1994 = vpop.f32.mrf.mxu0
        %v1995 = vadd.f32 %v1903, %v1994
        %1996 = vmatmul.f32.gmra.mxu0 %v1811
        %v1997 = vpop.f32.mrf.mxu0
        %v1998 = vadd.f32 %v1906, %v1997
        %1999 = vmatmul.f32.gmra.mxu0 %v1814
        %v2000 = vpop.f32.mrf.mxu0
        %v2001 = vadd.f32 %v1909, %v2000
        %2002 = vmatmul.f32.gmra.mxu0 %v1817
        %v2003 = vpop.f32.mrf.mxu0
        %v2004 = vadd.f32 %v1912, %v2003
        %2005 = vmatmul.f32.gmra.mxu0 %v1820
        %v2006 = vpop.f32.mrf.mxu0
        %v2007 = vadd.f32 %v1915, %v2006
        %2008 = vmatmul.f32.gmra.mxu0 %v1823
        %v2009 = vpop.f32.mrf.mxu0
        %v2010 = vadd.f32 %v1918, %v2009
        %2011 = vmatmul.f32.gmra.mxu0 %v1826
        %v2012 = vpop.f32.mrf.mxu0
        %v2013 = vadd.f32 %v1921, %v2012
        %2014 = vmatmul.f32.gmra.mxu0 %v1829
        %v2015 = vpop.f32.mrf.mxu0
        %v2016 = vadd.f32 %v1924, %v2015
        %2017 = vmatmul.f32.gmra.mxu0 %v1832
        %v2018 = vpop.f32.mrf.mxu0
        %v2019 = vadd.f32 %v1927, %v2018
        %2020 = vmatmul.f32.gmra.mxu0 %v1835
        %v2021 = vpop.f32.mrf.mxu0
        %v2022 = vadd.f32 %v1930, %v2021
        %2023 = vdwg.mxu0
        %v2024 = vadd.f32 %v1659, %v1950
        %v2025 = vadd.f32 %v1660, %v1953
        %v2026 = vadd.f32 %v1661, %v1956
        %v2027 = vadd.f32 %v1662, %v1959
        %v2028 = vadd.f32 %v1663, %v1962
        %v2029 = vadd.f32 %v1664, %v1965
        %v2030 = vadd.f32 %v1665, %v1968
        %v2031 = vadd.f32 %v1666, %v1971
        %v2032 = vadd.f32 %v1667, %v1974
        %v2033 = vadd.f32 %v1668, %v1977
        %v2034 = vadd.f32 %v1669, %v1980
        %v2035 = vadd.f32 %v1670, %v1983
        %v2036 = vadd.f32 %v1671, %v1986
        %v2037 = vadd.f32 %v1672, %v1989
        %v2038 = vadd.f32 %v1673, %v1992
        %v2039 = vadd.f32 %v1674, %v1995
        %v2040 = vadd.f32 %v1675, %v1998
        %v2041 = vadd.f32 %v1676, %v2001
        %v2042 = vadd.f32 %v1677, %v2004
        %v2043 = vadd.f32 %v1678, %v2007
        %v2044 = vadd.f32 %v1679, %v2010
        %v2045 = vadd.f32 %v1680, %v2013
        %v2046 = vadd.f32 %v1681, %v2016
        %v2047 = vadd.f32 %v1682, %v2019
        %v2048 = vadd.f32 %v1683, %v2022
        %v2049 = vld [vmem:[#allocation6 + $0x4] sm:$0x1]
        %v2050 = vperm.slane %v2049, 0
        %v2051 = vmul.f32 %v517, %v2050
        %v2052 = vmul.f32 %v522, %v2050
        %v2053 = vmul.f32 %v527, %v2050
        %v2054 = vmul.f32 %v532, %v2050
        %v2055 = vmul.f32 %v537, %v2050
        %v2056 = vmul.f32 %v542, %v2050
        %v2057 = vmul.f32 %v547, %v2050
        %v2058 = vmul.f32 %v552, %v2050
        %v2059 = vmul.f32 %v557, %v2050
        %v2060 = vmul.f32 %v562, %v2050
        %v2061 = vmul.f32 %v567, %v2050
        %v2062 = vmul.f32 %v572, %v2050
        %v2063 = vmul.f32 %v577, %v2050
        %v2064 = vmul.f32 %v582, %v2050
        %v2065 = vmul.f32 %v587, %v2050
        %v2066 = vmul.f32 %v592, %v2050
        %v2067 = vmul.f32 %v597, %v2050
        %v2068 = vmul.f32 %v602, %v2050
        %v2069 = vmul.f32 %v607, %v2050
        %v2070 = vmul.f32 %v612, %v2050
        %v2071 = vmul.f32 %v617, %v2050
        %v2072 = vmul.f32 %v622, %v2050
        %v2073 = vmul.f32 %v627, %v2050
        %v2074 = vmul.f32 %v632, %v2050
        %v2075 = vmul.f32 %v637, %v2050
        %s2076 = scalar_lea.vmem [#allocation2], 1600
        %v2077 = vld [vmem:[%s2076] sm:$0xff]
        %v2078 = vld [vmem:[%s2076 + $0x8] sm:$0xff]
        %v2079 = vld [vmem:[%s2076 + $0x10] sm:$0xff]
        %v2080 = vld [vmem:[%s2076 + $0x18] sm:$0xff]
        %v2081 = vld [vmem:[%s2076 + $0x20] sm:$0xff]
        %v2082 = vld [vmem:[%s2076 + $0x28] sm:$0xff]
        %v2083 = vld [vmem:[%s2076 + $0x30] sm:$0xff]
        %v2084 = vld [vmem:[%s2076 + $0x38] sm:$0xff]
        %v2085 = vld [vmem:[%s2076 + $0x40] sm:$0xff]
        %v2086 = vld [vmem:[%s2076 + $0x48] sm:$0xff]
        %v2087 = vld [vmem:[%s2076 + $0x50] sm:$0xff]
        %v2088 = vld [vmem:[%s2076 + $0x58] sm:$0xff]
        %v2089 = vld [vmem:[%s2076 + $0x60] sm:$0xff]
        %v2090 = vld [vmem:[%s2076 + $0x68] sm:$0xff]
        %v2091 = vld [vmem:[%s2076 + $0x70] sm:$0xff]
        %v2092 = vld [vmem:[%s2076 + $0x78] sm:$0xff]
        %v2093 = vld [vmem:[%s2076 + $0x80] sm:$0xff]
        %v2094 = vld [vmem:[%s2076 + $0x88] sm:$0xff]
        %v2095 = vld [vmem:[%s2076 + $0x90] sm:$0xff]
        %v2096 = vld [vmem:[%s2076 + $0x98] sm:$0xff]
        %v2097 = vld [vmem:[%s2076 + $0xa0] sm:$0xff]
        %v2098 = vld [vmem:[%s2076 + $0xa8] sm:$0xff]
        %v2099 = vld [vmem:[%s2076 + $0xb0] sm:$0xff]
        %v2100 = vld [vmem:[%s2076 + $0xb8] sm:$0xff]
        %v2101 = vld [vmem:[%s2076 + $0xc0] sm:$0xff]
        %v2102 = vld [vmem:[%s2076 + $0xc8] sm:$0xff]
        %v2103 = vld [vmem:[%s2076 + $0xd0] sm:$0xff]
        %v2104 = vld [vmem:[%s2076 + $0xd8] sm:$0xff]
        %v2105 = vld [vmem:[%s2076 + $0xe0] sm:$0xff]
        %v2106 = vld [vmem:[%s2076 + $0xe8] sm:$0xff]
        %v2107 = vld [vmem:[%s2076 + $0xf0] sm:$0xff]
        %v2108 = vld [vmem:[%s2076 + $0xf8] sm:$0xff]
        %v2109 = vld [vmem:[%s2076 + $0x100] sm:$0xff]
        %v2110 = vld [vmem:[%s2076 + $0x108] sm:$0xff]
        %v2111 = vld [vmem:[%s2076 + $0x110] sm:$0xff]
        %v2112 = vld [vmem:[%s2076 + $0x118] sm:$0xff]
        %v2113 = vld [vmem:[%s2076 + $0x120] sm:$0xff]
        %v2114 = vld [vmem:[%s2076 + $0x128] sm:$0xff]
        %v2115 = vld [vmem:[%s2076 + $0x130] sm:$0xff]
        %v2116 = vld [vmem:[%s2076 + $0x138] sm:$0xff]
        %v2117 = vld [vmem:[%s2076 + $0x140] sm:$0xff]
        %v2118 = vld [vmem:[%s2076 + $0x148] sm:$0xff]
        %v2119 = vld [vmem:[%s2076 + $0x150] sm:$0xff]
        %v2120 = vld [vmem:[%s2076 + $0x158] sm:$0xff]
        %v2121 = vld [vmem:[%s2076 + $0x160] sm:$0xff]
        %v2122 = vld [vmem:[%s2076 + $0x168] sm:$0xff]
        %v2123 = vld [vmem:[%s2076 + $0x170] sm:$0xff]
        %v2124 = vld [vmem:[%s2076 + $0x178] sm:$0xff]
        %v2125 = vld [vmem:[%s2076 + $0x180] sm:$0xf]
        %v2126 = vld [vmem:[%s2076 + $0x188] sm:$0xf]
        %v2128 = vsel %vm793, %v2078, 0
        %v2131 = vsel %vm793, %v2080, 0
        %v2134 = vsel %vm793, %v2082, 0
        %v2137 = vsel %vm793, %v2084, 0
        %v2140 = vsel %vm793, %v2086, 0
        %v2143 = vsel %vm793, %v2088, 0
        %v2146 = vsel %vm793, %v2090, 0
        %v2149 = vsel %vm793, %v2092, 0
        %v2152 = vsel %vm793, %v2094, 0
        %v2155 = vsel %vm793, %v2096, 0
        %v2158 = vsel %vm793, %v2098, 0
        %v2161 = vsel %vm793, %v2100, 0
        %v2164 = vsel %vm793, %v2102, 0
        %v2167 = vsel %vm793, %v2104, 0
        %v2170 = vsel %vm793, %v2106, 0
        %v2173 = vsel %vm793, %v2108, 0
        %v2176 = vsel %vm793, %v2110, 0
        %v2179 = vsel %vm793, %v2112, 0
        %v2182 = vsel %vm793, %v2114, 0
        %v2185 = vsel %vm793, %v2116, 0
        %v2188 = vsel %vm793, %v2118, 0
        %v2191 = vsel %vm793, %v2120, 0
        %v2194 = vsel %vm793, %v2122, 0
        %v2197 = vsel %vm793, %v2124, 0
        %v2200 = vsel %vm793, %v2126, 0
        %v2203 = vsel %vm869, %v2075, 0
        %2205 = vmatpush.msra.mxu0 %v2066
        %2206 = vmatpush.msra.mxu0 %v2065
        %2207 = vmatpush.msra.mxu0 %v2064
        %2208 = vmatpush.msra.mxu0 %v2063
        %2209 = vmatpush.msra.mxu0 %v2062
        %2210 = vmatpush.msra.mxu0 %v2061
        %2211 = vmatpush.msra.mxu0 %v2060
        %2212 = vmatpush.msra.mxu0 %v2059
        %2213 = vmatpush.msra.mxu0 %v2058
        %2214 = vmatpush.msra.mxu0 %v2057
        %2215 = vmatpush.msra.mxu0 %v2056
        %2216 = vmatpush.msra.mxu0 %v2055
        %2217 = vmatpush.msra.mxu0 %v2054
        %2218 = vmatpush.msra.mxu0 %v2053
        %2219 = vmatpush.msra.mxu0 %v2052
        %2220 = vmatpush.msra.mxu0 %v2051
        %2221 = vmatmul.f32.gmra.mxu0 %v2077
        %v2222 = vpop.f32.mrf.mxu0
        %v2223 = vadd.f32 0.0, %v2222
        %2224 = vmatmul.f32.gmra.mxu0 %v2079
        %v2225 = vpop.f32.mrf.mxu0
        %v2226 = vadd.f32 0.0, %v2225
        %2227 = vmatmul.f32.gmra.mxu0 %v2081
        %v2228 = vpop.f32.mrf.mxu0
        %v2229 = vadd.f32 0.0, %v2228
        %2230 = vmatmul.f32.gmra.mxu0 %v2083
        %v2231 = vpop.f32.mrf.mxu0
        %v2232 = vadd.f32 0.0, %v2231
        %2233 = vmatmul.f32.gmra.mxu0 %v2085
        %v2234 = vpop.f32.mrf.mxu0
        %v2235 = vadd.f32 0.0, %v2234
        %2236 = vmatmul.f32.gmra.mxu0 %v2087
        %v2237 = vpop.f32.mrf.mxu0
        %v2238 = vadd.f32 0.0, %v2237
        %2239 = vmatmul.f32.gmra.mxu0 %v2089
        %v2240 = vpop.f32.mrf.mxu0
        %v2241 = vadd.f32 0.0, %v2240
        %2242 = vmatmul.f32.gmra.mxu0 %v2091
        %v2243 = vpop.f32.mrf.mxu0
        %v2244 = vadd.f32 0.0, %v2243
        %2245 = vmatmul.f32.gmra.mxu0 %v2093
        %v2246 = vpop.f32.mrf.mxu0
        %v2247 = vadd.f32 0.0, %v2246
        %2248 = vmatmul.f32.gmra.mxu0 %v2095
        %v2249 = vpop.f32.mrf.mxu0
        %v2250 = vadd.f32 0.0, %v2249
        %2251 = vmatmul.f32.gmra.mxu0 %v2097
        %v2252 = vpop.f32.mrf.mxu0
        %v2253 = vadd.f32 0.0, %v2252
        %2254 = vmatmul.f32.gmra.mxu0 %v2099
        %v2255 = vpop.f32.mrf.mxu0
        %v2256 = vadd.f32 0.0, %v2255
        %2257 = vmatmul.f32.gmra.mxu0 %v2101
        %v2258 = vpop.f32.mrf.mxu0
        %v2259 = vadd.f32 0.0, %v2258
        %2260 = vmatmul.f32.gmra.mxu0 %v2103
        %v2261 = vpop.f32.mrf.mxu0
        %v2262 = vadd.f32 0.0, %v2261
        %2263 = vmatmul.f32.gmra.mxu0 %v2105
        %v2264 = vpop.f32.mrf.mxu0
        %v2265 = vadd.f32 0.0, %v2264
        %2266 = vmatmul.f32.gmra.mxu0 %v2107
        %v2267 = vpop.f32.mrf.mxu0
        %v2268 = vadd.f32 0.0, %v2267
        %2269 = vmatmul.f32.gmra.mxu0 %v2109
        %v2270 = vpop.f32.mrf.mxu0
        %v2271 = vadd.f32 0.0, %v2270
        %2272 = vmatmul.f32.gmra.mxu0 %v2111
        %v2273 = vpop.f32.mrf.mxu0
        %v2274 = vadd.f32 0.0, %v2273
        %2275 = vmatmul.f32.gmra.mxu0 %v2113
        %v2276 = vpop.f32.mrf.mxu0
        %v2277 = vadd.f32 0.0, %v2276
        %2278 = vmatmul.f32.gmra.mxu0 %v2115
        %v2279 = vpop.f32.mrf.mxu0
        %v2280 = vadd.f32 0.0, %v2279
        %2281 = vmatmul.f32.gmra.mxu0 %v2117
        %v2282 = vpop.f32.mrf.mxu0
        %v2283 = vadd.f32 0.0, %v2282
        %2284 = vmatmul.f32.gmra.mxu0 %v2119
        %v2285 = vpop.f32.mrf.mxu0
        %v2286 = vadd.f32 0.0, %v2285
        %2287 = vmatmul.f32.gmra.mxu0 %v2121
        %v2288 = vpop.f32.mrf.mxu0
        %v2289 = vadd.f32 0.0, %v2288
        %2290 = vmatmul.f32.gmra.mxu0 %v2123
        %v2291 = vpop.f32.mrf.mxu0
        %v2292 = vadd.f32 0.0, %v2291
        %2293 = vmatmul.f32.gmra.mxu0 %v2125
        %v2294 = vpop.f32.mrf.mxu0
        %v2295 = vadd.f32 0.0, %v2294
        %2296 = vdwg.mxu0
        %2297 = vmatpush.msra.mxu0 0.0
        %2298 = vmatpush.msra.mxu0 0.0
        %2299 = vmatpush.msra.mxu0 0.0
        %2300 = vmatpush.msra.mxu0 0.0
        %2301 = vmatpush.msra.mxu0 0.0
        %2302 = vmatpush.msra.mxu0 0.0
        %2303 = vmatpush.msra.mxu0 0.0
        %2304 = vmatpush.msra.mxu0 %v2203
        %2305 = vmatpush.msra.mxu0 %v2074
        %2306 = vmatpush.msra.mxu0 %v2073
        %2307 = vmatpush.msra.mxu0 %v2072
        %2308 = vmatpush.msra.mxu0 %v2071
        %2309 = vmatpush.msra.mxu0 %v2070
        %2310 = vmatpush.msra.mxu0 %v2069
        %2311 = vmatpush.msra.mxu0 %v2068
        %2312 = vmatpush.msra.mxu0 %v2067
        %2313 = vmatmul.f32.gmra.mxu0 %v2128
        %v2314 = vpop.f32.mrf.mxu0
        %v2315 = vadd.f32 %v2223, %v2314
        %2316 = vmatmul.f32.gmra.mxu0 %v2131
        %v2317 = vpop.f32.mrf.mxu0
        %v2318 = vadd.f32 %v2226, %v2317
        %2319 = vmatmul.f32.gmra.mxu0 %v2134
        %v2320 = vpop.f32.mrf.mxu0
        %v2321 = vadd.f32 %v2229, %v2320
        %2322 = vmatmul.f32.gmra.mxu0 %v2137
        %v2323 = vpop.f32.mrf.mxu0
        %v2324 = vadd.f32 %v2232, %v2323
        %2325 = vmatmul.f32.gmra.mxu0 %v2140
        %v2326 = vpop.f32.mrf.mxu0
        %v2327 = vadd.f32 %v2235, %v2326
        %2328 = vmatmul.f32.gmra.mxu0 %v2143
        %v2329 = vpop.f32.mrf.mxu0
        %v2330 = vadd.f32 %v2238, %v2329
        %2331 = vmatmul.f32.gmra.mxu0 %v2146
        %v2332 = vpop.f32.mrf.mxu0
        %v2333 = vadd.f32 %v2241, %v2332
        %2334 = vmatmul.f32.gmra.mxu0 %v2149
        %v2335 = vpop.f32.mrf.mxu0
        %v2336 = vadd.f32 %v2244, %v2335
        %2337 = vmatmul.f32.gmra.mxu0 %v2152
        %v2338 = vpop.f32.mrf.mxu0
        %v2339 = vadd.f32 %v2247, %v2338
        %2340 = vmatmul.f32.gmra.mxu0 %v2155
        %v2341 = vpop.f32.mrf.mxu0
        %v2342 = vadd.f32 %v2250, %v2341
        %2343 = vmatmul.f32.gmra.mxu0 %v2158
        %v2344 = vpop.f32.mrf.mxu0
        %v2345 = vadd.f32 %v2253, %v2344
        %2346 = vmatmul.f32.gmra.mxu0 %v2161
        %v2347 = vpop.f32.mrf.mxu0
        %v2348 = vadd.f32 %v2256, %v2347
        %2349 = vmatmul.f32.gmra.mxu0 %v2164
        %v2350 = vpop.f32.mrf.mxu0
        %v2351 = vadd.f32 %v2259, %v2350
        %2352 = vmatmul.f32.gmra.mxu0 %v2167
        %v2353 = vpop.f32.mrf.mxu0
        %v2354 = vadd.f32 %v2262, %v2353
        %2355 = vmatmul.f32.gmra.mxu0 %v2170
        %v2356 = vpop.f32.mrf.mxu0
        %v2357 = vadd.f32 %v2265, %v2356
        %2358 = vmatmul.f32.gmra.mxu0 %v2173
        %v2359 = vpop.f32.mrf.mxu0
        %v2360 = vadd.f32 %v2268, %v2359
        %2361 = vmatmul.f32.gmra.mxu0 %v2176
        %v2362 = vpop.f32.mrf.mxu0
        %v2363 = vadd.f32 %v2271, %v2362
        %2364 = vmatmul.f32.gmra.mxu0 %v2179
        %v2365 = vpop.f32.mrf.mxu0
        %v2366 = vadd.f32 %v2274, %v2365
        %2367 = vmatmul.f32.gmra.mxu0 %v2182
        %v2368 = vpop.f32.mrf.mxu0
        %v2369 = vadd.f32 %v2277, %v2368
        %2370 = vmatmul.f32.gmra.mxu0 %v2185
        %v2371 = vpop.f32.mrf.mxu0
        %v2372 = vadd.f32 %v2280, %v2371
        %2373 = vmatmul.f32.gmra.mxu0 %v2188
        %v2374 = vpop.f32.mrf.mxu0
        %v2375 = vadd.f32 %v2283, %v2374
        %2376 = vmatmul.f32.gmra.mxu0 %v2191
        %v2377 = vpop.f32.mrf.mxu0
        %v2378 = vadd.f32 %v2286, %v2377
        %2379 = vmatmul.f32.gmra.mxu0 %v2194
        %v2380 = vpop.f32.mrf.mxu0
        %v2381 = vadd.f32 %v2289, %v2380
        %2382 = vmatmul.f32.gmra.mxu0 %v2197
        %v2383 = vpop.f32.mrf.mxu0
        %v2384 = vadd.f32 %v2292, %v2383
        %2385 = vmatmul.f32.gmra.mxu0 %v2200
        %v2386 = vpop.f32.mrf.mxu0
        %v2387 = vadd.f32 %v2295, %v2386
        %2388 = vdwg.mxu0
        %v2389 = vadd.f32 %v2024, %v2315
        %v2390 = vadd.f32 %v2025, %v2318
        %v2391 = vadd.f32 %v2026, %v2321
        %v2392 = vadd.f32 %v2027, %v2324
        %v2393 = vadd.f32 %v2028, %v2327
        %v2394 = vadd.f32 %v2029, %v2330
        %v2395 = vadd.f32 %v2030, %v2333
        %v2396 = vadd.f32 %v2031, %v2336
        %v2397 = vadd.f32 %v2032, %v2339
        %v2398 = vadd.f32 %v2033, %v2342
        %v2399 = vadd.f32 %v2034, %v2345
        %v2400 = vadd.f32 %v2035, %v2348
        %v2401 = vadd.f32 %v2036, %v2351
        %v2402 = vadd.f32 %v2037, %v2354
        %v2403 = vadd.f32 %v2038, %v2357
        %v2404 = vadd.f32 %v2039, %v2360
        %v2405 = vadd.f32 %v2040, %v2363
        %v2406 = vadd.f32 %v2041, %v2366
        %v2407 = vadd.f32 %v2042, %v2369
        %v2408 = vadd.f32 %v2043, %v2372
        %v2409 = vadd.f32 %v2044, %v2375
        %v2410 = vadd.f32 %v2045, %v2378
        %v2411 = vadd.f32 %v2046, %v2381
        %v2412 = vadd.f32 %v2047, %v2384
        %v2413 = vadd.f32 %v2048, %v2387
        %v2414 = vld [vmem:[#allocation6 + $0x5] sm:$0x1]
        %v2415 = vperm.slane %v2414, 0
        %v2416 = vmul.f32 %v517, %v2415
        %v2417 = vmul.f32 %v522, %v2415
        %v2418 = vmul.f32 %v527, %v2415
        %v2419 = vmul.f32 %v532, %v2415
        %v2420 = vmul.f32 %v537, %v2415
        %v2421 = vmul.f32 %v542, %v2415
        %v2422 = vmul.f32 %v547, %v2415
        %v2423 = vmul.f32 %v552, %v2415
        %v2424 = vmul.f32 %v557, %v2415
        %v2425 = vmul.f32 %v562, %v2415
        %v2426 = vmul.f32 %v567, %v2415
        %v2427 = vmul.f32 %v572, %v2415
        %v2428 = vmul.f32 %v577, %v2415
        %v2429 = vmul.f32 %v582, %v2415
        %v2430 = vmul.f32 %v587, %v2415
        %v2431 = vmul.f32 %v592, %v2415
        %v2432 = vmul.f32 %v597, %v2415
        %v2433 = vmul.f32 %v602, %v2415
        %v2434 = vmul.f32 %v607, %v2415
        %v2435 = vmul.f32 %v612, %v2415
        %v2436 = vmul.f32 %v617, %v2415
        %v2437 = vmul.f32 %v622, %v2415
        %v2438 = vmul.f32 %v627, %v2415
        %v2439 = vmul.f32 %v632, %v2415
        %v2440 = vmul.f32 %v637, %v2415
        %s2441 = scalar_lea.vmem [#allocation2], 2000
        %v2442 = vld [vmem:[%s2441] sm:$0xff]
        %v2443 = vld [vmem:[%s2441 + $0x8] sm:$0xff]
        %v2444 = vld [vmem:[%s2441 + $0x10] sm:$0xff]
        %v2445 = vld [vmem:[%s2441 + $0x18] sm:$0xff]
        %v2446 = vld [vmem:[%s2441 + $0x20] sm:$0xff]
        %v2447 = vld [vmem:[%s2441 + $0x28] sm:$0xff]
        %v2448 = vld [vmem:[%s2441 + $0x30] sm:$0xff]
        %v2449 = vld [vmem:[%s2441 + $0x38] sm:$0xff]
        %v2450 = vld [vmem:[%s2441 + $0x40] sm:$0xff]
        %v2451 = vld [vmem:[%s2441 + $0x48] sm:$0xff]
        %v2452 = vld [vmem:[%s2441 + $0x50] sm:$0xff]
        %v2453 = vld [vmem:[%s2441 + $0x58] sm:$0xff]
        %v2454 = vld [vmem:[%s2441 + $0x60] sm:$0xff]
        %v2455 = vld [vmem:[%s2441 + $0x68] sm:$0xff]
        %v2456 = vld [vmem:[%s2441 + $0x70] sm:$0xff]
        %v2457 = vld [vmem:[%s2441 + $0x78] sm:$0xff]
        %v2458 = vld [vmem:[%s2441 + $0x80] sm:$0xff]
        %v2459 = vld [vmem:[%s2441 + $0x88] sm:$0xff]
        %v2460 = vld [vmem:[%s2441 + $0x90] sm:$0xff]
        %v2461 = vld [vmem:[%s2441 + $0x98] sm:$0xff]
        %v2462 = vld [vmem:[%s2441 + $0xa0] sm:$0xff]
        %v2463 = vld [vmem:[%s2441 + $0xa8] sm:$0xff]
        %v2464 = vld [vmem:[%s2441 + $0xb0] sm:$0xff]
        %v2465 = vld [vmem:[%s2441 + $0xb8] sm:$0xff]
        %v2466 = vld [vmem:[%s2441 + $0xc0] sm:$0xff]
        %v2467 = vld [vmem:[%s2441 + $0xc8] sm:$0xff]
        %v2468 = vld [vmem:[%s2441 + $0xd0] sm:$0xff]
        %v2469 = vld [vmem:[%s2441 + $0xd8] sm:$0xff]
        %v2470 = vld [vmem:[%s2441 + $0xe0] sm:$0xff]
        %v2471 = vld [vmem:[%s2441 + $0xe8] sm:$0xff]
        %v2472 = vld [vmem:[%s2441 + $0xf0] sm:$0xff]
        %v2473 = vld [vmem:[%s2441 + $0xf8] sm:$0xff]
        %v2474 = vld [vmem:[%s2441 + $0x100] sm:$0xff]
        %v2475 = vld [vmem:[%s2441 + $0x108] sm:$0xff]
        %v2476 = vld [vmem:[%s2441 + $0x110] sm:$0xff]
        %v2477 = vld [vmem:[%s2441 + $0x118] sm:$0xff]
        %v2478 = vld [vmem:[%s2441 + $0x120] sm:$0xff]
        %v2479 = vld [vmem:[%s2441 + $0x128] sm:$0xff]
        %v2480 = vld [vmem:[%s2441 + $0x130] sm:$0xff]
        %v2481 = vld [vmem:[%s2441 + $0x138] sm:$0xff]
        %v2482 = vld [vmem:[%s2441 + $0x140] sm:$0xff]
        %v2483 = vld [vmem:[%s2441 + $0x148] sm:$0xff]
        %v2484 = vld [vmem:[%s2441 + $0x150] sm:$0xff]
        %v2485 = vld [vmem:[%s2441 + $0x158] sm:$0xff]
        %v2486 = vld [vmem:[%s2441 + $0x160] sm:$0xff]
        %v2487 = vld [vmem:[%s2441 + $0x168] sm:$0xff]
        %v2488 = vld [vmem:[%s2441 + $0x170] sm:$0xff]
        %v2489 = vld [vmem:[%s2441 + $0x178] sm:$0xff]
        %v2490 = vld [vmem:[%s2441 + $0x180] sm:$0xf]
        %v2491 = vld [vmem:[%s2441 + $0x188] sm:$0xf]
        %v2493 = vsel %vm793, %v2443, 0
        %v2496 = vsel %vm793, %v2445, 0
        %v2499 = vsel %vm793, %v2447, 0
        %v2502 = vsel %vm793, %v2449, 0
        %v2505 = vsel %vm793, %v2451, 0
        %v2508 = vsel %vm793, %v2453, 0
        %v2511 = vsel %vm793, %v2455, 0
        %v2514 = vsel %vm793, %v2457, 0
        %v2517 = vsel %vm793, %v2459, 0
        %v2520 = vsel %vm793, %v2461, 0
        %v2523 = vsel %vm793, %v2463, 0
        %v2526 = vsel %vm793, %v2465, 0
        %v2529 = vsel %vm793, %v2467, 0
        %v2532 = vsel %vm793, %v2469, 0
        %v2535 = vsel %vm793, %v2471, 0
        %v2538 = vsel %vm793, %v2473, 0
        %v2541 = vsel %vm793, %v2475, 0
        %v2544 = vsel %vm793, %v2477, 0
        %v2547 = vsel %vm793, %v2479, 0
        %v2550 = vsel %vm793, %v2481, 0
        %v2553 = vsel %vm793, %v2483, 0
        %v2556 = vsel %vm793, %v2485, 0
        %v2559 = vsel %vm793, %v2487, 0
        %v2562 = vsel %vm793, %v2489, 0
        %v2565 = vsel %vm793, %v2491, 0
        %v2568 = vsel %vm869, %v2440, 0
        %2570 = vmatpush.msra.mxu0 %v2431
        %2571 = vmatpush.msra.mxu0 %v2430
        %2572 = vmatpush.msra.mxu0 %v2429
        %2573 = vmatpush.msra.mxu0 %v2428
        %2574 = vmatpush.msra.mxu0 %v2427
        %2575 = vmatpush.msra.mxu0 %v2426
        %2576 = vmatpush.msra.mxu0 %v2425
        %2577 = vmatpush.msra.mxu0 %v2424
        %2578 = vmatpush.msra.mxu0 %v2423
        %2579 = vmatpush.msra.mxu0 %v2422
        %2580 = vmatpush.msra.mxu0 %v2421
        %2581 = vmatpush.msra.mxu0 %v2420
        %2582 = vmatpush.msra.mxu0 %v2419
        %2583 = vmatpush.msra.mxu0 %v2418
        %2584 = vmatpush.msra.mxu0 %v2417
        %2585 = vmatpush.msra.mxu0 %v2416
        %2586 = vmatmul.f32.gmra.mxu0 %v2442
        %v2587 = vpop.f32.mrf.mxu0
        %v2588 = vadd.f32 0.0, %v2587
        %2589 = vmatmul.f32.gmra.mxu0 %v2444
        %v2590 = vpop.f32.mrf.mxu0
        %v2591 = vadd.f32 0.0, %v2590
        %2592 = vmatmul.f32.gmra.mxu0 %v2446
        %v2593 = vpop.f32.mrf.mxu0
        %v2594 = vadd.f32 0.0, %v2593
        %2595 = vmatmul.f32.gmra.mxu0 %v2448
        %v2596 = vpop.f32.mrf.mxu0
        %v2597 = vadd.f32 0.0, %v2596
        %2598 = vmatmul.f32.gmra.mxu0 %v2450
        %v2599 = vpop.f32.mrf.mxu0
        %v2600 = vadd.f32 0.0, %v2599
        %2601 = vmatmul.f32.gmra.mxu0 %v2452
        %v2602 = vpop.f32.mrf.mxu0
        %v2603 = vadd.f32 0.0, %v2602
        %2604 = vmatmul.f32.gmra.mxu0 %v2454
        %v2605 = vpop.f32.mrf.mxu0
        %v2606 = vadd.f32 0.0, %v2605
        %2607 = vmatmul.f32.gmra.mxu0 %v2456
        %v2608 = vpop.f32.mrf.mxu0
        %v2609 = vadd.f32 0.0, %v2608
        %2610 = vmatmul.f32.gmra.mxu0 %v2458
        %v2611 = vpop.f32.mrf.mxu0
        %v2612 = vadd.f32 0.0, %v2611
        %2613 = vmatmul.f32.gmra.mxu0 %v2460
        %v2614 = vpop.f32.mrf.mxu0
        %v2615 = vadd.f32 0.0, %v2614
        %2616 = vmatmul.f32.gmra.mxu0 %v2462
        %v2617 = vpop.f32.mrf.mxu0
        %v2618 = vadd.f32 0.0, %v2617
        %2619 = vmatmul.f32.gmra.mxu0 %v2464
        %v2620 = vpop.f32.mrf.mxu0
        %v2621 = vadd.f32 0.0, %v2620
        %2622 = vmatmul.f32.gmra.mxu0 %v2466
        %v2623 = vpop.f32.mrf.mxu0
        %v2624 = vadd.f32 0.0, %v2623
        %2625 = vmatmul.f32.gmra.mxu0 %v2468
        %v2626 = vpop.f32.mrf.mxu0
        %v2627 = vadd.f32 0.0, %v2626
        %2628 = vmatmul.f32.gmra.mxu0 %v2470
        %v2629 = vpop.f32.mrf.mxu0
        %v2630 = vadd.f32 0.0, %v2629
        %2631 = vmatmul.f32.gmra.mxu0 %v2472
        %v2632 = vpop.f32.mrf.mxu0
        %v2633 = vadd.f32 0.0, %v2632
        %2634 = vmatmul.f32.gmra.mxu0 %v2474
        %v2635 = vpop.f32.mrf.mxu0
        %v2636 = vadd.f32 0.0, %v2635
        %2637 = vmatmul.f32.gmra.mxu0 %v2476
        %v2638 = vpop.f32.mrf.mxu0
        %v2639 = vadd.f32 0.0, %v2638
        %2640 = vmatmul.f32.gmra.mxu0 %v2478
        %v2641 = vpop.f32.mrf.mxu0
        %v2642 = vadd.f32 0.0, %v2641
        %2643 = vmatmul.f32.gmra.mxu0 %v2480
        %v2644 = vpop.f32.mrf.mxu0
        %v2645 = vadd.f32 0.0, %v2644
        %2646 = vmatmul.f32.gmra.mxu0 %v2482
        %v2647 = vpop.f32.mrf.mxu0
        %v2648 = vadd.f32 0.0, %v2647
        %2649 = vmatmul.f32.gmra.mxu0 %v2484
        %v2650 = vpop.f32.mrf.mxu0
        %v2651 = vadd.f32 0.0, %v2650
        %2652 = vmatmul.f32.gmra.mxu0 %v2486
        %v2653 = vpop.f32.mrf.mxu0
        %v2654 = vadd.f32 0.0, %v2653
        %2655 = vmatmul.f32.gmra.mxu0 %v2488
        %v2656 = vpop.f32.mrf.mxu0
        %v2657 = vadd.f32 0.0, %v2656
        %2658 = vmatmul.f32.gmra.mxu0 %v2490
        %v2659 = vpop.f32.mrf.mxu0
        %v2660 = vadd.f32 0.0, %v2659
        %2661 = vdwg.mxu0
        %2662 = vmatpush.msra.mxu0 0.0
        %2663 = vmatpush.msra.mxu0 0.0
        %2664 = vmatpush.msra.mxu0 0.0
        %2665 = vmatpush.msra.mxu0 0.0
        %2666 = vmatpush.msra.mxu0 0.0
        %2667 = vmatpush.msra.mxu0 0.0
        %2668 = vmatpush.msra.mxu0 0.0
        %2669 = vmatpush.msra.mxu0 %v2568
        %2670 = vmatpush.msra.mxu0 %v2439
        %2671 = vmatpush.msra.mxu0 %v2438
        %2672 = vmatpush.msra.mxu0 %v2437
        %2673 = vmatpush.msra.mxu0 %v2436
        %2674 = vmatpush.msra.mxu0 %v2435
        %2675 = vmatpush.msra.mxu0 %v2434
        %2676 = vmatpush.msra.mxu0 %v2433
        %2677 = vmatpush.msra.mxu0 %v2432
        %2678 = vmatmul.f32.gmra.mxu0 %v2493
        %v2679 = vpop.f32.mrf.mxu0
        %v2680 = vadd.f32 %v2588, %v2679
        %2681 = vmatmul.f32.gmra.mxu0 %v2496
        %v2682 = vpop.f32.mrf.mxu0
        %v2683 = vadd.f32 %v2591, %v2682
        %2684 = vmatmul.f32.gmra.mxu0 %v2499
        %v2685 = vpop.f32.mrf.mxu0
        %v2686 = vadd.f32 %v2594, %v2685
        %2687 = vmatmul.f32.gmra.mxu0 %v2502
        %v2688 = vpop.f32.mrf.mxu0
        %v2689 = vadd.f32 %v2597, %v2688
        %2690 = vmatmul.f32.gmra.mxu0 %v2505
        %v2691 = vpop.f32.mrf.mxu0
        %v2692 = vadd.f32 %v2600, %v2691
        %2693 = vmatmul.f32.gmra.mxu0 %v2508
        %v2694 = vpop.f32.mrf.mxu0
        %v2695 = vadd.f32 %v2603, %v2694
        %2696 = vmatmul.f32.gmra.mxu0 %v2511
        %v2697 = vpop.f32.mrf.mxu0
        %v2698 = vadd.f32 %v2606, %v2697
        %2699 = vmatmul.f32.gmra.mxu0 %v2514
        %v2700 = vpop.f32.mrf.mxu0
        %v2701 = vadd.f32 %v2609, %v2700
        %2702 = vmatmul.f32.gmra.mxu0 %v2517
        %v2703 = vpop.f32.mrf.mxu0
        %v2704 = vadd.f32 %v2612, %v2703
        %2705 = vmatmul.f32.gmra.mxu0 %v2520
        %v2706 = vpop.f32.mrf.mxu0
        %v2707 = vadd.f32 %v2615, %v2706
        %2708 = vmatmul.f32.gmra.mxu0 %v2523
        %v2709 = vpop.f32.mrf.mxu0
        %v2710 = vadd.f32 %v2618, %v2709
        %2711 = vmatmul.f32.gmra.mxu0 %v2526
        %v2712 = vpop.f32.mrf.mxu0
        %v2713 = vadd.f32 %v2621, %v2712
        %2714 = vmatmul.f32.gmra.mxu0 %v2529
        %v2715 = vpop.f32.mrf.mxu0
        %v2716 = vadd.f32 %v2624, %v2715
        %2717 = vmatmul.f32.gmra.mxu0 %v2532
        %v2718 = vpop.f32.mrf.mxu0
        %v2719 = vadd.f32 %v2627, %v2718
        %2720 = vmatmul.f32.gmra.mxu0 %v2535
        %v2721 = vpop.f32.mrf.mxu0
        %v2722 = vadd.f32 %v2630, %v2721
        %2723 = vmatmul.f32.gmra.mxu0 %v2538
        %v2724 = vpop.f32.mrf.mxu0
        %v2725 = vadd.f32 %v2633, %v2724
        %2726 = vmatmul.f32.gmra.mxu0 %v2541
        %v2727 = vpop.f32.mrf.mxu0
        %v2728 = vadd.f32 %v2636, %v2727
        %2729 = vmatmul.f32.gmra.mxu0 %v2544
        %v2730 = vpop.f32.mrf.mxu0
        %v2731 = vadd.f32 %v2639, %v2730
        %2732 = vmatmul.f32.gmra.mxu0 %v2547
        %v2733 = vpop.f32.mrf.mxu0
        %v2734 = vadd.f32 %v2642, %v2733
        %2735 = vmatmul.f32.gmra.mxu0 %v2550
        %v2736 = vpop.f32.mrf.mxu0
        %v2737 = vadd.f32 %v2645, %v2736
        %2738 = vmatmul.f32.gmra.mxu0 %v2553
        %v2739 = vpop.f32.mrf.mxu0
        %v2740 = vadd.f32 %v2648, %v2739
        %2741 = vmatmul.f32.gmra.mxu0 %v2556
        %v2742 = vpop.f32.mrf.mxu0
        %v2743 = vadd.f32 %v2651, %v2742
        %2744 = vmatmul.f32.gmra.mxu0 %v2559
        %v2745 = vpop.f32.mrf.mxu0
        %v2746 = vadd.f32 %v2654, %v2745
        %2747 = vmatmul.f32.gmra.mxu0 %v2562
        %v2748 = vpop.f32.mrf.mxu0
        %v2749 = vadd.f32 %v2657, %v2748
        %2750 = vmatmul.f32.gmra.mxu0 %v2565
        %v2751 = vpop.f32.mrf.mxu0
        %v2752 = vadd.f32 %v2660, %v2751
        %2753 = vdwg.mxu0
        %v2754 = vadd.f32 %v2389, %v2680
        %v2755 = vadd.f32 %v2390, %v2683
        %v2756 = vadd.f32 %v2391, %v2686
        %v2757 = vadd.f32 %v2392, %v2689
        %v2758 = vadd.f32 %v2393, %v2692
        %v2759 = vadd.f32 %v2394, %v2695
        %v2760 = vadd.f32 %v2395, %v2698
        %v2761 = vadd.f32 %v2396, %v2701
        %v2762 = vadd.f32 %v2397, %v2704
        %v2763 = vadd.f32 %v2398, %v2707
        %v2764 = vadd.f32 %v2399, %v2710
        %v2765 = vadd.f32 %v2400, %v2713
        %v2766 = vadd.f32 %v2401, %v2716
        %v2767 = vadd.f32 %v2402, %v2719
        %v2768 = vadd.f32 %v2403, %v2722
        %v2769 = vadd.f32 %v2404, %v2725
        %v2770 = vadd.f32 %v2405, %v2728
        %v2771 = vadd.f32 %v2406, %v2731
        %v2772 = vadd.f32 %v2407, %v2734
        %v2773 = vadd.f32 %v2408, %v2737
        %v2774 = vadd.f32 %v2409, %v2740
        %v2775 = vadd.f32 %v2410, %v2743
        %v2776 = vadd.f32 %v2411, %v2746
        %v2777 = vadd.f32 %v2412, %v2749
        %v2778 = vadd.f32 %v2413, %v2752
        %v2779 = vld [vmem:[#allocation6 + $0x6] sm:$0x1]
        %v2780 = vperm.slane %v2779, 0
        %v2781 = vmul.f32 %v517, %v2780
        %v2782 = vmul.f32 %v522, %v2780
        %v2783 = vmul.f32 %v527, %v2780
        %v2784 = vmul.f32 %v532, %v2780
        %v2785 = vmul.f32 %v537, %v2780
        %v2786 = vmul.f32 %v542, %v2780
        %v2787 = vmul.f32 %v547, %v2780
        %v2788 = vmul.f32 %v552, %v2780
        %v2789 = vmul.f32 %v557, %v2780
        %v2790 = vmul.f32 %v562, %v2780
        %v2791 = vmul.f32 %v567, %v2780
        %v2792 = vmul.f32 %v572, %v2780
        %v2793 = vmul.f32 %v577, %v2780
        %v2794 = vmul.f32 %v582, %v2780
        %v2795 = vmul.f32 %v587, %v2780
        %v2796 = vmul.f32 %v592, %v2780
        %v2797 = vmul.f32 %v597, %v2780
        %v2798 = vmul.f32 %v602, %v2780
        %v2799 = vmul.f32 %v607, %v2780
        %v2800 = vmul.f32 %v612, %v2780
        %v2801 = vmul.f32 %v617, %v2780
        %v2802 = vmul.f32 %v622, %v2780
        %v2803 = vmul.f32 %v627, %v2780
        %v2804 = vmul.f32 %v632, %v2780
        %v2805 = vmul.f32 %v637, %v2780
        %s2806 = scalar_lea.vmem [#allocation2], 2400
        %v2807 = vld [vmem:[%s2806] sm:$0xff]
        %v2808 = vld [vmem:[%s2806 + $0x8] sm:$0xff]
        %v2809 = vld [vmem:[%s2806 + $0x10] sm:$0xff]
        %v2810 = vld [vmem:[%s2806 + $0x18] sm:$0xff]
        %v2811 = vld [vmem:[%s2806 + $0x20] sm:$0xff]
        %v2812 = vld [vmem:[%s2806 + $0x28] sm:$0xff]
        %v2813 = vld [vmem:[%s2806 + $0x30] sm:$0xff]
        %v2814 = vld [vmem:[%s2806 + $0x38] sm:$0xff]
        %v2815 = vld [vmem:[%s2806 + $0x40] sm:$0xff]
        %v2816 = vld [vmem:[%s2806 + $0x48] sm:$0xff]
        %v2817 = vld [vmem:[%s2806 + $0x50] sm:$0xff]
        %v2818 = vld [vmem:[%s2806 + $0x58] sm:$0xff]
        %v2819 = vld [vmem:[%s2806 + $0x60] sm:$0xff]
        %v2820 = vld [vmem:[%s2806 + $0x68] sm:$0xff]
        %v2821 = vld [vmem:[%s2806 + $0x70] sm:$0xff]
        %v2822 = vld [vmem:[%s2806 + $0x78] sm:$0xff]
        %v2823 = vld [vmem:[%s2806 + $0x80] sm:$0xff]
        %v2824 = vld [vmem:[%s2806 + $0x88] sm:$0xff]
        %v2825 = vld [vmem:[%s2806 + $0x90] sm:$0xff]
        %v2826 = vld [vmem:[%s2806 + $0x98] sm:$0xff]
        %v2827 = vld [vmem:[%s2806 + $0xa0] sm:$0xff]
        %v2828 = vld [vmem:[%s2806 + $0xa8] sm:$0xff]
        %v2829 = vld [vmem:[%s2806 + $0xb0] sm:$0xff]
        %v2830 = vld [vmem:[%s2806 + $0xb8] sm:$0xff]
        %v2831 = vld [vmem:[%s2806 + $0xc0] sm:$0xff]
        %v2832 = vld [vmem:[%s2806 + $0xc8] sm:$0xff]
        %v2833 = vld [vmem:[%s2806 + $0xd0] sm:$0xff]
        %v2834 = vld [vmem:[%s2806 + $0xd8] sm:$0xff]
        %v2835 = vld [vmem:[%s2806 + $0xe0] sm:$0xff]
        %v2836 = vld [vmem:[%s2806 + $0xe8] sm:$0xff]
        %v2837 = vld [vmem:[%s2806 + $0xf0] sm:$0xff]
        %v2838 = vld [vmem:[%s2806 + $0xf8] sm:$0xff]
        %v2839 = vld [vmem:[%s2806 + $0x100] sm:$0xff]
        %v2840 = vld [vmem:[%s2806 + $0x108] sm:$0xff]
        %v2841 = vld [vmem:[%s2806 + $0x110] sm:$0xff]
        %v2842 = vld [vmem:[%s2806 + $0x118] sm:$0xff]
        %v2843 = vld [vmem:[%s2806 + $0x120] sm:$0xff]
        %v2844 = vld [vmem:[%s2806 + $0x128] sm:$0xff]
        %v2845 = vld [vmem:[%s2806 + $0x130] sm:$0xff]
        %v2846 = vld [vmem:[%s2806 + $0x138] sm:$0xff]
        %v2847 = vld [vmem:[%s2806 + $0x140] sm:$0xff]
        %v2848 = vld [vmem:[%s2806 + $0x148] sm:$0xff]
        %v2849 = vld [vmem:[%s2806 + $0x150] sm:$0xff]
        %v2850 = vld [vmem:[%s2806 + $0x158] sm:$0xff]
        %v2851 = vld [vmem:[%s2806 + $0x160] sm:$0xff]
        %v2852 = vld [vmem:[%s2806 + $0x168] sm:$0xff]
        %v2853 = vld [vmem:[%s2806 + $0x170] sm:$0xff]
        %v2854 = vld [vmem:[%s2806 + $0x178] sm:$0xff]
        %v2855 = vld [vmem:[%s2806 + $0x180] sm:$0xf]
        %v2856 = vld [vmem:[%s2806 + $0x188] sm:$0xf]
        %v2858 = vsel %vm793, %v2808, 0
        %v2861 = vsel %vm793, %v2810, 0
        %v2864 = vsel %vm793, %v2812, 0
        %v2867 = vsel %vm793, %v2814, 0
        %v2870 = vsel %vm793, %v2816, 0
        %v2873 = vsel %vm793, %v2818, 0
        %v2876 = vsel %vm793, %v2820, 0
        %v2879 = vsel %vm793, %v2822, 0
        %v2882 = vsel %vm793, %v2824, 0
        %v2885 = vsel %vm793, %v2826, 0
        %v2888 = vsel %vm793, %v2828, 0
        %v2891 = vsel %vm793, %v2830, 0
        %v2894 = vsel %vm793, %v2832, 0
        %v2897 = vsel %vm793, %v2834, 0
        %v2900 = vsel %vm793, %v2836, 0
        %v2903 = vsel %vm793, %v2838, 0
        %v2906 = vsel %vm793, %v2840, 0
        %v2909 = vsel %vm793, %v2842, 0
        %v2912 = vsel %vm793, %v2844, 0
        %v2915 = vsel %vm793, %v2846, 0
        %v2918 = vsel %vm793, %v2848, 0
        %v2921 = vsel %vm793, %v2850, 0
        %v2924 = vsel %vm793, %v2852, 0
        %v2927 = vsel %vm793, %v2854, 0
        %v2930 = vsel %vm793, %v2856, 0
        %v2933 = vsel %vm869, %v2805, 0
        %2935 = vmatpush.msra.mxu0 %v2796
        %2936 = vmatpush.msra.mxu0 %v2795
        %2937 = vmatpush.msra.mxu0 %v2794
        %2938 = vmatpush.msra.mxu0 %v2793
        %2939 = vmatpush.msra.mxu0 %v2792
        %2940 = vmatpush.msra.mxu0 %v2791
        %2941 = vmatpush.msra.mxu0 %v2790
        %2942 = vmatpush.msra.mxu0 %v2789
        %2943 = vmatpush.msra.mxu0 %v2788
        %2944 = vmatpush.msra.mxu0 %v2787
        %2945 = vmatpush.msra.mxu0 %v2786
        %2946 = vmatpush.msra.mxu0 %v2785
        %2947 = vmatpush.msra.mxu0 %v2784
        %2948 = vmatpush.msra.mxu0 %v2783
        %2949 = vmatpush.msra.mxu0 %v2782
        %2950 = vmatpush.msra.mxu0 %v2781
        %2951 = vmatmul.f32.gmra.mxu0 %v2807
        %v2952 = vpop.f32.mrf.mxu0
        %v2953 = vadd.f32 0.0, %v2952
        %2954 = vmatmul.f32.gmra.mxu0 %v2809
        %v2955 = vpop.f32.mrf.mxu0
        %v2956 = vadd.f32 0.0, %v2955
        %2957 = vmatmul.f32.gmra.mxu0 %v2811
        %v2958 = vpop.f32.mrf.mxu0
        %v2959 = vadd.f32 0.0, %v2958
        %2960 = vmatmul.f32.gmra.mxu0 %v2813
        %v2961 = vpop.f32.mrf.mxu0
        %v2962 = vadd.f32 0.0, %v2961
        %2963 = vmatmul.f32.gmra.mxu0 %v2815
        %v2964 = vpop.f32.mrf.mxu0
        %v2965 = vadd.f32 0.0, %v2964
        %2966 = vmatmul.f32.gmra.mxu0 %v2817
        %v2967 = vpop.f32.mrf.mxu0
        %v2968 = vadd.f32 0.0, %v2967
        %2969 = vmatmul.f32.gmra.mxu0 %v2819
        %v2970 = vpop.f32.mrf.mxu0
        %v2971 = vadd.f32 0.0, %v2970
        %2972 = vmatmul.f32.gmra.mxu0 %v2821
        %v2973 = vpop.f32.mrf.mxu0
        %v2974 = vadd.f32 0.0, %v2973
        %2975 = vmatmul.f32.gmra.mxu0 %v2823
        %v2976 = vpop.f32.mrf.mxu0
        %v2977 = vadd.f32 0.0, %v2976
        %2978 = vmatmul.f32.gmra.mxu0 %v2825
        %v2979 = vpop.f32.mrf.mxu0
        %v2980 = vadd.f32 0.0, %v2979
        %2981 = vmatmul.f32.gmra.mxu0 %v2827
        %v2982 = vpop.f32.mrf.mxu0
        %v2983 = vadd.f32 0.0, %v2982
        %2984 = vmatmul.f32.gmra.mxu0 %v2829
        %v2985 = vpop.f32.mrf.mxu0
        %v2986 = vadd.f32 0.0, %v2985
        %2987 = vmatmul.f32.gmra.mxu0 %v2831
        %v2988 = vpop.f32.mrf.mxu0
        %v2989 = vadd.f32 0.0, %v2988
        %2990 = vmatmul.f32.gmra.mxu0 %v2833
        %v2991 = vpop.f32.mrf.mxu0
        %v2992 = vadd.f32 0.0, %v2991
        %2993 = vmatmul.f32.gmra.mxu0 %v2835
        %v2994 = vpop.f32.mrf.mxu0
        %v2995 = vadd.f32 0.0, %v2994
        %2996 = vmatmul.f32.gmra.mxu0 %v2837
        %v2997 = vpop.f32.mrf.mxu0
        %v2998 = vadd.f32 0.0, %v2997
        %2999 = vmatmul.f32.gmra.mxu0 %v2839
        %v3000 = vpop.f32.mrf.mxu0
        %v3001 = vadd.f32 0.0, %v3000
        %3002 = vmatmul.f32.gmra.mxu0 %v2841
        %v3003 = vpop.f32.mrf.mxu0
        %v3004 = vadd.f32 0.0, %v3003
        %3005 = vmatmul.f32.gmra.mxu0 %v2843
        %v3006 = vpop.f32.mrf.mxu0
        %v3007 = vadd.f32 0.0, %v3006
        %3008 = vmatmul.f32.gmra.mxu0 %v2845
        %v3009 = vpop.f32.mrf.mxu0
        %v3010 = vadd.f32 0.0, %v3009
        %3011 = vmatmul.f32.gmra.mxu0 %v2847
        %v3012 = vpop.f32.mrf.mxu0
        %v3013 = vadd.f32 0.0, %v3012
        %3014 = vmatmul.f32.gmra.mxu0 %v2849
        %v3015 = vpop.f32.mrf.mxu0
        %v3016 = vadd.f32 0.0, %v3015
        %3017 = vmatmul.f32.gmra.mxu0 %v2851
        %v3018 = vpop.f32.mrf.mxu0
        %v3019 = vadd.f32 0.0, %v3018
        %3020 = vmatmul.f32.gmra.mxu0 %v2853
        %v3021 = vpop.f32.mrf.mxu0
        %v3022 = vadd.f32 0.0, %v3021
        %3023 = vmatmul.f32.gmra.mxu0 %v2855
        %v3024 = vpop.f32.mrf.mxu0
        %v3025 = vadd.f32 0.0, %v3024
        %3026 = vdwg.mxu0
        %3027 = vmatpush.msra.mxu0 0.0
        %3028 = vmatpush.msra.mxu0 0.0
        %3029 = vmatpush.msra.mxu0 0.0
        %3030 = vmatpush.msra.mxu0 0.0
        %3031 = vmatpush.msra.mxu0 0.0
        %3032 = vmatpush.msra.mxu0 0.0
        %3033 = vmatpush.msra.mxu0 0.0
        %3034 = vmatpush.msra.mxu0 %v2933
        %3035 = vmatpush.msra.mxu0 %v2804
        %3036 = vmatpush.msra.mxu0 %v2803
        %3037 = vmatpush.msra.mxu0 %v2802
        %3038 = vmatpush.msra.mxu0 %v2801
        %3039 = vmatpush.msra.mxu0 %v2800
        %3040 = vmatpush.msra.mxu0 %v2799
        %3041 = vmatpush.msra.mxu0 %v2798
        %3042 = vmatpush.msra.mxu0 %v2797
        %3043 = vmatmul.f32.gmra.mxu0 %v2858
        %v3044 = vpop.f32.mrf.mxu0
        %v3045 = vadd.f32 %v2953, %v3044
        %3046 = vmatmul.f32.gmra.mxu0 %v2861
        %v3047 = vpop.f32.mrf.mxu0
        %v3048 = vadd.f32 %v2956, %v3047
        %3049 = vmatmul.f32.gmra.mxu0 %v2864
        %v3050 = vpop.f32.mrf.mxu0
        %v3051 = vadd.f32 %v2959, %v3050
        %3052 = vmatmul.f32.gmra.mxu0 %v2867
        %v3053 = vpop.f32.mrf.mxu0
        %v3054 = vadd.f32 %v2962, %v3053
        %3055 = vmatmul.f32.gmra.mxu0 %v2870
        %v3056 = vpop.f32.mrf.mxu0
        %v3057 = vadd.f32 %v2965, %v3056
        %3058 = vmatmul.f32.gmra.mxu0 %v2873
        %v3059 = vpop.f32.mrf.mxu0
        %v3060 = vadd.f32 %v2968, %v3059
        %3061 = vmatmul.f32.gmra.mxu0 %v2876
        %v3062 = vpop.f32.mrf.mxu0
        %v3063 = vadd.f32 %v2971, %v3062
        %3064 = vmatmul.f32.gmra.mxu0 %v2879
        %v3065 = vpop.f32.mrf.mxu0
        %v3066 = vadd.f32 %v2974, %v3065
        %3067 = vmatmul.f32.gmra.mxu0 %v2882
        %v3068 = vpop.f32.mrf.mxu0
        %v3069 = vadd.f32 %v2977, %v3068
        %3070 = vmatmul.f32.gmra.mxu0 %v2885
        %v3071 = vpop.f32.mrf.mxu0
        %v3072 = vadd.f32 %v2980, %v3071
        %3073 = vmatmul.f32.gmra.mxu0 %v2888
        %v3074 = vpop.f32.mrf.mxu0
        %v3075 = vadd.f32 %v2983, %v3074
        %3076 = vmatmul.f32.gmra.mxu0 %v2891
        %v3077 = vpop.f32.mrf.mxu0
        %v3078 = vadd.f32 %v2986, %v3077
        %3079 = vmatmul.f32.gmra.mxu0 %v2894
        %v3080 = vpop.f32.mrf.mxu0
        %v3081 = vadd.f32 %v2989, %v3080
        %3082 = vmatmul.f32.gmra.mxu0 %v2897
        %v3083 = vpop.f32.mrf.mxu0
        %v3084 = vadd.f32 %v2992, %v3083
        %3085 = vmatmul.f32.gmra.mxu0 %v2900
        %v3086 = vpop.f32.mrf.mxu0
        %v3087 = vadd.f32 %v2995, %v3086
        %3088 = vmatmul.f32.gmra.mxu0 %v2903
        %v3089 = vpop.f32.mrf.mxu0
        %v3090 = vadd.f32 %v2998, %v3089
        %3091 = vmatmul.f32.gmra.mxu0 %v2906
        %v3092 = vpop.f32.mrf.mxu0
        %v3093 = vadd.f32 %v3001, %v3092
        %3094 = vmatmul.f32.gmra.mxu0 %v2909
        %v3095 = vpop.f32.mrf.mxu0
        %v3096 = vadd.f32 %v3004, %v3095
        %3097 = vmatmul.f32.gmra.mxu0 %v2912
        %v3098 = vpop.f32.mrf.mxu0
        %v3099 = vadd.f32 %v3007, %v3098
        %3100 = vmatmul.f32.gmra.mxu0 %v2915
        %v3101 = vpop.f32.mrf.mxu0
        %v3102 = vadd.f32 %v3010, %v3101
        %3103 = vmatmul.f32.gmra.mxu0 %v2918
        %v3104 = vpop.f32.mrf.mxu0
        %v3105 = vadd.f32 %v3013, %v3104
        %3106 = vmatmul.f32.gmra.mxu0 %v2921
        %v3107 = vpop.f32.mrf.mxu0
        %v3108 = vadd.f32 %v3016, %v3107
        %3109 = vmatmul.f32.gmra.mxu0 %v2924
        %v3110 = vpop.f32.mrf.mxu0
        %v3111 = vadd.f32 %v3019, %v3110
        %3112 = vmatmul.f32.gmra.mxu0 %v2927
        %v3113 = vpop.f32.mrf.mxu0
        %v3114 = vadd.f32 %v3022, %v3113
        %3115 = vmatmul.f32.gmra.mxu0 %v2930
        %v3116 = vpop.f32.mrf.mxu0
        %v3117 = vadd.f32 %v3025, %v3116
        %3118 = vdwg.mxu0
        %v3119 = vadd.f32 %v2754, %v3045
        %v3120 = vadd.f32 %v2755, %v3048
        %v3121 = vadd.f32 %v2756, %v3051
        %v3122 = vadd.f32 %v2757, %v3054
        %v3123 = vadd.f32 %v2758, %v3057
        %v3124 = vadd.f32 %v2759, %v3060
        %v3125 = vadd.f32 %v2760, %v3063
        %v3126 = vadd.f32 %v2761, %v3066
        %v3127 = vadd.f32 %v2762, %v3069
        %v3128 = vadd.f32 %v2763, %v3072
        %v3129 = vadd.f32 %v2764, %v3075
        %v3130 = vadd.f32 %v2765, %v3078
        %v3131 = vadd.f32 %v2766, %v3081
        %v3132 = vadd.f32 %v2767, %v3084
        %v3133 = vadd.f32 %v2768, %v3087
        %v3134 = vadd.f32 %v2769, %v3090
        %v3135 = vadd.f32 %v2770, %v3093
        %v3136 = vadd.f32 %v2771, %v3096
        %v3137 = vadd.f32 %v2772, %v3099
        %v3138 = vadd.f32 %v2773, %v3102
        %v3139 = vadd.f32 %v2774, %v3105
        %v3140 = vadd.f32 %v2775, %v3108
        %v3141 = vadd.f32 %v2776, %v3111
        %v3142 = vadd.f32 %v2777, %v3114
        %v3143 = vadd.f32 %v2778, %v3117
        %v3144 = vld [vmem:[#allocation6 + $0x7] sm:$0x1]
        %v3145 = vperm.slane %v3144, 0
        %v3146 = vmul.f32 %v517, %v3145
        %v3147 = vmul.f32 %v522, %v3145
        %v3148 = vmul.f32 %v527, %v3145
        %v3149 = vmul.f32 %v532, %v3145
        %v3150 = vmul.f32 %v537, %v3145
        %v3151 = vmul.f32 %v542, %v3145
        %v3152 = vmul.f32 %v547, %v3145
        %v3153 = vmul.f32 %v552, %v3145
        %v3154 = vmul.f32 %v557, %v3145
        %v3155 = vmul.f32 %v562, %v3145
        %v3156 = vmul.f32 %v567, %v3145
        %v3157 = vmul.f32 %v572, %v3145
        %v3158 = vmul.f32 %v577, %v3145
        %v3159 = vmul.f32 %v582, %v3145
        %v3160 = vmul.f32 %v587, %v3145
        %v3161 = vmul.f32 %v592, %v3145
        %v3162 = vmul.f32 %v597, %v3145
        %v3163 = vmul.f32 %v602, %v3145
        %v3164 = vmul.f32 %v607, %v3145
        %v3165 = vmul.f32 %v612, %v3145
        %v3166 = vmul.f32 %v617, %v3145
        %v3167 = vmul.f32 %v622, %v3145
        %v3168 = vmul.f32 %v627, %v3145
        %v3169 = vmul.f32 %v632, %v3145
        %v3170 = vmul.f32 %v637, %v3145
        %s3171 = scalar_lea.vmem [#allocation2], 2800
        %v3172 = vld [vmem:[%s3171] sm:$0xff]
        %v3173 = vld [vmem:[%s3171 + $0x8] sm:$0xff]
        %v3174 = vld [vmem:[%s3171 + $0x10] sm:$0xff]
        %v3175 = vld [vmem:[%s3171 + $0x18] sm:$0xff]
        %v3176 = vld [vmem:[%s3171 + $0x20] sm:$0xff]
        %v3177 = vld [vmem:[%s3171 + $0x28] sm:$0xff]
        %v3178 = vld [vmem:[%s3171 + $0x30] sm:$0xff]
        %v3179 = vld [vmem:[%s3171 + $0x38] sm:$0xff]
        %v3180 = vld [vmem:[%s3171 + $0x40] sm:$0xff]
        %v3181 = vld [vmem:[%s3171 + $0x48] sm:$0xff]
        %v3182 = vld [vmem:[%s3171 + $0x50] sm:$0xff]
        %v3183 = vld [vmem:[%s3171 + $0x58] sm:$0xff]
        %v3184 = vld [vmem:[%s3171 + $0x60] sm:$0xff]
        %v3185 = vld [vmem:[%s3171 + $0x68] sm:$0xff]
        %v3186 = vld [vmem:[%s3171 + $0x70] sm:$0xff]
        %v3187 = vld [vmem:[%s3171 + $0x78] sm:$0xff]
        %v3188 = vld [vmem:[%s3171 + $0x80] sm:$0xff]
        %v3189 = vld [vmem:[%s3171 + $0x88] sm:$0xff]
        %v3190 = vld [vmem:[%s3171 + $0x90] sm:$0xff]
        %v3191 = vld [vmem:[%s3171 + $0x98] sm:$0xff]
        %v3192 = vld [vmem:[%s3171 + $0xa0] sm:$0xff]
        %v3193 = vld [vmem:[%s3171 + $0xa8] sm:$0xff]
        %v3194 = vld [vmem:[%s3171 + $0xb0] sm:$0xff]
        %v3195 = vld [vmem:[%s3171 + $0xb8] sm:$0xff]
        %v3196 = vld [vmem:[%s3171 + $0xc0] sm:$0xff]
        %v3197 = vld [vmem:[%s3171 + $0xc8] sm:$0xff]
        %v3198 = vld [vmem:[%s3171 + $0xd0] sm:$0xff]
        %v3199 = vld [vmem:[%s3171 + $0xd8] sm:$0xff]
        %v3200 = vld [vmem:[%s3171 + $0xe0] sm:$0xff]
        %v3201 = vld [vmem:[%s3171 + $0xe8] sm:$0xff]
        %v3202 = vld [vmem:[%s3171 + $0xf0] sm:$0xff]
        %v3203 = vld [vmem:[%s3171 + $0xf8] sm:$0xff]
        %v3204 = vld [vmem:[%s3171 + $0x100] sm:$0xff]
        %v3205 = vld [vmem:[%s3171 + $0x108] sm:$0xff]
        %v3206 = vld [vmem:[%s3171 + $0x110] sm:$0xff]
        %v3207 = vld [vmem:[%s3171 + $0x118] sm:$0xff]
        %v3208 = vld [vmem:[%s3171 + $0x120] sm:$0xff]
        %v3209 = vld [vmem:[%s3171 + $0x128] sm:$0xff]
        %v3210 = vld [vmem:[%s3171 + $0x130] sm:$0xff]
        %v3211 = vld [vmem:[%s3171 + $0x138] sm:$0xff]
        %v3212 = vld [vmem:[%s3171 + $0x140] sm:$0xff]
        %v3213 = vld [vmem:[%s3171 + $0x148] sm:$0xff]
        %v3214 = vld [vmem:[%s3171 + $0x150] sm:$0xff]
        %v3215 = vld [vmem:[%s3171 + $0x158] sm:$0xff]
        %v3216 = vld [vmem:[%s3171 + $0x160] sm:$0xff]
        %v3217 = vld [vmem:[%s3171 + $0x168] sm:$0xff]
        %v3218 = vld [vmem:[%s3171 + $0x170] sm:$0xff]
        %v3219 = vld [vmem:[%s3171 + $0x178] sm:$0xff]
        %v3220 = vld [vmem:[%s3171 + $0x180] sm:$0xf]
        %v3221 = vld [vmem:[%s3171 + $0x188] sm:$0xf]
        %v3223 = vsel %vm793, %v3173, 0
        %v3226 = vsel %vm793, %v3175, 0
        %v3229 = vsel %vm793, %v3177, 0
        %v3232 = vsel %vm793, %v3179, 0
        %v3235 = vsel %vm793, %v3181, 0
        %v3238 = vsel %vm793, %v3183, 0
        %v3241 = vsel %vm793, %v3185, 0
        %v3244 = vsel %vm793, %v3187, 0
        %v3247 = vsel %vm793, %v3189, 0
        %v3250 = vsel %vm793, %v3191, 0
        %v3253 = vsel %vm793, %v3193, 0
        %v3256 = vsel %vm793, %v3195, 0
        %v3259 = vsel %vm793, %v3197, 0
        %v3262 = vsel %vm793, %v3199, 0
        %v3265 = vsel %vm793, %v3201, 0
        %v3268 = vsel %vm793, %v3203, 0
        %v3271 = vsel %vm793, %v3205, 0
        %v3274 = vsel %vm793, %v3207, 0
        %v3277 = vsel %vm793, %v3209, 0
        %v3280 = vsel %vm793, %v3211, 0
        %v3283 = vsel %vm793, %v3213, 0
        %v3286 = vsel %vm793, %v3215, 0
        %v3289 = vsel %vm793, %v3217, 0
        %v3292 = vsel %vm793, %v3219, 0
        %v3295 = vsel %vm793, %v3221, 0
        %v3298 = vsel %vm869, %v3170, 0
        %3300 = vmatpush.msra.mxu0 %v3161
        %3301 = vmatpush.msra.mxu0 %v3160
        %3302 = vmatpush.msra.mxu0 %v3159
        %3303 = vmatpush.msra.mxu0 %v3158
        %3304 = vmatpush.msra.mxu0 %v3157
        %3305 = vmatpush.msra.mxu0 %v3156
        %3306 = vmatpush.msra.mxu0 %v3155
        %3307 = vmatpush.msra.mxu0 %v3154
        %3308 = vmatpush.msra.mxu0 %v3153
        %3309 = vmatpush.msra.mxu0 %v3152
        %3310 = vmatpush.msra.mxu0 %v3151
        %3311 = vmatpush.msra.mxu0 %v3150
        %3312 = vmatpush.msra.mxu0 %v3149
        %3313 = vmatpush.msra.mxu0 %v3148
        %3314 = vmatpush.msra.mxu0 %v3147
        %3315 = vmatpush.msra.mxu0 %v3146
        %3316 = vmatmul.f32.gmra.mxu0 %v3172
        %v3317 = vpop.f32.mrf.mxu0
        %v3318 = vadd.f32 0.0, %v3317
        %3319 = vmatmul.f32.gmra.mxu0 %v3174
        %v3320 = vpop.f32.mrf.mxu0
        %v3321 = vadd.f32 0.0, %v3320
        %3322 = vmatmul.f32.gmra.mxu0 %v3176
        %v3323 = vpop.f32.mrf.mxu0
        %v3324 = vadd.f32 0.0, %v3323
        %3325 = vmatmul.f32.gmra.mxu0 %v3178
        %v3326 = vpop.f32.mrf.mxu0
        %v3327 = vadd.f32 0.0, %v3326
        %3328 = vmatmul.f32.gmra.mxu0 %v3180
        %v3329 = vpop.f32.mrf.mxu0
        %v3330 = vadd.f32 0.0, %v3329
        %3331 = vmatmul.f32.gmra.mxu0 %v3182
        %v3332 = vpop.f32.mrf.mxu0
        %v3333 = vadd.f32 0.0, %v3332
        %3334 = vmatmul.f32.gmra.mxu0 %v3184
        %v3335 = vpop.f32.mrf.mxu0
        %v3336 = vadd.f32 0.0, %v3335
        %3337 = vmatmul.f32.gmra.mxu0 %v3186
        %v3338 = vpop.f32.mrf.mxu0
        %v3339 = vadd.f32 0.0, %v3338
        %3340 = vmatmul.f32.gmra.mxu0 %v3188
        %v3341 = vpop.f32.mrf.mxu0
        %v3342 = vadd.f32 0.0, %v3341
        %3343 = vmatmul.f32.gmra.mxu0 %v3190
        %v3344 = vpop.f32.mrf.mxu0
        %v3345 = vadd.f32 0.0, %v3344
        %3346 = vmatmul.f32.gmra.mxu0 %v3192
        %v3347 = vpop.f32.mrf.mxu0
        %v3348 = vadd.f32 0.0, %v3347
        %3349 = vmatmul.f32.gmra.mxu0 %v3194
        %v3350 = vpop.f32.mrf.mxu0
        %v3351 = vadd.f32 0.0, %v3350
        %3352 = vmatmul.f32.gmra.mxu0 %v3196
        %v3353 = vpop.f32.mrf.mxu0
        %v3354 = vadd.f32 0.0, %v3353
        %3355 = vmatmul.f32.gmra.mxu0 %v3198
        %v3356 = vpop.f32.mrf.mxu0
        %v3357 = vadd.f32 0.0, %v3356
        %3358 = vmatmul.f32.gmra.mxu0 %v3200
        %v3359 = vpop.f32.mrf.mxu0
        %v3360 = vadd.f32 0.0, %v3359
        %3361 = vmatmul.f32.gmra.mxu0 %v3202
        %v3362 = vpop.f32.mrf.mxu0
        %v3363 = vadd.f32 0.0, %v3362
        %3364 = vmatmul.f32.gmra.mxu0 %v3204
        %v3365 = vpop.f32.mrf.mxu0
        %v3366 = vadd.f32 0.0, %v3365
        %3367 = vmatmul.f32.gmra.mxu0 %v3206
        %v3368 = vpop.f32.mrf.mxu0
        %v3369 = vadd.f32 0.0, %v3368
        %3370 = vmatmul.f32.gmra.mxu0 %v3208
        %v3371 = vpop.f32.mrf.mxu0
        %v3372 = vadd.f32 0.0, %v3371
        %3373 = vmatmul.f32.gmra.mxu0 %v3210
        %v3374 = vpop.f32.mrf.mxu0
        %v3375 = vadd.f32 0.0, %v3374
        %3376 = vmatmul.f32.gmra.mxu0 %v3212
        %v3377 = vpop.f32.mrf.mxu0
        %v3378 = vadd.f32 0.0, %v3377
        %3379 = vmatmul.f32.gmra.mxu0 %v3214
        %v3380 = vpop.f32.mrf.mxu0
        %v3381 = vadd.f32 0.0, %v3380
        %3382 = vmatmul.f32.gmra.mxu0 %v3216
        %v3383 = vpop.f32.mrf.mxu0
        %v3384 = vadd.f32 0.0, %v3383
        %3385 = vmatmul.f32.gmra.mxu0 %v3218
        %v3386 = vpop.f32.mrf.mxu0
        %v3387 = vadd.f32 0.0, %v3386
        %3388 = vmatmul.f32.gmra.mxu0 %v3220
        %v3389 = vpop.f32.mrf.mxu0
        %v3390 = vadd.f32 0.0, %v3389
        %3391 = vdwg.mxu0
        %3392 = vmatpush.msra.mxu0 0.0
        %3393 = vmatpush.msra.mxu0 0.0
        %3394 = vmatpush.msra.mxu0 0.0
        %3395 = vmatpush.msra.mxu0 0.0
        %3396 = vmatpush.msra.mxu0 0.0
        %3397 = vmatpush.msra.mxu0 0.0
        %3398 = vmatpush.msra.mxu0 0.0
        %3399 = vmatpush.msra.mxu0 %v3298
        %3400 = vmatpush.msra.mxu0 %v3169
        %3401 = vmatpush.msra.mxu0 %v3168
        %3402 = vmatpush.msra.mxu0 %v3167
        %3403 = vmatpush.msra.mxu0 %v3166
        %3404 = vmatpush.msra.mxu0 %v3165
        %3405 = vmatpush.msra.mxu0 %v3164
        %3406 = vmatpush.msra.mxu0 %v3163
        %3407 = vmatpush.msra.mxu0 %v3162
        %3408 = vmatmul.f32.gmra.mxu0 %v3223
        %v3409 = vpop.f32.mrf.mxu0
        %v3410 = vadd.f32 %v3318, %v3409
        %3411 = vmatmul.f32.gmra.mxu0 %v3226
        %v3412 = vpop.f32.mrf.mxu0
        %v3413 = vadd.f32 %v3321, %v3412
        %3414 = vmatmul.f32.gmra.mxu0 %v3229
        %v3415 = vpop.f32.mrf.mxu0
        %v3416 = vadd.f32 %v3324, %v3415
        %3417 = vmatmul.f32.gmra.mxu0 %v3232
        %v3418 = vpop.f32.mrf.mxu0
        %v3419 = vadd.f32 %v3327, %v3418
        %3420 = vmatmul.f32.gmra.mxu0 %v3235
        %v3421 = vpop.f32.mrf.mxu0
        %v3422 = vadd.f32 %v3330, %v3421
        %3423 = vmatmul.f32.gmra.mxu0 %v3238
        %v3424 = vpop.f32.mrf.mxu0
        %v3425 = vadd.f32 %v3333, %v3424
        %3426 = vmatmul.f32.gmra.mxu0 %v3241
        %v3427 = vpop.f32.mrf.mxu0
        %v3428 = vadd.f32 %v3336, %v3427
        %3429 = vmatmul.f32.gmra.mxu0 %v3244
        %v3430 = vpop.f32.mrf.mxu0
        %v3431 = vadd.f32 %v3339, %v3430
        %3432 = vmatmul.f32.gmra.mxu0 %v3247
        %v3433 = vpop.f32.mrf.mxu0
        %v3434 = vadd.f32 %v3342, %v3433
        %3435 = vmatmul.f32.gmra.mxu0 %v3250
        %v3436 = vpop.f32.mrf.mxu0
        %v3437 = vadd.f32 %v3345, %v3436
        %3438 = vmatmul.f32.gmra.mxu0 %v3253
        %v3439 = vpop.f32.mrf.mxu0
        %v3440 = vadd.f32 %v3348, %v3439
        %3441 = vmatmul.f32.gmra.mxu0 %v3256
        %v3442 = vpop.f32.mrf.mxu0
        %v3443 = vadd.f32 %v3351, %v3442
        %3444 = vmatmul.f32.gmra.mxu0 %v3259
        %v3445 = vpop.f32.mrf.mxu0
        %v3446 = vadd.f32 %v3354, %v3445
        %3447 = vmatmul.f32.gmra.mxu0 %v3262
        %v3448 = vpop.f32.mrf.mxu0
        %v3449 = vadd.f32 %v3357, %v3448
        %3450 = vmatmul.f32.gmra.mxu0 %v3265
        %v3451 = vpop.f32.mrf.mxu0
        %v3452 = vadd.f32 %v3360, %v3451
        %3453 = vmatmul.f32.gmra.mxu0 %v3268
        %v3454 = vpop.f32.mrf.mxu0
        %v3455 = vadd.f32 %v3363, %v3454
        %3456 = vmatmul.f32.gmra.mxu0 %v3271
        %v3457 = vpop.f32.mrf.mxu0
        %v3458 = vadd.f32 %v3366, %v3457
        %3459 = vmatmul.f32.gmra.mxu0 %v3274
        %v3460 = vpop.f32.mrf.mxu0
        %v3461 = vadd.f32 %v3369, %v3460
        %3462 = vmatmul.f32.gmra.mxu0 %v3277
        %v3463 = vpop.f32.mrf.mxu0
        %v3464 = vadd.f32 %v3372, %v3463
        %3465 = vmatmul.f32.gmra.mxu0 %v3280
        %v3466 = vpop.f32.mrf.mxu0
        %v3467 = vadd.f32 %v3375, %v3466
        %3468 = vmatmul.f32.gmra.mxu0 %v3283
        %v3469 = vpop.f32.mrf.mxu0
        %v3470 = vadd.f32 %v3378, %v3469
        %3471 = vmatmul.f32.gmra.mxu0 %v3286
        %v3472 = vpop.f32.mrf.mxu0
        %v3473 = vadd.f32 %v3381, %v3472
        %3474 = vmatmul.f32.gmra.mxu0 %v3289
        %v3475 = vpop.f32.mrf.mxu0
        %v3476 = vadd.f32 %v3384, %v3475
        %3477 = vmatmul.f32.gmra.mxu0 %v3292
        %v3478 = vpop.f32.mrf.mxu0
        %v3479 = vadd.f32 %v3387, %v3478
        %3480 = vmatmul.f32.gmra.mxu0 %v3295
        %v3481 = vpop.f32.mrf.mxu0
        %v3482 = vadd.f32 %v3390, %v3481
        %3483 = vdwg.mxu0
        %v3484 = vadd.f32 %v3119, %v3410
        %v3485 = vadd.f32 %v3120, %v3413
        %v3486 = vadd.f32 %v3121, %v3416
        %v3487 = vadd.f32 %v3122, %v3419
        %v3488 = vadd.f32 %v3123, %v3422
        %v3489 = vadd.f32 %v3124, %v3425
        %v3490 = vadd.f32 %v3125, %v3428
        %v3491 = vadd.f32 %v3126, %v3431
        %v3492 = vadd.f32 %v3127, %v3434
        %v3493 = vadd.f32 %v3128, %v3437
        %v3494 = vadd.f32 %v3129, %v3440
        %v3495 = vadd.f32 %v3130, %v3443
        %v3496 = vadd.f32 %v3131, %v3446
        %v3497 = vadd.f32 %v3132, %v3449
        %v3498 = vadd.f32 %v3133, %v3452
        %v3499 = vadd.f32 %v3134, %v3455
        %v3500 = vadd.f32 %v3135, %v3458
        %v3501 = vadd.f32 %v3136, %v3461
        %v3502 = vadd.f32 %v3137, %v3464
        %v3503 = vadd.f32 %v3138, %v3467
        %v3504 = vadd.f32 %v3139, %v3470
        %v3505 = vadd.f32 %v3140, %v3473
        %v3506 = vadd.f32 %v3141, %v3476
        %v3507 = vadd.f32 %v3142, %v3479
        %v3508 = vadd.f32 %v3143, %v3482
        %v3509 = vld [vmem:[#allocation6 + $0x8] sm:$0x1]
        %v3510 = vperm.slane %v3509, 0
        %v3511 = vmul.f32 %v517, %v3510
        %v3512 = vmul.f32 %v522, %v3510
        %v3513 = vmul.f32 %v527, %v3510
        %v3514 = vmul.f32 %v532, %v3510
        %v3515 = vmul.f32 %v537, %v3510
        %v3516 = vmul.f32 %v542, %v3510
        %v3517 = vmul.f32 %v547, %v3510
        %v3518 = vmul.f32 %v552, %v3510
        %v3519 = vmul.f32 %v557, %v3510
        %v3520 = vmul.f32 %v562, %v3510
        %v3521 = vmul.f32 %v567, %v3510
        %v3522 = vmul.f32 %v572, %v3510
        %v3523 = vmul.f32 %v577, %v3510
        %v3524 = vmul.f32 %v582, %v3510
        %v3525 = vmul.f32 %v587, %v3510
        %v3526 = vmul.f32 %v592, %v3510
        %v3527 = vmul.f32 %v597, %v3510
        %v3528 = vmul.f32 %v602, %v3510
        %v3529 = vmul.f32 %v607, %v3510
        %v3530 = vmul.f32 %v612, %v3510
        %v3531 = vmul.f32 %v617, %v3510
        %v3532 = vmul.f32 %v622, %v3510
        %v3533 = vmul.f32 %v627, %v3510
        %v3534 = vmul.f32 %v632, %v3510
        %v3535 = vmul.f32 %v637, %v3510
        %s3536 = scalar_lea.vmem [#allocation2], 3200
        %v3537 = vld [vmem:[%s3536] sm:$0xff]
        %v3538 = vld [vmem:[%s3536 + $0x8] sm:$0xff]
        %v3539 = vld [vmem:[%s3536 + $0x10] sm:$0xff]
        %v3540 = vld [vmem:[%s3536 + $0x18] sm:$0xff]
        %v3541 = vld [vmem:[%s3536 + $0x20] sm:$0xff]
        %v3542 = vld [vmem:[%s3536 + $0x28] sm:$0xff]
        %v3543 = vld [vmem:[%s3536 + $0x30] sm:$0xff]
        %v3544 = vld [vmem:[%s3536 + $0x38] sm:$0xff]
        %v3545 = vld [vmem:[%s3536 + $0x40] sm:$0xff]
        %v3546 = vld [vmem:[%s3536 + $0x48] sm:$0xff]
        %v3547 = vld [vmem:[%s3536 + $0x50] sm:$0xff]
        %v3548 = vld [vmem:[%s3536 + $0x58] sm:$0xff]
        %v3549 = vld [vmem:[%s3536 + $0x60] sm:$0xff]
        %v3550 = vld [vmem:[%s3536 + $0x68] sm:$0xff]
        %v3551 = vld [vmem:[%s3536 + $0x70] sm:$0xff]
        %v3552 = vld [vmem:[%s3536 + $0x78] sm:$0xff]
        %v3553 = vld [vmem:[%s3536 + $0x80] sm:$0xff]
        %v3554 = vld [vmem:[%s3536 + $0x88] sm:$0xff]
        %v3555 = vld [vmem:[%s3536 + $0x90] sm:$0xff]
        %v3556 = vld [vmem:[%s3536 + $0x98] sm:$0xff]
        %v3557 = vld [vmem:[%s3536 + $0xa0] sm:$0xff]
        %v3558 = vld [vmem:[%s3536 + $0xa8] sm:$0xff]
        %v3559 = vld [vmem:[%s3536 + $0xb0] sm:$0xff]
        %v3560 = vld [vmem:[%s3536 + $0xb8] sm:$0xff]
        %v3561 = vld [vmem:[%s3536 + $0xc0] sm:$0xff]
        %v3562 = vld [vmem:[%s3536 + $0xc8] sm:$0xff]
        %v3563 = vld [vmem:[%s3536 + $0xd0] sm:$0xff]
        %v3564 = vld [vmem:[%s3536 + $0xd8] sm:$0xff]
        %v3565 = vld [vmem:[%s3536 + $0xe0] sm:$0xff]
        %v3566 = vld [vmem:[%s3536 + $0xe8] sm:$0xff]
        %v3567 = vld [vmem:[%s3536 + $0xf0] sm:$0xff]
        %v3568 = vld [vmem:[%s3536 + $0xf8] sm:$0xff]
        %v3569 = vld [vmem:[%s3536 + $0x100] sm:$0xff]
        %v3570 = vld [vmem:[%s3536 + $0x108] sm:$0xff]
        %v3571 = vld [vmem:[%s3536 + $0x110] sm:$0xff]
        %v3572 = vld [vmem:[%s3536 + $0x118] sm:$0xff]
        %v3573 = vld [vmem:[%s3536 + $0x120] sm:$0xff]
        %v3574 = vld [vmem:[%s3536 + $0x128] sm:$0xff]
        %v3575 = vld [vmem:[%s3536 + $0x130] sm:$0xff]
        %v3576 = vld [vmem:[%s3536 + $0x138] sm:$0xff]
        %v3577 = vld [vmem:[%s3536 + $0x140] sm:$0xff]
        %v3578 = vld [vmem:[%s3536 + $0x148] sm:$0xff]
        %v3579 = vld [vmem:[%s3536 + $0x150] sm:$0xff]
        %v3580 = vld [vmem:[%s3536 + $0x158] sm:$0xff]
        %v3581 = vld [vmem:[%s3536 + $0x160] sm:$0xff]
        %v3582 = vld [vmem:[%s3536 + $0x168] sm:$0xff]
        %v3583 = vld [vmem:[%s3536 + $0x170] sm:$0xff]
        %v3584 = vld [vmem:[%s3536 + $0x178] sm:$0xff]
        %v3585 = vld [vmem:[%s3536 + $0x180] sm:$0xf]
        %v3586 = vld [vmem:[%s3536 + $0x188] sm:$0xf]
        %v3588 = vsel %vm793, %v3538, 0
        %v3591 = vsel %vm793, %v3540, 0
        %v3594 = vsel %vm793, %v3542, 0
        %v3597 = vsel %vm793, %v3544, 0
        %v3600 = vsel %vm793, %v3546, 0
        %v3603 = vsel %vm793, %v3548, 0
        %v3606 = vsel %vm793, %v3550, 0
        %v3609 = vsel %vm793, %v3552, 0
        %v3612 = vsel %vm793, %v3554, 0
        %v3615 = vsel %vm793, %v3556, 0
        %v3618 = vsel %vm793, %v3558, 0
        %v3621 = vsel %vm793, %v3560, 0
        %v3624 = vsel %vm793, %v3562, 0
        %v3627 = vsel %vm793, %v3564, 0
        %v3630 = vsel %vm793, %v3566, 0
        %v3633 = vsel %vm793, %v3568, 0
        %v3636 = vsel %vm793, %v3570, 0
        %v3639 = vsel %vm793, %v3572, 0
        %v3642 = vsel %vm793, %v3574, 0
        %v3645 = vsel %vm793, %v3576, 0
        %v3648 = vsel %vm793, %v3578, 0
        %v3651 = vsel %vm793, %v3580, 0
        %v3654 = vsel %vm793, %v3582, 0
        %v3657 = vsel %vm793, %v3584, 0
        %v3660 = vsel %vm793, %v3586, 0
        %v3663 = vsel %vm869, %v3535, 0
        %3665 = vmatpush.msra.mxu0 %v3526
        %3666 = vmatpush.msra.mxu0 %v3525
        %3667 = vmatpush.msra.mxu0 %v3524
        %3668 = vmatpush.msra.mxu0 %v3523
        %3669 = vmatpush.msra.mxu0 %v3522
        %3670 = vmatpush.msra.mxu0 %v3521
        %3671 = vmatpush.msra.mxu0 %v3520
        %3672 = vmatpush.msra.mxu0 %v3519
        %3673 = vmatpush.msra.mxu0 %v3518
        %3674 = vmatpush.msra.mxu0 %v3517
        %3675 = vmatpush.msra.mxu0 %v3516
        %3676 = vmatpush.msra.mxu0 %v3515
        %3677 = vmatpush.msra.mxu0 %v3514
        %3678 = vmatpush.msra.mxu0 %v3513
        %3679 = vmatpush.msra.mxu0 %v3512
        %3680 = vmatpush.msra.mxu0 %v3511
        %3681 = vmatmul.f32.gmra.mxu0 %v3537
        %v3682 = vpop.f32.mrf.mxu0
        %v3683 = vadd.f32 0.0, %v3682
        %3684 = vmatmul.f32.gmra.mxu0 %v3539
        %v3685 = vpop.f32.mrf.mxu0
        %v3686 = vadd.f32 0.0, %v3685
        %3687 = vmatmul.f32.gmra.mxu0 %v3541
        %v3688 = vpop.f32.mrf.mxu0
        %v3689 = vadd.f32 0.0, %v3688
        %3690 = vmatmul.f32.gmra.mxu0 %v3543
        %v3691 = vpop.f32.mrf.mxu0
        %v3692 = vadd.f32 0.0, %v3691
        %3693 = vmatmul.f32.gmra.mxu0 %v3545
        %v3694 = vpop.f32.mrf.mxu0
        %v3695 = vadd.f32 0.0, %v3694
        %3696 = vmatmul.f32.gmra.mxu0 %v3547
        %v3697 = vpop.f32.mrf.mxu0
        %v3698 = vadd.f32 0.0, %v3697
        %3699 = vmatmul.f32.gmra.mxu0 %v3549
        %v3700 = vpop.f32.mrf.mxu0
        %v3701 = vadd.f32 0.0, %v3700
        %3702 = vmatmul.f32.gmra.mxu0 %v3551
        %v3703 = vpop.f32.mrf.mxu0
        %v3704 = vadd.f32 0.0, %v3703
        %3705 = vmatmul.f32.gmra.mxu0 %v3553
        %v3706 = vpop.f32.mrf.mxu0
        %v3707 = vadd.f32 0.0, %v3706
        %3708 = vmatmul.f32.gmra.mxu0 %v3555
        %v3709 = vpop.f32.mrf.mxu0
        %v3710 = vadd.f32 0.0, %v3709
        %3711 = vmatmul.f32.gmra.mxu0 %v3557
        %v3712 = vpop.f32.mrf.mxu0
        %v3713 = vadd.f32 0.0, %v3712
        %3714 = vmatmul.f32.gmra.mxu0 %v3559
        %v3715 = vpop.f32.mrf.mxu0
        %v3716 = vadd.f32 0.0, %v3715
        %3717 = vmatmul.f32.gmra.mxu0 %v3561
        %v3718 = vpop.f32.mrf.mxu0
        %v3719 = vadd.f32 0.0, %v3718
        %3720 = vmatmul.f32.gmra.mxu0 %v3563
        %v3721 = vpop.f32.mrf.mxu0
        %v3722 = vadd.f32 0.0, %v3721
        %3723 = vmatmul.f32.gmra.mxu0 %v3565
        %v3724 = vpop.f32.mrf.mxu0
        %v3725 = vadd.f32 0.0, %v3724
        %3726 = vmatmul.f32.gmra.mxu0 %v3567
        %v3727 = vpop.f32.mrf.mxu0
        %v3728 = vadd.f32 0.0, %v3727
        %3729 = vmatmul.f32.gmra.mxu0 %v3569
        %v3730 = vpop.f32.mrf.mxu0
        %v3731 = vadd.f32 0.0, %v3730
        %3732 = vmatmul.f32.gmra.mxu0 %v3571
        %v3733 = vpop.f32.mrf.mxu0
        %v3734 = vadd.f32 0.0, %v3733
        %3735 = vmatmul.f32.gmra.mxu0 %v3573
        %v3736 = vpop.f32.mrf.mxu0
        %v3737 = vadd.f32 0.0, %v3736
        %3738 = vmatmul.f32.gmra.mxu0 %v3575
        %v3739 = vpop.f32.mrf.mxu0
        %v3740 = vadd.f32 0.0, %v3739
        %3741 = vmatmul.f32.gmra.mxu0 %v3577
        %v3742 = vpop.f32.mrf.mxu0
        %v3743 = vadd.f32 0.0, %v3742
        %3744 = vmatmul.f32.gmra.mxu0 %v3579
        %v3745 = vpop.f32.mrf.mxu0
        %v3746 = vadd.f32 0.0, %v3745
        %3747 = vmatmul.f32.gmra.mxu0 %v3581
        %v3748 = vpop.f32.mrf.mxu0
        %v3749 = vadd.f32 0.0, %v3748
        %3750 = vmatmul.f32.gmra.mxu0 %v3583
        %v3751 = vpop.f32.mrf.mxu0
        %v3752 = vadd.f32 0.0, %v3751
        %3753 = vmatmul.f32.gmra.mxu0 %v3585
        %v3754 = vpop.f32.mrf.mxu0
        %v3755 = vadd.f32 0.0, %v3754
        %3756 = vdwg.mxu0
        %3757 = vmatpush.msra.mxu0 0.0
        %3758 = vmatpush.msra.mxu0 0.0
        %3759 = vmatpush.msra.mxu0 0.0
        %3760 = vmatpush.msra.mxu0 0.0
        %3761 = vmatpush.msra.mxu0 0.0
        %3762 = vmatpush.msra.mxu0 0.0
        %3763 = vmatpush.msra.mxu0 0.0
        %3764 = vmatpush.msra.mxu0 %v3663
        %3765 = vmatpush.msra.mxu0 %v3534
        %3766 = vmatpush.msra.mxu0 %v3533
        %3767 = vmatpush.msra.mxu0 %v3532
        %3768 = vmatpush.msra.mxu0 %v3531
        %3769 = vmatpush.msra.mxu0 %v3530
        %3770 = vmatpush.msra.mxu0 %v3529
        %3771 = vmatpush.msra.mxu0 %v3528
        %3772 = vmatpush.msra.mxu0 %v3527
        %3773 = vmatmul.f32.gmra.mxu0 %v3588
        %v3774 = vpop.f32.mrf.mxu0
        %v3775 = vadd.f32 %v3683, %v3774
        %3776 = vmatmul.f32.gmra.mxu0 %v3591
        %v3777 = vpop.f32.mrf.mxu0
        %v3778 = vadd.f32 %v3686, %v3777
        %3779 = vmatmul.f32.gmra.mxu0 %v3594
        %v3780 = vpop.f32.mrf.mxu0
        %v3781 = vadd.f32 %v3689, %v3780
        %3782 = vmatmul.f32.gmra.mxu0 %v3597
        %v3783 = vpop.f32.mrf.mxu0
        %v3784 = vadd.f32 %v3692, %v3783
        %3785 = vmatmul.f32.gmra.mxu0 %v3600
        %v3786 = vpop.f32.mrf.mxu0
        %v3787 = vadd.f32 %v3695, %v3786
        %3788 = vmatmul.f32.gmra.mxu0 %v3603
        %v3789 = vpop.f32.mrf.mxu0
        %v3790 = vadd.f32 %v3698, %v3789
        %3791 = vmatmul.f32.gmra.mxu0 %v3606
        %v3792 = vpop.f32.mrf.mxu0
        %v3793 = vadd.f32 %v3701, %v3792
        %3794 = vmatmul.f32.gmra.mxu0 %v3609
        %v3795 = vpop.f32.mrf.mxu0
        %v3796 = vadd.f32 %v3704, %v3795
        %3797 = vmatmul.f32.gmra.mxu0 %v3612
        %v3798 = vpop.f32.mrf.mxu0
        %v3799 = vadd.f32 %v3707, %v3798
        %3800 = vmatmul.f32.gmra.mxu0 %v3615
        %v3801 = vpop.f32.mrf.mxu0
        %v3802 = vadd.f32 %v3710, %v3801
        %3803 = vmatmul.f32.gmra.mxu0 %v3618
        %v3804 = vpop.f32.mrf.mxu0
        %v3805 = vadd.f32 %v3713, %v3804
        %3806 = vmatmul.f32.gmra.mxu0 %v3621
        %v3807 = vpop.f32.mrf.mxu0
        %v3808 = vadd.f32 %v3716, %v3807
        %3809 = vmatmul.f32.gmra.mxu0 %v3624
        %v3810 = vpop.f32.mrf.mxu0
        %v3811 = vadd.f32 %v3719, %v3810
        %3812 = vmatmul.f32.gmra.mxu0 %v3627
        %v3813 = vpop.f32.mrf.mxu0
        %v3814 = vadd.f32 %v3722, %v3813
        %3815 = vmatmul.f32.gmra.mxu0 %v3630
        %v3816 = vpop.f32.mrf.mxu0
        %v3817 = vadd.f32 %v3725, %v3816
        %3818 = vmatmul.f32.gmra.mxu0 %v3633
        %v3819 = vpop.f32.mrf.mxu0
        %v3820 = vadd.f32 %v3728, %v3819
        %3821 = vmatmul.f32.gmra.mxu0 %v3636
        %v3822 = vpop.f32.mrf.mxu0
        %v3823 = vadd.f32 %v3731, %v3822
        %3824 = vmatmul.f32.gmra.mxu0 %v3639
        %v3825 = vpop.f32.mrf.mxu0
        %v3826 = vadd.f32 %v3734, %v3825
        %3827 = vmatmul.f32.gmra.mxu0 %v3642
        %v3828 = vpop.f32.mrf.mxu0
        %v3829 = vadd.f32 %v3737, %v3828
        %3830 = vmatmul.f32.gmra.mxu0 %v3645
        %v3831 = vpop.f32.mrf.mxu0
        %v3832 = vadd.f32 %v3740, %v3831
        %3833 = vmatmul.f32.gmra.mxu0 %v3648
        %v3834 = vpop.f32.mrf.mxu0
        %v3835 = vadd.f32 %v3743, %v3834
        %3836 = vmatmul.f32.gmra.mxu0 %v3651
        %v3837 = vpop.f32.mrf.mxu0
        %v3838 = vadd.f32 %v3746, %v3837
        %3839 = vmatmul.f32.gmra.mxu0 %v3654
        %v3840 = vpop.f32.mrf.mxu0
        %v3841 = vadd.f32 %v3749, %v3840
        %3842 = vmatmul.f32.gmra.mxu0 %v3657
        %v3843 = vpop.f32.mrf.mxu0
        %v3844 = vadd.f32 %v3752, %v3843
        %3845 = vmatmul.f32.gmra.mxu0 %v3660
        %v3846 = vpop.f32.mrf.mxu0
        %v3847 = vadd.f32 %v3755, %v3846
        %3848 = vdwg.mxu0
        %v3849 = vadd.f32 %v3484, %v3775
        %v3850 = vadd.f32 %v3485, %v3778
        %v3851 = vadd.f32 %v3486, %v3781
        %v3852 = vadd.f32 %v3487, %v3784
        %v3853 = vadd.f32 %v3488, %v3787
        %v3854 = vadd.f32 %v3489, %v3790
        %v3855 = vadd.f32 %v3490, %v3793
        %v3856 = vadd.f32 %v3491, %v3796
        %v3857 = vadd.f32 %v3492, %v3799
        %v3858 = vadd.f32 %v3493, %v3802
        %v3859 = vadd.f32 %v3494, %v3805
        %v3860 = vadd.f32 %v3495, %v3808
        %v3861 = vadd.f32 %v3496, %v3811
        %v3862 = vadd.f32 %v3497, %v3814
        %v3863 = vadd.f32 %v3498, %v3817
        %v3864 = vadd.f32 %v3499, %v3820
        %v3865 = vadd.f32 %v3500, %v3823
        %v3866 = vadd.f32 %v3501, %v3826
        %v3867 = vadd.f32 %v3502, %v3829
        %v3868 = vadd.f32 %v3503, %v3832
        %v3869 = vadd.f32 %v3504, %v3835
        %v3870 = vadd.f32 %v3505, %v3838
        %v3871 = vadd.f32 %v3506, %v3841
        %v3872 = vadd.f32 %v3507, %v3844
        %v3873 = vadd.f32 %v3508, %v3847
        %v3874 = vld [vmem:[#allocation7] sm:$0x1]
        %v3876 = vperm.slane %v3874, 0
        %v3878 = vadd.f32 %v3849, %v3876
        %v3879 = vadd.f32 %v3850, %v3876
        %v3880 = vadd.f32 %v3851, %v3876
        %v3881 = vadd.f32 %v3852, %v3876
        %v3882 = vadd.f32 %v3853, %v3876
        %v3883 = vadd.f32 %v3854, %v3876
        %v3884 = vadd.f32 %v3855, %v3876
        %v3885 = vadd.f32 %v3856, %v3876
        %v3886 = vadd.f32 %v3857, %v3876
        %v3887 = vadd.f32 %v3858, %v3876
        %v3888 = vadd.f32 %v3859, %v3876
        %v3889 = vadd.f32 %v3860, %v3876
        %v3890 = vadd.f32 %v3861, %v3876
        %v3891 = vadd.f32 %v3862, %v3876
        %v3892 = vadd.f32 %v3863, %v3876
        %v3893 = vadd.f32 %v3864, %v3876
        %v3894 = vadd.f32 %v3865, %v3876
        %v3895 = vadd.f32 %v3866, %v3876
        %v3896 = vadd.f32 %v3867, %v3876
        %v3897 = vadd.f32 %v3868, %v3876
        %v3898 = vadd.f32 %v3869, %v3876
        %v3899 = vadd.f32 %v3870, %v3876
        %v3900 = vadd.f32 %v3871, %v3876
        %v3901 = vadd.f32 %v3872, %v3876
        %v3902 = vadd.f32 %v3873, %v3876
        %v3903 = vmax.f32 %v3878, 0.0
        %v3904 = vmax.f32 %v3879, 0.0
        %v3905 = vmax.f32 %v3880, 0.0
        %v3906 = vmax.f32 %v3881, 0.0
        %v3907 = vmax.f32 %v3882, 0.0
        %v3908 = vmax.f32 %v3883, 0.0
        %v3909 = vmax.f32 %v3884, 0.0
        %v3910 = vmax.f32 %v3885, 0.0
        %v3911 = vmax.f32 %v3886, 0.0
        %v3912 = vmax.f32 %v3887, 0.0
        %v3913 = vmax.f32 %v3888, 0.0
        %v3914 = vmax.f32 %v3889, 0.0
        %v3915 = vmax.f32 %v3890, 0.0
        %v3916 = vmax.f32 %v3891, 0.0
        %v3917 = vmax.f32 %v3892, 0.0
        %v3918 = vmax.f32 %v3893, 0.0
        %v3919 = vmax.f32 %v3894, 0.0
        %v3920 = vmax.f32 %v3895, 0.0
        %v3921 = vmax.f32 %v3896, 0.0
        %v3922 = vmax.f32 %v3897, 0.0
        %v3923 = vmax.f32 %v3898, 0.0
        %v3924 = vmax.f32 %v3899, 0.0
        %v3925 = vmax.f32 %v3900, 0.0
        %v3926 = vmax.f32 %v3901, 0.0
        %v3927 = vmax.f32 %v3902, 0.0
        %v3928 = vld [vmem:[%s2] sm:$0xff]
        %v3929 = vld [vmem:[%s2 + $0x8] sm:$0xff]
        %v3930 = vld [vmem:[%s2 + $0x10] sm:$0xff]
        %v3931 = vld [vmem:[%s2 + $0x18] sm:$0xff]
        %v3932 = vld [vmem:[%s2 + $0x20] sm:$0xff]
        %v3933 = vld [vmem:[%s2 + $0x28] sm:$0xff]
        %v3934 = vld [vmem:[%s2 + $0x30] sm:$0xff]
        %v3935 = vld [vmem:[%s2 + $0x38] sm:$0xff]
        %v3936 = vld [vmem:[%s2 + $0x40] sm:$0xff]
        %v3937 = vld [vmem:[%s2 + $0x48] sm:$0xff]
        %v3938 = vld [vmem:[%s2 + $0x50] sm:$0xff]
        %v3939 = vld [vmem:[%s2 + $0x58] sm:$0xff]
        %v3940 = vld [vmem:[%s2 + $0x60] sm:$0x1]
        %v3941 = vld [vmem:[%s2 + $0x68] sm:$0x1]
        %v3943 = vsel %vm793, %v3929, 0
        %v3946 = vsel %vm793, %v3931, 0
        %v3949 = vsel %vm793, %v3933, 0
        %v3952 = vsel %vm793, %v3935, 0
        %v3955 = vsel %vm793, %v3937, 0
        %v3958 = vsel %vm793, %v3939, 0
        %v3961 = vsel %vm793, %v3941, 0
        %v3964 = vsel %vm869, %v3927, 0
        %3966 = vmatpush.msra.mxu0 %v3918
        %3967 = vmatpush.msra.mxu0 %v3917
        %3968 = vmatpush.msra.mxu0 %v3916
        %3969 = vmatpush.msra.mxu0 %v3915
        %3970 = vmatpush.msra.mxu0 %v3914
        %3971 = vmatpush.msra.mxu0 %v3913
        %3972 = vmatpush.msra.mxu0 %v3912
        %3973 = vmatpush.msra.mxu0 %v3911
        %3974 = vmatpush.msra.mxu0 %v3910
        %3975 = vmatpush.msra.mxu0 %v3909
        %3976 = vmatpush.msra.mxu0 %v3908
        %3977 = vmatpush.msra.mxu0 %v3907
        %3978 = vmatpush.msra.mxu0 %v3906
        %3979 = vmatpush.msra.mxu0 %v3905
        %3980 = vmatpush.msra.mxu0 %v3904
        %3981 = vmatpush.msra.mxu0 %v3903
        %3982 = vmatmul.f32.gmra.mxu0 %v3928
        %v3983 = vpop.f32.mrf.mxu0
        %v3984 = vadd.f32 0.0, %v3983
        %3985 = vmatmul.f32.gmra.mxu0 %v3930
        %v3986 = vpop.f32.mrf.mxu0
        %v3987 = vadd.f32 0.0, %v3986
        %3988 = vmatmul.f32.gmra.mxu0 %v3932
        %v3989 = vpop.f32.mrf.mxu0
        %v3990 = vadd.f32 0.0, %v3989
        %3991 = vmatmul.f32.gmra.mxu0 %v3934
        %v3992 = vpop.f32.mrf.mxu0
        %v3993 = vadd.f32 0.0, %v3992
        %3994 = vmatmul.f32.gmra.mxu0 %v3936
        %v3995 = vpop.f32.mrf.mxu0
        %v3996 = vadd.f32 0.0, %v3995
        %3997 = vmatmul.f32.gmra.mxu0 %v3938
        %v3998 = vpop.f32.mrf.mxu0
        %v3999 = vadd.f32 0.0, %v3998
        %4000 = vmatmul.f32.gmra.mxu0 %v3940
        %v4001 = vpop.f32.mrf.mxu0
        %v4002 = vadd.f32 0.0, %v4001
        %4003 = vdwg.mxu0
        %4004 = vmatpush.msra.mxu0 0.0
        %4005 = vmatpush.msra.mxu0 0.0
        %4006 = vmatpush.msra.mxu0 0.0
        %4007 = vmatpush.msra.mxu0 0.0
        %4008 = vmatpush.msra.mxu0 0.0
        %4009 = vmatpush.msra.mxu0 0.0
        %4010 = vmatpush.msra.mxu0 0.0
        %4011 = vmatpush.msra.mxu0 %v3964
        %4012 = vmatpush.msra.mxu0 %v3926
        %4013 = vmatpush.msra.mxu0 %v3925
        %4014 = vmatpush.msra.mxu0 %v3924
        %4015 = vmatpush.msra.mxu0 %v3923
        %4016 = vmatpush.msra.mxu0 %v3922
        %4017 = vmatpush.msra.mxu0 %v3921
        %4018 = vmatpush.msra.mxu0 %v3920
        %4019 = vmatpush.msra.mxu0 %v3919
        %4020 = vmatmul.f32.gmra.mxu0 %v3943
        %v4021 = vpop.f32.mrf.mxu0
        %v4022 = vadd.f32 %v3984, %v4021
        %4023 = vmatmul.f32.gmra.mxu0 %v3946
        %v4024 = vpop.f32.mrf.mxu0
        %v4025 = vadd.f32 %v3987, %v4024
        %4026 = vmatmul.f32.gmra.mxu0 %v3949
        %v4027 = vpop.f32.mrf.mxu0
        %v4028 = vadd.f32 %v3990, %v4027
        %4029 = vmatmul.f32.gmra.mxu0 %v3952
        %v4030 = vpop.f32.mrf.mxu0
        %v4031 = vadd.f32 %v3993, %v4030
        %4032 = vmatmul.f32.gmra.mxu0 %v3955
        %v4033 = vpop.f32.mrf.mxu0
        %v4034 = vadd.f32 %v3996, %v4033
        %4035 = vmatmul.f32.gmra.mxu0 %v3958
        %v4036 = vpop.f32.mrf.mxu0
        %v4037 = vadd.f32 %v3999, %v4036
        %4038 = vmatmul.f32.gmra.mxu0 %v3961
        %v4039 = vpop.f32.mrf.mxu0
        %v4040 = vadd.f32 %v4002, %v4039
        %4041 = vdwg.mxu0
        %s4042 = scalar_lea.vmem %s2, 112
        %v4043 = vld [vmem:[%s4042] sm:$0xff]
        %v4044 = vld [vmem:[%s4042 + $0x8] sm:$0xff]
        %v4045 = vld [vmem:[%s4042 + $0x10] sm:$0xff]
        %v4046 = vld [vmem:[%s4042 + $0x18] sm:$0xff]
        %v4047 = vld [vmem:[%s4042 + $0x20] sm:$0xff]
        %v4048 = vld [vmem:[%s4042 + $0x28] sm:$0xff]
        %v4049 = vld [vmem:[%s4042 + $0x30] sm:$0xff]
        %v4050 = vld [vmem:[%s4042 + $0x38] sm:$0xff]
        %v4051 = vld [vmem:[%s4042 + $0x40] sm:$0xff]
        %v4052 = vld [vmem:[%s4042 + $0x48] sm:$0xff]
        %v4053 = vld [vmem:[%s4042 + $0x50] sm:$0xff]
        %v4054 = vld [vmem:[%s4042 + $0x58] sm:$0xff]
        %v4055 = vld [vmem:[%s4042 + $0x60] sm:$0x1]
        %v4056 = vld [vmem:[%s4042 + $0x68] sm:$0x1]
        %v4058 = vsel %vm793, %v4044, 0
        %v4061 = vsel %vm793, %v4046, 0
        %v4064 = vsel %vm793, %v4048, 0
        %v4067 = vsel %vm793, %v4050, 0
        %v4070 = vsel %vm793, %v4052, 0
        %v4073 = vsel %vm793, %v4054, 0
        %v4076 = vsel %vm793, %v4056, 0
        %4078 = vmatpush.msra.mxu0 %v3918
        %4079 = vmatpush.msra.mxu0 %v3917
        %4080 = vmatpush.msra.mxu0 %v3916
        %4081 = vmatpush.msra.mxu0 %v3915
        %4082 = vmatpush.msra.mxu0 %v3914
        %4083 = vmatpush.msra.mxu0 %v3913
        %4084 = vmatpush.msra.mxu0 %v3912
        %4085 = vmatpush.msra.mxu0 %v3911
        %4086 = vmatpush.msra.mxu0 %v3910
        %4087 = vmatpush.msra.mxu0 %v3909
        %4088 = vmatpush.msra.mxu0 %v3908
        %4089 = vmatpush.msra.mxu0 %v3907
        %4090 = vmatpush.msra.mxu0 %v3906
        %4091 = vmatpush.msra.mxu0 %v3905
        %4092 = vmatpush.msra.mxu0 %v3904
        %4093 = vmatpush.msra.mxu0 %v3903
        %4094 = vmatmul.f32.gmra.mxu0 %v4043
        %v4095 = vpop.f32.mrf.mxu0
        %v4096 = vadd.f32 0.0, %v4095
        %4097 = vmatmul.f32.gmra.mxu0 %v4045
        %v4098 = vpop.f32.mrf.mxu0
        %v4099 = vadd.f32 0.0, %v4098
        %4100 = vmatmul.f32.gmra.mxu0 %v4047
        %v4101 = vpop.f32.mrf.mxu0
        %v4102 = vadd.f32 0.0, %v4101
        %4103 = vmatmul.f32.gmra.mxu0 %v4049
        %v4104 = vpop.f32.mrf.mxu0
        %v4105 = vadd.f32 0.0, %v4104
        %4106 = vmatmul.f32.gmra.mxu0 %v4051
        %v4107 = vpop.f32.mrf.mxu0
        %v4108 = vadd.f32 0.0, %v4107
        %4109 = vmatmul.f32.gmra.mxu0 %v4053
        %v4110 = vpop.f32.mrf.mxu0
        %v4111 = vadd.f32 0.0, %v4110
        %4112 = vmatmul.f32.gmra.mxu0 %v4055
        %v4113 = vpop.f32.mrf.mxu0
        %v4114 = vadd.f32 0.0, %v4113
        %4115 = vdwg.mxu0
        %4116 = vmatpush.msra.mxu0 0.0
        %4117 = vmatpush.msra.mxu0 0.0
        %4118 = vmatpush.msra.mxu0 0.0
        %4119 = vmatpush.msra.mxu0 0.0
        %4120 = vmatpush.msra.mxu0 0.0
        %4121 = vmatpush.msra.mxu0 0.0
        %4122 = vmatpush.msra.mxu0 0.0
        %4123 = vmatpush.msra.mxu0 %v3964
        %4124 = vmatpush.msra.mxu0 %v3926
        %4125 = vmatpush.msra.mxu0 %v3925
        %4126 = vmatpush.msra.mxu0 %v3924
        %4127 = vmatpush.msra.mxu0 %v3923
        %4128 = vmatpush.msra.mxu0 %v3922
        %4129 = vmatpush.msra.mxu0 %v3921
        %4130 = vmatpush.msra.mxu0 %v3920
        %4131 = vmatpush.msra.mxu0 %v3919
        %4132 = vmatmul.f32.gmra.mxu0 %v4058
        %v4133 = vpop.f32.mrf.mxu0
        %v4134 = vadd.f32 %v4096, %v4133
        %4135 = vmatmul.f32.gmra.mxu0 %v4061
        %v4136 = vpop.f32.mrf.mxu0
        %v4137 = vadd.f32 %v4099, %v4136
        %4138 = vmatmul.f32.gmra.mxu0 %v4064
        %v4139 = vpop.f32.mrf.mxu0
        %v4140 = vadd.f32 %v4102, %v4139
        %4141 = vmatmul.f32.gmra.mxu0 %v4067
        %v4142 = vpop.f32.mrf.mxu0
        %v4143 = vadd.f32 %v4105, %v4142
        %4144 = vmatmul.f32.gmra.mxu0 %v4070
        %v4145 = vpop.f32.mrf.mxu0
        %v4146 = vadd.f32 %v4108, %v4145
        %4147 = vmatmul.f32.gmra.mxu0 %v4073
        %v4148 = vpop.f32.mrf.mxu0
        %v4149 = vadd.f32 %v4111, %v4148
        %4150 = vmatmul.f32.gmra.mxu0 %v4076
        %v4151 = vpop.f32.mrf.mxu0
        %v4152 = vadd.f32 %v4114, %v4151
        %4153 = vdwg.mxu0
        %v4154 = vmax.f32 %v4022, %v4134
        %v4155 = vmax.f32 %v4025, %v4137
        %v4156 = vmax.f32 %v4028, %v4140
        %v4157 = vmax.f32 %v4031, %v4143
        %v4158 = vmax.f32 %v4034, %v4146
        %v4159 = vmax.f32 %v4037, %v4149
        %v4160 = vmax.f32 %v4040, %v4152
        %s4161 = scalar_lea.vmem %s2, 224
        %v4162 = vld [vmem:[%s4161] sm:$0xff]
        %v4163 = vld [vmem:[%s4161 + $0x8] sm:$0xff]
        %v4164 = vld [vmem:[%s4161 + $0x10] sm:$0xff]
        %v4165 = vld [vmem:[%s4161 + $0x18] sm:$0xff]
        %v4166 = vld [vmem:[%s4161 + $0x20] sm:$0xff]
        %v4167 = vld [vmem:[%s4161 + $0x28] sm:$0xff]
        %v4168 = vld [vmem:[%s4161 + $0x30] sm:$0xff]
        %v4169 = vld [vmem:[%s4161 + $0x38] sm:$0xff]
        %v4170 = vld [vmem:[%s4161 + $0x40] sm:$0xff]
        %v4171 = vld [vmem:[%s4161 + $0x48] sm:$0xff]
        %v4172 = vld [vmem:[%s4161 + $0x50] sm:$0xff]
        %v4173 = vld [vmem:[%s4161 + $0x58] sm:$0xff]
        %v4174 = vld [vmem:[%s4161 + $0x60] sm:$0x1]
        %v4175 = vld [vmem:[%s4161 + $0x68] sm:$0x1]
        %v4177 = vsel %vm793, %v4163, 0
        %v4180 = vsel %vm793, %v4165, 0
        %v4183 = vsel %vm793, %v4167, 0
        %v4186 = vsel %vm793, %v4169, 0
        %v4189 = vsel %vm793, %v4171, 0
        %v4192 = vsel %vm793, %v4173, 0
        %v4195 = vsel %vm793, %v4175, 0
        %4197 = vmatpush.msra.mxu0 %v3918
        %4198 = vmatpush.msra.mxu0 %v3917
        %4199 = vmatpush.msra.mxu0 %v3916
        %4200 = vmatpush.msra.mxu0 %v3915
        %4201 = vmatpush.msra.mxu0 %v3914
        %4202 = vmatpush.msra.mxu0 %v3913
        %4203 = vmatpush.msra.mxu0 %v3912
        %4204 = vmatpush.msra.mxu0 %v3911
        %4205 = vmatpush.msra.mxu0 %v3910
        %4206 = vmatpush.msra.mxu0 %v3909
        %4207 = vmatpush.msra.mxu0 %v3908
        %4208 = vmatpush.msra.mxu0 %v3907
        %4209 = vmatpush.msra.mxu0 %v3906
        %4210 = vmatpush.msra.mxu0 %v3905
        %4211 = vmatpush.msra.mxu0 %v3904
        %4212 = vmatpush.msra.mxu0 %v3903
        %4213 = vmatmul.f32.gmra.mxu0 %v4162
        %v4214 = vpop.f32.mrf.mxu0
        %v4215 = vadd.f32 0.0, %v4214
        %4216 = vmatmul.f32.gmra.mxu0 %v4164
        %v4217 = vpop.f32.mrf.mxu0
        %v4218 = vadd.f32 0.0, %v4217
        %4219 = vmatmul.f32.gmra.mxu0 %v4166
        %v4220 = vpop.f32.mrf.mxu0
        %v4221 = vadd.f32 0.0, %v4220
        %4222 = vmatmul.f32.gmra.mxu0 %v4168
        %v4223 = vpop.f32.mrf.mxu0
        %v4224 = vadd.f32 0.0, %v4223
        %4225 = vmatmul.f32.gmra.mxu0 %v4170
        %v4226 = vpop.f32.mrf.mxu0
        %v4227 = vadd.f32 0.0, %v4226
        %4228 = vmatmul.f32.gmra.mxu0 %v4172
        %v4229 = vpop.f32.mrf.mxu0
        %v4230 = vadd.f32 0.0, %v4229
        %4231 = vmatmul.f32.gmra.mxu0 %v4174
        %v4232 = vpop.f32.mrf.mxu0
        %v4233 = vadd.f32 0.0, %v4232
        %4234 = vdwg.mxu0
        %4235 = vmatpush.msra.mxu0 0.0
        %4236 = vmatpush.msra.mxu0 0.0
        %4237 = vmatpush.msra.mxu0 0.0
        %4238 = vmatpush.msra.mxu0 0.0
        %4239 = vmatpush.msra.mxu0 0.0
        %4240 = vmatpush.msra.mxu0 0.0
        %4241 = vmatpush.msra.mxu0 0.0
        %4242 = vmatpush.msra.mxu0 %v3964
        %4243 = vmatpush.msra.mxu0 %v3926
        %4244 = vmatpush.msra.mxu0 %v3925
        %4245 = vmatpush.msra.mxu0 %v3924
        %4246 = vmatpush.msra.mxu0 %v3923
        %4247 = vmatpush.msra.mxu0 %v3922
        %4248 = vmatpush.msra.mxu0 %v3921
        %4249 = vmatpush.msra.mxu0 %v3920
        %4250 = vmatpush.msra.mxu0 %v3919
        %4251 = vmatmul.f32.gmra.mxu0 %v4177
        %v4252 = vpop.f32.mrf.mxu0
        %v4253 = vadd.f32 %v4215, %v4252
        %4254 = vmatmul.f32.gmra.mxu0 %v4180
        %v4255 = vpop.f32.mrf.mxu0
        %v4256 = vadd.f32 %v4218, %v4255
        %4257 = vmatmul.f32.gmra.mxu0 %v4183
        %v4258 = vpop.f32.mrf.mxu0
        %v4259 = vadd.f32 %v4221, %v4258
        %4260 = vmatmul.f32.gmra.mxu0 %v4186
        %v4261 = vpop.f32.mrf.mxu0
        %v4262 = vadd.f32 %v4224, %v4261
        %4263 = vmatmul.f32.gmra.mxu0 %v4189
        %v4264 = vpop.f32.mrf.mxu0
        %v4265 = vadd.f32 %v4227, %v4264
        %4266 = vmatmul.f32.gmra.mxu0 %v4192
        %v4267 = vpop.f32.mrf.mxu0
        %v4268 = vadd.f32 %v4230, %v4267
        %4269 = vmatmul.f32.gmra.mxu0 %v4195
        %v4270 = vpop.f32.mrf.mxu0
        %v4271 = vadd.f32 %v4233, %v4270
        %4272 = vdwg.mxu0
        %v4273 = vmax.f32 %v4154, %v4253
        %v4274 = vmax.f32 %v4155, %v4256
        %v4275 = vmax.f32 %v4156, %v4259
        %v4276 = vmax.f32 %v4157, %v4262
        %v4277 = vmax.f32 %v4158, %v4265
        %v4278 = vmax.f32 %v4159, %v4268
        %v4279 = vmax.f32 %v4160, %v4271
        %s4280 = scalar_lea.vmem %s2, 336
        %v4281 = vld [vmem:[%s4280] sm:$0xff]
        %v4282 = vld [vmem:[%s4280 + $0x8] sm:$0xff]
        %v4283 = vld [vmem:[%s4280 + $0x10] sm:$0xff]
        %v4284 = vld [vmem:[%s4280 + $0x18] sm:$0xff]
        %v4285 = vld [vmem:[%s4280 + $0x20] sm:$0xff]
        %v4286 = vld [vmem:[%s4280 + $0x28] sm:$0xff]
        %v4287 = vld [vmem:[%s4280 + $0x30] sm:$0xff]
        %v4288 = vld [vmem:[%s4280 + $0x38] sm:$0xff]
        %v4289 = vld [vmem:[%s4280 + $0x40] sm:$0xff]
        %v4290 = vld [vmem:[%s4280 + $0x48] sm:$0xff]
        %v4291 = vld [vmem:[%s4280 + $0x50] sm:$0xff]
        %v4292 = vld [vmem:[%s4280 + $0x58] sm:$0xff]
        %v4293 = vld [vmem:[%s4280 + $0x60] sm:$0x1]
        %v4294 = vld [vmem:[%s4280 + $0x68] sm:$0x1]
        %v4296 = vsel %vm793, %v4282, 0
        %v4299 = vsel %vm793, %v4284, 0
        %v4302 = vsel %vm793, %v4286, 0
        %v4305 = vsel %vm793, %v4288, 0
        %v4308 = vsel %vm793, %v4290, 0
        %v4311 = vsel %vm793, %v4292, 0
        %v4314 = vsel %vm793, %v4294, 0
        %4316 = vmatpush.msra.mxu0 %v3918
        %4317 = vmatpush.msra.mxu0 %v3917
        %4318 = vmatpush.msra.mxu0 %v3916
        %4319 = vmatpush.msra.mxu0 %v3915
        %4320 = vmatpush.msra.mxu0 %v3914
        %4321 = vmatpush.msra.mxu0 %v3913
        %4322 = vmatpush.msra.mxu0 %v3912
        %4323 = vmatpush.msra.mxu0 %v3911
        %4324 = vmatpush.msra.mxu0 %v3910
        %4325 = vmatpush.msra.mxu0 %v3909
        %4326 = vmatpush.msra.mxu0 %v3908
        %4327 = vmatpush.msra.mxu0 %v3907
        %4328 = vmatpush.msra.mxu0 %v3906
        %4329 = vmatpush.msra.mxu0 %v3905
        %4330 = vmatpush.msra.mxu0 %v3904
        %4331 = vmatpush.msra.mxu0 %v3903
        %4332 = vmatmul.f32.gmra.mxu0 %v4281
        %v4333 = vpop.f32.mrf.mxu0
        %v4334 = vadd.f32 0.0, %v4333
        %4335 = vmatmul.f32.gmra.mxu0 %v4283
        %v4336 = vpop.f32.mrf.mxu0
        %v4337 = vadd.f32 0.0, %v4336
        %4338 = vmatmul.f32.gmra.mxu0 %v4285
        %v4339 = vpop.f32.mrf.mxu0
        %v4340 = vadd.f32 0.0, %v4339
        %4341 = vmatmul.f32.gmra.mxu0 %v4287
        %v4342 = vpop.f32.mrf.mxu0
        %v4343 = vadd.f32 0.0, %v4342
        %4344 = vmatmul.f32.gmra.mxu0 %v4289
        %v4345 = vpop.f32.mrf.mxu0
        %v4346 = vadd.f32 0.0, %v4345
        %4347 = vmatmul.f32.gmra.mxu0 %v4291
        %v4348 = vpop.f32.mrf.mxu0
        %v4349 = vadd.f32 0.0, %v4348
        %4350 = vmatmul.f32.gmra.mxu0 %v4293
        %v4351 = vpop.f32.mrf.mxu0
        %v4352 = vadd.f32 0.0, %v4351
        %4353 = vdwg.mxu0
        %4354 = vmatpush.msra.mxu0 0.0
        %4355 = vmatpush.msra.mxu0 0.0
        %4356 = vmatpush.msra.mxu0 0.0
        %4357 = vmatpush.msra.mxu0 0.0
        %4358 = vmatpush.msra.mxu0 0.0
        %4359 = vmatpush.msra.mxu0 0.0
        %4360 = vmatpush.msra.mxu0 0.0
        %4361 = vmatpush.msra.mxu0 %v3964
        %4362 = vmatpush.msra.mxu0 %v3926
        %4363 = vmatpush.msra.mxu0 %v3925
        %4364 = vmatpush.msra.mxu0 %v3924
        %4365 = vmatpush.msra.mxu0 %v3923
        %4366 = vmatpush.msra.mxu0 %v3922
        %4367 = vmatpush.msra.mxu0 %v3921
        %4368 = vmatpush.msra.mxu0 %v3920
        %4369 = vmatpush.msra.mxu0 %v3919
        %4370 = vmatmul.f32.gmra.mxu0 %v4296
        %v4371 = vpop.f32.mrf.mxu0
        %v4372 = vadd.f32 %v4334, %v4371
        %4373 = vmatmul.f32.gmra.mxu0 %v4299
        %v4374 = vpop.f32.mrf.mxu0
        %v4375 = vadd.f32 %v4337, %v4374
        %4376 = vmatmul.f32.gmra.mxu0 %v4302
        %v4377 = vpop.f32.mrf.mxu0
        %v4378 = vadd.f32 %v4340, %v4377
        %4379 = vmatmul.f32.gmra.mxu0 %v4305
        %v4380 = vpop.f32.mrf.mxu0
        %v4381 = vadd.f32 %v4343, %v4380
        %4382 = vmatmul.f32.gmra.mxu0 %v4308
        %v4383 = vpop.f32.mrf.mxu0
        %v4384 = vadd.f32 %v4346, %v4383
        %4385 = vmatmul.f32.gmra.mxu0 %v4311
        %v4386 = vpop.f32.mrf.mxu0
        %v4387 = vadd.f32 %v4349, %v4386
        %4388 = vmatmul.f32.gmra.mxu0 %v4314
        %v4389 = vpop.f32.mrf.mxu0
        %v4390 = vadd.f32 %v4352, %v4389
        %4391 = vdwg.mxu0
        %v4392 = vmax.f32 %v4273, %v4372
        %v4393 = vmax.f32 %v4274, %v4375
        %v4394 = vmax.f32 %v4275, %v4378
        %v4395 = vmax.f32 %v4276, %v4381
        %v4396 = vmax.f32 %v4277, %v4384
        %v4397 = vmax.f32 %v4278, %v4387
        %v4398 = vmax.f32 %v4279, %v4390
        %v4399 = vpack.c.bf16 %v4393, %v4392
        %v4400 = vpack.c.bf16 %v4395, %v4394
        %v4401 = vpack.c.bf16 %v4397, %v4396
        %v4402 = vpack.c.bf16 %v4398, %v4398
        %v4403 = vld [vmem:[#allocation9] sm:$0xf]
        %v4404 = vld [vmem:[#allocation9 + $0x4] sm:$0xf]
        %v4405 = vld [vmem:[#allocation9 + $0x8] sm:$0xf]
        %v4406 = vld [vmem:[#allocation9 + $0xc] sm:$0xf]
        %v4411 = vunpack.c.l.b16 %v4403
        %v4412 = vunpack.c.l.b16 %v4404
        %v4413 = vunpack.c.l.b16 %v4405
        %v4414 = vunpack.c.l.b16 %v4406
        %v4415 = vpack.c.b16 %v4412, %v4411
        %v4416 = vpack.c.b16 %v4414, %v4413
        %vm4419 = vcmask 261120
        %v4421 = vsel %vm4419, %v4399, 0
        %v4424 = vsel %vm4419, %v4400, 0
        %v4427 = vsel %vm4419, %v4401, 0
        %v4430 = vsel %vm4419, %v4402, 0
        %4432 = vmatpush.bf16.msra.mxu0 0
        %4433 = vmatpush.bf16.msra.mxu0 0
        %4434 = vmatpush.bf16.msra.mxu0 0
        %4435 = vmatpush.bf16.msra.mxu0 0
        %4436 = vmatpush.bf16.msra.mxu0 0
        %4437 = vmatpush.bf16.msra.mxu0 0
        %4438 = vmatpush.bf16.msra.mxu0 %v4416
        %4439 = vmatpush.bf16.msra.mxu0 %v4415
        %4440 = vmatmul.bf16.gmra.mxu0 %v4421
        %v4441 = vpop.f32.mrf.mxu0
        %v4442 = vadd.f32 0.0, %v4441
        %v4443 = vpop.f32.mrf.mxu0
        %v4444 = vadd.f32 0.0, %v4443
        %4445 = vmatmul.bf16.gmra.mxu0 %v4424
        %v4446 = vpop.f32.mrf.mxu0
        %v4447 = vadd.f32 0.0, %v4446
        %v4448 = vpop.f32.mrf.mxu0
        %v4449 = vadd.f32 0.0, %v4448
        %4450 = vmatmul.bf16.gmra.mxu0 %v4427
        %v4451 = vpop.f32.mrf.mxu0
        %v4452 = vadd.f32 0.0, %v4451
        %v4453 = vpop.f32.mrf.mxu0
        %v4454 = vadd.f32 0.0, %v4453
        %4455 = vmatmul.bf16.gmra.mxu0 %v4430
        %v4456 = vpop.f32.mrf.mxu0
        %v4457 = vadd.f32 0.0, %v4456
        %v4458 = vpop.f32.mrf.mxu0
        %4459 = vdwg.mxu0
        %v4460 = vld [vmem:[#allocation4] sm:$0xff]
        %v4461 = vld [vmem:[#allocation4 + $0x8] sm:$0xff]
        %v4462 = vld [vmem:[#allocation4 + $0x10] sm:$0xff]
        %v4463 = vld [vmem:[#allocation4 + $0x18] sm:$0xff]
        %v4464 = vld [vmem:[#allocation4 + $0x20] sm:$0xff]
        %v4465 = vld [vmem:[#allocation4 + $0x28] sm:$0xff]
        %v4466 = vld [vmem:[#allocation4 + $0x30] sm:$0x1]
        %s4467 = scalar_lea.vmem [#allocation9], 16
        %v4468 = vld [vmem:[%s4467] sm:$0xf]
        %v4469 = vld [vmem:[%s4467 + $0x4] sm:$0xf]
        %v4470 = vld [vmem:[%s4467 + $0x8] sm:$0xf]
        %v4471 = vld [vmem:[%s4467 + $0xc] sm:$0xf]
        %v4476 = vunpack.c.l.b16 %v4468
        %v4477 = vunpack.c.l.b16 %v4469
        %v4478 = vunpack.c.l.b16 %v4470
        %v4479 = vunpack.c.l.b16 %v4471
        %v4480 = vpack.c.b16 %v4477, %v4476
        %v4481 = vpack.c.b16 %v4479, %v4478
        %4484 = vmatpush.bf16.msra.mxu0 0
        %4485 = vmatpush.bf16.msra.mxu0 0
        %4486 = vmatpush.bf16.msra.mxu0 0
        %4487 = vmatpush.bf16.msra.mxu0 0
        %4488 = vmatpush.bf16.msra.mxu0 0
        %4489 = vmatpush.bf16.msra.mxu0 0
        %4490 = vmatpush.bf16.msra.mxu0 %v4481
        %4491 = vmatpush.bf16.msra.mxu0 %v4480
        %4492 = vmatmul.bf16.gmra.mxu0 %v4421
        %v4493 = vpop.f32.mrf.mxu0
        %v4494 = vadd.f32 0.0, %v4493
        %v4495 = vpop.f32.mrf.mxu0
        %v4496 = vadd.f32 0.0, %v4495
        %4497 = vmatmul.bf16.gmra.mxu0 %v4424
        %v4498 = vpop.f32.mrf.mxu0
        %v4499 = vadd.f32 0.0, %v4498
        %v4500 = vpop.f32.mrf.mxu0
        %v4501 = vadd.f32 0.0, %v4500
        %4502 = vmatmul.bf16.gmra.mxu0 %v4427
        %v4503 = vpop.f32.mrf.mxu0
        %v4504 = vadd.f32 0.0, %v4503
        %v4505 = vpop.f32.mrf.mxu0
        %v4506 = vadd.f32 0.0, %v4505
        %4507 = vmatmul.bf16.gmra.mxu0 %v4430
        %v4508 = vpop.f32.mrf.mxu0
        %v4509 = vadd.f32 0.0, %v4508
        %v4510 = vpop.f32.mrf.mxu0
        %4511 = vdwg.mxu0
        %s4512 = scalar_lea.vmem [#allocation4], 56
        %v4513 = vld [vmem:[%s4512] sm:$0xff]
        %v4514 = vld [vmem:[%s4512 + $0x8] sm:$0xff]
        %v4515 = vld [vmem:[%s4512 + $0x10] sm:$0xff]
        %v4516 = vld [vmem:[%s4512 + $0x18] sm:$0xff]
        %v4517 = vld [vmem:[%s4512 + $0x20] sm:$0xff]
        %v4518 = vld [vmem:[%s4512 + $0x28] sm:$0xff]
        %v4519 = vld [vmem:[%s4512 + $0x30] sm:$0x1]
        %vm4520 = vcmask 400384
        %v4522 = vsel %vm4520, %v4513, 0
        %v4525 = vsel %vm4520, %v4514, 0
        %v4528 = vsel %vm4520, %v4515, 0
        %v4531 = vsel %vm4520, %v4516, 0
        %v4534 = vsel %vm4520, %v4517, 0
        %v4537 = vsel %vm4520, %v4518, 0
        %v4540 = vsel %vm4520, %v4519, 0
        %vm4542 = vcmask 1040384
        %v4544 = vsel %vm4542, %v4509, 0
        %4546 = vmatpush.msra.mxu0 0.0
        %4547 = vmatpush.msra.mxu0 0.0
        %4548 = vmatpush.msra.mxu0 0.0
        %4549 = vmatpush.msra.mxu0 0.0
        %4550 = vmatpush.msra.mxu0 0.0
        %4551 = vmatpush.msra.mxu0 0.0
        %4552 = vmatpush.msra.mxu0 0.0
        %4553 = vmatpush.msra.mxu0 0.0
        %4554 = vmatpush.msra.mxu0 0.0
        %4555 = vmatpush.msra.mxu0 %v4544
        %4556 = vmatpush.msra.mxu0 %v4506
        %4557 = vmatpush.msra.mxu0 %v4504
        %4558 = vmatpush.msra.mxu0 %v4501
        %4559 = vmatpush.msra.mxu0 %v4499
        %4560 = vmatpush.msra.mxu0 %v4496
        %4561 = vmatpush.msra.mxu0 %v4494
        %4562 = vmatmul.f32.gmra.mxu0 %v4522
        %v4563 = vpop.f32.mrf.mxu0
        %v4564 = vadd.f32 0.0, %v4563
        %4565 = vmatmul.f32.gmra.mxu0 %v4525
        %v4566 = vpop.f32.mrf.mxu0
        %v4567 = vadd.f32 0.0, %v4566
        %4568 = vmatmul.f32.gmra.mxu0 %v4528
        %v4569 = vpop.f32.mrf.mxu0
        %v4570 = vadd.f32 0.0, %v4569
        %4571 = vmatmul.f32.gmra.mxu0 %v4531
        %v4572 = vpop.f32.mrf.mxu0
        %v4573 = vadd.f32 0.0, %v4572
        %4574 = vmatmul.f32.gmra.mxu0 %v4534
        %v4575 = vpop.f32.mrf.mxu0
        %v4576 = vadd.f32 0.0, %v4575
        %4577 = vmatmul.f32.gmra.mxu0 %v4537
        %v4578 = vpop.f32.mrf.mxu0
        %v4579 = vadd.f32 0.0, %v4578
        %4580 = vmatmul.f32.gmra.mxu0 %v4540
        %v4581 = vpop.f32.mrf.mxu0
        %v4582 = vadd.f32 0.0, %v4581
        %4583 = vdwg.mxu0
        %v4585 = vsel %vm4520, %v4460, 0
        %v4588 = vsel %vm4520, %v4461, 0
        %v4591 = vsel %vm4520, %v4462, 0
        %v4594 = vsel %vm4520, %v4463, 0
        %v4597 = vsel %vm4520, %v4464, 0
        %v4600 = vsel %vm4520, %v4465, 0
        %v4603 = vsel %vm4520, %v4466, 0
        %v4606 = vsel %vm4542, %v4457, 0
        %4608 = vmatpush.msra.mxu0 0.0
        %4609 = vmatpush.msra.mxu0 0.0
        %4610 = vmatpush.msra.mxu0 0.0
        %4611 = vmatpush.msra.mxu0 0.0
        %4612 = vmatpush.msra.mxu0 0.0
        %4613 = vmatpush.msra.mxu0 0.0
        %4614 = vmatpush.msra.mxu0 0.0
        %4615 = vmatpush.msra.mxu0 0.0
        %4616 = vmatpush.msra.mxu0 0.0
        %4617 = vmatpush.msra.mxu0 %v4606
        %4618 = vmatpush.msra.mxu0 %v4454
        %4619 = vmatpush.msra.mxu0 %v4452
        %4620 = vmatpush.msra.mxu0 %v4449
        %4621 = vmatpush.msra.mxu0 %v4447
        %4622 = vmatpush.msra.mxu0 %v4444
        %4623 = vmatpush.msra.mxu0 %v4442
        %4624 = vmatmul.f32.gmra.mxu0 %v4585
        %v4625 = vpop.f32.mrf.mxu0
        %v4626 = vadd.f32 %v4564, %v4625
        %4627 = vmatmul.f32.gmra.mxu0 %v4588
        %v4628 = vpop.f32.mrf.mxu0
        %v4629 = vadd.f32 %v4567, %v4628
        %4630 = vmatmul.f32.gmra.mxu0 %v4591
        %v4631 = vpop.f32.mrf.mxu0
        %v4632 = vadd.f32 %v4570, %v4631
        %4633 = vmatmul.f32.gmra.mxu0 %v4594
        %v4634 = vpop.f32.mrf.mxu0
        %v4635 = vadd.f32 %v4573, %v4634
        %4636 = vmatmul.f32.gmra.mxu0 %v4597
        %v4637 = vpop.f32.mrf.mxu0
        %v4638 = vadd.f32 %v4576, %v4637
        %4639 = vmatmul.f32.gmra.mxu0 %v4600
        %v4640 = vpop.f32.mrf.mxu0
        %v4641 = vadd.f32 %v4579, %v4640
        %4642 = vmatmul.f32.gmra.mxu0 %v4603
        %v4643 = vpop.f32.mrf.mxu0
        %v4644 = vadd.f32 %v4582, %v4643
        %4645 = vdwg.mxu0
        %s4646 = scalar_lea.vmem [#allocation9], 32
        %v4647 = vld [vmem:[%s4646] sm:$0xf]
        %v4648 = vld [vmem:[%s4646 + $0x4] sm:$0xf]
        %v4649 = vld [vmem:[%s4646 + $0x8] sm:$0xf]
        %v4650 = vld [vmem:[%s4646 + $0xc] sm:$0xf]
        %v4655 = vunpack.c.l.b16 %v4647
        %v4656 = vunpack.c.l.b16 %v4648
        %v4657 = vunpack.c.l.b16 %v4649
        %v4658 = vunpack.c.l.b16 %v4650
        %v4659 = vpack.c.b16 %v4656, %v4655
        %v4660 = vpack.c.b16 %v4658, %v4657
        %4663 = vmatpush.bf16.msra.mxu0 0
        %4664 = vmatpush.bf16.msra.mxu0 0
        %4665 = vmatpush.bf16.msra.mxu0 0
        %4666 = vmatpush.bf16.msra.mxu0 0
        %4667 = vmatpush.bf16.msra.mxu0 0
        %4668 = vmatpush.bf16.msra.mxu0 0
        %4669 = vmatpush.bf16.msra.mxu0 %v4660
        %4670 = vmatpush.bf16.msra.mxu0 %v4659
        %4671 = vmatmul.bf16.gmra.mxu0 %v4421
        %v4672 = vpop.f32.mrf.mxu0
        %v4673 = vadd.f32 0.0, %v4672
        %v4674 = vpop.f32.mrf.mxu0
        %v4675 = vadd.f32 0.0, %v4674
        %4676 = vmatmul.bf16.gmra.mxu0 %v4424
        %v4677 = vpop.f32.mrf.mxu0
        %v4678 = vadd.f32 0.0, %v4677
        %v4679 = vpop.f32.mrf.mxu0
        %v4680 = vadd.f32 0.0, %v4679
        %4681 = vmatmul.bf16.gmra.mxu0 %v4427
        %v4682 = vpop.f32.mrf.mxu0
        %v4683 = vadd.f32 0.0, %v4682
        %v4684 = vpop.f32.mrf.mxu0
        %v4685 = vadd.f32 0.0, %v4684
        %4686 = vmatmul.bf16.gmra.mxu0 %v4430
        %v4687 = vpop.f32.mrf.mxu0
        %v4688 = vadd.f32 0.0, %v4687
        %v4689 = vpop.f32.mrf.mxu0
        %4690 = vdwg.mxu0
        %s4691 = scalar_lea.vmem [#allocation4], 112
        %v4692 = vld [vmem:[%s4691] sm:$0xff]
        %v4693 = vld [vmem:[%s4691 + $0x8] sm:$0xff]
        %v4694 = vld [vmem:[%s4691 + $0x10] sm:$0xff]
        %v4695 = vld [vmem:[%s4691 + $0x18] sm:$0xff]
        %v4696 = vld [vmem:[%s4691 + $0x20] sm:$0xff]
        %v4697 = vld [vmem:[%s4691 + $0x28] sm:$0xff]
        %v4698 = vld [vmem:[%s4691 + $0x30] sm:$0x1]
        %v4700 = vsel %vm4520, %v4692, 0
        %v4703 = vsel %vm4520, %v4693, 0
        %v4706 = vsel %vm4520, %v4694, 0
        %v4709 = vsel %vm4520, %v4695, 0
        %v4712 = vsel %vm4520, %v4696, 0
        %v4715 = vsel %vm4520, %v4697, 0
        %v4718 = vsel %vm4520, %v4698, 0
        %v4721 = vsel %vm4542, %v4688, 0
        %4723 = vmatpush.msra.mxu0 0.0
        %4724 = vmatpush.msra.mxu0 0.0
        %4725 = vmatpush.msra.mxu0 0.0
        %4726 = vmatpush.msra.mxu0 0.0
        %4727 = vmatpush.msra.mxu0 0.0
        %4728 = vmatpush.msra.mxu0 0.0
        %4729 = vmatpush.msra.mxu0 0.0
        %4730 = vmatpush.msra.mxu0 0.0
        %4731 = vmatpush.msra.mxu0 0.0
        %4732 = vmatpush.msra.mxu0 %v4721
        %4733 = vmatpush.msra.mxu0 %v4685
        %4734 = vmatpush.msra.mxu0 %v4683
        %4735 = vmatpush.msra.mxu0 %v4680
        %4736 = vmatpush.msra.mxu0 %v4678
        %4737 = vmatpush.msra.mxu0 %v4675
        %4738 = vmatpush.msra.mxu0 %v4673
        %4739 = vmatmul.f32.gmra.mxu0 %v4700
        %v4740 = vpop.f32.mrf.mxu0
        %v4741 = vadd.f32 0.0, %v4740
        %4742 = vmatmul.f32.gmra.mxu0 %v4703
        %v4743 = vpop.f32.mrf.mxu0
        %v4744 = vadd.f32 0.0, %v4743
        %4745 = vmatmul.f32.gmra.mxu0 %v4706
        %v4746 = vpop.f32.mrf.mxu0
        %v4747 = vadd.f32 0.0, %v4746
        %4748 = vmatmul.f32.gmra.mxu0 %v4709
        %v4749 = vpop.f32.mrf.mxu0
        %v4750 = vadd.f32 0.0, %v4749
        %4751 = vmatmul.f32.gmra.mxu0 %v4712
        %v4752 = vpop.f32.mrf.mxu0
        %v4753 = vadd.f32 0.0, %v4752
        %4754 = vmatmul.f32.gmra.mxu0 %v4715
        %v4755 = vpop.f32.mrf.mxu0
        %v4756 = vadd.f32 0.0, %v4755
        %4757 = vmatmul.f32.gmra.mxu0 %v4718
        %v4758 = vpop.f32.mrf.mxu0
        %v4759 = vadd.f32 0.0, %v4758
        %4760 = vdwg.mxu0
        %v4761 = vadd.f32 %v4626, %v4741
        %v4762 = vadd.f32 %v4629, %v4744
        %v4763 = vadd.f32 %v4632, %v4747
        %v4764 = vadd.f32 %v4635, %v4750
        %v4765 = vadd.f32 %v4638, %v4753
        %v4766 = vadd.f32 %v4641, %v4756
        %v4767 = vadd.f32 %v4644, %v4759
        %s4768 = scalar_lea.vmem [#allocation9], 48
        %v4769 = vld [vmem:[%s4768] sm:$0xf]
        %v4770 = vld [vmem:[%s4768 + $0x4] sm:$0xf]
        %v4771 = vld [vmem:[%s4768 + $0x8] sm:$0xf]
        %v4772 = vld [vmem:[%s4768 + $0xc] sm:$0xf]
        %v4777 = vunpack.c.l.b16 %v4769
        %v4778 = vunpack.c.l.b16 %v4770
        %v4779 = vunpack.c.l.b16 %v4771
        %v4780 = vunpack.c.l.b16 %v4772
        %v4781 = vpack.c.b16 %v4778, %v4777
        %v4782 = vpack.c.b16 %v4780, %v4779
        %4785 = vmatpush.bf16.msra.mxu0 0
        %4786 = vmatpush.bf16.msra.mxu0 0
        %4787 = vmatpush.bf16.msra.mxu0 0
        %4788 = vmatpush.bf16.msra.mxu0 0
        %4789 = vmatpush.bf16.msra.mxu0 0
        %4790 = vmatpush.bf16.msra.mxu0 0
        %4791 = vmatpush.bf16.msra.mxu0 %v4782
        %4792 = vmatpush.bf16.msra.mxu0 %v4781
        %4793 = vmatmul.bf16.gmra.mxu0 %v4421
        %v4794 = vpop.f32.mrf.mxu0
        %v4795 = vadd.f32 0.0, %v4794
        %v4796 = vpop.f32.mrf.mxu0
        %v4797 = vadd.f32 0.0, %v4796
        %4798 = vmatmul.bf16.gmra.mxu0 %v4424
        %v4799 = vpop.f32.mrf.mxu0
        %v4800 = vadd.f32 0.0, %v4799
        %v4801 = vpop.f32.mrf.mxu0
        %v4802 = vadd.f32 0.0, %v4801
        %4803 = vmatmul.bf16.gmra.mxu0 %v4427
        %v4804 = vpop.f32.mrf.mxu0
        %v4805 = vadd.f32 0.0, %v4804
        %v4806 = vpop.f32.mrf.mxu0
        %v4807 = vadd.f32 0.0, %v4806
        %4808 = vmatmul.bf16.gmra.mxu0 %v4430
        %v4809 = vpop.f32.mrf.mxu0
        %v4810 = vadd.f32 0.0, %v4809
        %v4811 = vpop.f32.mrf.mxu0
        %4812 = vdwg.mxu0
        %s4813 = scalar_lea.vmem [#allocation4], 168
        %v4814 = vld [vmem:[%s4813] sm:$0xff]
        %v4815 = vld [vmem:[%s4813 + $0x8] sm:$0xff]
        %v4816 = vld [vmem:[%s4813 + $0x10] sm:$0xff]
        %v4817 = vld [vmem:[%s4813 + $0x18] sm:$0xff]
        %v4818 = vld [vmem:[%s4813 + $0x20] sm:$0xff]
        %v4819 = vld [vmem:[%s4813 + $0x28] sm:$0xff]
        %v4820 = vld [vmem:[%s4813 + $0x30] sm:$0x1]
        %v4822 = vsel %vm4520, %v4814, 0
        %v4825 = vsel %vm4520, %v4815, 0
        %v4828 = vsel %vm4520, %v4816, 0
        %v4831 = vsel %vm4520, %v4817, 0
        %v4834 = vsel %vm4520, %v4818, 0
        %v4837 = vsel %vm4520, %v4819, 0
        %v4840 = vsel %vm4520, %v4820, 0
        %v4843 = vsel %vm4542, %v4810, 0
        %4845 = vmatpush.msra.mxu0 0.0
        %4846 = vmatpush.msra.mxu0 0.0
        %4847 = vmatpush.msra.mxu0 0.0
        %4848 = vmatpush.msra.mxu0 0.0
        %4849 = vmatpush.msra.mxu0 0.0
        %4850 = vmatpush.msra.mxu0 0.0
        %4851 = vmatpush.msra.mxu0 0.0
        %4852 = vmatpush.msra.mxu0 0.0
        %4853 = vmatpush.msra.mxu0 0.0
        %4854 = vmatpush.msra.mxu0 %v4843
        %4855 = vmatpush.msra.mxu0 %v4807
        %4856 = vmatpush.msra.mxu0 %v4805
        %4857 = vmatpush.msra.mxu0 %v4802
        %4858 = vmatpush.msra.mxu0 %v4800
        %4859 = vmatpush.msra.mxu0 %v4797
        %4860 = vmatpush.msra.mxu0 %v4795
        %4861 = vmatmul.f32.gmra.mxu0 %v4822
        %v4862 = vpop.f32.mrf.mxu0
        %v4863 = vadd.f32 0.0, %v4862
        %4864 = vmatmul.f32.gmra.mxu0 %v4825
        %v4865 = vpop.f32.mrf.mxu0
        %v4866 = vadd.f32 0.0, %v4865
        %4867 = vmatmul.f32.gmra.mxu0 %v4828
        %v4868 = vpop.f32.mrf.mxu0
        %v4869 = vadd.f32 0.0, %v4868
        %4870 = vmatmul.f32.gmra.mxu0 %v4831
        %v4871 = vpop.f32.mrf.mxu0
        %v4872 = vadd.f32 0.0, %v4871
        %4873 = vmatmul.f32.gmra.mxu0 %v4834
        %v4874 = vpop.f32.mrf.mxu0
        %v4875 = vadd.f32 0.0, %v4874
        %4876 = vmatmul.f32.gmra.mxu0 %v4837
        %v4877 = vpop.f32.mrf.mxu0
        %v4878 = vadd.f32 0.0, %v4877
        %4879 = vmatmul.f32.gmra.mxu0 %v4840
        %v4880 = vpop.f32.mrf.mxu0
        %v4881 = vadd.f32 0.0, %v4880
        %4882 = vdwg.mxu0
        %v4883 = vadd.f32 %v4761, %v4863
        %v4884 = vadd.f32 %v4762, %v4866
        %v4885 = vadd.f32 %v4763, %v4869
        %v4886 = vadd.f32 %v4764, %v4872
        %v4887 = vadd.f32 %v4765, %v4875
        %v4888 = vadd.f32 %v4766, %v4878
        %v4889 = vadd.f32 %v4767, %v4881
        %s4890 = scalar_lea.vmem [#allocation9], 64
        %v4891 = vld [vmem:[%s4890] sm:$0xf]
        %v4892 = vld [vmem:[%s4890 + $0x4] sm:$0xf]
        %v4893 = vld [vmem:[%s4890 + $0x8] sm:$0xf]
        %v4894 = vld [vmem:[%s4890 + $0xc] sm:$0xf]
        %v4899 = vunpack.c.l.b16 %v4891
        %v4900 = vunpack.c.l.b16 %v4892
        %v4901 = vunpack.c.l.b16 %v4893
        %v4902 = vunpack.c.l.b16 %v4894
        %v4903 = vpack.c.b16 %v4900, %v4899
        %v4904 = vpack.c.b16 %v4902, %v4901
        %4907 = vmatpush.bf16.msra.mxu0 0
        %4908 = vmatpush.bf16.msra.mxu0 0
        %4909 = vmatpush.bf16.msra.mxu0 0
        %4910 = vmatpush.bf16.msra.mxu0 0
        %4911 = vmatpush.bf16.msra.mxu0 0
        %4912 = vmatpush.bf16.msra.mxu0 0
        %4913 = vmatpush.bf16.msra.mxu0 %v4904
        %4914 = vmatpush.bf16.msra.mxu0 %v4903
        %4915 = vmatmul.bf16.gmra.mxu0 %v4421
        %v4916 = vpop.f32.mrf.mxu0
        %v4917 = vadd.f32 0.0, %v4916
        %v4918 = vpop.f32.mrf.mxu0
        %v4919 = vadd.f32 0.0, %v4918
        %4920 = vmatmul.bf16.gmra.mxu0 %v4424
        %v4921 = vpop.f32.mrf.mxu0
        %v4922 = vadd.f32 0.0, %v4921
        %v4923 = vpop.f32.mrf.mxu0
        %v4924 = vadd.f32 0.0, %v4923
        %4925 = vmatmul.bf16.gmra.mxu0 %v4427
        %v4926 = vpop.f32.mrf.mxu0
        %v4927 = vadd.f32 0.0, %v4926
        %v4928 = vpop.f32.mrf.mxu0
        %v4929 = vadd.f32 0.0, %v4928
        %4930 = vmatmul.bf16.gmra.mxu0 %v4430
        %v4931 = vpop.f32.mrf.mxu0
        %v4932 = vadd.f32 0.0, %v4931
        %v4933 = vpop.f32.mrf.mxu0
        %4934 = vdwg.mxu0
        %s4935 = scalar_lea.vmem [#allocation4], 224
        %v4936 = vld [vmem:[%s4935] sm:$0xff]
        %v4937 = vld [vmem:[%s4935 + $0x8] sm:$0xff]
        %v4938 = vld [vmem:[%s4935 + $0x10] sm:$0xff]
        %v4939 = vld [vmem:[%s4935 + $0x18] sm:$0xff]
        %v4940 = vld [vmem:[%s4935 + $0x20] sm:$0xff]
        %v4941 = vld [vmem:[%s4935 + $0x28] sm:$0xff]
        %v4942 = vld [vmem:[%s4935 + $0x30] sm:$0x1]
        %v4944 = vsel %vm4520, %v4936, 0
        %v4947 = vsel %vm4520, %v4937, 0
        %v4950 = vsel %vm4520, %v4938, 0
        %v4953 = vsel %vm4520, %v4939, 0
        %v4956 = vsel %vm4520, %v4940, 0
        %v4959 = vsel %vm4520, %v4941, 0
        %v4962 = vsel %vm4520, %v4942, 0
        %v4965 = vsel %vm4542, %v4932, 0
        %4967 = vmatpush.msra.mxu0 0.0
        %4968 = vmatpush.msra.mxu0 0.0
        %4969 = vmatpush.msra.mxu0 0.0
        %4970 = vmatpush.msra.mxu0 0.0
        %4971 = vmatpush.msra.mxu0 0.0
        %4972 = vmatpush.msra.mxu0 0.0
        %4973 = vmatpush.msra.mxu0 0.0
        %4974 = vmatpush.msra.mxu0 0.0
        %4975 = vmatpush.msra.mxu0 0.0
        %4976 = vmatpush.msra.mxu0 %v4965
        %4977 = vmatpush.msra.mxu0 %v4929
        %4978 = vmatpush.msra.mxu0 %v4927
        %4979 = vmatpush.msra.mxu0 %v4924
        %4980 = vmatpush.msra.mxu0 %v4922
        %4981 = vmatpush.msra.mxu0 %v4919
        %4982 = vmatpush.msra.mxu0 %v4917
        %4983 = vmatmul.f32.gmra.mxu0 %v4944
        %v4984 = vpop.f32.mrf.mxu0
        %v4985 = vadd.f32 0.0, %v4984
        %4986 = vmatmul.f32.gmra.mxu0 %v4947
        %v4987 = vpop.f32.mrf.mxu0
        %v4988 = vadd.f32 0.0, %v4987
        %4989 = vmatmul.f32.gmra.mxu0 %v4950
        %v4990 = vpop.f32.mrf.mxu0
        %v4991 = vadd.f32 0.0, %v4990
        %4992 = vmatmul.f32.gmra.mxu0 %v4953
        %v4993 = vpop.f32.mrf.mxu0
        %v4994 = vadd.f32 0.0, %v4993
        %4995 = vmatmul.f32.gmra.mxu0 %v4956
        %v4996 = vpop.f32.mrf.mxu0
        %v4997 = vadd.f32 0.0, %v4996
        %4998 = vmatmul.f32.gmra.mxu0 %v4959
        %v4999 = vpop.f32.mrf.mxu0
        %v5000 = vadd.f32 0.0, %v4999
        %5001 = vmatmul.f32.gmra.mxu0 %v4962
        %v5002 = vpop.f32.mrf.mxu0
        %v5003 = vadd.f32 0.0, %v5002
        %5004 = vdwg.mxu0
        %v5005 = vadd.f32 %v4883, %v4985
        %v5006 = vadd.f32 %v4884, %v4988
        %v5007 = vadd.f32 %v4885, %v4991
        %v5008 = vadd.f32 %v4886, %v4994
        %v5009 = vadd.f32 %v4887, %v4997
        %v5010 = vadd.f32 %v4888, %v5000
        %v5011 = vadd.f32 %v4889, %v5003
        %s5012 = scalar_lea.vmem [#allocation9], 80
        %v5013 = vld [vmem:[%s5012] sm:$0xf]
        %v5014 = vld [vmem:[%s5012 + $0x4] sm:$0xf]
        %v5015 = vld [vmem:[%s5012 + $0x8] sm:$0xf]
        %v5016 = vld [vmem:[%s5012 + $0xc] sm:$0xf]
        %v5021 = vunpack.c.l.b16 %v5013
        %v5022 = vunpack.c.l.b16 %v5014
        %v5023 = vunpack.c.l.b16 %v5015
        %v5024 = vunpack.c.l.b16 %v5016
        %v5025 = vpack.c.b16 %v5022, %v5021
        %v5026 = vpack.c.b16 %v5024, %v5023
        %5029 = vmatpush.bf16.msra.mxu0 0
        %5030 = vmatpush.bf16.msra.mxu0 0
        %5031 = vmatpush.bf16.msra.mxu0 0
        %5032 = vmatpush.bf16.msra.mxu0 0
        %5033 = vmatpush.bf16.msra.mxu0 0
        %5034 = vmatpush.bf16.msra.mxu0 0
        %5035 = vmatpush.bf16.msra.mxu0 %v5026
        %5036 = vmatpush.bf16.msra.mxu0 %v5025
        %5037 = vmatmul.bf16.gmra.mxu0 %v4421
        %v5038 = vpop.f32.mrf.mxu0
        %v5039 = vadd.f32 0.0, %v5038
        %v5040 = vpop.f32.mrf.mxu0
        %v5041 = vadd.f32 0.0, %v5040
        %5042 = vmatmul.bf16.gmra.mxu0 %v4424
        %v5043 = vpop.f32.mrf.mxu0
        %v5044 = vadd.f32 0.0, %v5043
        %v5045 = vpop.f32.mrf.mxu0
        %v5046 = vadd.f32 0.0, %v5045
        %5047 = vmatmul.bf16.gmra.mxu0 %v4427
        %v5048 = vpop.f32.mrf.mxu0
        %v5049 = vadd.f32 0.0, %v5048
        %v5050 = vpop.f32.mrf.mxu0
        %v5051 = vadd.f32 0.0, %v5050
        %5052 = vmatmul.bf16.gmra.mxu0 %v4430
        %v5053 = vpop.f32.mrf.mxu0
        %v5054 = vadd.f32 0.0, %v5053
        %v5055 = vpop.f32.mrf.mxu0
        %5056 = vdwg.mxu0
        %s5057 = scalar_lea.vmem [#allocation4], 280
        %v5058 = vld [vmem:[%s5057] sm:$0xff]
        %v5059 = vld [vmem:[%s5057 + $0x8] sm:$0xff]
        %v5060 = vld [vmem:[%s5057 + $0x10] sm:$0xff]
        %v5061 = vld [vmem:[%s5057 + $0x18] sm:$0xff]
        %v5062 = vld [vmem:[%s5057 + $0x20] sm:$0xff]
        %v5063 = vld [vmem:[%s5057 + $0x28] sm:$0xff]
        %v5064 = vld [vmem:[%s5057 + $0x30] sm:$0x1]
        %v5066 = vsel %vm4520, %v5058, 0
        %v5069 = vsel %vm4520, %v5059, 0
        %v5072 = vsel %vm4520, %v5060, 0
        %v5075 = vsel %vm4520, %v5061, 0
        %v5078 = vsel %vm4520, %v5062, 0
        %v5081 = vsel %vm4520, %v5063, 0
        %v5084 = vsel %vm4520, %v5064, 0
        %v5087 = vsel %vm4542, %v5054, 0
        %5089 = vmatpush.msra.mxu0 0.0
        %5090 = vmatpush.msra.mxu0 0.0
        %5091 = vmatpush.msra.mxu0 0.0
        %5092 = vmatpush.msra.mxu0 0.0
        %5093 = vmatpush.msra.mxu0 0.0
        %5094 = vmatpush.msra.mxu0 0.0
        %5095 = vmatpush.msra.mxu0 0.0
        %5096 = vmatpush.msra.mxu0 0.0
        %5097 = vmatpush.msra.mxu0 0.0
        %5098 = vmatpush.msra.mxu0 %v5087
        %5099 = vmatpush.msra.mxu0 %v5051
        %5100 = vmatpush.msra.mxu0 %v5049
        %5101 = vmatpush.msra.mxu0 %v5046
        %5102 = vmatpush.msra.mxu0 %v5044
        %5103 = vmatpush.msra.mxu0 %v5041
        %5104 = vmatpush.msra.mxu0 %v5039
        %5105 = vmatmul.f32.gmra.mxu0 %v5066
        %v5106 = vpop.f32.mrf.mxu0
        %v5107 = vadd.f32 0.0, %v5106
        %5108 = vmatmul.f32.gmra.mxu0 %v5069
        %v5109 = vpop.f32.mrf.mxu0
        %v5110 = vadd.f32 0.0, %v5109
        %5111 = vmatmul.f32.gmra.mxu0 %v5072
        %v5112 = vpop.f32.mrf.mxu0
        %v5113 = vadd.f32 0.0, %v5112
        %5114 = vmatmul.f32.gmra.mxu0 %v5075
        %v5115 = vpop.f32.mrf.mxu0
        %v5116 = vadd.f32 0.0, %v5115
        %5117 = vmatmul.f32.gmra.mxu0 %v5078
        %v5118 = vpop.f32.mrf.mxu0
        %v5119 = vadd.f32 0.0, %v5118
        %5120 = vmatmul.f32.gmra.mxu0 %v5081
        %v5121 = vpop.f32.mrf.mxu0
        %v5122 = vadd.f32 0.0, %v5121
        %5123 = vmatmul.f32.gmra.mxu0 %v5084
        %v5124 = vpop.f32.mrf.mxu0
        %v5125 = vadd.f32 0.0, %v5124
        %5126 = vdwg.mxu0
        %v5127 = vadd.f32 %v5005, %v5107
        %v5128 = vadd.f32 %v5006, %v5110
        %v5129 = vadd.f32 %v5007, %v5113
        %v5130 = vadd.f32 %v5008, %v5116
        %v5131 = vadd.f32 %v5009, %v5119
        %v5132 = vadd.f32 %v5010, %v5122
        %v5133 = vadd.f32 %v5011, %v5125
        %s5134 = scalar_lea.vmem [#allocation9], 96
        %v5135 = vld [vmem:[%s5134] sm:$0xf]
        %v5136 = vld [vmem:[%s5134 + $0x4] sm:$0xf]
        %v5137 = vld [vmem:[%s5134 + $0x8] sm:$0xf]
        %v5138 = vld [vmem:[%s5134 + $0xc] sm:$0xf]
        %v5143 = vunpack.c.l.b16 %v5135
        %v5144 = vunpack.c.l.b16 %v5136
        %v5145 = vunpack.c.l.b16 %v5137
        %v5146 = vunpack.c.l.b16 %v5138
        %v5147 = vpack.c.b16 %v5144, %v5143
        %v5148 = vpack.c.b16 %v5146, %v5145
        %5151 = vmatpush.bf16.msra.mxu0 0
        %5152 = vmatpush.bf16.msra.mxu0 0
        %5153 = vmatpush.bf16.msra.mxu0 0
        %5154 = vmatpush.bf16.msra.mxu0 0
        %5155 = vmatpush.bf16.msra.mxu0 0
        %5156 = vmatpush.bf16.msra.mxu0 0
        %5157 = vmatpush.bf16.msra.mxu0 %v5148
        %5158 = vmatpush.bf16.msra.mxu0 %v5147
        %5159 = vmatmul.bf16.gmra.mxu0 %v4421
        %v5160 = vpop.f32.mrf.mxu0
        %v5161 = vadd.f32 0.0, %v5160
        %v5162 = vpop.f32.mrf.mxu0
        %v5163 = vadd.f32 0.0, %v5162
        %5164 = vmatmul.bf16.gmra.mxu0 %v4424
        %v5165 = vpop.f32.mrf.mxu0
        %v5166 = vadd.f32 0.0, %v5165
        %v5167 = vpop.f32.mrf.mxu0
        %v5168 = vadd.f32 0.0, %v5167
        %5169 = vmatmul.bf16.gmra.mxu0 %v4427
        %v5170 = vpop.f32.mrf.mxu0
        %v5171 = vadd.f32 0.0, %v5170
        %v5172 = vpop.f32.mrf.mxu0
        %v5173 = vadd.f32 0.0, %v5172
        %5174 = vmatmul.bf16.gmra.mxu0 %v4430
        %v5175 = vpop.f32.mrf.mxu0
        %v5176 = vadd.f32 0.0, %v5175
        %v5177 = vpop.f32.mrf.mxu0
        %5178 = vdwg.mxu0
        %s5179 = scalar_lea.vmem [#allocation4], 336
        %v5180 = vld [vmem:[%s5179] sm:$0xff]
        %v5181 = vld [vmem:[%s5179 + $0x8] sm:$0xff]
        %v5182 = vld [vmem:[%s5179 + $0x10] sm:$0xff]
        %v5183 = vld [vmem:[%s5179 + $0x18] sm:$0xff]
        %v5184 = vld [vmem:[%s5179 + $0x20] sm:$0xff]
        %v5185 = vld [vmem:[%s5179 + $0x28] sm:$0xff]
        %v5186 = vld [vmem:[%s5179 + $0x30] sm:$0x1]
        %v5188 = vsel %vm4520, %v5180, 0
        %v5191 = vsel %vm4520, %v5181, 0
        %v5194 = vsel %vm4520, %v5182, 0
        %v5197 = vsel %vm4520, %v5183, 0
        %v5200 = vsel %vm4520, %v5184, 0
        %v5203 = vsel %vm4520, %v5185, 0
        %v5206 = vsel %vm4520, %v5186, 0
        %v5209 = vsel %vm4542, %v5176, 0
        %5211 = vmatpush.msra.mxu0 0.0
        %5212 = vmatpush.msra.mxu0 0.0
        %5213 = vmatpush.msra.mxu0 0.0
        %5214 = vmatpush.msra.mxu0 0.0
        %5215 = vmatpush.msra.mxu0 0.0
        %5216 = vmatpush.msra.mxu0 0.0
        %5217 = vmatpush.msra.mxu0 0.0
        %5218 = vmatpush.msra.mxu0 0.0
        %5219 = vmatpush.msra.mxu0 0.0
        %5220 = vmatpush.msra.mxu0 %v5209
        %5221 = vmatpush.msra.mxu0 %v5173
        %5222 = vmatpush.msra.mxu0 %v5171
        %5223 = vmatpush.msra.mxu0 %v5168
        %5224 = vmatpush.msra.mxu0 %v5166
        %5225 = vmatpush.msra.mxu0 %v5163
        %5226 = vmatpush.msra.mxu0 %v5161
        %5227 = vmatmul.f32.gmra.mxu0 %v5188
        %v5228 = vpop.f32.mrf.mxu0
        %v5229 = vadd.f32 0.0, %v5228
        %5230 = vmatmul.f32.gmra.mxu0 %v5191
        %v5231 = vpop.f32.mrf.mxu0
        %v5232 = vadd.f32 0.0, %v5231
        %5233 = vmatmul.f32.gmra.mxu0 %v5194
        %v5234 = vpop.f32.mrf.mxu0
        %v5235 = vadd.f32 0.0, %v5234
        %5236 = vmatmul.f32.gmra.mxu0 %v5197
        %v5237 = vpop.f32.mrf.mxu0
        %v5238 = vadd.f32 0.0, %v5237
        %5239 = vmatmul.f32.gmra.mxu0 %v5200
        %v5240 = vpop.f32.mrf.mxu0
        %v5241 = vadd.f32 0.0, %v5240
        %5242 = vmatmul.f32.gmra.mxu0 %v5203
        %v5243 = vpop.f32.mrf.mxu0
        %v5244 = vadd.f32 0.0, %v5243
        %5245 = vmatmul.f32.gmra.mxu0 %v5206
        %v5246 = vpop.f32.mrf.mxu0
        %v5247 = vadd.f32 0.0, %v5246
        %5248 = vdwg.mxu0
        %v5249 = vadd.f32 %v5127, %v5229
        %v5250 = vadd.f32 %v5128, %v5232
        %v5251 = vadd.f32 %v5129, %v5235
        %v5252 = vadd.f32 %v5130, %v5238
        %v5253 = vadd.f32 %v5131, %v5241
        %v5254 = vadd.f32 %v5132, %v5244
        %v5255 = vadd.f32 %v5133, %v5247
        %s5256 = scalar_lea.vmem [#allocation9], 112
        %v5257 = vld [vmem:[%s5256] sm:$0xf]
        %v5258 = vld [vmem:[%s5256 + $0x4] sm:$0xf]
        %v5259 = vld [vmem:[%s5256 + $0x8] sm:$0xf]
        %v5260 = vld [vmem:[%s5256 + $0xc] sm:$0xf]
        %v5265 = vunpack.c.l.b16 %v5257
        %v5266 = vunpack.c.l.b16 %v5258
        %v5267 = vunpack.c.l.b16 %v5259
        %v5268 = vunpack.c.l.b16 %v5260
        %v5269 = vpack.c.b16 %v5266, %v5265
        %v5270 = vpack.c.b16 %v5268, %v5267
        %5273 = vmatpush.bf16.msra.mxu0 0
        %5274 = vmatpush.bf16.msra.mxu0 0
        %5275 = vmatpush.bf16.msra.mxu0 0
        %5276 = vmatpush.bf16.msra.mxu0 0
        %5277 = vmatpush.bf16.msra.mxu0 0
        %5278 = vmatpush.bf16.msra.mxu0 0
        %5279 = vmatpush.bf16.msra.mxu0 %v5270
        %5280 = vmatpush.bf16.msra.mxu0 %v5269
        %5281 = vmatmul.bf16.gmra.mxu0 %v4421
        %v5282 = vpop.f32.mrf.mxu0
        %v5283 = vadd.f32 0.0, %v5282
        %v5284 = vpop.f32.mrf.mxu0
        %v5285 = vadd.f32 0.0, %v5284
        %5286 = vmatmul.bf16.gmra.mxu0 %v4424
        %v5287 = vpop.f32.mrf.mxu0
        %v5288 = vadd.f32 0.0, %v5287
        %v5289 = vpop.f32.mrf.mxu0
        %v5290 = vadd.f32 0.0, %v5289
        %5291 = vmatmul.bf16.gmra.mxu0 %v4427
        %v5292 = vpop.f32.mrf.mxu0
        %v5293 = vadd.f32 0.0, %v5292
        %v5294 = vpop.f32.mrf.mxu0
        %v5295 = vadd.f32 0.0, %v5294
        %5296 = vmatmul.bf16.gmra.mxu0 %v4430
        %v5297 = vpop.f32.mrf.mxu0
        %v5298 = vadd.f32 0.0, %v5297
        %v5299 = vpop.f32.mrf.mxu0
        %5300 = vdwg.mxu0
        %s5301 = scalar_lea.vmem [#allocation4], 392
        %v5302 = vld [vmem:[%s5301] sm:$0xff]
        %v5303 = vld [vmem:[%s5301 + $0x8] sm:$0xff]
        %v5304 = vld [vmem:[%s5301 + $0x10] sm:$0xff]
        %v5305 = vld [vmem:[%s5301 + $0x18] sm:$0xff]
        %v5306 = vld [vmem:[%s5301 + $0x20] sm:$0xff]
        %v5307 = vld [vmem:[%s5301 + $0x28] sm:$0xff]
        %v5308 = vld [vmem:[%s5301 + $0x30] sm:$0x1]
        %v5310 = vsel %vm4520, %v5302, 0
        %v5313 = vsel %vm4520, %v5303, 0
        %v5316 = vsel %vm4520, %v5304, 0
        %v5319 = vsel %vm4520, %v5305, 0
        %v5322 = vsel %vm4520, %v5306, 0
        %v5325 = vsel %vm4520, %v5307, 0
        %v5328 = vsel %vm4520, %v5308, 0
        %v5331 = vsel %vm4542, %v5298, 0
        %5333 = vmatpush.msra.mxu0 0.0
        %5334 = vmatpush.msra.mxu0 0.0
        %5335 = vmatpush.msra.mxu0 0.0
        %5336 = vmatpush.msra.mxu0 0.0
        %5337 = vmatpush.msra.mxu0 0.0
        %5338 = vmatpush.msra.mxu0 0.0
        %5339 = vmatpush.msra.mxu0 0.0
        %5340 = vmatpush.msra.mxu0 0.0
        %5341 = vmatpush.msra.mxu0 0.0
        %5342 = vmatpush.msra.mxu0 %v5331
        %5343 = vmatpush.msra.mxu0 %v5295
        %5344 = vmatpush.msra.mxu0 %v5293
        %5345 = vmatpush.msra.mxu0 %v5290
        %5346 = vmatpush.msra.mxu0 %v5288
        %5347 = vmatpush.msra.mxu0 %v5285
        %5348 = vmatpush.msra.mxu0 %v5283
        %5349 = vmatmul.f32.gmra.mxu0 %v5310
        %v5350 = vpop.f32.mrf.mxu0
        %v5351 = vadd.f32 0.0, %v5350
        %5352 = vmatmul.f32.gmra.mxu0 %v5313
        %v5353 = vpop.f32.mrf.mxu0
        %v5354 = vadd.f32 0.0, %v5353
        %5355 = vmatmul.f32.gmra.mxu0 %v5316
        %v5356 = vpop.f32.mrf.mxu0
        %v5357 = vadd.f32 0.0, %v5356
        %5358 = vmatmul.f32.gmra.mxu0 %v5319
        %v5359 = vpop.f32.mrf.mxu0
        %v5360 = vadd.f32 0.0, %v5359
        %5361 = vmatmul.f32.gmra.mxu0 %v5322
        %v5362 = vpop.f32.mrf.mxu0
        %v5363 = vadd.f32 0.0, %v5362
        %5364 = vmatmul.f32.gmra.mxu0 %v5325
        %v5365 = vpop.f32.mrf.mxu0
        %v5366 = vadd.f32 0.0, %v5365
        %5367 = vmatmul.f32.gmra.mxu0 %v5328
        %v5368 = vpop.f32.mrf.mxu0
        %v5369 = vadd.f32 0.0, %v5368
        %5370 = vdwg.mxu0
        %v5371 = vadd.f32 %v5249, %v5351
        %v5372 = vadd.f32 %v5250, %v5354
        %v5373 = vadd.f32 %v5251, %v5357
        %v5374 = vadd.f32 %v5252, %v5360
        %v5375 = vadd.f32 %v5253, %v5363
        %v5376 = vadd.f32 %v5254, %v5366
        %v5377 = vadd.f32 %v5255, %v5369
        %s5378 = scalar_lea.vmem [#allocation9], 128
        %v5379 = vld [vmem:[%s5378] sm:$0xf]
        %v5380 = vld [vmem:[%s5378 + $0x4] sm:$0xf]
        %v5381 = vld [vmem:[%s5378 + $0x8] sm:$0xf]
        %v5382 = vld [vmem:[%s5378 + $0xc] sm:$0xf]
        %v5387 = vunpack.c.l.b16 %v5379
        %v5388 = vunpack.c.l.b16 %v5380
        %v5389 = vunpack.c.l.b16 %v5381
        %v5390 = vunpack.c.l.b16 %v5382
        %v5391 = vpack.c.b16 %v5388, %v5387
        %v5392 = vpack.c.b16 %v5390, %v5389
        %5395 = vmatpush.bf16.msra.mxu0 0
        %5396 = vmatpush.bf16.msra.mxu0 0
        %5397 = vmatpush.bf16.msra.mxu0 0
        %5398 = vmatpush.bf16.msra.mxu0 0
        %5399 = vmatpush.bf16.msra.mxu0 0
        %5400 = vmatpush.bf16.msra.mxu0 0
        %5401 = vmatpush.bf16.msra.mxu0 %v5392
        %5402 = vmatpush.bf16.msra.mxu0 %v5391
        %5403 = vmatmul.bf16.gmra.mxu0 %v4421
        %v5404 = vpop.f32.mrf.mxu0
        %v5405 = vadd.f32 0.0, %v5404
        %v5406 = vpop.f32.mrf.mxu0
        %v5407 = vadd.f32 0.0, %v5406
        %5408 = vmatmul.bf16.gmra.mxu0 %v4424
        %v5409 = vpop.f32.mrf.mxu0
        %v5410 = vadd.f32 0.0, %v5409
        %v5411 = vpop.f32.mrf.mxu0
        %v5412 = vadd.f32 0.0, %v5411
        %5413 = vmatmul.bf16.gmra.mxu0 %v4427
        %v5414 = vpop.f32.mrf.mxu0
        %v5415 = vadd.f32 0.0, %v5414
        %v5416 = vpop.f32.mrf.mxu0
        %v5417 = vadd.f32 0.0, %v5416
        %5418 = vmatmul.bf16.gmra.mxu0 %v4430
        %v5419 = vpop.f32.mrf.mxu0
        %v5420 = vadd.f32 0.0, %v5419
        %v5421 = vpop.f32.mrf.mxu0
        %5422 = vdwg.mxu0
        %s5423 = scalar_lea.vmem [#allocation4], 448
        %v5424 = vld [vmem:[%s5423] sm:$0xff]
        %v5425 = vld [vmem:[%s5423 + $0x8] sm:$0xff]
        %v5426 = vld [vmem:[%s5423 + $0x10] sm:$0xff]
        %v5427 = vld [vmem:[%s5423 + $0x18] sm:$0xff]
        %v5428 = vld [vmem:[%s5423 + $0x20] sm:$0xff]
        %v5429 = vld [vmem:[%s5423 + $0x28] sm:$0xff]
        %v5430 = vld [vmem:[%s5423 + $0x30] sm:$0x1]
        %v5432 = vsel %vm4520, %v5424, 0
        %v5435 = vsel %vm4520, %v5425, 0
        %v5438 = vsel %vm4520, %v5426, 0
        %v5441 = vsel %vm4520, %v5427, 0
        %v5444 = vsel %vm4520, %v5428, 0
        %v5447 = vsel %vm4520, %v5429, 0
        %v5450 = vsel %vm4520, %v5430, 0
        %v5453 = vsel %vm4542, %v5420, 0
        %5455 = vmatpush.msra.mxu0 0.0
        %5456 = vmatpush.msra.mxu0 0.0
        %5457 = vmatpush.msra.mxu0 0.0
        %5458 = vmatpush.msra.mxu0 0.0
        %5459 = vmatpush.msra.mxu0 0.0
        %5460 = vmatpush.msra.mxu0 0.0
        %5461 = vmatpush.msra.mxu0 0.0
        %5462 = vmatpush.msra.mxu0 0.0
        %5463 = vmatpush.msra.mxu0 0.0
        %5464 = vmatpush.msra.mxu0 %v5453
        %5465 = vmatpush.msra.mxu0 %v5417
        %5466 = vmatpush.msra.mxu0 %v5415
        %5467 = vmatpush.msra.mxu0 %v5412
        %5468 = vmatpush.msra.mxu0 %v5410
        %5469 = vmatpush.msra.mxu0 %v5407
        %5470 = vmatpush.msra.mxu0 %v5405
        %5471 = vmatmul.f32.gmra.mxu0 %v5432
        %v5472 = vpop.f32.mrf.mxu0
        %v5473 = vadd.f32 0.0, %v5472
        %5474 = vmatmul.f32.gmra.mxu0 %v5435
        %v5475 = vpop.f32.mrf.mxu0
        %v5476 = vadd.f32 0.0, %v5475
        %5477 = vmatmul.f32.gmra.mxu0 %v5438
        %v5478 = vpop.f32.mrf.mxu0
        %v5479 = vadd.f32 0.0, %v5478
        %5480 = vmatmul.f32.gmra.mxu0 %v5441
        %v5481 = vpop.f32.mrf.mxu0
        %v5482 = vadd.f32 0.0, %v5481
        %5483 = vmatmul.f32.gmra.mxu0 %v5444
        %v5484 = vpop.f32.mrf.mxu0
        %v5485 = vadd.f32 0.0, %v5484
        %5486 = vmatmul.f32.gmra.mxu0 %v5447
        %v5487 = vpop.f32.mrf.mxu0
        %v5488 = vadd.f32 0.0, %v5487
        %5489 = vmatmul.f32.gmra.mxu0 %v5450
        %v5490 = vpop.f32.mrf.mxu0
        %v5491 = vadd.f32 0.0, %v5490
        %5492 = vdwg.mxu0
        %v5493 = vadd.f32 %v5371, %v5473
        %v5494 = vadd.f32 %v5372, %v5476
        %v5495 = vadd.f32 %v5373, %v5479
        %v5496 = vadd.f32 %v5374, %v5482
        %v5497 = vadd.f32 %v5375, %v5485
        %v5498 = vadd.f32 %v5376, %v5488
        %v5499 = vadd.f32 %v5377, %v5491
        %v5500 = vld [vmem:[#allocation10] sm:$0x1]
        %v5502 = vperm.slane %v5500, 0
        %v5504 = vadd.f32 %v5493, %v5502
        %v5505 = vadd.f32 %v5494, %v5502
        %v5506 = vadd.f32 %v5495, %v5502
        %v5507 = vadd.f32 %v5496, %v5502
        %v5508 = vadd.f32 %v5497, %v5502
        %v5509 = vadd.f32 %v5498, %v5502
        %v5510 = vadd.f32 %v5499, %v5502
        %v5511 = vmax.f32 %v5504, 0.0
        %v5512 = vmax.f32 %v5505, 0.0
        %v5513 = vmax.f32 %v5506, 0.0
        %v5514 = vmax.f32 %v5507, 0.0
        %v5515 = vmax.f32 %v5508, 0.0
        %v5516 = vmax.f32 %v5509, 0.0
        %v5517 = vmax.f32 %v5510, 0.0
        %v5518 = vpack.c.bf16 %v5512, %v5511
        %v5519 = vpack.c.bf16 %v5514, %v5513
        %v5520 = vpack.c.bf16 %v5516, %v5515
        %v5521 = vpack.c.bf16 %v5517, %v5517
        %v5522 = vld [vmem:[#allocation12] sm:$0xf]
        %v5523 = vld [vmem:[#allocation12 + $0x4] sm:$0xf]
        %v5524 = vld [vmem:[#allocation12 + $0x8] sm:$0xf]
        %v5525 = vld [vmem:[#allocation12 + $0xc] sm:$0xf]
        %v5526 = vld [vmem:[#allocation12 + $0x10] sm:$0xf]
        %v5527 = vld [vmem:[#allocation12 + $0x14] sm:$0xf]
        %v5528 = vld [vmem:[#allocation12 + $0x18] sm:$0xf]
        %v5529 = vld [vmem:[#allocation12 + $0x1c] sm:$0xf]
        %v5538 = vunpack.c.l.b16 %v5522
        %v5539 = vunpack.c.l.b16 %v5523
        %v5540 = vunpack.c.l.b16 %v5524
        %v5541 = vunpack.c.l.b16 %v5525
        %v5542 = vunpack.c.l.b16 %v5526
        %v5543 = vunpack.c.l.b16 %v5527
        %v5544 = vunpack.c.l.b16 %v5528
        %v5545 = vunpack.c.l.b16 %v5529
        %v5546 = vpack.c.b16 %v5539, %v5538
        %v5547 = vpack.c.b16 %v5541, %v5540
        %v5548 = vpack.c.b16 %v5543, %v5542
        %v5549 = vpack.c.b16 %v5545, %v5544
        %vm5554 = vcmask 523264
        %v5556 = vsel %vm5554, %v5518, 0
        %v5559 = vsel %vm5554, %v5519, 0
        %v5562 = vsel %vm5554, %v5520, 0
        %v5565 = vsel %vm5554, %v5521, 0
        %5567 = vmatpush.bf16.msra.mxu0 0
        %5568 = vmatpush.bf16.msra.mxu0 0
        %5569 = vmatpush.bf16.msra.mxu0 0
        %5570 = vmatpush.bf16.msra.mxu0 0
        %5571 = vmatpush.bf16.msra.mxu0 %v5549
        %5572 = vmatpush.bf16.msra.mxu0 %v5548
        %5573 = vmatpush.bf16.msra.mxu0 %v5547
        %5574 = vmatpush.bf16.msra.mxu0 %v5546
        %5575 = vmatmul.bf16.gmra.mxu0 %v5556
        %v5576 = vpop.f32.mrf.mxu0
        %v5577 = vadd.f32 0.0, %v5576
        %v5578 = vpop.f32.mrf.mxu0
        %v5579 = vadd.f32 0.0, %v5578
        %5580 = vmatmul.bf16.gmra.mxu0 %v5559
        %v5581 = vpop.f32.mrf.mxu0
        %v5582 = vadd.f32 0.0, %v5581
        %v5583 = vpop.f32.mrf.mxu0
        %v5584 = vadd.f32 0.0, %v5583
        %5585 = vmatmul.bf16.gmra.mxu0 %v5562
        %v5586 = vpop.f32.mrf.mxu0
        %v5587 = vadd.f32 0.0, %v5586
        %v5588 = vpop.f32.mrf.mxu0
        %v5589 = vadd.f32 0.0, %v5588
        %5590 = vmatmul.bf16.gmra.mxu0 %v5565
        %v5591 = vpop.f32.mrf.mxu0
        %v5592 = vadd.f32 0.0, %v5591
        %v5593 = vpop.f32.mrf.mxu0
        %5594 = vdwg.mxu0
        %s5595 = scalar_lea.vmem [#allocation12], 32
        %v5596 = vld [vmem:[%s5595] sm:$0xf]
        %v5597 = vld [vmem:[%s5595 + $0x4] sm:$0xf]
        %v5598 = vld [vmem:[%s5595 + $0x8] sm:$0xf]
        %v5599 = vld [vmem:[%s5595 + $0xc] sm:$0xf]
        %v5600 = vld [vmem:[%s5595 + $0x10] sm:$0xf]
        %v5601 = vld [vmem:[%s5595 + $0x14] sm:$0xf]
        %v5602 = vld [vmem:[%s5595 + $0x18] sm:$0xf]
        %v5603 = vld [vmem:[%s5595 + $0x1c] sm:$0xf]
        %v5612 = vunpack.c.l.b16 %v5596
        %v5613 = vunpack.c.l.b16 %v5597
        %v5614 = vunpack.c.l.b16 %v5598
        %v5615 = vunpack.c.l.b16 %v5599
        %v5616 = vunpack.c.l.b16 %v5600
        %v5617 = vunpack.c.l.b16 %v5601
        %v5618 = vunpack.c.l.b16 %v5602
        %v5619 = vunpack.c.l.b16 %v5603
        %v5620 = vpack.c.b16 %v5613, %v5612
        %v5621 = vpack.c.b16 %v5615, %v5614
        %v5622 = vpack.c.b16 %v5617, %v5616
        %v5623 = vpack.c.b16 %v5619, %v5618
        %5628 = vmatpush.bf16.msra.mxu0 0
        %5629 = vmatpush.bf16.msra.mxu0 0
        %5630 = vmatpush.bf16.msra.mxu0 0
        %5631 = vmatpush.bf16.msra.mxu0 0
        %5632 = vmatpush.bf16.msra.mxu0 %v5623
        %5633 = vmatpush.bf16.msra.mxu0 %v5622
        %5634 = vmatpush.bf16.msra.mxu0 %v5621
        %5635 = vmatpush.bf16.msra.mxu0 %v5620
        %5636 = vmatmul.bf16.gmra.mxu0 %v5556
        %v5637 = vpop.f32.mrf.mxu0
        %v5638 = vadd.f32 0.0, %v5637
        %v5639 = vpop.f32.mrf.mxu0
        %v5640 = vadd.f32 0.0, %v5639
        %5641 = vmatmul.bf16.gmra.mxu0 %v5559
        %v5642 = vpop.f32.mrf.mxu0
        %v5643 = vadd.f32 0.0, %v5642
        %v5644 = vpop.f32.mrf.mxu0
        %v5645 = vadd.f32 0.0, %v5644
        %5646 = vmatmul.bf16.gmra.mxu0 %v5562
        %v5647 = vpop.f32.mrf.mxu0
        %v5648 = vadd.f32 0.0, %v5647
        %v5649 = vpop.f32.mrf.mxu0
        %v5650 = vadd.f32 0.0, %v5649
        %5651 = vmatmul.bf16.gmra.mxu0 %v5565
        %v5652 = vpop.f32.mrf.mxu0
        %v5653 = vadd.f32 0.0, %v5652
        %v5654 = vpop.f32.mrf.mxu0
        %5655 = vdwg.mxu0
        %v5657 = vsel %vm4542, %v5653, 0
        %5659 = vmatpush.msra.mxu0 0.0
        %5660 = vmatpush.msra.mxu0 0.0
        %5661 = vmatpush.msra.mxu0 0.0
        %5662 = vmatpush.msra.mxu0 0.0
        %5663 = vmatpush.msra.mxu0 0.0
        %5664 = vmatpush.msra.mxu0 0.0
        %5665 = vmatpush.msra.mxu0 0.0
        %5666 = vmatpush.msra.mxu0 0.0
        %5667 = vmatpush.msra.mxu0 0.0
        %5668 = vmatpush.msra.mxu0 %v5657
        %5669 = vmatpush.msra.mxu0 %v5650
        %5670 = vmatpush.msra.mxu0 %v5648
        %5671 = vmatpush.msra.mxu0 %v5645
        %5672 = vmatpush.msra.mxu0 %v5643
        %5673 = vmatpush.msra.mxu0 %v5640
        %5674 = vmatpush.msra.mxu0 %v5638
        %5675 = vmatmul.f32.gmra.mxu0 %v4522
        %v5676 = vpop.f32.mrf.mxu0
        %v5677 = vadd.f32 0.0, %v5676
        %5678 = vmatmul.f32.gmra.mxu0 %v4525
        %v5679 = vpop.f32.mrf.mxu0
        %v5680 = vadd.f32 0.0, %v5679
        %5681 = vmatmul.f32.gmra.mxu0 %v4528
        %v5682 = vpop.f32.mrf.mxu0
        %v5683 = vadd.f32 0.0, %v5682
        %5684 = vmatmul.f32.gmra.mxu0 %v4531
        %v5685 = vpop.f32.mrf.mxu0
        %v5686 = vadd.f32 0.0, %v5685
        %5687 = vmatmul.f32.gmra.mxu0 %v4534
        %v5688 = vpop.f32.mrf.mxu0
        %v5689 = vadd.f32 0.0, %v5688
        %5690 = vmatmul.f32.gmra.mxu0 %v4537
        %v5691 = vpop.f32.mrf.mxu0
        %v5692 = vadd.f32 0.0, %v5691
        %5693 = vmatmul.f32.gmra.mxu0 %v4540
        %v5694 = vpop.f32.mrf.mxu0
        %v5695 = vadd.f32 0.0, %v5694
        %5696 = vdwg.mxu0
        %v5698 = vsel %vm4542, %v5592, 0
        %5700 = vmatpush.msra.mxu0 0.0
        %5701 = vmatpush.msra.mxu0 0.0
        %5702 = vmatpush.msra.mxu0 0.0
        %5703 = vmatpush.msra.mxu0 0.0
        %5704 = vmatpush.msra.mxu0 0.0
        %5705 = vmatpush.msra.mxu0 0.0
        %5706 = vmatpush.msra.mxu0 0.0
        %5707 = vmatpush.msra.mxu0 0.0
        %5708 = vmatpush.msra.mxu0 0.0
        %5709 = vmatpush.msra.mxu0 %v5698
        %5710 = vmatpush.msra.mxu0 %v5589
        %5711 = vmatpush.msra.mxu0 %v5587
        %5712 = vmatpush.msra.mxu0 %v5584
        %5713 = vmatpush.msra.mxu0 %v5582
        %5714 = vmatpush.msra.mxu0 %v5579
        %5715 = vmatpush.msra.mxu0 %v5577
        %5716 = vmatmul.f32.gmra.mxu0 %v4585
        %v5717 = vpop.f32.mrf.mxu0
        %v5718 = vadd.f32 %v5677, %v5717
        %5719 = vmatmul.f32.gmra.mxu0 %v4588
        %v5720 = vpop.f32.mrf.mxu0
        %v5721 = vadd.f32 %v5680, %v5720
        %5722 = vmatmul.f32.gmra.mxu0 %v4591
        %v5723 = vpop.f32.mrf.mxu0
        %v5724 = vadd.f32 %v5683, %v5723
        %5725 = vmatmul.f32.gmra.mxu0 %v4594
        %v5726 = vpop.f32.mrf.mxu0
        %v5727 = vadd.f32 %v5686, %v5726
        %5728 = vmatmul.f32.gmra.mxu0 %v4597
        %v5729 = vpop.f32.mrf.mxu0
        %v5730 = vadd.f32 %v5689, %v5729
        %5731 = vmatmul.f32.gmra.mxu0 %v4600
        %v5732 = vpop.f32.mrf.mxu0
        %v5733 = vadd.f32 %v5692, %v5732
        %5734 = vmatmul.f32.gmra.mxu0 %v4603
        %v5735 = vpop.f32.mrf.mxu0
        %v5736 = vadd.f32 %v5695, %v5735
        %5737 = vdwg.mxu0
        %s5738 = scalar_lea.vmem [#allocation12], 64
        %v5739 = vld [vmem:[%s5738] sm:$0xf]
        %v5740 = vld [vmem:[%s5738 + $0x4] sm:$0xf]
        %v5741 = vld [vmem:[%s5738 + $0x8] sm:$0xf]
        %v5742 = vld [vmem:[%s5738 + $0xc] sm:$0xf]
        %v5743 = vld [vmem:[%s5738 + $0x10] sm:$0xf]
        %v5744 = vld [vmem:[%s5738 + $0x14] sm:$0xf]
        %v5745 = vld [vmem:[%s5738 + $0x18] sm:$0xf]
        %v5746 = vld [vmem:[%s5738 + $0x1c] sm:$0xf]
        %v5755 = vunpack.c.l.b16 %v5739
        %v5756 = vunpack.c.l.b16 %v5740
        %v5757 = vunpack.c.l.b16 %v5741
        %v5758 = vunpack.c.l.b16 %v5742
        %v5759 = vunpack.c.l.b16 %v5743
        %v5760 = vunpack.c.l.b16 %v5744
        %v5761 = vunpack.c.l.b16 %v5745
        %v5762 = vunpack.c.l.b16 %v5746
        %v5763 = vpack.c.b16 %v5756, %v5755
        %v5764 = vpack.c.b16 %v5758, %v5757
        %v5765 = vpack.c.b16 %v5760, %v5759
        %v5766 = vpack.c.b16 %v5762, %v5761
        %5771 = vmatpush.bf16.msra.mxu0 0
        %5772 = vmatpush.bf16.msra.mxu0 0
        %5773 = vmatpush.bf16.msra.mxu0 0
        %5774 = vmatpush.bf16.msra.mxu0 0
        %5775 = vmatpush.bf16.msra.mxu0 %v5766
        %5776 = vmatpush.bf16.msra.mxu0 %v5765
        %5777 = vmatpush.bf16.msra.mxu0 %v5764
        %5778 = vmatpush.bf16.msra.mxu0 %v5763
        %5779 = vmatmul.bf16.gmra.mxu0 %v5556
        %v5780 = vpop.f32.mrf.mxu0
        %v5781 = vadd.f32 0.0, %v5780
        %v5782 = vpop.f32.mrf.mxu0
        %v5783 = vadd.f32 0.0, %v5782
        %5784 = vmatmul.bf16.gmra.mxu0 %v5559
        %v5785 = vpop.f32.mrf.mxu0
        %v5786 = vadd.f32 0.0, %v5785
        %v5787 = vpop.f32.mrf.mxu0
        %v5788 = vadd.f32 0.0, %v5787
        %5789 = vmatmul.bf16.gmra.mxu0 %v5562
        %v5790 = vpop.f32.mrf.mxu0
        %v5791 = vadd.f32 0.0, %v5790
        %v5792 = vpop.f32.mrf.mxu0
        %v5793 = vadd.f32 0.0, %v5792
        %5794 = vmatmul.bf16.gmra.mxu0 %v5565
        %v5795 = vpop.f32.mrf.mxu0
        %v5796 = vadd.f32 0.0, %v5795
        %v5797 = vpop.f32.mrf.mxu0
        %5798 = vdwg.mxu0
        %v5800 = vsel %vm4542, %v5796, 0
        %5802 = vmatpush.msra.mxu0 0.0
        %5803 = vmatpush.msra.mxu0 0.0
        %5804 = vmatpush.msra.mxu0 0.0
        %5805 = vmatpush.msra.mxu0 0.0
        %5806 = vmatpush.msra.mxu0 0.0
        %5807 = vmatpush.msra.mxu0 0.0
        %5808 = vmatpush.msra.mxu0 0.0
        %5809 = vmatpush.msra.mxu0 0.0
        %5810 = vmatpush.msra.mxu0 0.0
        %5811 = vmatpush.msra.mxu0 %v5800
        %5812 = vmatpush.msra.mxu0 %v5793
        %5813 = vmatpush.msra.mxu0 %v5791
        %5814 = vmatpush.msra.mxu0 %v5788
        %5815 = vmatpush.msra.mxu0 %v5786
        %5816 = vmatpush.msra.mxu0 %v5783
        %5817 = vmatpush.msra.mxu0 %v5781
        %5818 = vmatmul.f32.gmra.mxu0 %v4700
        %v5819 = vpop.f32.mrf.mxu0
        %v5820 = vadd.f32 0.0, %v5819
        %5821 = vmatmul.f32.gmra.mxu0 %v4703
        %v5822 = vpop.f32.mrf.mxu0
        %v5823 = vadd.f32 0.0, %v5822
        %5824 = vmatmul.f32.gmra.mxu0 %v4706
        %v5825 = vpop.f32.mrf.mxu0
        %v5826 = vadd.f32 0.0, %v5825
        %5827 = vmatmul.f32.gmra.mxu0 %v4709
        %v5828 = vpop.f32.mrf.mxu0
        %v5829 = vadd.f32 0.0, %v5828
        %5830 = vmatmul.f32.gmra.mxu0 %v4712
        %v5831 = vpop.f32.mrf.mxu0
        %v5832 = vadd.f32 0.0, %v5831
        %5833 = vmatmul.f32.gmra.mxu0 %v4715
        %v5834 = vpop.f32.mrf.mxu0
        %v5835 = vadd.f32 0.0, %v5834
        %5836 = vmatmul.f32.gmra.mxu0 %v4718
        %v5837 = vpop.f32.mrf.mxu0
        %v5838 = vadd.f32 0.0, %v5837
        %5839 = vdwg.mxu0
        %v5840 = vadd.f32 %v5718, %v5820
        %v5841 = vadd.f32 %v5721, %v5823
        %v5842 = vadd.f32 %v5724, %v5826
        %v5843 = vadd.f32 %v5727, %v5829
        %v5844 = vadd.f32 %v5730, %v5832
        %v5845 = vadd.f32 %v5733, %v5835
        %v5846 = vadd.f32 %v5736, %v5838
        %s5847 = scalar_lea.vmem [#allocation12], 96
        %v5848 = vld [vmem:[%s5847] sm:$0xf]
        %v5849 = vld [vmem:[%s5847 + $0x4] sm:$0xf]
        %v5850 = vld [vmem:[%s5847 + $0x8] sm:$0xf]
        %v5851 = vld [vmem:[%s5847 + $0xc] sm:$0xf]
        %v5852 = vld [vmem:[%s5847 + $0x10] sm:$0xf]
        %v5853 = vld [vmem:[%s5847 + $0x14] sm:$0xf]
        %v5854 = vld [vmem:[%s5847 + $0x18] sm:$0xf]
        %v5855 = vld [vmem:[%s5847 + $0x1c] sm:$0xf]
        %v5864 = vunpack.c.l.b16 %v5848
        %v5865 = vunpack.c.l.b16 %v5849
        %v5866 = vunpack.c.l.b16 %v5850
        %v5867 = vunpack.c.l.b16 %v5851
        %v5868 = vunpack.c.l.b16 %v5852
        %v5869 = vunpack.c.l.b16 %v5853
        %v5870 = vunpack.c.l.b16 %v5854
        %v5871 = vunpack.c.l.b16 %v5855
        %v5872 = vpack.c.b16 %v5865, %v5864
        %v5873 = vpack.c.b16 %v5867, %v5866
        %v5874 = vpack.c.b16 %v5869, %v5868
        %v5875 = vpack.c.b16 %v5871, %v5870
        %5880 = vmatpush.bf16.msra.mxu0 0
        %5881 = vmatpush.bf16.msra.mxu0 0
        %5882 = vmatpush.bf16.msra.mxu0 0
        %5883 = vmatpush.bf16.msra.mxu0 0
        %5884 = vmatpush.bf16.msra.mxu0 %v5875
        %5885 = vmatpush.bf16.msra.mxu0 %v5874
        %5886 = vmatpush.bf16.msra.mxu0 %v5873
        %5887 = vmatpush.bf16.msra.mxu0 %v5872
        %5888 = vmatmul.bf16.gmra.mxu0 %v5556
        %v5889 = vpop.f32.mrf.mxu0
        %v5890 = vadd.f32 0.0, %v5889
        %v5891 = vpop.f32.mrf.mxu0
        %v5892 = vadd.f32 0.0, %v5891
        %5893 = vmatmul.bf16.gmra.mxu0 %v5559
        %v5894 = vpop.f32.mrf.mxu0
        %v5895 = vadd.f32 0.0, %v5894
        %v5896 = vpop.f32.mrf.mxu0
        %v5897 = vadd.f32 0.0, %v5896
        %5898 = vmatmul.bf16.gmra.mxu0 %v5562
        %v5899 = vpop.f32.mrf.mxu0
        %v5900 = vadd.f32 0.0, %v5899
        %v5901 = vpop.f32.mrf.mxu0
        %v5902 = vadd.f32 0.0, %v5901
        %5903 = vmatmul.bf16.gmra.mxu0 %v5565
        %v5904 = vpop.f32.mrf.mxu0
        %v5905 = vadd.f32 0.0, %v5904
        %v5906 = vpop.f32.mrf.mxu0
        %5907 = vdwg.mxu0
        %v5909 = vsel %vm4542, %v5905, 0
        %5911 = vmatpush.msra.mxu0 0.0
        %5912 = vmatpush.msra.mxu0 0.0
        %5913 = vmatpush.msra.mxu0 0.0
        %5914 = vmatpush.msra.mxu0 0.0
        %5915 = vmatpush.msra.mxu0 0.0
        %5916 = vmatpush.msra.mxu0 0.0
        %5917 = vmatpush.msra.mxu0 0.0
        %5918 = vmatpush.msra.mxu0 0.0
        %5919 = vmatpush.msra.mxu0 0.0
        %5920 = vmatpush.msra.mxu0 %v5909
        %5921 = vmatpush.msra.mxu0 %v5902
        %5922 = vmatpush.msra.mxu0 %v5900
        %5923 = vmatpush.msra.mxu0 %v5897
        %5924 = vmatpush.msra.mxu0 %v5895
        %5925 = vmatpush.msra.mxu0 %v5892
        %5926 = vmatpush.msra.mxu0 %v5890
        %5927 = vmatmul.f32.gmra.mxu0 %v4822
        %v5928 = vpop.f32.mrf.mxu0
        %v5929 = vadd.f32 0.0, %v5928
        %5930 = vmatmul.f32.gmra.mxu0 %v4825
        %v5931 = vpop.f32.mrf.mxu0
        %v5932 = vadd.f32 0.0, %v5931
        %5933 = vmatmul.f32.gmra.mxu0 %v4828
        %v5934 = vpop.f32.mrf.mxu0
        %v5935 = vadd.f32 0.0, %v5934
        %5936 = vmatmul.f32.gmra.mxu0 %v4831
        %v5937 = vpop.f32.mrf.mxu0
        %v5938 = vadd.f32 0.0, %v5937
        %5939 = vmatmul.f32.gmra.mxu0 %v4834
        %v5940 = vpop.f32.mrf.mxu0
        %v5941 = vadd.f32 0.0, %v5940
        %5942 = vmatmul.f32.gmra.mxu0 %v4837
        %v5943 = vpop.f32.mrf.mxu0
        %v5944 = vadd.f32 0.0, %v5943
        %5945 = vmatmul.f32.gmra.mxu0 %v4840
        %v5946 = vpop.f32.mrf.mxu0
        %v5947 = vadd.f32 0.0, %v5946
        %5948 = vdwg.mxu0
        %v5949 = vadd.f32 %v5840, %v5929
        %v5950 = vadd.f32 %v5841, %v5932
        %v5951 = vadd.f32 %v5842, %v5935
        %v5952 = vadd.f32 %v5843, %v5938
        %v5953 = vadd.f32 %v5844, %v5941
        %v5954 = vadd.f32 %v5845, %v5944
        %v5955 = vadd.f32 %v5846, %v5947
        %s5956 = scalar_lea.vmem [#allocation12], 128
        %v5957 = vld [vmem:[%s5956] sm:$0xf]
        %v5958 = vld [vmem:[%s5956 + $0x4] sm:$0xf]
        %v5959 = vld [vmem:[%s5956 + $0x8] sm:$0xf]
        %v5960 = vld [vmem:[%s5956 + $0xc] sm:$0xf]
        %v5961 = vld [vmem:[%s5956 + $0x10] sm:$0xf]
        %v5962 = vld [vmem:[%s5956 + $0x14] sm:$0xf]
        %v5963 = vld [vmem:[%s5956 + $0x18] sm:$0xf]
        %v5964 = vld [vmem:[%s5956 + $0x1c] sm:$0xf]
        %v5973 = vunpack.c.l.b16 %v5957
        %v5974 = vunpack.c.l.b16 %v5958
        %v5975 = vunpack.c.l.b16 %v5959
        %v5976 = vunpack.c.l.b16 %v5960
        %v5977 = vunpack.c.l.b16 %v5961
        %v5978 = vunpack.c.l.b16 %v5962
        %v5979 = vunpack.c.l.b16 %v5963
        %v5980 = vunpack.c.l.b16 %v5964
        %v5981 = vpack.c.b16 %v5974, %v5973
        %v5982 = vpack.c.b16 %v5976, %v5975
        %v5983 = vpack.c.b16 %v5978, %v5977
        %v5984 = vpack.c.b16 %v5980, %v5979
        %5989 = vmatpush.bf16.msra.mxu0 0
        %5990 = vmatpush.bf16.msra.mxu0 0
        %5991 = vmatpush.bf16.msra.mxu0 0
        %5992 = vmatpush.bf16.msra.mxu0 0
        %5993 = vmatpush.bf16.msra.mxu0 %v5984
        %5994 = vmatpush.bf16.msra.mxu0 %v5983
        %5995 = vmatpush.bf16.msra.mxu0 %v5982
        %5996 = vmatpush.bf16.msra.mxu0 %v5981
        %5997 = vmatmul.bf16.gmra.mxu0 %v5556
        %v5998 = vpop.f32.mrf.mxu0
        %v5999 = vadd.f32 0.0, %v5998
        %v6000 = vpop.f32.mrf.mxu0
        %v6001 = vadd.f32 0.0, %v6000
        %6002 = vmatmul.bf16.gmra.mxu0 %v5559
        %v6003 = vpop.f32.mrf.mxu0
        %v6004 = vadd.f32 0.0, %v6003
        %v6005 = vpop.f32.mrf.mxu0
        %v6006 = vadd.f32 0.0, %v6005
        %6007 = vmatmul.bf16.gmra.mxu0 %v5562
        %v6008 = vpop.f32.mrf.mxu0
        %v6009 = vadd.f32 0.0, %v6008
        %v6010 = vpop.f32.mrf.mxu0
        %v6011 = vadd.f32 0.0, %v6010
        %6012 = vmatmul.bf16.gmra.mxu0 %v5565
        %v6013 = vpop.f32.mrf.mxu0
        %v6014 = vadd.f32 0.0, %v6013
        %v6015 = vpop.f32.mrf.mxu0
        %6016 = vdwg.mxu0
        %v6018 = vsel %vm4542, %v6014, 0
        %6020 = vmatpush.msra.mxu0 0.0
        %6021 = vmatpush.msra.mxu0 0.0
        %6022 = vmatpush.msra.mxu0 0.0
        %6023 = vmatpush.msra.mxu0 0.0
        %6024 = vmatpush.msra.mxu0 0.0
        %6025 = vmatpush.msra.mxu0 0.0
        %6026 = vmatpush.msra.mxu0 0.0
        %6027 = vmatpush.msra.mxu0 0.0
        %6028 = vmatpush.msra.mxu0 0.0
        %6029 = vmatpush.msra.mxu0 %v6018
        %6030 = vmatpush.msra.mxu0 %v6011
        %6031 = vmatpush.msra.mxu0 %v6009
        %6032 = vmatpush.msra.mxu0 %v6006
        %6033 = vmatpush.msra.mxu0 %v6004
        %6034 = vmatpush.msra.mxu0 %v6001
        %6035 = vmatpush.msra.mxu0 %v5999
        %6036 = vmatmul.f32.gmra.mxu0 %v4944
        %v6037 = vpop.f32.mrf.mxu0
        %v6038 = vadd.f32 0.0, %v6037
        %6039 = vmatmul.f32.gmra.mxu0 %v4947
        %v6040 = vpop.f32.mrf.mxu0
        %v6041 = vadd.f32 0.0, %v6040
        %6042 = vmatmul.f32.gmra.mxu0 %v4950
        %v6043 = vpop.f32.mrf.mxu0
        %v6044 = vadd.f32 0.0, %v6043
        %6045 = vmatmul.f32.gmra.mxu0 %v4953
        %v6046 = vpop.f32.mrf.mxu0
        %v6047 = vadd.f32 0.0, %v6046
        %6048 = vmatmul.f32.gmra.mxu0 %v4956
        %v6049 = vpop.f32.mrf.mxu0
        %v6050 = vadd.f32 0.0, %v6049
        %6051 = vmatmul.f32.gmra.mxu0 %v4959
        %v6052 = vpop.f32.mrf.mxu0
        %v6053 = vadd.f32 0.0, %v6052
        %6054 = vmatmul.f32.gmra.mxu0 %v4962
        %v6055 = vpop.f32.mrf.mxu0
        %v6056 = vadd.f32 0.0, %v6055
        %6057 = vdwg.mxu0
        %v6058 = vadd.f32 %v5949, %v6038
        %v6059 = vadd.f32 %v5950, %v6041
        %v6060 = vadd.f32 %v5951, %v6044
        %v6061 = vadd.f32 %v5952, %v6047
        %v6062 = vadd.f32 %v5953, %v6050
        %v6063 = vadd.f32 %v5954, %v6053
        %v6064 = vadd.f32 %v5955, %v6056
        %s6065 = scalar_lea.vmem [#allocation12], 160
        %v6066 = vld [vmem:[%s6065] sm:$0xf]
        %v6067 = vld [vmem:[%s6065 + $0x4] sm:$0xf]
        %v6068 = vld [vmem:[%s6065 + $0x8] sm:$0xf]
        %v6069 = vld [vmem:[%s6065 + $0xc] sm:$0xf]
        %v6070 = vld [vmem:[%s6065 + $0x10] sm:$0xf]
        %v6071 = vld [vmem:[%s6065 + $0x14] sm:$0xf]
        %v6072 = vld [vmem:[%s6065 + $0x18] sm:$0xf]
        %v6073 = vld [vmem:[%s6065 + $0x1c] sm:$0xf]
        %v6082 = vunpack.c.l.b16 %v6066
        %v6083 = vunpack.c.l.b16 %v6067
        %v6084 = vunpack.c.l.b16 %v6068
        %v6085 = vunpack.c.l.b16 %v6069
        %v6086 = vunpack.c.l.b16 %v6070
        %v6087 = vunpack.c.l.b16 %v6071
        %v6088 = vunpack.c.l.b16 %v6072
        %v6089 = vunpack.c.l.b16 %v6073
        %v6090 = vpack.c.b16 %v6083, %v6082
        %v6091 = vpack.c.b16 %v6085, %v6084
        %v6092 = vpack.c.b16 %v6087, %v6086
        %v6093 = vpack.c.b16 %v6089, %v6088
        %6098 = vmatpush.bf16.msra.mxu0 0
        %6099 = vmatpush.bf16.msra.mxu0 0
        %6100 = vmatpush.bf16.msra.mxu0 0
        %6101 = vmatpush.bf16.msra.mxu0 0
        %6102 = vmatpush.bf16.msra.mxu0 %v6093
        %6103 = vmatpush.bf16.msra.mxu0 %v6092
        %6104 = vmatpush.bf16.msra.mxu0 %v6091
        %6105 = vmatpush.bf16.msra.mxu0 %v6090
        %6106 = vmatmul.bf16.gmra.mxu0 %v5556
        %v6107 = vpop.f32.mrf.mxu0
        %v6108 = vadd.f32 0.0, %v6107
        %v6109 = vpop.f32.mrf.mxu0
        %v6110 = vadd.f32 0.0, %v6109
        %6111 = vmatmul.bf16.gmra.mxu0 %v5559
        %v6112 = vpop.f32.mrf.mxu0
        %v6113 = vadd.f32 0.0, %v6112
        %v6114 = vpop.f32.mrf.mxu0
        %v6115 = vadd.f32 0.0, %v6114
        %6116 = vmatmul.bf16.gmra.mxu0 %v5562
        %v6117 = vpop.f32.mrf.mxu0
        %v6118 = vadd.f32 0.0, %v6117
        %v6119 = vpop.f32.mrf.mxu0
        %v6120 = vadd.f32 0.0, %v6119
        %6121 = vmatmul.bf16.gmra.mxu0 %v5565
        %v6122 = vpop.f32.mrf.mxu0
        %v6123 = vadd.f32 0.0, %v6122
        %v6124 = vpop.f32.mrf.mxu0
        %6125 = vdwg.mxu0
        %v6127 = vsel %vm4542, %v6123, 0
        %6129 = vmatpush.msra.mxu0 0.0
        %6130 = vmatpush.msra.mxu0 0.0
        %6131 = vmatpush.msra.mxu0 0.0
        %6132 = vmatpush.msra.mxu0 0.0
        %6133 = vmatpush.msra.mxu0 0.0
        %6134 = vmatpush.msra.mxu0 0.0
        %6135 = vmatpush.msra.mxu0 0.0
        %6136 = vmatpush.msra.mxu0 0.0
        %6137 = vmatpush.msra.mxu0 0.0
        %6138 = vmatpush.msra.mxu0 %v6127
        %6139 = vmatpush.msra.mxu0 %v6120
        %6140 = vmatpush.msra.mxu0 %v6118
        %6141 = vmatpush.msra.mxu0 %v6115
        %6142 = vmatpush.msra.mxu0 %v6113
        %6143 = vmatpush.msra.mxu0 %v6110
        %6144 = vmatpush.msra.mxu0 %v6108
        %6145 = vmatmul.f32.gmra.mxu0 %v5066
        %v6146 = vpop.f32.mrf.mxu0
        %v6147 = vadd.f32 0.0, %v6146
        %6148 = vmatmul.f32.gmra.mxu0 %v5069
        %v6149 = vpop.f32.mrf.mxu0
        %v6150 = vadd.f32 0.0, %v6149
        %6151 = vmatmul.f32.gmra.mxu0 %v5072
        %v6152 = vpop.f32.mrf.mxu0
        %v6153 = vadd.f32 0.0, %v6152
        %6154 = vmatmul.f32.gmra.mxu0 %v5075
        %v6155 = vpop.f32.mrf.mxu0
        %v6156 = vadd.f32 0.0, %v6155
        %6157 = vmatmul.f32.gmra.mxu0 %v5078
        %v6158 = vpop.f32.mrf.mxu0
        %v6159 = vadd.f32 0.0, %v6158
        %6160 = vmatmul.f32.gmra.mxu0 %v5081
        %v6161 = vpop.f32.mrf.mxu0
        %v6162 = vadd.f32 0.0, %v6161
        %6163 = vmatmul.f32.gmra.mxu0 %v5084
        %v6164 = vpop.f32.mrf.mxu0
        %v6165 = vadd.f32 0.0, %v6164
        %6166 = vdwg.mxu0
        %v6167 = vadd.f32 %v6058, %v6147
        %v6168 = vadd.f32 %v6059, %v6150
        %v6169 = vadd.f32 %v6060, %v6153
        %v6170 = vadd.f32 %v6061, %v6156
        %v6171 = vadd.f32 %v6062, %v6159
        %v6172 = vadd.f32 %v6063, %v6162
        %v6173 = vadd.f32 %v6064, %v6165
        %s6174 = scalar_lea.vmem [#allocation12], 192
        %v6175 = vld [vmem:[%s6174] sm:$0xf]
        %v6176 = vld [vmem:[%s6174 + $0x4] sm:$0xf]
        %v6177 = vld [vmem:[%s6174 + $0x8] sm:$0xf]
        %v6178 = vld [vmem:[%s6174 + $0xc] sm:$0xf]
        %v6179 = vld [vmem:[%s6174 + $0x10] sm:$0xf]
        %v6180 = vld [vmem:[%s6174 + $0x14] sm:$0xf]
        %v6181 = vld [vmem:[%s6174 + $0x18] sm:$0xf]
        %v6182 = vld [vmem:[%s6174 + $0x1c] sm:$0xf]
        %v6191 = vunpack.c.l.b16 %v6175
        %v6192 = vunpack.c.l.b16 %v6176
        %v6193 = vunpack.c.l.b16 %v6177
        %v6194 = vunpack.c.l.b16 %v6178
        %v6195 = vunpack.c.l.b16 %v6179
        %v6196 = vunpack.c.l.b16 %v6180
        %v6197 = vunpack.c.l.b16 %v6181
        %v6198 = vunpack.c.l.b16 %v6182
        %v6199 = vpack.c.b16 %v6192, %v6191
        %v6200 = vpack.c.b16 %v6194, %v6193
        %v6201 = vpack.c.b16 %v6196, %v6195
        %v6202 = vpack.c.b16 %v6198, %v6197
        %6207 = vmatpush.bf16.msra.mxu0 0
        %6208 = vmatpush.bf16.msra.mxu0 0
        %6209 = vmatpush.bf16.msra.mxu0 0
        %6210 = vmatpush.bf16.msra.mxu0 0
        %6211 = vmatpush.bf16.msra.mxu0 %v6202
        %6212 = vmatpush.bf16.msra.mxu0 %v6201
        %6213 = vmatpush.bf16.msra.mxu0 %v6200
        %6214 = vmatpush.bf16.msra.mxu0 %v6199
        %6215 = vmatmul.bf16.gmra.mxu0 %v5556
        %v6216 = vpop.f32.mrf.mxu0
        %v6217 = vadd.f32 0.0, %v6216
        %v6218 = vpop.f32.mrf.mxu0
        %v6219 = vadd.f32 0.0, %v6218
        %6220 = vmatmul.bf16.gmra.mxu0 %v5559
        %v6221 = vpop.f32.mrf.mxu0
        %v6222 = vadd.f32 0.0, %v6221
        %v6223 = vpop.f32.mrf.mxu0
        %v6224 = vadd.f32 0.0, %v6223
        %6225 = vmatmul.bf16.gmra.mxu0 %v5562
        %v6226 = vpop.f32.mrf.mxu0
        %v6227 = vadd.f32 0.0, %v6226
        %v6228 = vpop.f32.mrf.mxu0
        %v6229 = vadd.f32 0.0, %v6228
        %6230 = vmatmul.bf16.gmra.mxu0 %v5565
        %v6231 = vpop.f32.mrf.mxu0
        %v6232 = vadd.f32 0.0, %v6231
        %v6233 = vpop.f32.mrf.mxu0
        %6234 = vdwg.mxu0
        %v6236 = vsel %vm4542, %v6232, 0
        %6238 = vmatpush.msra.mxu0 0.0
        %6239 = vmatpush.msra.mxu0 0.0
        %6240 = vmatpush.msra.mxu0 0.0
        %6241 = vmatpush.msra.mxu0 0.0
        %6242 = vmatpush.msra.mxu0 0.0
        %6243 = vmatpush.msra.mxu0 0.0
        %6244 = vmatpush.msra.mxu0 0.0
        %6245 = vmatpush.msra.mxu0 0.0
        %6246 = vmatpush.msra.mxu0 0.0
        %6247 = vmatpush.msra.mxu0 %v6236
        %6248 = vmatpush.msra.mxu0 %v6229
        %6249 = vmatpush.msra.mxu0 %v6227
        %6250 = vmatpush.msra.mxu0 %v6224
        %6251 = vmatpush.msra.mxu0 %v6222
        %6252 = vmatpush.msra.mxu0 %v6219
        %6253 = vmatpush.msra.mxu0 %v6217
        %6254 = vmatmul.f32.gmra.mxu0 %v5188
        %v6255 = vpop.f32.mrf.mxu0
        %v6256 = vadd.f32 0.0, %v6255
        %6257 = vmatmul.f32.gmra.mxu0 %v5191
        %v6258 = vpop.f32.mrf.mxu0
        %v6259 = vadd.f32 0.0, %v6258
        %6260 = vmatmul.f32.gmra.mxu0 %v5194
        %v6261 = vpop.f32.mrf.mxu0
        %v6262 = vadd.f32 0.0, %v6261
        %6263 = vmatmul.f32.gmra.mxu0 %v5197
        %v6264 = vpop.f32.mrf.mxu0
        %v6265 = vadd.f32 0.0, %v6264
        %6266 = vmatmul.f32.gmra.mxu0 %v5200
        %v6267 = vpop.f32.mrf.mxu0
        %v6268 = vadd.f32 0.0, %v6267
        %6269 = vmatmul.f32.gmra.mxu0 %v5203
        %v6270 = vpop.f32.mrf.mxu0
        %v6271 = vadd.f32 0.0, %v6270
        %6272 = vmatmul.f32.gmra.mxu0 %v5206
        %v6273 = vpop.f32.mrf.mxu0
        %v6274 = vadd.f32 0.0, %v6273
        %6275 = vdwg.mxu0
        %v6276 = vadd.f32 %v6167, %v6256
        %v6277 = vadd.f32 %v6168, %v6259
        %v6278 = vadd.f32 %v6169, %v6262
        %v6279 = vadd.f32 %v6170, %v6265
        %v6280 = vadd.f32 %v6171, %v6268
        %v6281 = vadd.f32 %v6172, %v6271
        %v6282 = vadd.f32 %v6173, %v6274
        %s6283 = scalar_lea.vmem [#allocation12], 224
        %v6284 = vld [vmem:[%s6283] sm:$0xf]
        %v6285 = vld [vmem:[%s6283 + $0x4] sm:$0xf]
        %v6286 = vld [vmem:[%s6283 + $0x8] sm:$0xf]
        %v6287 = vld [vmem:[%s6283 + $0xc] sm:$0xf]
        %v6288 = vld [vmem:[%s6283 + $0x10] sm:$0xf]
        %v6289 = vld [vmem:[%s6283 + $0x14] sm:$0xf]
        %v6290 = vld [vmem:[%s6283 + $0x18] sm:$0xf]
        %v6291 = vld [vmem:[%s6283 + $0x1c] sm:$0xf]
        %v6300 = vunpack.c.l.b16 %v6284
        %v6301 = vunpack.c.l.b16 %v6285
        %v6302 = vunpack.c.l.b16 %v6286
        %v6303 = vunpack.c.l.b16 %v6287
        %v6304 = vunpack.c.l.b16 %v6288
        %v6305 = vunpack.c.l.b16 %v6289
        %v6306 = vunpack.c.l.b16 %v6290
        %v6307 = vunpack.c.l.b16 %v6291
        %v6308 = vpack.c.b16 %v6301, %v6300
        %v6309 = vpack.c.b16 %v6303, %v6302
        %v6310 = vpack.c.b16 %v6305, %v6304
        %v6311 = vpack.c.b16 %v6307, %v6306
        %6316 = vmatpush.bf16.msra.mxu0 0
        %6317 = vmatpush.bf16.msra.mxu0 0
        %6318 = vmatpush.bf16.msra.mxu0 0
        %6319 = vmatpush.bf16.msra.mxu0 0
        %6320 = vmatpush.bf16.msra.mxu0 %v6311
        %6321 = vmatpush.bf16.msra.mxu0 %v6310
        %6322 = vmatpush.bf16.msra.mxu0 %v6309
        %6323 = vmatpush.bf16.msra.mxu0 %v6308
        %6324 = vmatmul.bf16.gmra.mxu0 %v5556
        %v6325 = vpop.f32.mrf.mxu0
        %v6326 = vadd.f32 0.0, %v6325
        %v6327 = vpop.f32.mrf.mxu0
        %v6328 = vadd.f32 0.0, %v6327
        %6329 = vmatmul.bf16.gmra.mxu0 %v5559
        %v6330 = vpop.f32.mrf.mxu0
        %v6331 = vadd.f32 0.0, %v6330
        %v6332 = vpop.f32.mrf.mxu0
        %v6333 = vadd.f32 0.0, %v6332
        %6334 = vmatmul.bf16.gmra.mxu0 %v5562
        %v6335 = vpop.f32.mrf.mxu0
        %v6336 = vadd.f32 0.0, %v6335
        %v6337 = vpop.f32.mrf.mxu0
        %v6338 = vadd.f32 0.0, %v6337
        %6339 = vmatmul.bf16.gmra.mxu0 %v5565
        %v6340 = vpop.f32.mrf.mxu0
        %v6341 = vadd.f32 0.0, %v6340
        %v6342 = vpop.f32.mrf.mxu0
        %6343 = vdwg.mxu0
        %v6345 = vsel %vm4542, %v6341, 0
        %6347 = vmatpush.msra.mxu0 0.0
        %6348 = vmatpush.msra.mxu0 0.0
        %6349 = vmatpush.msra.mxu0 0.0
        %6350 = vmatpush.msra.mxu0 0.0
        %6351 = vmatpush.msra.mxu0 0.0
        %6352 = vmatpush.msra.mxu0 0.0
        %6353 = vmatpush.msra.mxu0 0.0
        %6354 = vmatpush.msra.mxu0 0.0
        %6355 = vmatpush.msra.mxu0 0.0
        %6356 = vmatpush.msra.mxu0 %v6345
        %6357 = vmatpush.msra.mxu0 %v6338
        %6358 = vmatpush.msra.mxu0 %v6336
        %6359 = vmatpush.msra.mxu0 %v6333
        %6360 = vmatpush.msra.mxu0 %v6331
        %6361 = vmatpush.msra.mxu0 %v6328
        %6362 = vmatpush.msra.mxu0 %v6326
        %6363 = vmatmul.f32.gmra.mxu0 %v5310
        %v6364 = vpop.f32.mrf.mxu0
        %v6365 = vadd.f32 0.0, %v6364
        %6366 = vmatmul.f32.gmra.mxu0 %v5313
        %v6367 = vpop.f32.mrf.mxu0
        %v6368 = vadd.f32 0.0, %v6367
        %6369 = vmatmul.f32.gmra.mxu0 %v5316
        %v6370 = vpop.f32.mrf.mxu0
        %v6371 = vadd.f32 0.0, %v6370
        %6372 = vmatmul.f32.gmra.mxu0 %v5319
        %v6373 = vpop.f32.mrf.mxu0
        %v6374 = vadd.f32 0.0, %v6373
        %6375 = vmatmul.f32.gmra.mxu0 %v5322
        %v6376 = vpop.f32.mrf.mxu0
        %v6377 = vadd.f32 0.0, %v6376
        %6378 = vmatmul.f32.gmra.mxu0 %v5325
        %v6379 = vpop.f32.mrf.mxu0
        %v6380 = vadd.f32 0.0, %v6379
        %6381 = vmatmul.f32.gmra.mxu0 %v5328
        %v6382 = vpop.f32.mrf.mxu0
        %v6383 = vadd.f32 0.0, %v6382
        %6384 = vdwg.mxu0
        %v6385 = vadd.f32 %v6276, %v6365
        %v6386 = vadd.f32 %v6277, %v6368
        %v6387 = vadd.f32 %v6278, %v6371
        %v6388 = vadd.f32 %v6279, %v6374
        %v6389 = vadd.f32 %v6280, %v6377
        %v6390 = vadd.f32 %v6281, %v6380
        %v6391 = vadd.f32 %v6282, %v6383
        %s6392 = scalar_lea.vmem [#allocation12], 256
        %v6393 = vld [vmem:[%s6392] sm:$0xf]
        %v6394 = vld [vmem:[%s6392 + $0x4] sm:$0xf]
        %v6395 = vld [vmem:[%s6392 + $0x8] sm:$0xf]
        %v6396 = vld [vmem:[%s6392 + $0xc] sm:$0xf]
        %v6397 = vld [vmem:[%s6392 + $0x10] sm:$0xf]
        %v6398 = vld [vmem:[%s6392 + $0x14] sm:$0xf]
        %v6399 = vld [vmem:[%s6392 + $0x18] sm:$0xf]
        %v6400 = vld [vmem:[%s6392 + $0x1c] sm:$0xf]
        %v6409 = vunpack.c.l.b16 %v6393
        %v6410 = vunpack.c.l.b16 %v6394
        %v6411 = vunpack.c.l.b16 %v6395
        %v6412 = vunpack.c.l.b16 %v6396
        %v6413 = vunpack.c.l.b16 %v6397
        %v6414 = vunpack.c.l.b16 %v6398
        %v6415 = vunpack.c.l.b16 %v6399
        %v6416 = vunpack.c.l.b16 %v6400
        %v6417 = vpack.c.b16 %v6410, %v6409
        %v6418 = vpack.c.b16 %v6412, %v6411
        %v6419 = vpack.c.b16 %v6414, %v6413
        %v6420 = vpack.c.b16 %v6416, %v6415
        %6425 = vmatpush.bf16.msra.mxu0 0
        %6426 = vmatpush.bf16.msra.mxu0 0
        %6427 = vmatpush.bf16.msra.mxu0 0
        %6428 = vmatpush.bf16.msra.mxu0 0
        %6429 = vmatpush.bf16.msra.mxu0 %v6420
        %6430 = vmatpush.bf16.msra.mxu0 %v6419
        %6431 = vmatpush.bf16.msra.mxu0 %v6418
        %6432 = vmatpush.bf16.msra.mxu0 %v6417
        %6433 = vmatmul.bf16.gmra.mxu0 %v5556
        %v6434 = vpop.f32.mrf.mxu0
        %v6435 = vadd.f32 0.0, %v6434
        %v6436 = vpop.f32.mrf.mxu0
        %v6437 = vadd.f32 0.0, %v6436
        %6438 = vmatmul.bf16.gmra.mxu0 %v5559
        %v6439 = vpop.f32.mrf.mxu0
        %v6440 = vadd.f32 0.0, %v6439
        %v6441 = vpop.f32.mrf.mxu0
        %v6442 = vadd.f32 0.0, %v6441
        %6443 = vmatmul.bf16.gmra.mxu0 %v5562
        %v6444 = vpop.f32.mrf.mxu0
        %v6445 = vadd.f32 0.0, %v6444
        %v6446 = vpop.f32.mrf.mxu0
        %v6447 = vadd.f32 0.0, %v6446
        %6448 = vmatmul.bf16.gmra.mxu0 %v5565
        %v6449 = vpop.f32.mrf.mxu0
        %v6450 = vadd.f32 0.0, %v6449
        %v6451 = vpop.f32.mrf.mxu0
        %6452 = vdwg.mxu0
        %v6454 = vsel %vm4542, %v6450, 0
        %6456 = vmatpush.msra.mxu0 0.0
        %6457 = vmatpush.msra.mxu0 0.0
        %6458 = vmatpush.msra.mxu0 0.0
        %6459 = vmatpush.msra.mxu0 0.0
        %6460 = vmatpush.msra.mxu0 0.0
        %6461 = vmatpush.msra.mxu0 0.0
        %6462 = vmatpush.msra.mxu0 0.0
        %6463 = vmatpush.msra.mxu0 0.0
        %6464 = vmatpush.msra.mxu0 0.0
        %6465 = vmatpush.msra.mxu0 %v6454
        %6466 = vmatpush.msra.mxu0 %v6447
        %6467 = vmatpush.msra.mxu0 %v6445
        %6468 = vmatpush.msra.mxu0 %v6442
        %6469 = vmatpush.msra.mxu0 %v6440
        %6470 = vmatpush.msra.mxu0 %v6437
        %6471 = vmatpush.msra.mxu0 %v6435
        %6472 = vmatmul.f32.gmra.mxu0 %v5432
        %v6473 = vpop.f32.mrf.mxu0
        %v6474 = vadd.f32 0.0, %v6473
        %6475 = vmatmul.f32.gmra.mxu0 %v5435
        %v6476 = vpop.f32.mrf.mxu0
        %v6477 = vadd.f32 0.0, %v6476
        %6478 = vmatmul.f32.gmra.mxu0 %v5438
        %v6479 = vpop.f32.mrf.mxu0
        %v6480 = vadd.f32 0.0, %v6479
        %6481 = vmatmul.f32.gmra.mxu0 %v5441
        %v6482 = vpop.f32.mrf.mxu0
        %v6483 = vadd.f32 0.0, %v6482
        %6484 = vmatmul.f32.gmra.mxu0 %v5444
        %v6485 = vpop.f32.mrf.mxu0
        %v6486 = vadd.f32 0.0, %v6485
        %6487 = vmatmul.f32.gmra.mxu0 %v5447
        %v6488 = vpop.f32.mrf.mxu0
        %v6489 = vadd.f32 0.0, %v6488
        %6490 = vmatmul.f32.gmra.mxu0 %v5450
        %v6491 = vpop.f32.mrf.mxu0
        %v6492 = vadd.f32 0.0, %v6491
        %6493 = vdwg.mxu0
        %v6494 = vadd.f32 %v6385, %v6474
        %v6495 = vadd.f32 %v6386, %v6477
        %v6496 = vadd.f32 %v6387, %v6480
        %v6497 = vadd.f32 %v6388, %v6483
        %v6498 = vadd.f32 %v6389, %v6486
        %v6499 = vadd.f32 %v6390, %v6489
        %v6500 = vadd.f32 %v6391, %v6492
        %v6501 = vld [vmem:[#allocation13] sm:$0x1]
        %v6503 = vperm.slane %v6501, 0
        %v6505 = vadd.f32 %v6494, %v6503
        %v6506 = vadd.f32 %v6495, %v6503
        %v6507 = vadd.f32 %v6496, %v6503
        %v6508 = vadd.f32 %v6497, %v6503
        %v6509 = vadd.f32 %v6498, %v6503
        %v6510 = vadd.f32 %v6499, %v6503
        %v6511 = vadd.f32 %v6500, %v6503
        %v6512 = vmax.f32 %v6505, 0.0
        %v6513 = vmax.f32 %v6506, 0.0
        %v6514 = vmax.f32 %v6507, 0.0
        %v6515 = vmax.f32 %v6508, 0.0
        %v6516 = vmax.f32 %v6509, 0.0
        %v6517 = vmax.f32 %v6510, 0.0
        %v6518 = vmax.f32 %v6511, 0.0
        %v6519 = vpack.c.bf16 %v6512, %v6512
        %v6520 = vpack.c.bf16 %v6513, %v6513
        %v6521 = vpack.c.bf16 %v6514, %v6514
        %v6522 = vpack.c.bf16 %v6515, %v6515
        %v6523 = vpack.c.bf16 %v6516, %v6516
        %v6524 = vpack.c.bf16 %v6517, %v6517
        %v6525 = vpack.c.bf16 %v6518, %v6518
        %6526 = vst [vmem:[%s486] sm:$0xf] %v6519
        %6527 = vst [vmem:[%s486 + $0x4] sm:$0xf] %v6520
        %6528 = vst [vmem:[%s486 + $0x8] sm:$0xf] %v6521
        %6529 = vst [vmem:[%s486 + $0xc] sm:$0xf] %v6522
        %6530 = vst [vmem:[%s486 + $0x10] sm:$0xf] %v6523
        %6531 = vst [vmem:[%s486 + $0x14] sm:$0xf] %v6524
        %vm6532 = vcmask 1040384
        %vm6533 = vsmask.f32 256
        %vm6534 = vmand %vm6532, %vm6533
        %v6535 = vld [vmem:[%s486 + $0x18] sm:$0x1]
        %v6536 = vsel %vm6534, %v6525, %v6535
        %6537 = vst [vmem:[%s486 + $0x18] sm:$0x1] %v6536
        %p6538 = scmp.lt.s32.totalorder %s26, 1
        %s6539 = scalar_select %p6538, %s26, 1
        %s6540 = smul.addr %s6539, 7
        %s6541 = smul.addr %s6540, 4
        %s6542 = scalar_lea.vmem %s10, %s6541
        // Predicated region
        $region93: #{cnn_classifier_forward.2} parent=59 // pred_check
          %p6543 = pneg %p259
        $region94: #{cnn_classifier_forward.2} parent=59 // pred_check_branch
          %6545 = sbr.rel (%p6543) target = $region96
        $region95: #{cnn_classifier_forward.2} parent=59 // pred_region
          _
        $region96: #{cnn_classifier_forward.2} parent=59 // pred_fallthru
          _
      $region60: #{cnn_classifier_forward.2} parent=5 // pred_fallthru
        _
      %p6546 = scmp.le.s32.totalorder 2, %s21
      // Predicated region
      $region97: #{cnn_classifier_forward.2} parent=5 // pred_check
        %p6547 = pneg %p6546
      $region98: #{cnn_classifier_forward.2} parent=5 // pred_check_branch
        %6549 = sbr.rel (%p6547) target = $region100
      $region99: #{cnn_classifier_forward.2} parent=5 // pred_region
        %s6550 = ssub.s32 %s21, 2
        // Predicated region
        $region101: #{cnn_classifier_forward.2} parent=99 // pred_check
          %p6551 = pneg %p265
        $region102: #{cnn_classifier_forward.2} parent=99 // pred_check_branch
          %6553 = sbr.rel (%p6551) target = $region104
        $region103: #{cnn_classifier_forward.2} parent=99 // pred_region
          %p6554 = scmp.lt.s32.totalorder %s27, 1
          %s6555 = scalar_select %p6554, %s27, 1
          %s6556 = smul.addr %s6555, 7
          %s6557 = smul.addr %s6556, 4
          %s6558 = scalar_lea.vmem %s10, %s6557
        $region104: #{cnn_classifier_forward.2} parent=99 // pred_fallthru
          _
      $region100: #{cnn_classifier_forward.2} parent=5 // pred_fallthru
        _
    $region6: #{cnn_classifier_forward.2} parent=1 // loop_footer
      %s25 = sadd.s32 1, %s21
    $region7: #{cnn_classifier_forward.2} parent=1 // loop_footer_branch
      %20 = sbr.rel target = $region3
    $region8: #{cnn_classifier_forward.2} parent=1 // loop_exit
      _
    %6559 = vsyncpa [#allocation3], 1
    %s6560 = scalar_lea.sflag [#allocation3], 1
    %6561 = vsyncpa %s6560, 1
    %6562 = vsyncpa [#allocation5], 1
    %6563 = vsyncpa [#allocation8], 1
    %6564 = vsyncpa [#allocation11], 1
    %6565 = vsyncpa [#allocation14], 1

</llo_original>
